<compile_context>
chip_gen: v7x
topology: tpu7x:2x2x1
jax: 0.10.0
libtpu: 0.0.40
codegen_flags: <defaults>
</compile_context>

<pallas_src>
import math

import jax
import jax.numpy as jnp
import numpy as np
from jax.experimental import pallas as pl
from jax.experimental.pallas import tpu as pltpu

T_EMB = 63
D_MODEL = 64
NHEAD = 4
HEAD_DIM = D_MODEL // NHEAD
NUM_LAYERS = 2          # num_encoder_layers (small, synthetic)
LN_EPS = 1e-5
MAX_LEN = 5000

assert NHEAD * HEAD_DIM == D_MODEL


def _round_up(x, m):
    return ((x + m - 1) // m) * m


def _layer_norm(x, gamma, beta):
    mu = jnp.mean(x, axis=-1, keepdims=True)
    var = jnp.mean((x - mu) ** 2, axis=-1, keepdims=True)
    return (x - mu) * jax.lax.rsqrt(var + LN_EPS) * gamma + beta


def txt_encoder_kernel(x_ref, const_ref, w_in_ref, wqkv_ref, qkv_bias_ref,
                       w64_ref, vec_ref, out_ref):
    # x_ref block: (B_TILE, L, 64) bf16, feature dim zero-padded 63 -> 64.
    B, L, _ = x_ref.shape
    BL = B * L

    x = x_ref[...].reshape(BL, D_MODEL)            # bf16 slab
    b_in = const_ref[0:1, :]                        # (1, 64) f32
    a_row = const_ref[1:2, :]                       # (1, 64) PReLU slope (broadcast)

    # fc_in (Linear 63->64, padded K; bf16 MXU operands, f32 accumulate) + PReLU.
    h = jnp.dot(x, w_in_ref[...], preferred_element_type=jnp.float32) + b_in
    h = jnp.where(h >= 0.0, h, h * a_row)           # f32 elementwise

    # num_encoder_layers is static -> unrolled Python loop over layer weights.
    for l in range(NUM_LAYERS):
        wqkv = wqkv_ref[l]                          # (64, 192) bf16 [Wq*scale|Wk|Wv]
        qkv_b = qkv_bias_ref[l]                     # (L, 192) f32, pos folded in Q/K
        wo = w64_ref[l, 0]                          # (64, 64) bf16
        w1 = w64_ref[l, 1]
        w2 = w64_ref[l, 2]
        bo = vec_ref[l, 0:1, :]                     # (1, 64) f32
        b1 = vec_ref[l, 1:2, :]
        b2 = vec_ref[l, 2:3, :]
        g1 = vec_ref[l, 3:4, :]
        be1 = vec_ref[l, 4:5, :]
        g2 = vec_ref[l, 5:6, :]
        be2 = vec_ref[l, 6:7, :]

        # ---- self-attention (post-norm, DETR-style: pos added to Q/K only) ----
        qkv = jnp.dot(h.astype(jnp.bfloat16), wqkv,
                      preferred_element_type=jnp.float32)               # (B*L, 192)
        qkv3 = qkv.reshape(B, L, 3 * D_MODEL) + qkv_b[None]             # + per-pos bias

        heads = []
        for hh in range(NHEAD):                     # exact 16-wide head contractions
            lo = hh * HEAD_DIM
            qh = qkv3[:, :, lo:lo + HEAD_DIM].astype(jnp.bfloat16)            # (B,L,16)
            kh = qkv3[:, :, D_MODEL + lo:D_MODEL + lo + HEAD_DIM].astype(jnp.bfloat16)
            vh = qkv3[:, :, 2 * D_MODEL + lo:2 * D_MODEL + lo + HEAD_DIM].astype(jnp.bfloat16)
            s = jnp.einsum('bld,bmd->blm', qh, kh,
                           preferred_element_type=jnp.float32)           # (B, L, L)
            s = s - jnp.max(s, axis=-1, keepdims=True)
            p = jnp.exp(s)
            p = p / jnp.sum(p, axis=-1, keepdims=True)                    # exact, f32
            heads.append(jnp.einsum('blm,bmd->bld', p.astype(jnp.bfloat16), vh,
                                    preferred_element_type=jnp.float32))  # (B, L, 16)
        attn = jnp.concatenate(heads, axis=-1).reshape(BL, D_MODEL)
        attn = jnp.dot(attn.astype(jnp.bfloat16), wo,
                       preferred_element_type=jnp.float32) + bo

        # dropout1 == identity at inference
        h = _layer_norm(h + attn, g1, be1)

        # ---- feed-forward (64 -> 64 -> 64, relu) ----
        ff = jnp.dot(h.astype(jnp.bfloat16), w1, preferred_element_type=jnp.float32) + b1
        ff = jnp.maximum(ff, 0.0)
        ff = jnp.dot(ff.astype(jnp.bfloat16), w2, preferred_element_type=jnp.float32) + b2

        # dropout2 == identity at inference
        h = _layer_norm(h + ff, g2, be2)

    # Emit seq-first (L, B_TILE, 64) directly.  Per-row static stores (L is small
    # and static) keep the lowering simple instead of a monolithic 3-D transpose.
    h3 = h.reshape(B, L, D_MODEL)
    for ll in range(L):
        out_ref[ll] = h3[:, ll, :]


def init_params(key, num_layers=NUM_LAYERS):
    keys = jax.random.split(key, 16)

    def dense(k, shape, scl=0.05):
        return (scl * jax.random.normal(k, shape)).astype(jnp.float32)

    params = {
        "w_in": dense(keys[0], (T_EMB, D_MODEL)),
        "b_in": dense(keys[1], (1, D_MODEL)),
        "prelu_a": jnp.full((1, 1), 0.25, jnp.float32),       # nn.PReLU default slope
        "wq": dense(keys[2], (num_layers, D_MODEL, D_MODEL)),
        "wk": dense(keys[3], (num_layers, D_MODEL, D_MODEL)),
        "wv": dense(keys[4], (num_layers, D_MODEL, D_MODEL)),
        "bq": dense(keys[5], (num_layers, 1, D_MODEL)),
        "bk": dense(keys[6], (num_layers, 1, D_MODEL)),
        "bv": dense(keys[7], (num_layers, 1, D_MODEL)),
        "wo": dense(keys[8], (num_layers, D_MODEL, D_MODEL)),
        "bo": dense(keys[9], (num_layers, 1, D_MODEL)),
        "w1": dense(keys[10], (num_layers, D_MODEL, D_MODEL)),
        "b1": dense(keys[11], (num_layers, 1, D_MODEL)),
        "w2": dense(keys[12], (num_layers, D_MODEL, D_MODEL)),
        "b2": dense(keys[13], (num_layers, 1, D_MODEL)),
        "g1": jnp.ones((num_layers, 1, D_MODEL), jnp.float32),
        "be1": jnp.zeros((num_layers, 1, D_MODEL), jnp.float32),
        "g2": jnp.ones((num_layers, 1, D_MODEL), jnp.float32),
        "be2": jnp.zeros((num_layers, 1, D_MODEL), jnp.float32),
    }

    # Sinusoidal positional encoding (PositionalEncoding, dropout == identity).
    position = jnp.arange(MAX_LEN, dtype=jnp.float32)[:, None]
    div_term = jnp.exp(jnp.arange(0, D_MODEL, 2, dtype=jnp.float32)
                       * (-math.log(10000.0) / D_MODEL))
    pe = jnp.zeros((MAX_LEN, D_MODEL), jnp.float32)
    pe = pe.at[:, 0::2].set(jnp.sin(position * div_term))
    pe = pe.at[:, 1::2].set(jnp.cos(position * div_term))
    params["pos_table"] = pe
    return params


def _pack_params(params, L):
    """Pack the raw arrays into lane-aligned slabs for the kernel.

    * fc_in weight zero-padded 63->64, cast to bf16.
    * Wq pre-scaled by 1/sqrt(HEAD_DIM); [Wq|Wk|Wv] fused into one (64,192) bf16 slab.
    * Per-layer (L,192) f32 bias that already contains pos@Wq (scaled), pos@Wk and
      the Q/K/V biases, so the kernel never adds pos to the activations.
    """
    nl = params["wq"].shape[0]
    scale = 1.0 / math.sqrt(HEAD_DIM)

    w_in_pad = jnp.pad(params["w_in"], ((0, D_MODEL - T_EMB), (0, 0))
                       ).astype(jnp.bfloat16)                            # (64,64)

    wqkv = jnp.concatenate([params["wq"] * scale, params["wk"], params["wv"]],
                           axis=-1).astype(jnp.bfloat16)                 # (nl,64,192)

    pos = params["pos_table"][:L]                                        # (L,64) f32
    q_bias = (jnp.einsum('ld,ndk->nlk', pos, params["wq"]) + params["bq"]) * scale
    k_bias = jnp.einsum('ld,ndk->nlk', pos, params["wk"]) + params["bk"]
    v_bias = jnp.broadcast_to(params["bv"], (nl, L, D_MODEL))
    qkv_bias = jnp.concatenate([q_bias, k_bias, v_bias],
                               axis=-1).astype(jnp.float32)              # (nl,L,192)

    w64 = jnp.stack([params["wo"], params["w1"], params["w2"]],
                    axis=1).astype(jnp.bfloat16)                         # (nl,3,64,64)

    vecs = jnp.concatenate(
        [params[k] for k in ["bo", "b1", "b2", "g1", "be1", "g2", "be2"]],
        axis=1).astype(jnp.float32)                                      # (nl,7,64)

    const = jnp.concatenate(
        [params["b_in"],
         jnp.full((1, D_MODEL), params["prelu_a"][0, 0], jnp.float32)],
        axis=0)                                                          # (2,64)

    return const, w_in_pad, wqkv, qkv_bias, w64, vecs


def _choose_b_tile(n, l, requested, vmem_budget_bytes=20 * 1024 * 1024):
    """Pick the batch tile: as large as the VMEM budget allows (rough estimate of the
    per-batch-row working set), a multiple of 8, and small enough that the grid has
    >= 2 steps when the batch allows it (pipelining + megacore sharding)."""
    per_row = l * (2 * D_MODEL * 2          # double-buffered bf16 input block
                   + 2 * D_MODEL * 4        # double-buffered f32 output block
                   + 3 * D_MODEL * 4 * 2    # qkv slab + biased copy (f32)
                   + 4 * D_MODEL * 4        # h / attn / ff / residual temps (f32)
                   + NHEAD * l * 4)         # per-head (L,L) score tiles (f32)
    cap = max(8, (vmem_budget_bytes // max(per_row, 1)) // 8 * 8)
    n8 = _round_up(max(n, 1), 8)
    bt = min(requested, cap, n8)
    if n8 >= 16:                            # keep the grid >= 2 steps if possible
        bt = min(bt, _round_up(-(-n8 // 2), 8))
    return max(8, (bt // 8) * 8)


def txt_encoder_gt_forward(text_emb, params, b_tile=128):
    """text_emb: (N, T_EMB, 1, L) float32 (PyTorch NCHW).  Returns (L, N, D_MODEL)."""
    N, _, _, L = text_emb.shape

    # permute(0,3,1,2).squeeze(-1) -> (N, L, 63); pad features 63->64; bf16 operands.
    x = jnp.pad(jnp.squeeze(jnp.transpose(text_emb, (0, 3, 1, 2)), axis=-1),
                ((0, 0), (0, 0), (0, D_MODEL - T_EMB)))

    bt = _choose_b_tile(N, L, b_tile)
    n_padded = _round_up(N, bt)
    if n_padded != N:
        x = jnp.pad(x, ((0, n_padded - N), (0, 0), (0, 0)))
    x = x.astype(jnp.bfloat16)

    const, w_in_pad, wqkv, qkv_bias, w64, vecs = _pack_params(params, L)

    def full_spec(arr):
        return pl.BlockSpec(arr.shape, lambda n, _nd=arr.ndim: (0,) * _nd)

    out = pl.pallas_call(
        txt_encoder_kernel,
        out_shape=jax.ShapeDtypeStruct((L, n_padded, D_MODEL), jnp.float32),
        grid_spec=pltpu.PrefetchScalarGridSpec(
            num_scalar_prefetch=0,
            grid=(n_padded // bt,),
            in_specs=[pl.BlockSpec((bt, L, D_MODEL), lambda n: (n, 0, 0)),
                      full_spec(const), full_spec(w_in_pad), full_spec(wqkv),
                      full_spec(qkv_bias), full_spec(w64), full_spec(vecs)],
            out_specs=pl.BlockSpec((L, bt, D_MODEL), lambda n: (0, n, 0)),
        ),
        compiler_params=pltpu.CompilerParams(
            dimension_semantics=("parallel",),
            # Explicit scoped-VMEM limit: fits v7x's 64 MiB physical VMEM and raises
            # the smaller default scoped limits on v5e/v6e for the larger batch tile.
            vmem_limit_bytes=48 * 1024 * 1024,
        ),
    )(x, const, w_in_pad, wqkv, qkv_bias, w64, vecs)

    # Padded batch rows are computed and discarded (harmless, attention is per-batch).
    return out[:, :N, :]


def reference_forward(text_emb, params):
    """Pure-JAX f32 reference of the same math (for correctness check)."""
    x = jnp.squeeze(jnp.transpose(text_emb, (0, 3, 1, 2)), axis=-1)
    h = x @ params["w_in"] + params["b_in"]
    a = params["prelu_a"][0, 0]
    h = jnp.where(h >= 0.0, h, a * h)
    N, L, D = h.shape
    pos = params["pos_table"][:L][None]
    scale = 1.0 / math.sqrt(HEAD_DIM)
    for l in range(NUM_LAYERS):
        qk_in = h + pos
        q = qk_in @ params["wq"][l] + params["bq"][l]
        k = qk_in @ params["wk"][l] + params["bk"][l]
        v = h @ params["wv"][l] + params["bv"][l]
        qh = (q * scale).reshape(N, L, NHEAD, HEAD_DIM)
        kh = k.reshape(N, L, NHEAD, HEAD_DIM)
        vh = v.reshape(N, L, NHEAD, HEAD_DIM)
        s = jnp.einsum("nqhd,nkhd->nhqk", qh, kh)
        p = jax.nn.softmax(s, axis=-1)
        attn = jnp.einsum("nhqk,nkhd->nqhd", p, vh).reshape(N, L, D)
        attn = attn @ params["wo"][l] + params["bo"][l]
        h = _layer_norm(h + attn, params["g1"][l], params["be1"][l])
        ff = jax.nn.relu(h @ params["w1"][l] + params["b1"][l])
        ff = ff @ params["w2"][l] + params["b2"][l]
        h = _layer_norm(h + ff, params["g2"][l], params["be2"][l])
    return jnp.transpose(h, (1, 0, 2))


if __name__ == "__main__":
    key = jax.random.PRNGKey(0)
    k_in, k_p = jax.random.split(key)

    N, L = 2, 16                                    # small synthetic shapes
    text_emb = jax.random.normal(k_in, (N, T_EMB, 1, L), dtype=jnp.float32)
    params = init_params(k_p)

    out = txt_encoder_gt_forward(text_emb, params)
    out = jax.block_until_ready(out)

    assert out.shape == (L, N, D_MODEL), out.shape
    ref = reference_forward(text_emb, params)
    # Tolerance sized for bf16 MXU operands with f32 accumulation (elementwise math,
    # softmax normalization and LayerNorm are exact f32).
    np.testing.assert_allclose(np.asarray(out), np.asarray(ref), atol=3e-2, rtol=3e-2)

    print("KERNEL_OK")
</pallas_src>

<mosaic_0001>
module attributes {stable_mosaic.version = 11 : i64} {
  func.func @txt_encoder_kernel(%arg0: i32, %arg1: memref<8x16x64xbf16, #tpu.memory_space<vmem>>, %arg2: memref<2x64xf32, #tpu.memory_space<vmem>>, %arg3: memref<64x64xbf16, #tpu.memory_space<vmem>>, %arg4: memref<2x64x192xbf16, #tpu.memory_space<vmem>>, %arg5: memref<2x16x192xf32, #tpu.memory_space<vmem>>, %arg6: memref<2x3x64x64xbf16, #tpu.memory_space<vmem>>, %arg7: memref<2x7x64xf32, #tpu.memory_space<vmem>>, %arg8: memref<16x8x64xf32, #tpu.memory_space<vmem>>) attributes {dimension_semantics = [#tpu.dimension_semantics<parallel>], iteration_bounds = array<i64: 1>, scalar_prefetch = 0 : i64, scratch_operands = 0 : i64, tpu.core_type = #tpu.core_type<tc>, window_params = [{transform_indices = @transform_0, window_bounds = array<i64: 8, 16, 64>}, {pipeline_mode = #tpu.pipeline_mode<synchronous>, transform_indices = @transform_1, window_bounds = array<i64: 2, 64>}, {pipeline_mode = #tpu.pipeline_mode<synchronous>, transform_indices = @transform_2, window_bounds = array<i64: 64, 64>}, {pipeline_mode = #tpu.pipeline_mode<synchronous>, transform_indices = @transform_3, window_bounds = array<i64: 2, 64, 192>}, {pipeline_mode = #tpu.pipeline_mode<synchronous>, transform_indices = @transform_4, window_bounds = array<i64: 2, 16, 192>}, {pipeline_mode = #tpu.pipeline_mode<synchronous>, transform_indices = @transform_5, window_bounds = array<i64: 2, 3, 64, 64>}, {pipeline_mode = #tpu.pipeline_mode<synchronous>, transform_indices = @transform_6, window_bounds = array<i64: 2, 7, 64>}, {transform_indices = @transform_7, window_bounds = array<i64: 16, 8, 64>}]} {
    %c0 = arith.constant 0 : index
    %c0_0 = arith.constant 0 : index
    %c0_1 = arith.constant 0 : index
    %0 = vector.load %arg1[%c0, %c0_0, %c0_1] : memref<8x16x64xbf16, #tpu.memory_space<vmem>>, vector<8x16x64xbf16>
    %1 = vector.shape_cast %0 : vector<8x16x64xbf16> to vector<128x64xbf16>
    %c0_2 = arith.constant 0 : index
    %c0_3 = arith.constant 0 : index
    %2 = vector.load %arg2[%c0_2, %c0_3] : memref<2x64xf32, #tpu.memory_space<vmem>>, vector<1x64xf32>
    %c1 = arith.constant 1 : index
    %c0_4 = arith.constant 0 : index
    %3 = vector.load %arg2[%c1, %c0_4] : memref<2x64xf32, #tpu.memory_space<vmem>>, vector<1x64xf32>
    %c0_5 = arith.constant 0 : index
    %c0_6 = arith.constant 0 : index
    %4 = vector.load %arg3[%c0_5, %c0_6] : memref<64x64xbf16, #tpu.memory_space<vmem>>, vector<64x64xbf16>
    %cst = arith.constant dense<0.000000e+00> : vector<128x64xf32>
    %5 = tpu.matmul %1, %4, %cst {dimension_numbers = #tpu.dot_dimension_numbers<[1], [0], [0], [1], [0, 0, 1, 1], [], []>} : vector<128x64xbf16>, vector<64x64xbf16>, vector<128x64xf32> -> vector<128x64xf32>
    %6 = vector.broadcast %2 : vector<1x64xf32> to vector<128x64xf32>
    %7 = arith.addf %5, %6 : vector<128x64xf32>
    %cst_7 = arith.constant 0.000000e+00 : f32
    %8 = vector.broadcast %cst_7 : f32 to vector<128x64xf32>
    %9 = arith.cmpf oge, %7, %8 : vector<128x64xf32>
    %10 = vector.broadcast %3 : vector<1x64xf32> to vector<128x64xf32>
    %11 = arith.mulf %7, %10 : vector<128x64xf32>
    %12 = arith.select %9, %7, %11 : vector<128x64xi1>, vector<128x64xf32>
    %c0_8 = arith.constant 0 : index
    %c0_9 = arith.constant 0 : index
    %c0_10 = arith.constant 0 : index
    %13 = vector.load %arg4[%c0_8, %c0_9, %c0_10] : memref<2x64x192xbf16, #tpu.memory_space<vmem>>, vector<1x64x192xbf16>
    %14 = vector.shape_cast %13 : vector<1x64x192xbf16> to vector<64x192xbf16>
    %c0_11 = arith.constant 0 : index
    %c0_12 = arith.constant 0 : index
    %c0_13 = arith.constant 0 : index
    %15 = vector.load %arg5[%c0_11, %c0_12, %c0_13] : memref<2x16x192xf32, #tpu.memory_space<vmem>>, vector<1x16x192xf32>
    %16 = vector.shape_cast %15 : vector<1x16x192xf32> to vector<16x192xf32>
    %c0_14 = arith.constant 0 : index
    %c0_15 = arith.constant 0 : index
    %c0_16 = arith.constant 0 : index
    %c0_17 = arith.constant 0 : index
    %17 = vector.load %arg6[%c0_14, %c0_15, %c0_16, %c0_17] : memref<2x3x64x64xbf16, #tpu.memory_space<vmem>>, vector<1x1x64x64xbf16>
    %18 = vector.shape_cast %17 : vector<1x1x64x64xbf16> to vector<64x64xbf16>
    %c0_18 = arith.constant 0 : index
    %c1_19 = arith.constant 1 : index
    %c0_20 = arith.constant 0 : index
    %c0_21 = arith.constant 0 : index
    %19 = vector.load %arg6[%c0_18, %c1_19, %c0_20, %c0_21] : memref<2x3x64x64xbf16, #tpu.memory_space<vmem>>, vector<1x1x64x64xbf16>
    %20 = vector.shape_cast %19 : vector<1x1x64x64xbf16> to vector<64x64xbf16>
    %c0_22 = arith.constant 0 : index
    %c2 = arith.constant 2 : index
    %c0_23 = arith.constant 0 : index
    %c0_24 = arith.constant 0 : index
    %21 = vector.load %arg6[%c0_22, %c2, %c0_23, %c0_24] : memref<2x3x64x64xbf16, #tpu.memory_space<vmem>>, vector<1x1x64x64xbf16>
    %22 = vector.shape_cast %21 : vector<1x1x64x64xbf16> to vector<64x64xbf16>
    %c0_25 = arith.constant 0 : index
    %c0_26 = arith.constant 0 : index
    %c0_27 = arith.constant 0 : index
    %23 = vector.load %arg7[%c0_25, %c0_26, %c0_27] : memref<2x7x64xf32, #tpu.memory_space<vmem>>, vector<1x1x64xf32>
    %24 = vector.shape_cast %23 : vector<1x1x64xf32> to vector<1x64xf32>
    %c0_28 = arith.constant 0 : index
    %c1_29 = arith.constant 1 : index
    %c0_30 = arith.constant 0 : index
    %25 = vector.load %arg7[%c0_28, %c1_29, %c0_30] : memref<2x7x64xf32, #tpu.memory_space<vmem>>, vector<1x1x64xf32>
    %26 = vector.shape_cast %25 : vector<1x1x64xf32> to vector<1x64xf32>
    %c0_31 = arith.constant 0 : index
    %c2_32 = arith.constant 2 : index
    %c0_33 = arith.constant 0 : index
    %27 = vector.load %arg7[%c0_31, %c2_32, %c0_33] : memref<2x7x64xf32, #tpu.memory_space<vmem>>, vector<1x1x64xf32>
    %28 = vector.shape_cast %27 : vector<1x1x64xf32> to vector<1x64xf32>
    %c0_34 = arith.constant 0 : index
    %c3 = arith.constant 3 : index
    %c0_35 = arith.constant 0 : index
    %29 = vector.load %arg7[%c0_34, %c3, %c0_35] : memref<2x7x64xf32, #tpu.memory_space<vmem>>, vector<1x1x64xf32>
    %30 = vector.shape_cast %29 : vector<1x1x64xf32> to vector<1x64xf32>
    %c0_36 = arith.constant 0 : index
    %c4 = arith.constant 4 : index
    %c0_37 = arith.constant 0 : index
    %31 = vector.load %arg7[%c0_36, %c4, %c0_37] : memref<2x7x64xf32, #tpu.memory_space<vmem>>, vector<1x1x64xf32>
    %32 = vector.shape_cast %31 : vector<1x1x64xf32> to vector<1x64xf32>
    %c0_38 = arith.constant 0 : index
    %c5 = arith.constant 5 : index
    %c0_39 = arith.constant 0 : index
    %33 = vector.load %arg7[%c0_38, %c5, %c0_39] : memref<2x7x64xf32, #tpu.memory_space<vmem>>, vector<1x1x64xf32>
    %34 = vector.shape_cast %33 : vector<1x1x64xf32> to vector<1x64xf32>
    %c0_40 = arith.constant 0 : index
    %c6 = arith.constant 6 : index
    %c0_41 = arith.constant 0 : index
    %35 = vector.load %arg7[%c0_40, %c6, %c0_41] : memref<2x7x64xf32, #tpu.memory_space<vmem>>, vector<1x1x64xf32>
    %36 = vector.shape_cast %35 : vector<1x1x64xf32> to vector<1x64xf32>
    %37 = arith.truncf %12 : vector<128x64xf32> to vector<128x64xbf16>
    %cst_42 = arith.constant dense<0.000000e+00> : vector<128x192xf32>
    %38 = tpu.matmul %37, %14, %cst_42 {dimension_numbers = #tpu.dot_dimension_numbers<[1], [0], [0], [1], [0, 0, 1, 1], [], []>} : vector<128x64xbf16>, vector<64x192xbf16>, vector<128x192xf32> -> vector<128x192xf32>
    %39 = vector.shape_cast %38 : vector<128x192xf32> to vector<8x16x192xf32>
    %40 = vector.shape_cast %16 : vector<16x192xf32> to vector<1x16x192xf32>
    %41 = vector.broadcast %40 : vector<1x16x192xf32> to vector<8x16x192xf32>
    %42 = arith.addf %39, %41 : vector<8x16x192xf32>
    %43 = vector.extract_strided_slice %42 {offsets = [0, 0, 0], sizes = [8, 16, 16], strides = [1, 1, 1]} : vector<8x16x192xf32> to vector<8x16x16xf32>
    %44 = arith.truncf %43 : vector<8x16x16xf32> to vector<8x16x16xbf16>
    %45 = vector.extract_strided_slice %42 {offsets = [0, 0, 64], sizes = [8, 16, 16], strides = [1, 1, 1]} : vector<8x16x192xf32> to vector<8x16x16xf32>
    %46 = arith.truncf %45 : vector<8x16x16xf32> to vector<8x16x16xbf16>
    %47 = vector.extract_strided_slice %42 {offsets = [0, 0, 128], sizes = [8, 16, 16], strides = [1, 1, 1]} : vector<8x16x192xf32> to vector<8x16x16xf32>
    %48 = arith.truncf %47 : vector<8x16x16xf32> to vector<8x16x16xbf16>
    "tpu.trace_start"() <{level = 10 : i32, message = "bld,bmd->blm"}> : () -> ()
    %cst_43 = arith.constant dense<0.000000e+00> : vector<8x16x16xf32>
    %49 = tpu.matmul %44, %46, %cst_43 {dimension_numbers = #tpu.dot_dimension_numbers<[2], [2], [1], [1], [0, 0, 0, 1, 1, 1], [0], [0]>} : vector<8x16x16xbf16>, vector<8x16x16xbf16>, vector<8x16x16xf32> -> vector<8x16x16xf32>
    "tpu.trace_stop"() : () -> ()
    %cst_44 = arith.constant dense<0xFF800000> : vector<8x16xf32>
    %50 = vector.multi_reduction <maximumf>, %49, %cst_44 [2] : vector<8x16x16xf32> to vector<8x16xf32>
    %51 = vector.shape_cast %50 : vector<8x16xf32> to vector<8x16x1xf32>
    %52 = vector.broadcast %51 : vector<8x16x1xf32> to vector<8x16x16xf32>
    %53 = arith.subf %49, %52 : vector<8x16x16xf32>
    %54 = math.exp %53 : vector<8x16x16xf32>
    %cst_45 = arith.constant dense<0.000000e+00> : vector<8x16xf32>
    %55 = vector.multi_reduction <add>, %54, %cst_45 [2] : vector<8x16x16xf32> to vector<8x16xf32>
    %56 = vector.shape_cast %55 : vector<8x16xf32> to vector<8x16x1xf32>
    %57 = vector.broadcast %56 : vector<8x16x1xf32> to vector<8x16x16xf32>
    %58 = arith.divf %54, %57 : vector<8x16x16xf32>
    %59 = arith.truncf %58 : vector<8x16x16xf32> to vector<8x16x16xbf16>
    "tpu.trace_start"() <{level = 10 : i32, message = "blm,bmd->bld"}> : () -> ()
    %cst_46 = arith.constant dense<0.000000e+00> : vector<8x16x16xf32>
    %60 = tpu.matmul %59, %48, %cst_46 {dimension_numbers = #tpu.dot_dimension_numbers<[2], [1], [1], [2], [0, 0, 0, 1, 1, 2], [0], [0]>} : vector<8x16x16xbf16>, vector<8x16x16xbf16>, vector<8x16x16xf32> -> vector<8x16x16xf32>
    "tpu.trace_stop"() : () -> ()
    %61 = vector.extract_strided_slice %42 {offsets = [0, 0, 16], sizes = [8, 16, 16], strides = [1, 1, 1]} : vector<8x16x192xf32> to vector<8x16x16xf32>
    %62 = arith.truncf %61 : vector<8x16x16xf32> to vector<8x16x16xbf16>
    %63 = vector.extract_strided_slice %42 {offsets = [0, 0, 80], sizes = [8, 16, 16], strides = [1, 1, 1]} : vector<8x16x192xf32> to vector<8x16x16xf32>
    %64 = arith.truncf %63 : vector<8x16x16xf32> to vector<8x16x16xbf16>
    %65 = vector.extract_strided_slice %42 {offsets = [0, 0, 144], sizes = [8, 16, 16], strides = [1, 1, 1]} : vector<8x16x192xf32> to vector<8x16x16xf32>
    %66 = arith.truncf %65 : vector<8x16x16xf32> to vector<8x16x16xbf16>
    "tpu.trace_start"() <{level = 10 : i32, message = "bld,bmd->blm"}> : () -> ()
    %cst_47 = arith.constant dense<0.000000e+00> : vector<8x16x16xf32>
    %67 = tpu.matmul %62, %64, %cst_47 {dimension_numbers = #tpu.dot_dimension_numbers<[2], [2], [1], [1], [0, 0, 0, 1, 1, 1], [0], [0]>} : vector<8x16x16xbf16>, vector<8x16x16xbf16>, vector<8x16x16xf32> -> vector<8x16x16xf32>
    "tpu.trace_stop"() : () -> ()
    %cst_48 = arith.constant dense<0xFF800000> : vector<8x16xf32>
    %68 = vector.multi_reduction <maximumf>, %67, %cst_48 [2] : vector<8x16x16xf32> to vector<8x16xf32>
    %69 = vector.shape_cast %68 : vector<8x16xf32> to vector<8x16x1xf32>
    %70 = vector.broadcast %69 : vector<8x16x1xf32> to vector<8x16x16xf32>
    %71 = arith.subf %67, %70 : vector<8x16x16xf32>
    %72 = math.exp %71 : vector<8x16x16xf32>
    %cst_49 = arith.constant dense<0.000000e+00> : vector<8x16xf32>
    %73 = vector.multi_reduction <add>, %72, %cst_49 [2] : vector<8x16x16xf32> to vector<8x16xf32>
    %74 = vector.shape_cast %73 : vector<8x16xf32> to vector<8x16x1xf32>
    %75 = vector.broadcast %74 : vector<8x16x1xf32> to vector<8x16x16xf32>
    %76 = arith.divf %72, %75 : vector<8x16x16xf32>
    %77 = arith.truncf %76 : vector<8x16x16xf32> to vector<8x16x16xbf16>
    "tpu.trace_start"() <{level = 10 : i32, message = "blm,bmd->bld"}> : () -> ()
    %cst_50 = arith.constant dense<0.000000e+00> : vector<8x16x16xf32>
    %78 = tpu.matmul %77, %66, %cst_50 {dimension_numbers = #tpu.dot_dimension_numbers<[2], [1], [1], [2], [0, 0, 0, 1, 1, 2], [0], [0]>} : vector<8x16x16xbf16>, vector<8x16x16xbf16>, vector<8x16x16xf32> -> vector<8x16x16xf32>
    "tpu.trace_stop"() : () -> ()
    %79 = vector.extract_strided_slice %42 {offsets = [0, 0, 32], sizes = [8, 16, 16], strides = [1, 1, 1]} : vector<8x16x192xf32> to vector<8x16x16xf32>
    %80 = arith.truncf %79 : vector<8x16x16xf32> to vector<8x16x16xbf16>
    %81 = vector.extract_strided_slice %42 {offsets = [0, 0, 96], sizes = [8, 16, 16], strides = [1, 1, 1]} : vector<8x16x192xf32> to vector<8x16x16xf32>
    %82 = arith.truncf %81 : vector<8x16x16xf32> to vector<8x16x16xbf16>
    %83 = vector.extract_strided_slice %42 {offsets = [0, 0, 160], sizes = [8, 16, 16], strides = [1, 1, 1]} : vector<8x16x192xf32> to vector<8x16x16xf32>
    %84 = arith.truncf %83 : vector<8x16x16xf32> to vector<8x16x16xbf16>
    "tpu.trace_start"() <{level = 10 : i32, message = "bld,bmd->blm"}> : () -> ()
    %cst_51 = arith.constant dense<0.000000e+00> : vector<8x16x16xf32>
    %85 = tpu.matmul %80, %82, %cst_51 {dimension_numbers = #tpu.dot_dimension_numbers<[2], [2], [1], [1], [0, 0, 0, 1, 1, 1], [0], [0]>} : vector<8x16x16xbf16>, vector<8x16x16xbf16>, vector<8x16x16xf32> -> vector<8x16x16xf32>
    "tpu.trace_stop"() : () -> ()
    %cst_52 = arith.constant dense<0xFF800000> : vector<8x16xf32>
    %86 = vector.multi_reduction <maximumf>, %85, %cst_52 [2] : vector<8x16x16xf32> to vector<8x16xf32>
    %87 = vector.shape_cast %86 : vector<8x16xf32> to vector<8x16x1xf32>
    %88 = vector.broadcast %87 : vector<8x16x1xf32> to vector<8x16x16xf32>
    %89 = arith.subf %85, %88 : vector<8x16x16xf32>
    %90 = math.exp %89 : vector<8x16x16xf32>
    %cst_53 = arith.constant dense<0.000000e+00> : vector<8x16xf32>
    %91 = vector.multi_reduction <add>, %90, %cst_53 [2] : vector<8x16x16xf32> to vector<8x16xf32>
    %92 = vector.shape_cast %91 : vector<8x16xf32> to vector<8x16x1xf32>
    %93 = vector.broadcast %92 : vector<8x16x1xf32> to vector<8x16x16xf32>
    %94 = arith.divf %90, %93 : vector<8x16x16xf32>
    %95 = arith.truncf %94 : vector<8x16x16xf32> to vector<8x16x16xbf16>
    "tpu.trace_start"() <{level = 10 : i32, message = "blm,bmd->bld"}> : () -> ()
    %cst_54 = arith.constant dense<0.000000e+00> : vector<8x16x16xf32>
    %96 = tpu.matmul %95, %84, %cst_54 {dimension_numbers = #tpu.dot_dimension_numbers<[2], [1], [1], [2], [0, 0, 0, 1, 1, 2], [0], [0]>} : vector<8x16x16xbf16>, vector<8x16x16xbf16>, vector<8x16x16xf32> -> vector<8x16x16xf32>
    "tpu.trace_stop"() : () -> ()
    %97 = vector.extract_strided_slice %42 {offsets = [0, 0, 48], sizes = [8, 16, 16], strides = [1, 1, 1]} : vector<8x16x192xf32> to vector<8x16x16xf32>
    %98 = arith.truncf %97 : vector<8x16x16xf32> to vector<8x16x16xbf16>
    %99 = vector.extract_strided_slice %42 {offsets = [0, 0, 112], sizes = [8, 16, 16], strides = [1, 1, 1]} : vector<8x16x192xf32> to vector<8x16x16xf32>
    %100 = arith.truncf %99 : vector<8x16x16xf32> to vector<8x16x16xbf16>
    %101 = vector.extract_strided_slice %42 {offsets = [0, 0, 176], sizes = [8, 16, 16], strides = [1, 1, 1]} : vector<8x16x192xf32> to vector<8x16x16xf32>
    %102 = arith.truncf %101 : vector<8x16x16xf32> to vector<8x16x16xbf16>
    "tpu.trace_start"() <{level = 10 : i32, message = "bld,bmd->blm"}> : () -> ()
    %cst_55 = arith.constant dense<0.000000e+00> : vector<8x16x16xf32>
    %103 = tpu.matmul %98, %100, %cst_55 {dimension_numbers = #tpu.dot_dimension_numbers<[2], [2], [1], [1], [0, 0, 0, 1, 1, 1], [0], [0]>} : vector<8x16x16xbf16>, vector<8x16x16xbf16>, vector<8x16x16xf32> -> vector<8x16x16xf32>
    "tpu.trace_stop"() : () -> ()
    %cst_56 = arith.constant dense<0xFF800000> : vector<8x16xf32>
    %104 = vector.multi_reduction <maximumf>, %103, %cst_56 [2] : vector<8x16x16xf32> to vector<8x16xf32>
    %105 = vector.shape_cast %104 : vector<8x16xf32> to vector<8x16x1xf32>
    %106 = vector.broadcast %105 : vector<8x16x1xf32> to vector<8x16x16xf32>
    %107 = arith.subf %103, %106 : vector<8x16x16xf32>
    %108 = math.exp %107 : vector<8x16x16xf32>
    %cst_57 = arith.constant dense<0.000000e+00> : vector<8x16xf32>
    %109 = vector.multi_reduction <add>, %108, %cst_57 [2] : vector<8x16x16xf32> to vector<8x16xf32>
    %110 = vector.shape_cast %109 : vector<8x16xf32> to vector<8x16x1xf32>
    %111 = vector.broadcast %110 : vector<8x16x1xf32> to vector<8x16x16xf32>
    %112 = arith.divf %108, %111 : vector<8x16x16xf32>
    %113 = arith.truncf %112 : vector<8x16x16xf32> to vector<8x16x16xbf16>
    "tpu.trace_start"() <{level = 10 : i32, message = "blm,bmd->bld"}> : () -> ()
    %cst_58 = arith.constant dense<0.000000e+00> : vector<8x16x16xf32>
    %114 = tpu.matmul %113, %102, %cst_58 {dimension_numbers = #tpu.dot_dimension_numbers<[2], [1], [1], [2], [0, 0, 0, 1, 1, 2], [0], [0]>} : vector<8x16x16xbf16>, vector<8x16x16xbf16>, vector<8x16x16xf32> -> vector<8x16x16xf32>
    "tpu.trace_stop"() : () -> ()
    %115 = tpu.concatenate %60, %78, %96, %114 in 2 : vector<8x16x16xf32>, vector<8x16x16xf32>, vector<8x16x16xf32>, vector<8x16x16xf32> -> vector<8x16x64xf32>
    %116 = vector.shape_cast %115 : vector<8x16x64xf32> to vector<128x64xf32>
    %117 = arith.truncf %116 : vector<128x64xf32> to vector<128x64xbf16>
    %cst_59 = arith.constant dense<0.000000e+00> : vector<128x64xf32>
    %118 = tpu.matmul %117, %18, %cst_59 {dimension_numbers = #tpu.dot_dimension_numbers<[1], [0], [0], [1], [0, 0, 1, 1], [], []>} : vector<128x64xbf16>, vector<64x64xbf16>, vector<128x64xf32> -> vector<128x64xf32>
    %119 = vector.broadcast %24 : vector<1x64xf32> to vector<128x64xf32>
    %120 = arith.addf %118, %119 : vector<128x64xf32>
    %121 = arith.addf %12, %120 : vector<128x64xf32>
    %cst_60 = arith.constant dense<0.000000e+00> : vector<128xf32>
    %122 = vector.multi_reduction <add>, %121, %cst_60 [1] : vector<128x64xf32> to vector<128xf32>
    %123 = vector.shape_cast %122 : vector<128xf32> to vector<128x1xf32>
    %cst_61 = arith.constant 6.400000e+01 : f32
    %124 = vector.broadcast %cst_61 : f32 to vector<128x1xf32>
    %125 = arith.divf %123, %124 : vector<128x1xf32>
    %126 = vector.broadcast %125 : vector<128x1xf32> to vector<128x64xf32>
    %127 = arith.subf %121, %126 : vector<128x64xf32>
    %128 = arith.mulf %127, %127 : vector<128x64xf32>
    %cst_62 = arith.constant dense<0.000000e+00> : vector<128xf32>
    %129 = vector.multi_reduction <add>, %128, %cst_62 [1] : vector<128x64xf32> to vector<128xf32>
    %130 = vector.shape_cast %129 : vector<128xf32> to vector<128x1xf32>
    %cst_63 = arith.constant 6.400000e+01 : f32
    %131 = vector.broadcast %cst_63 : f32 to vector<128x1xf32>
    %132 = arith.divf %130, %131 : vector<128x1xf32>
    %133 = vector.broadcast %125 : vector<128x1xf32> to vector<128x64xf32>
    %134 = arith.subf %121, %133 : vector<128x64xf32>
    %cst_64 = arith.constant 9.99999974E-6 : f32
    %135 = vector.broadcast %cst_64 : f32 to vector<128x1xf32>
    %136 = arith.addf %132, %135 : vector<128x1xf32>
    %137 = math.rsqrt %136 : vector<128x1xf32>
    %138 = vector.broadcast %137 : vector<128x1xf32> to vector<128x64xf32>
    %139 = arith.mulf %134, %138 : vector<128x64xf32>
    %140 = vector.broadcast %30 : vector<1x64xf32> to vector<128x64xf32>
    %141 = arith.mulf %139, %140 : vector<128x64xf32>
    %142 = vector.broadcast %32 : vector<1x64xf32> to vector<128x64xf32>
    %143 = arith.addf %141, %142 : vector<128x64xf32>
    %144 = arith.truncf %143 : vector<128x64xf32> to vector<128x64xbf16>
    %cst_65 = arith.constant dense<0.000000e+00> : vector<128x64xf32>
    %145 = tpu.matmul %144, %20, %cst_65 {dimension_numbers = #tpu.dot_dimension_numbers<[1], [0], [0], [1], [0, 0, 1, 1], [], []>} : vector<128x64xbf16>, vector<64x64xbf16>, vector<128x64xf32> -> vector<128x64xf32>
    %146 = vector.broadcast %26 : vector<1x64xf32> to vector<128x64xf32>
    %147 = arith.addf %145, %146 : vector<128x64xf32>
    %cst_66 = arith.constant 0.000000e+00 : f32
    %148 = vector.broadcast %cst_66 : f32 to vector<128x64xf32>
    %149 = arith.maximumf %147, %148 : vector<128x64xf32>
    %150 = arith.truncf %149 : vector<128x64xf32> to vector<128x64xbf16>
    %cst_67 = arith.constant dense<0.000000e+00> : vector<128x64xf32>
    %151 = tpu.matmul %150, %22, %cst_67 {dimension_numbers = #tpu.dot_dimension_numbers<[1], [0], [0], [1], [0, 0, 1, 1], [], []>} : vector<128x64xbf16>, vector<64x64xbf16>, vector<128x64xf32> -> vector<128x64xf32>
    %152 = vector.broadcast %28 : vector<1x64xf32> to vector<128x64xf32>
    %153 = arith.addf %151, %152 : vector<128x64xf32>
    %154 = arith.addf %143, %153 : vector<128x64xf32>
    %cst_68 = arith.constant dense<0.000000e+00> : vector<128xf32>
    %155 = vector.multi_reduction <add>, %154, %cst_68 [1] : vector<128x64xf32> to vector<128xf32>
    %156 = vector.shape_cast %155 : vector<128xf32> to vector<128x1xf32>
    %cst_69 = arith.constant 6.400000e+01 : f32
    %157 = vector.broadcast %cst_69 : f32 to vector<128x1xf32>
    %158 = arith.divf %156, %157 : vector<128x1xf32>
    %159 = vector.broadcast %158 : vector<128x1xf32> to vector<128x64xf32>
    %160 = arith.subf %154, %159 : vector<128x64xf32>
    %161 = arith.mulf %160, %160 : vector<128x64xf32>
    %cst_70 = arith.constant dense<0.000000e+00> : vector<128xf32>
    %162 = vector.multi_reduction <add>, %161, %cst_70 [1] : vector<128x64xf32> to vector<128xf32>
    %163 = vector.shape_cast %162 : vector<128xf32> to vector<128x1xf32>
    %cst_71 = arith.constant 6.400000e+01 : f32
    %164 = vector.broadcast %cst_71 : f32 to vector<128x1xf32>
    %165 = arith.divf %163, %164 : vector<128x1xf32>
    %166 = vector.broadcast %158 : vector<128x1xf32> to vector<128x64xf32>
    %167 = arith.subf %154, %166 : vector<128x64xf32>
    %cst_72 = arith.constant 9.99999974E-6 : f32
    %168 = vector.broadcast %cst_72 : f32 to vector<128x1xf32>
    %169 = arith.addf %165, %168 : vector<128x1xf32>
    %170 = math.rsqrt %169 : vector<128x1xf32>
    %171 = vector.broadcast %170 : vector<128x1xf32> to vector<128x64xf32>
    %172 = arith.mulf %167, %171 : vector<128x64xf32>
    %173 = vector.broadcast %34 : vector<1x64xf32> to vector<128x64xf32>
    %174 = arith.mulf %172, %173 : vector<128x64xf32>
    %175 = vector.broadcast %36 : vector<1x64xf32> to vector<128x64xf32>
    %176 = arith.addf %174, %175 : vector<128x64xf32>
    %c1_73 = arith.constant 1 : index
    %c0_74 = arith.constant 0 : index
    %c0_75 = arith.constant 0 : index
    %177 = vector.load %arg4[%c1_73, %c0_74, %c0_75] : memref<2x64x192xbf16, #tpu.memory_space<vmem>>, vector<1x64x192xbf16>
    %178 = vector.shape_cast %177 : vector<1x64x192xbf16> to vector<64x192xbf16>
    %c1_76 = arith.constant 1 : index
    %c0_77 = arith.constant 0 : index
    %c0_78 = arith.constant 0 : index
    %179 = vector.load %arg5[%c1_76, %c0_77, %c0_78] : memref<2x16x192xf32, #tpu.memory_space<vmem>>, vector<1x16x192xf32>
    %180 = vector.shape_cast %179 : vector<1x16x192xf32> to vector<16x192xf32>
    %c1_79 = arith.constant 1 : index
    %c0_80 = arith.constant 0 : index
    %c0_81 = arith.constant 0 : index
    %c0_82 = arith.constant 0 : index
    %181 = vector.load %arg6[%c1_79, %c0_80, %c0_81, %c0_82] : memref<2x3x64x64xbf16, #tpu.memory_space<vmem>>, vector<1x1x64x64xbf16>
    %182 = vector.shape_cast %181 : vector<1x1x64x64xbf16> to vector<64x64xbf16>
    %c1_83 = arith.constant 1 : index
    %c1_84 = arith.constant 1 : index
    %c0_85 = arith.constant 0 : index
    %c0_86 = arith.constant 0 : index
    %183 = vector.load %arg6[%c1_83, %c1_84, %c0_85, %c0_86] : memref<2x3x64x64xbf16, #tpu.memory_space<vmem>>, vector<1x1x64x64xbf16>
    %184 = vector.shape_cast %183 : vector<1x1x64x64xbf16> to vector<64x64xbf16>
    %c1_87 = arith.constant 1 : index
    %c2_88 = arith.constant 2 : index
    %c0_89 = arith.constant 0 : index
    %c0_90 = arith.constant 0 : index
    %185 = vector.load %arg6[%c1_87, %c2_88, %c0_89, %c0_90] : memref<2x3x64x64xbf16, #tpu.memory_space<vmem>>, vector<1x1x64x64xbf16>
    %186 = vector.shape_cast %185 : vector<1x1x64x64xbf16> to vector<64x64xbf16>
    %c1_91 = arith.constant 1 : index
    %c0_92 = arith.constant 0 : index
    %c0_93 = arith.constant 0 : index
    %187 = vector.load %arg7[%c1_91, %c0_92, %c0_93] : memref<2x7x64xf32, #tpu.memory_space<vmem>>, vector<1x1x64xf32>
    %188 = vector.shape_cast %187 : vector<1x1x64xf32> to vector<1x64xf32>
    %c1_94 = arith.constant 1 : index
    %c1_95 = arith.constant 1 : index
    %c0_96 = arith.constant 0 : index
    %189 = vector.load %arg7[%c1_94, %c1_95, %c0_96] : memref<2x7x64xf32, #tpu.memory_space<vmem>>, vector<1x1x64xf32>
    %190 = vector.shape_cast %189 : vector<1x1x64xf32> to vector<1x64xf32>
    %c1_97 = arith.constant 1 : index
    %c2_98 = arith.constant 2 : index
    %c0_99 = arith.constant 0 : index
    %191 = vector.load %arg7[%c1_97, %c2_98, %c0_99] : memref<2x7x64xf32, #tpu.memory_space<vmem>>, vector<1x1x64xf32>
    %192 = vector.shape_cast %191 : vector<1x1x64xf32> to vector<1x64xf32>
    %c1_100 = arith.constant 1 : index
    %c3_101 = arith.constant 3 : index
    %c0_102 = arith.constant 0 : index
    %193 = vector.load %arg7[%c1_100, %c3_101, %c0_102] : memref<2x7x64xf32, #tpu.memory_space<vmem>>, vector<1x1x64xf32>
    %194 = vector.shape_cast %193 : vector<1x1x64xf32> to vector<1x64xf32>
    %c1_103 = arith.constant 1 : index
    %c4_104 = arith.constant 4 : index
    %c0_105 = arith.constant 0 : index
    %195 = vector.load %arg7[%c1_103, %c4_104, %c0_105] : memref<2x7x64xf32, #tpu.memory_space<vmem>>, vector<1x1x64xf32>
    %196 = vector.shape_cast %195 : vector<1x1x64xf32> to vector<1x64xf32>
    %c1_106 = arith.constant 1 : index
    %c5_107 = arith.constant 5 : index
    %c0_108 = arith.constant 0 : index
    %197 = vector.load %arg7[%c1_106, %c5_107, %c0_108] : memref<2x7x64xf32, #tpu.memory_space<vmem>>, vector<1x1x64xf32>
    %198 = vector.shape_cast %197 : vector<1x1x64xf32> to vector<1x64xf32>
    %c1_109 = arith.constant 1 : index
    %c6_110 = arith.constant 6 : index
    %c0_111 = arith.constant 0 : index
    %199 = vector.load %arg7[%c1_109, %c6_110, %c0_111] : memref<2x7x64xf32, #tpu.memory_space<vmem>>, vector<1x1x64xf32>
    %200 = vector.shape_cast %199 : vector<1x1x64xf32> to vector<1x64xf32>
    %201 = arith.truncf %176 : vector<128x64xf32> to vector<128x64xbf16>
    %cst_112 = arith.constant dense<0.000000e+00> : vector<128x192xf32>
    %202 = tpu.matmul %201, %178, %cst_112 {dimension_numbers = #tpu.dot_dimension_numbers<[1], [0], [0], [1], [0, 0, 1, 1], [], []>} : vector<128x64xbf16>, vector<64x192xbf16>, vector<128x192xf32> -> vector<128x192xf32>
    %203 = vector.shape_cast %202 : vector<128x192xf32> to vector<8x16x192xf32>
    %204 = vector.shape_cast %180 : vector<16x192xf32> to vector<1x16x192xf32>
    %205 = vector.broadcast %204 : vector<1x16x192xf32> to vector<8x16x192xf32>
    %206 = arith.addf %203, %205 : vector<8x16x192xf32>
    %207 = vector.extract_strided_slice %206 {offsets = [0, 0, 0], sizes = [8, 16, 16], strides = [1, 1, 1]} : vector<8x16x192xf32> to vector<8x16x16xf32>
    %208 = arith.truncf %207 : vector<8x16x16xf32> to vector<8x16x16xbf16>
    %209 = vector.extract_strided_slice %206 {offsets = [0, 0, 64], sizes = [8, 16, 16], strides = [1, 1, 1]} : vector<8x16x192xf32> to vector<8x16x16xf32>
    %210 = arith.truncf %209 : vector<8x16x16xf32> to vector<8x16x16xbf16>
    %211 = vector.extract_strided_slice %206 {offsets = [0, 0, 128], sizes = [8, 16, 16], strides = [1, 1, 1]} : vector<8x16x192xf32> to vector<8x16x16xf32>
    %212 = arith.truncf %211 : vector<8x16x16xf32> to vector<8x16x16xbf16>
    "tpu.trace_start"() <{level = 10 : i32, message = "bld,bmd->blm"}> : () -> ()
    %cst_113 = arith.constant dense<0.000000e+00> : vector<8x16x16xf32>
    %213 = tpu.matmul %208, %210, %cst_113 {dimension_numbers = #tpu.dot_dimension_numbers<[2], [2], [1], [1], [0, 0, 0, 1, 1, 1], [0], [0]>} : vector<8x16x16xbf16>, vector<8x16x16xbf16>, vector<8x16x16xf32> -> vector<8x16x16xf32>
    "tpu.trace_stop"() : () -> ()
    %cst_114 = arith.constant dense<0xFF800000> : vector<8x16xf32>
    %214 = vector.multi_reduction <maximumf>, %213, %cst_114 [2] : vector<8x16x16xf32> to vector<8x16xf32>
    %215 = vector.shape_cast %214 : vector<8x16xf32> to vector<8x16x1xf32>
    %216 = vector.broadcast %215 : vector<8x16x1xf32> to vector<8x16x16xf32>
    %217 = arith.subf %213, %216 : vector<8x16x16xf32>
    %218 = math.exp %217 : vector<8x16x16xf32>
    %cst_115 = arith.constant dense<0.000000e+00> : vector<8x16xf32>
    %219 = vector.multi_reduction <add>, %218, %cst_115 [2] : vector<8x16x16xf32> to vector<8x16xf32>
    %220 = vector.shape_cast %219 : vector<8x16xf32> to vector<8x16x1xf32>
    %221 = vector.broadcast %220 : vector<8x16x1xf32> to vector<8x16x16xf32>
    %222 = arith.divf %218, %221 : vector<8x16x16xf32>
    %223 = arith.truncf %222 : vector<8x16x16xf32> to vector<8x16x16xbf16>
    "tpu.trace_start"() <{level = 10 : i32, message = "blm,bmd->bld"}> : () -> ()
    %cst_116 = arith.constant dense<0.000000e+00> : vector<8x16x16xf32>
    %224 = tpu.matmul %223, %212, %cst_116 {dimension_numbers = #tpu.dot_dimension_numbers<[2], [1], [1], [2], [0, 0, 0, 1, 1, 2], [0], [0]>} : vector<8x16x16xbf16>, vector<8x16x16xbf16>, vector<8x16x16xf32> -> vector<8x16x16xf32>
    "tpu.trace_stop"() : () -> ()
    %225 = vector.extract_strided_slice %206 {offsets = [0, 0, 16], sizes = [8, 16, 16], strides = [1, 1, 1]} : vector<8x16x192xf32> to vector<8x16x16xf32>
    %226 = arith.truncf %225 : vector<8x16x16xf32> to vector<8x16x16xbf16>
    %227 = vector.extract_strided_slice %206 {offsets = [0, 0, 80], sizes = [8, 16, 16], strides = [1, 1, 1]} : vector<8x16x192xf32> to vector<8x16x16xf32>
    %228 = arith.truncf %227 : vector<8x16x16xf32> to vector<8x16x16xbf16>
    %229 = vector.extract_strided_slice %206 {offsets = [0, 0, 144], sizes = [8, 16, 16], strides = [1, 1, 1]} : vector<8x16x192xf32> to vector<8x16x16xf32>
    %230 = arith.truncf %229 : vector<8x16x16xf32> to vector<8x16x16xbf16>
    "tpu.trace_start"() <{level = 10 : i32, message = "bld,bmd->blm"}> : () -> ()
    %cst_117 = arith.constant dense<0.000000e+00> : vector<8x16x16xf32>
    %231 = tpu.matmul %226, %228, %cst_117 {dimension_numbers = #tpu.dot_dimension_numbers<[2], [2], [1], [1], [0, 0, 0, 1, 1, 1], [0], [0]>} : vector<8x16x16xbf16>, vector<8x16x16xbf16>, vector<8x16x16xf32> -> vector<8x16x16xf32>
    "tpu.trace_stop"() : () -> ()
    %cst_118 = arith.constant dense<0xFF800000> : vector<8x16xf32>
    %232 = vector.multi_reduction <maximumf>, %231, %cst_118 [2] : vector<8x16x16xf32> to vector<8x16xf32>
    %233 = vector.shape_cast %232 : vector<8x16xf32> to vector<8x16x1xf32>
    %234 = vector.broadcast %233 : vector<8x16x1xf32> to vector<8x16x16xf32>
    %235 = arith.subf %231, %234 : vector<8x16x16xf32>
    %236 = math.exp %235 : vector<8x16x16xf32>
    %cst_119 = arith.constant dense<0.000000e+00> : vector<8x16xf32>
    %237 = vector.multi_reduction <add>, %236, %cst_119 [2] : vector<8x16x16xf32> to vector<8x16xf32>
    %238 = vector.shape_cast %237 : vector<8x16xf32> to vector<8x16x1xf32>
    %239 = vector.broadcast %238 : vector<8x16x1xf32> to vector<8x16x16xf32>
    %240 = arith.divf %236, %239 : vector<8x16x16xf32>
    %241 = arith.truncf %240 : vector<8x16x16xf32> to vector<8x16x16xbf16>
    "tpu.trace_start"() <{level = 10 : i32, message = "blm,bmd->bld"}> : () -> ()
    %cst_120 = arith.constant dense<0.000000e+00> : vector<8x16x16xf32>
    %242 = tpu.matmul %241, %230, %cst_120 {dimension_numbers = #tpu.dot_dimension_numbers<[2], [1], [1], [2], [0, 0, 0, 1, 1, 2], [0], [0]>} : vector<8x16x16xbf16>, vector<8x16x16xbf16>, vector<8x16x16xf32> -> vector<8x16x16xf32>
    "tpu.trace_stop"() : () -> ()
    %243 = vector.extract_strided_slice %206 {offsets = [0, 0, 32], sizes = [8, 16, 16], strides = [1, 1, 1]} : vector<8x16x192xf32> to vector<8x16x16xf32>
    %244 = arith.truncf %243 : vector<8x16x16xf32> to vector<8x16x16xbf16>
    %245 = vector.extract_strided_slice %206 {offsets = [0, 0, 96], sizes = [8, 16, 16], strides = [1, 1, 1]} : vector<8x16x192xf32> to vector<8x16x16xf32>
    %246 = arith.truncf %245 : vector<8x16x16xf32> to vector<8x16x16xbf16>
    %247 = vector.extract_strided_slice %206 {offsets = [0, 0, 160], sizes = [8, 16, 16], strides = [1, 1, 1]} : vector<8x16x192xf32> to vector<8x16x16xf32>
    %248 = arith.truncf %247 : vector<8x16x16xf32> to vector<8x16x16xbf16>
    "tpu.trace_start"() <{level = 10 : i32, message = "bld,bmd->blm"}> : () -> ()
    %cst_121 = arith.constant dense<0.000000e+00> : vector<8x16x16xf32>
    %249 = tpu.matmul %244, %246, %cst_121 {dimension_numbers = #tpu.dot_dimension_numbers<[2], [2], [1], [1], [0, 0, 0, 1, 1, 1], [0], [0]>} : vector<8x16x16xbf16>, vector<8x16x16xbf16>, vector<8x16x16xf32> -> vector<8x16x16xf32>
    "tpu.trace_stop"() : () -> ()
    %cst_122 = arith.constant dense<0xFF800000> : vector<8x16xf32>
    %250 = vector.multi_reduction <maximumf>, %249, %cst_122 [2] : vector<8x16x16xf32> to vector<8x16xf32>
    %251 = vector.shape_cast %250 : vector<8x16xf32> to vector<8x16x1xf32>
    %252 = vector.broadcast %251 : vector<8x16x1xf32> to vector<8x16x16xf32>
    %253 = arith.subf %249, %252 : vector<8x16x16xf32>
    %254 = math.exp %253 : vector<8x16x16xf32>
    %cst_123 = arith.constant dense<0.000000e+00> : vector<8x16xf32>
    %255 = vector.multi_reduction <add>, %254, %cst_123 [2] : vector<8x16x16xf32> to vector<8x16xf32>
    %256 = vector.shape_cast %255 : vector<8x16xf32> to vector<8x16x1xf32>
    %257 = vector.broadcast %256 : vector<8x16x1xf32> to vector<8x16x16xf32>
    %258 = arith.divf %254, %257 : vector<8x16x16xf32>
    %259 = arith.truncf %258 : vector<8x16x16xf32> to vector<8x16x16xbf16>
    "tpu.trace_start"() <{level = 10 : i32, message = "blm,bmd->bld"}> : () -> ()
    %cst_124 = arith.constant dense<0.000000e+00> : vector<8x16x16xf32>
    %260 = tpu.matmul %259, %248, %cst_124 {dimension_numbers = #tpu.dot_dimension_numbers<[2], [1], [1], [2], [0, 0, 0, 1, 1, 2], [0], [0]>} : vector<8x16x16xbf16>, vector<8x16x16xbf16>, vector<8x16x16xf32> -> vector<8x16x16xf32>
    "tpu.trace_stop"() : () -> ()
    %261 = vector.extract_strided_slice %206 {offsets = [0, 0, 48], sizes = [8, 16, 16], strides = [1, 1, 1]} : vector<8x16x192xf32> to vector<8x16x16xf32>
    %262 = arith.truncf %261 : vector<8x16x16xf32> to vector<8x16x16xbf16>
    %263 = vector.extract_strided_slice %206 {offsets = [0, 0, 112], sizes = [8, 16, 16], strides = [1, 1, 1]} : vector<8x16x192xf32> to vector<8x16x16xf32>
    %264 = arith.truncf %263 : vector<8x16x16xf32> to vector<8x16x16xbf16>
    %265 = vector.extract_strided_slice %206 {offsets = [0, 0, 176], sizes = [8, 16, 16], strides = [1, 1, 1]} : vector<8x16x192xf32> to vector<8x16x16xf32>
    %266 = arith.truncf %265 : vector<8x16x16xf32> to vector<8x16x16xbf16>
    "tpu.trace_start"() <{level = 10 : i32, message = "bld,bmd->blm"}> : () -> ()
    %cst_125 = arith.constant dense<0.000000e+00> : vector<8x16x16xf32>
    %267 = tpu.matmul %262, %264, %cst_125 {dimension_numbers = #tpu.dot_dimension_numbers<[2], [2], [1], [1], [0, 0, 0, 1, 1, 1], [0], [0]>} : vector<8x16x16xbf16>, vector<8x16x16xbf16>, vector<8x16x16xf32> -> vector<8x16x16xf32>
    "tpu.trace_stop"() : () -> ()
    %cst_126 = arith.constant dense<0xFF800000> : vector<8x16xf32>
    %268 = vector.multi_reduction <maximumf>, %267, %cst_126 [2] : vector<8x16x16xf32> to vector<8x16xf32>
    %269 = vector.shape_cast %268 : vector<8x16xf32> to vector<8x16x1xf32>
    %270 = vector.broadcast %269 : vector<8x16x1xf32> to vector<8x16x16xf32>
    %271 = arith.subf %267, %270 : vector<8x16x16xf32>
    %272 = math.exp %271 : vector<8x16x16xf32>
    %cst_127 = arith.constant dense<0.000000e+00> : vector<8x16xf32>
    %273 = vector.multi_reduction <add>, %272, %cst_127 [2] : vector<8x16x16xf32> to vector<8x16xf32>
    %274 = vector.shape_cast %273 : vector<8x16xf32> to vector<8x16x1xf32>
    %275 = vector.broadcast %274 : vector<8x16x1xf32> to vector<8x16x16xf32>
    %276 = arith.divf %272, %275 : vector<8x16x16xf32>
    %277 = arith.truncf %276 : vector<8x16x16xf32> to vector<8x16x16xbf16>
    "tpu.trace_start"() <{level = 10 : i32, message = "blm,bmd->bld"}> : () -> ()
    %cst_128 = arith.constant dense<0.000000e+00> : vector<8x16x16xf32>
    %278 = tpu.matmul %277, %266, %cst_128 {dimension_numbers = #tpu.dot_dimension_numbers<[2], [1], [1], [2], [0, 0, 0, 1, 1, 2], [0], [0]>} : vector<8x16x16xbf16>, vector<8x16x16xbf16>, vector<8x16x16xf32> -> vector<8x16x16xf32>
    "tpu.trace_stop"() : () -> ()
    %279 = tpu.concatenate %224, %242, %260, %278 in 2 : vector<8x16x16xf32>, vector<8x16x16xf32>, vector<8x16x16xf32>, vector<8x16x16xf32> -> vector<8x16x64xf32>
    %280 = vector.shape_cast %279 : vector<8x16x64xf32> to vector<128x64xf32>
    %281 = arith.truncf %280 : vector<128x64xf32> to vector<128x64xbf16>
    %cst_129 = arith.constant dense<0.000000e+00> : vector<128x64xf32>
    %282 = tpu.matmul %281, %182, %cst_129 {dimension_numbers = #tpu.dot_dimension_numbers<[1], [0], [0], [1], [0, 0, 1, 1], [], []>} : vector<128x64xbf16>, vector<64x64xbf16>, vector<128x64xf32> -> vector<128x64xf32>
    %283 = vector.broadcast %188 : vector<1x64xf32> to vector<128x64xf32>
    %284 = arith.addf %282, %283 : vector<128x64xf32>
    %285 = arith.addf %176, %284 : vector<128x64xf32>
    %cst_130 = arith.constant dense<0.000000e+00> : vector<128xf32>
    %286 = vector.multi_reduction <add>, %285, %cst_130 [1] : vector<128x64xf32> to vector<128xf32>
    %287 = vector.shape_cast %286 : vector<128xf32> to vector<128x1xf32>
    %cst_131 = arith.constant 6.400000e+01 : f32
    %288 = vector.broadcast %cst_131 : f32 to vector<128x1xf32>
    %289 = arith.divf %287, %288 : vector<128x1xf32>
    %290 = vector.broadcast %289 : vector<128x1xf32> to vector<128x64xf32>
    %291 = arith.subf %285, %290 : vector<128x64xf32>
    %292 = arith.mulf %291, %291 : vector<128x64xf32>
    %cst_132 = arith.constant dense<0.000000e+00> : vector<128xf32>
    %293 = vector.multi_reduction <add>, %292, %cst_132 [1] : vector<128x64xf32> to vector<128xf32>
    %294 = vector.shape_cast %293 : vector<128xf32> to vector<128x1xf32>
    %cst_133 = arith.constant 6.400000e+01 : f32
    %295 = vector.broadcast %cst_133 : f32 to vector<128x1xf32>
    %296 = arith.divf %294, %295 : vector<128x1xf32>
    %297 = vector.broadcast %289 : vector<128x1xf32> to vector<128x64xf32>
    %298 = arith.subf %285, %297 : vector<128x64xf32>
    %cst_134 = arith.constant 9.99999974E-6 : f32
    %299 = vector.broadcast %cst_134 : f32 to vector<128x1xf32>
    %300 = arith.addf %296, %299 : vector<128x1xf32>
    %301 = math.rsqrt %300 : vector<128x1xf32>
    %302 = vector.broadcast %301 : vector<128x1xf32> to vector<128x64xf32>
    %303 = arith.mulf %298, %302 : vector<128x64xf32>
    %304 = vector.broadcast %194 : vector<1x64xf32> to vector<128x64xf32>
    %305 = arith.mulf %303, %304 : vector<128x64xf32>
    %306 = vector.broadcast %196 : vector<1x64xf32> to vector<128x64xf32>
    %307 = arith.addf %305, %306 : vector<128x64xf32>
    %308 = arith.truncf %307 : vector<128x64xf32> to vector<128x64xbf16>
    %cst_135 = arith.constant dense<0.000000e+00> : vector<128x64xf32>
    %309 = tpu.matmul %308, %184, %cst_135 {dimension_numbers = #tpu.dot_dimension_numbers<[1], [0], [0], [1], [0, 0, 1, 1], [], []>} : vector<128x64xbf16>, vector<64x64xbf16>, vector<128x64xf32> -> vector<128x64xf32>
    %310 = vector.broadcast %190 : vector<1x64xf32> to vector<128x64xf32>
    %311 = arith.addf %309, %310 : vector<128x64xf32>
    %cst_136 = arith.constant 0.000000e+00 : f32
    %312 = vector.broadcast %cst_136 : f32 to vector<128x64xf32>
    %313 = arith.maximumf %311, %312 : vector<128x64xf32>
    %314 = arith.truncf %313 : vector<128x64xf32> to vector<128x64xbf16>
    %cst_137 = arith.constant dense<0.000000e+00> : vector<128x64xf32>
    %315 = tpu.matmul %314, %186, %cst_137 {dimension_numbers = #tpu.dot_dimension_numbers<[1], [0], [0], [1], [0, 0, 1, 1], [], []>} : vector<128x64xbf16>, vector<64x64xbf16>, vector<128x64xf32> -> vector<128x64xf32>
    %316 = vector.broadcast %192 : vector<1x64xf32> to vector<128x64xf32>
    %317 = arith.addf %315, %316 : vector<128x64xf32>
    %318 = arith.addf %307, %317 : vector<128x64xf32>
    %cst_138 = arith.constant dense<0.000000e+00> : vector<128xf32>
    %319 = vector.multi_reduction <add>, %318, %cst_138 [1] : vector<128x64xf32> to vector<128xf32>
    %320 = vector.shape_cast %319 : vector<128xf32> to vector<128x1xf32>
    %cst_139 = arith.constant 6.400000e+01 : f32
    %321 = vector.broadcast %cst_139 : f32 to vector<128x1xf32>
    %322 = arith.divf %320, %321 : vector<128x1xf32>
    %323 = vector.broadcast %322 : vector<128x1xf32> to vector<128x64xf32>
    %324 = arith.subf %318, %323 : vector<128x64xf32>
    %325 = arith.mulf %324, %324 : vector<128x64xf32>
    %cst_140 = arith.constant dense<0.000000e+00> : vector<128xf32>
    %326 = vector.multi_reduction <add>, %325, %cst_140 [1] : vector<128x64xf32> to vector<128xf32>
    %327 = vector.shape_cast %326 : vector<128xf32> to vector<128x1xf32>
    %cst_141 = arith.constant 6.400000e+01 : f32
    %328 = vector.broadcast %cst_141 : f32 to vector<128x1xf32>
    %329 = arith.divf %327, %328 : vector<128x1xf32>
    %330 = vector.broadcast %322 : vector<128x1xf32> to vector<128x64xf32>
    %331 = arith.subf %318, %330 : vector<128x64xf32>
    %cst_142 = arith.constant 9.99999974E-6 : f32
    %332 = vector.broadcast %cst_142 : f32 to vector<128x1xf32>
    %333 = arith.addf %329, %332 : vector<128x1xf32>
    %334 = math.rsqrt %333 : vector<128x1xf32>
    %335 = vector.broadcast %334 : vector<128x1xf32> to vector<128x64xf32>
    %336 = arith.mulf %331, %335 : vector<128x64xf32>
    %337 = vector.broadcast %198 : vector<1x64xf32> to vector<128x64xf32>
    %338 = arith.mulf %336, %337 : vector<128x64xf32>
    %339 = vector.broadcast %200 : vector<1x64xf32> to vector<128x64xf32>
    %340 = arith.addf %338, %339 : vector<128x64xf32>
    %341 = vector.shape_cast %340 : vector<128x64xf32> to vector<8x16x64xf32>
    %342 = vector.extract_strided_slice %341 {offsets = [0, 0, 0], sizes = [8, 1, 64], strides = [1, 1, 1]} : vector<8x16x64xf32> to vector<8x1x64xf32>
    %343 = vector.shape_cast %342 : vector<8x1x64xf32> to vector<8x64xf32>
    %c0_143 = arith.constant 0 : index
    %c0_144 = arith.constant 0 : index
    %c0_145 = arith.constant 0 : index
    %344 = vector.load %arg8[%c0_143, %c0_144, %c0_145] : memref<16x8x64xf32, #tpu.memory_space<vmem>>, vector<1x8x64xf32>
    %345 = vector.shape_cast %344 : vector<1x8x64xf32> to vector<8x64xf32>
    %346 = vector.shape_cast %343 : vector<8x64xf32> to vector<1x8x64xf32>
    tpu.vector_store %arg8[%c0_143, %c0_144, %c0_145], %346 {strides = array<i32>} : memref<16x8x64xf32, #tpu.memory_space<vmem>>, vector<1x8x64xf32>,
    %347 = vector.extract_strided_slice %341 {offsets = [0, 1, 0], sizes = [8, 1, 64], strides = [1, 1, 1]} : vector<8x16x64xf32> to vector<8x1x64xf32>
    %348 = vector.shape_cast %347 : vector<8x1x64xf32> to vector<8x64xf32>
    %c1_146 = arith.constant 1 : index
    %c0_147 = arith.constant 0 : index
    %c0_148 = arith.constant 0 : index
    %349 = vector.load %arg8[%c1_146, %c0_147, %c0_148] : memref<16x8x64xf32, #tpu.memory_space<vmem>>, vector<1x8x64xf32>
    %350 = vector.shape_cast %349 : vector<1x8x64xf32> to vector<8x64xf32>
    %351 = vector.shape_cast %348 : vector<8x64xf32> to vector<1x8x64xf32>
    tpu.vector_store %arg8[%c1_146, %c0_147, %c0_148], %351 {strides = array<i32>} : memref<16x8x64xf32, #tpu.memory_space<vmem>>, vector<1x8x64xf32>,
    %352 = vector.extract_strided_slice %341 {offsets = [0, 2, 0], sizes = [8, 1, 64], strides = [1, 1, 1]} : vector<8x16x64xf32> to vector<8x1x64xf32>
    %353 = vector.shape_cast %352 : vector<8x1x64xf32> to vector<8x64xf32>
    %c2_149 = arith.constant 2 : index
    %c0_150 = arith.constant 0 : index
    %c0_151 = arith.constant 0 : index
    %354 = vector.load %arg8[%c2_149, %c0_150, %c0_151] : memref<16x8x64xf32, #tpu.memory_space<vmem>>, vector<1x8x64xf32>
    %355 = vector.shape_cast %354 : vector<1x8x64xf32> to vector<8x64xf32>
    %356 = vector.shape_cast %353 : vector<8x64xf32> to vector<1x8x64xf32>
    tpu.vector_store %arg8[%c2_149, %c0_150, %c0_151], %356 {strides = array<i32>} : memref<16x8x64xf32, #tpu.memory_space<vmem>>, vector<1x8x64xf32>,
    %357 = vector.extract_strided_slice %341 {offsets = [0, 3, 0], sizes = [8, 1, 64], strides = [1, 1, 1]} : vector<8x16x64xf32> to vector<8x1x64xf32>
    %358 = vector.shape_cast %357 : vector<8x1x64xf32> to vector<8x64xf32>
    %c3_152 = arith.constant 3 : index
    %c0_153 = arith.constant 0 : index
    %c0_154 = arith.constant 0 : index
    %359 = vector.load %arg8[%c3_152, %c0_153, %c0_154] : memref<16x8x64xf32, #tpu.memory_space<vmem>>, vector<1x8x64xf32>
    %360 = vector.shape_cast %359 : vector<1x8x64xf32> to vector<8x64xf32>
    %361 = vector.shape_cast %358 : vector<8x64xf32> to vector<1x8x64xf32>
    tpu.vector_store %arg8[%c3_152, %c0_153, %c0_154], %361 {strides = array<i32>} : memref<16x8x64xf32, #tpu.memory_space<vmem>>, vector<1x8x64xf32>,
    %362 = vector.extract_strided_slice %341 {offsets = [0, 4, 0], sizes = [8, 1, 64], strides = [1, 1, 1]} : vector<8x16x64xf32> to vector<8x1x64xf32>
    %363 = vector.shape_cast %362 : vector<8x1x64xf32> to vector<8x64xf32>
    %c4_155 = arith.constant 4 : index
    %c0_156 = arith.constant 0 : index
    %c0_157 = arith.constant 0 : index
    %364 = vector.load %arg8[%c4_155, %c0_156, %c0_157] : memref<16x8x64xf32, #tpu.memory_space<vmem>>, vector<1x8x64xf32>
    %365 = vector.shape_cast %364 : vector<1x8x64xf32> to vector<8x64xf32>
    %366 = vector.shape_cast %363 : vector<8x64xf32> to vector<1x8x64xf32>
    tpu.vector_store %arg8[%c4_155, %c0_156, %c0_157], %366 {strides = array<i32>} : memref<16x8x64xf32, #tpu.memory_space<vmem>>, vector<1x8x64xf32>,
    %367 = vector.extract_strided_slice %341 {offsets = [0, 5, 0], sizes = [8, 1, 64], strides = [1, 1, 1]} : vector<8x16x64xf32> to vector<8x1x64xf32>
    %368 = vector.shape_cast %367 : vector<8x1x64xf32> to vector<8x64xf32>
    %c5_158 = arith.constant 5 : index
    %c0_159 = arith.constant 0 : index
    %c0_160 = arith.constant 0 : index
    %369 = vector.load %arg8[%c5_158, %c0_159, %c0_160] : memref<16x8x64xf32, #tpu.memory_space<vmem>>, vector<1x8x64xf32>
    %370 = vector.shape_cast %369 : vector<1x8x64xf32> to vector<8x64xf32>
    %371 = vector.shape_cast %368 : vector<8x64xf32> to vector<1x8x64xf32>
    tpu.vector_store %arg8[%c5_158, %c0_159, %c0_160], %371 {strides = array<i32>} : memref<16x8x64xf32, #tpu.memory_space<vmem>>, vector<1x8x64xf32>,
    %372 = vector.extract_strided_slice %341 {offsets = [0, 6, 0], sizes = [8, 1, 64], strides = [1, 1, 1]} : vector<8x16x64xf32> to vector<8x1x64xf32>
    %373 = vector.shape_cast %372 : vector<8x1x64xf32> to vector<8x64xf32>
    %c6_161 = arith.constant 6 : index
    %c0_162 = arith.constant 0 : index
    %c0_163 = arith.constant 0 : index
    %374 = vector.load %arg8[%c6_161, %c0_162, %c0_163] : memref<16x8x64xf32, #tpu.memory_space<vmem>>, vector<1x8x64xf32>
    %375 = vector.shape_cast %374 : vector<1x8x64xf32> to vector<8x64xf32>
    %376 = vector.shape_cast %373 : vector<8x64xf32> to vector<1x8x64xf32>
    tpu.vector_store %arg8[%c6_161, %c0_162, %c0_163], %376 {strides = array<i32>} : memref<16x8x64xf32, #tpu.memory_space<vmem>>, vector<1x8x64xf32>,
    %377 = vector.extract_strided_slice %341 {offsets = [0, 7, 0], sizes = [8, 1, 64], strides = [1, 1, 1]} : vector<8x16x64xf32> to vector<8x1x64xf32>
    %378 = vector.shape_cast %377 : vector<8x1x64xf32> to vector<8x64xf32>
    %c7 = arith.constant 7 : index
    %c0_164 = arith.constant 0 : index
    %c0_165 = arith.constant 0 : index
    %379 = vector.load %arg8[%c7, %c0_164, %c0_165] : memref<16x8x64xf32, #tpu.memory_space<vmem>>, vector<1x8x64xf32>
    %380 = vector.shape_cast %379 : vector<1x8x64xf32> to vector<8x64xf32>
    %381 = vector.shape_cast %378 : vector<8x64xf32> to vector<1x8x64xf32>
    tpu.vector_store %arg8[%c7, %c0_164, %c0_165], %381 {strides = array<i32>} : memref<16x8x64xf32, #tpu.memory_space<vmem>>, vector<1x8x64xf32>,
    %382 = vector.extract_strided_slice %341 {offsets = [0, 8, 0], sizes = [8, 1, 64], strides = [1, 1, 1]} : vector<8x16x64xf32> to vector<8x1x64xf32>
    %383 = vector.shape_cast %382 : vector<8x1x64xf32> to vector<8x64xf32>
    %c8 = arith.constant 8 : index
    %c0_166 = arith.constant 0 : index
    %c0_167 = arith.constant 0 : index
    %384 = vector.load %arg8[%c8, %c0_166, %c0_167] : memref<16x8x64xf32, #tpu.memory_space<vmem>>, vector<1x8x64xf32>
    %385 = vector.shape_cast %384 : vector<1x8x64xf32> to vector<8x64xf32>
    %386 = vector.shape_cast %383 : vector<8x64xf32> to vector<1x8x64xf32>
    tpu.vector_store %arg8[%c8, %c0_166, %c0_167], %386 {strides = array<i32>} : memref<16x8x64xf32, #tpu.memory_space<vmem>>, vector<1x8x64xf32>,
    %387 = vector.extract_strided_slice %341 {offsets = [0, 9, 0], sizes = [8, 1, 64], strides = [1, 1, 1]} : vector<8x16x64xf32> to vector<8x1x64xf32>
    %388 = vector.shape_cast %387 : vector<8x1x64xf32> to vector<8x64xf32>
    %c9 = arith.constant 9 : index
    %c0_168 = arith.constant 0 : index
    %c0_169 = arith.constant 0 : index
    %389 = vector.load %arg8[%c9, %c0_168, %c0_169] : memref<16x8x64xf32, #tpu.memory_space<vmem>>, vector<1x8x64xf32>
    %390 = vector.shape_cast %389 : vector<1x8x64xf32> to vector<8x64xf32>
    %391 = vector.shape_cast %388 : vector<8x64xf32> to vector<1x8x64xf32>
    tpu.vector_store %arg8[%c9, %c0_168, %c0_169], %391 {strides = array<i32>} : memref<16x8x64xf32, #tpu.memory_space<vmem>>, vector<1x8x64xf32>,
    %392 = vector.extract_strided_slice %341 {offsets = [0, 10, 0], sizes = [8, 1, 64], strides = [1, 1, 1]} : vector<8x16x64xf32> to vector<8x1x64xf32>
    %393 = vector.shape_cast %392 : vector<8x1x64xf32> to vector<8x64xf32>
    %c10 = arith.constant 10 : index
    %c0_170 = arith.constant 0 : index
    %c0_171 = arith.constant 0 : index
    %394 = vector.load %arg8[%c10, %c0_170, %c0_171] : memref<16x8x64xf32, #tpu.memory_space<vmem>>, vector<1x8x64xf32>
    %395 = vector.shape_cast %394 : vector<1x8x64xf32> to vector<8x64xf32>
    %396 = vector.shape_cast %393 : vector<8x64xf32> to vector<1x8x64xf32>
    tpu.vector_store %arg8[%c10, %c0_170, %c0_171], %396 {strides = array<i32>} : memref<16x8x64xf32, #tpu.memory_space<vmem>>, vector<1x8x64xf32>,
    %397 = vector.extract_strided_slice %341 {offsets = [0, 11, 0], sizes = [8, 1, 64], strides = [1, 1, 1]} : vector<8x16x64xf32> to vector<8x1x64xf32>
    %398 = vector.shape_cast %397 : vector<8x1x64xf32> to vector<8x64xf32>
    %c11 = arith.constant 11 : index
    %c0_172 = arith.constant 0 : index
    %c0_173 = arith.constant 0 : index
    %399 = vector.load %arg8[%c11, %c0_172, %c0_173] : memref<16x8x64xf32, #tpu.memory_space<vmem>>, vector<1x8x64xf32>
    %400 = vector.shape_cast %399 : vector<1x8x64xf32> to vector<8x64xf32>
    %401 = vector.shape_cast %398 : vector<8x64xf32> to vector<1x8x64xf32>
    tpu.vector_store %arg8[%c11, %c0_172, %c0_173], %401 {strides = array<i32>} : memref<16x8x64xf32, #tpu.memory_space<vmem>>, vector<1x8x64xf32>,
    %402 = vector.extract_strided_slice %341 {offsets = [0, 12, 0], sizes = [8, 1, 64], strides = [1, 1, 1]} : vector<8x16x64xf32> to vector<8x1x64xf32>
    %403 = vector.shape_cast %402 : vector<8x1x64xf32> to vector<8x64xf32>
    %c12 = arith.constant 12 : index
    %c0_174 = arith.constant 0 : index
    %c0_175 = arith.constant 0 : index
    %404 = vector.load %arg8[%c12, %c0_174, %c0_175] : memref<16x8x64xf32, #tpu.memory_space<vmem>>, vector<1x8x64xf32>
    %405 = vector.shape_cast %404 : vector<1x8x64xf32> to vector<8x64xf32>
    %406 = vector.shape_cast %403 : vector<8x64xf32> to vector<1x8x64xf32>
    tpu.vector_store %arg8[%c12, %c0_174, %c0_175], %406 {strides = array<i32>} : memref<16x8x64xf32, #tpu.memory_space<vmem>>, vector<1x8x64xf32>,
    %407 = vector.extract_strided_slice %341 {offsets = [0, 13, 0], sizes = [8, 1, 64], strides = [1, 1, 1]} : vector<8x16x64xf32> to vector<8x1x64xf32>
    %408 = vector.shape_cast %407 : vector<8x1x64xf32> to vector<8x64xf32>
    %c13 = arith.constant 13 : index
    %c0_176 = arith.constant 0 : index
    %c0_177 = arith.constant 0 : index
    %409 = vector.load %arg8[%c13, %c0_176, %c0_177] : memref<16x8x64xf32, #tpu.memory_space<vmem>>, vector<1x8x64xf32>
    %410 = vector.shape_cast %409 : vector<1x8x64xf32> to vector<8x64xf32>
    %411 = vector.shape_cast %408 : vector<8x64xf32> to vector<1x8x64xf32>
    tpu.vector_store %arg8[%c13, %c0_176, %c0_177], %411 {strides = array<i32>} : memref<16x8x64xf32, #tpu.memory_space<vmem>>, vector<1x8x64xf32>,
    %412 = vector.extract_strided_slice %341 {offsets = [0, 14, 0], sizes = [8, 1, 64], strides = [1, 1, 1]} : vector<8x16x64xf32> to vector<8x1x64xf32>
    %413 = vector.shape_cast %412 : vector<8x1x64xf32> to vector<8x64xf32>
    %c14 = arith.constant 14 : index
    %c0_178 = arith.constant 0 : index
    %c0_179 = arith.constant 0 : index
    %414 = vector.load %arg8[%c14, %c0_178, %c0_179] : memref<16x8x64xf32, #tpu.memory_space<vmem>>, vector<1x8x64xf32>
    %415 = vector.shape_cast %414 : vector<1x8x64xf32> to vector<8x64xf32>
    %416 = vector.shape_cast %413 : vector<8x64xf32> to vector<1x8x64xf32>
    tpu.vector_store %arg8[%c14, %c0_178, %c0_179], %416 {strides = array<i32>} : memref<16x8x64xf32, #tpu.memory_space<vmem>>, vector<1x8x64xf32>,
    %417 = vector.extract_strided_slice %341 {offsets = [0, 15, 0], sizes = [8, 1, 64], strides = [1, 1, 1]} : vector<8x16x64xf32> to vector<8x1x64xf32>
    %418 = vector.shape_cast %417 : vector<8x1x64xf32> to vector<8x64xf32>
    %c15 = arith.constant 15 : index
    %c0_180 = arith.constant 0 : index
    %c0_181 = arith.constant 0 : index
    %419 = vector.load %arg8[%c15, %c0_180, %c0_181] : memref<16x8x64xf32, #tpu.memory_space<vmem>>, vector<1x8x64xf32>
    %420 = vector.shape_cast %419 : vector<1x8x64xf32> to vector<8x64xf32>
    %421 = vector.shape_cast %418 : vector<8x64xf32> to vector<1x8x64xf32>
    tpu.vector_store %arg8[%c15, %c0_180, %c0_181], %421 {strides = array<i32>} : memref<16x8x64xf32, #tpu.memory_space<vmem>>, vector<1x8x64xf32>,
    return
  }
  func.func @transform_0(%arg0: i32) -> (i32, i32, i32) {
    %c0_i32 = arith.constant 0 : i32
    %c0_i32_0 = arith.constant 0 : i32
    %c0_i32_1 = arith.constant 0 : i32
    return %arg0, %c0_i32, %c0_i32_0 : i32, i32, i32
  }
  func.func @transform_1(%arg0: i32) -> (i32, i32) {
    %c0_i32 = arith.constant 0 : i32
    %c0_i32_0 = arith.constant 0 : i32
    %c0_i32_1 = arith.constant 0 : i32
    return %c0_i32, %c0_i32_0 : i32, i32
  }
  func.func @transform_2(%arg0: i32) -> (i32, i32) {
    %c0_i32 = arith.constant 0 : i32
    %c0_i32_0 = arith.constant 0 : i32
    %c0_i32_1 = arith.constant 0 : i32
    return %c0_i32, %c0_i32_0 : i32, i32
  }
  func.func @transform_3(%arg0: i32) -> (i32, i32, i32) {
    %c0_i32 = arith.constant 0 : i32
    %c0_i32_0 = arith.constant 0 : i32
    %c0_i32_1 = arith.constant 0 : i32
    %c0_i32_2 = arith.constant 0 : i32
    return %c0_i32, %c0_i32_0, %c0_i32_1 : i32, i32, i32
  }
  func.func @transform_4(%arg0: i32) -> (i32, i32, i32) {
    %c0_i32 = arith.constant 0 : i32
    %c0_i32_0 = arith.constant 0 : i32
    %c0_i32_1 = arith.constant 0 : i32
    %c0_i32_2 = arith.constant 0 : i32
    return %c0_i32, %c0_i32_0, %c0_i32_1 : i32, i32, i32
  }
  func.func @transform_5(%arg0: i32) -> (i32, i32, i32, i32) {
    %c0_i32 = arith.constant 0 : i32
    %c0_i32_0 = arith.constant 0 : i32
    %c0_i32_1 = arith.constant 0 : i32
    %c0_i32_2 = arith.constant 0 : i32
    %c0_i32_3 = arith.constant 0 : i32
    return %c0_i32, %c0_i32_0, %c0_i32_1, %c0_i32_2 : i32, i32, i32, i32
  }
  func.func @transform_6(%arg0: i32) -> (i32, i32, i32) {
    %c0_i32 = arith.constant 0 : i32
    %c0_i32_0 = arith.constant 0 : i32
    %c0_i32_1 = arith.constant 0 : i32
    %c0_i32_2 = arith.constant 0 : i32
    return %c0_i32, %c0_i32_0, %c0_i32_1 : i32, i32, i32
  }
  func.func @transform_7(%arg0: i32) -> (i32, i32, i32) {
    %c0_i32 = arith.constant 0 : i32
    %c0_i32_0 = arith.constant 0 : i32
    %c0_i32_1 = arith.constant 0 : i32
    return %c0_i32, %arg0, %c0_i32_0 : i32, i32, i32
  }
}

</mosaic_0001>

<llo_original>
// kernel: tpu_custom_call.1
$region0: #{tpu_custom_call.1}
  #allocation0 [shape = 'u32[]', space=smem, size = 0x4, offset = 0x4, fixed_abs, tag = 'smem constant byte address 0x4 - core index']
  #allocation1 [shape = 'u32[144,128]{1,0:T(1,128)}', space=vmem, size = 0x12000, scoped, tag = 'internal scratch']
  %s0 = inlined_call_operand.hbm [shape: bf16[8,16,64], index: 0, kind: input, shape index: {}]
  %s1 = inlined_call_operand.vmem [shape: f32[2,64], index: 1, kind: input, shape index: {}]
  %s2 = inlined_call_operand.vmem [shape: bf16[64,64], index: 2, kind: input, shape index: {}]
  %s3 = inlined_call_operand.hbm [shape: bf16[2,64,192], index: 3, kind: input, shape index: {}]
  %s4 = inlined_call_operand.hbm [shape: f32[2,16,192], index: 4, kind: input, shape index: {}]
  %s5 = inlined_call_operand.hbm [shape: bf16[2,3,64,64], index: 5, kind: input, shape index: {}]
  %s6 = inlined_call_operand.vmem [shape: f32[2,7,64], index: 6, kind: input, shape index: {}]
  %s7 = inlined_call_operand.hbm [shape: f32[16,8,64], index: 7, kind: output, shape index: {}]
  %s8 = sld [smem:[#allocation0]]
  $region54: #{tpu_custom_call.1} parent=0
    _
  %s10 = ssub.s32 1, %s8
  %s11 = scalar_select 0, %s10, %s8
  $region1: #{tpu_custom_call.1} parent=0
    #allocation2 [shape = 'u8[32768]{0}', space=vmem, size = 0x8000, scoped, tag = 'input window, operand 0, single buffered']
    #allocation3 [shape = 's32[1]{0}', space=sflag, size = 0x4, scoped, tag = 'scoped memory for tpu_custom_call.1']
    #allocation4 [shape = 's32[1]{0}', space=sflag, size = 0x4, scoped, tag = 'scoped memory for tpu_custom_call.1']
    #allocation5 [shape = 'u8[65536]{0}', space=vmem, size = 0x10000, scoped, tag = 'input window, operand 3, single buffered']
    #allocation6 [shape = 's32[1]{0}', space=sflag, size = 0x4, scoped, tag = 'scoped memory for tpu_custom_call.1']
    #allocation7 [shape = 'u8[32768]{0}', space=vmem, size = 0x8000, scoped, tag = 'input window, operand 4, single buffered']
    #allocation8 [shape = 'u8[98304]{0}', space=vmem, size = 0x18000, scoped, tag = 'input window, operand 5, single buffered']
    #allocation9 [shape = 's32[1]{0}', space=sflag, size = 0x4, scoped, tag = 'scoped memory for tpu_custom_call.1']
    #allocation10 [shape = 'u8[65536]{0}', space=vmem, size = 0x10000, scoped, tag = 'output window, operand 0, single buffered']
    %12 = vsyncpa [#allocation3], 0
    %13 = vsyncpa [#allocation6], 0
    %14 = vsyncpa [#allocation9], 0
    %15 = vsyncpa [#allocation4], 0
    // Predicated region
    $region2: #{tpu_custom_call.1} parent=1 // pred_check
      _
    $region3: #{tpu_custom_call.1} parent=1 // pred_check_branch
      %17 = sbr.rel (0) target = $region5
    $region4: #{tpu_custom_call.1} parent=1 // pred_region
      %s19 = ssub.s32 1024, 1024
      %20 = vsyncadd [#allocation3], %s19
      %s21 = sshll.u32 [#allocation2], 4
      %s22 = int_to_ptr.vmem [resolvable:$true] %s21
      %27 = dma.hbm_to_vmem [thread:$0]  %s0, 1024, %s22, [#allocation3], 64, 64, 4
    $region5: #{tpu_custom_call.1} parent=1 // pred_fallthru
      _
    // Predicated region
    $region6: #{tpu_custom_call.1} parent=1 // pred_check
      _
    $region7: #{tpu_custom_call.1} parent=1 // pred_check_branch
      %29 = sbr.rel (0) target = $region9
    $region8: #{tpu_custom_call.1} parent=1 // pred_region
      _
    $region9: #{tpu_custom_call.1} parent=1 // pred_fallthru
      _
    // Predicated region
    $region10: #{tpu_custom_call.1} parent=1 // pred_check
      _
    $region11: #{tpu_custom_call.1} parent=1 // pred_check_branch
      %31 = sbr.rel (0) target = $region13
    $region12: #{tpu_custom_call.1} parent=1 // pred_region
      _
    $region13: #{tpu_custom_call.1} parent=1 // pred_fallthru
      _
    // Predicated region
    $region14: #{tpu_custom_call.1} parent=1 // pred_check
      _
    $region15: #{tpu_custom_call.1} parent=1 // pred_check_branch
      %33 = sbr.rel (0) target = $region17
    $region16: #{tpu_custom_call.1} parent=1 // pred_region
      %s35 = ssub.s32 2048, 2048
      %36 = vsyncadd [#allocation6], %s35
      %s37 = sshll.u32 [#allocation5], 4
      %s38 = int_to_ptr.vmem [resolvable:$true] %s37
      %43 = dma.hbm_to_vmem [thread:$0]  %s3, 2048, %s38, [#allocation6], 128, 128, 8
    $region17: #{tpu_custom_call.1} parent=1 // pred_fallthru
      _
    // Predicated region
    $region18: #{tpu_custom_call.1} parent=1 // pred_check
      _
    $region19: #{tpu_custom_call.1} parent=1 // pred_check_branch
      %45 = sbr.rel (0) target = $region21
    $region20: #{tpu_custom_call.1} parent=1 // pred_region
      %s47 = ssub.s32 1024, 1024
      %48 = vsyncadd [#allocation6], %s47
      %s49 = sshll.u32 [#allocation7], 4
      %s50 = int_to_ptr.vmem [resolvable:$true] %s49
      %55 = dma.hbm_to_vmem [thread:$0]  %s4, 1024, %s50, [#allocation6], 256, 256, 16
    $region21: #{tpu_custom_call.1} parent=1 // pred_fallthru
      _
    // Predicated region
    $region22: #{tpu_custom_call.1} parent=1 // pred_check
      _
    $region23: #{tpu_custom_call.1} parent=1 // pred_check_branch
      %57 = sbr.rel (0) target = $region25
    $region24: #{tpu_custom_call.1} parent=1 // pred_region
      %s59 = ssub.s32 3072, 3072
      %60 = vsyncadd [#allocation9], %s59
      %s61 = sshll.u32 [#allocation8], 4
      %s62 = int_to_ptr.vmem [resolvable:$true] %s61
      %67 = dma.hbm_to_vmem [thread:$0]  %s5, 3072, %s62, [#allocation9], 64, 64, 4
    $region25: #{tpu_custom_call.1} parent=1 // pred_fallthru
      _
    // Predicated region
    $region26: #{tpu_custom_call.1} parent=1 // pred_check
      _
    $region27: #{tpu_custom_call.1} parent=1 // pred_check_branch
      %69 = sbr.rel (0) target = $region29
    $region28: #{tpu_custom_call.1} parent=1 // pred_region
      _
    $region29: #{tpu_custom_call.1} parent=1 // pred_fallthru
      _
    // Predicated region
    $region30: #{tpu_custom_call.1} parent=1 // pred_check
      _
    $region31: #{tpu_custom_call.1} parent=1 // pred_check_branch
      %71 = sbr.rel (0) target = $region33
    $region32: #{tpu_custom_call.1} parent=1 // pred_region
      %72 = dma.done [#allocation3], 1024
    $region33: #{tpu_custom_call.1} parent=1 // pred_fallthru
      _
    // Predicated region
    $region34: #{tpu_custom_call.1} parent=1 // pred_check
      _
    $region35: #{tpu_custom_call.1} parent=1 // pred_check_branch
      %74 = sbr.rel (0) target = $region37
    $region36: #{tpu_custom_call.1} parent=1 // pred_region
      %75 = dma.done [#allocation6], 2048
    $region37: #{tpu_custom_call.1} parent=1 // pred_fallthru
      _
    // Predicated region
    $region38: #{tpu_custom_call.1} parent=1 // pred_check
      _
    $region39: #{tpu_custom_call.1} parent=1 // pred_check_branch
      %77 = sbr.rel (0) target = $region41
    $region40: #{tpu_custom_call.1} parent=1 // pred_region
      %78 = dma.done [#allocation6], 1024
    $region41: #{tpu_custom_call.1} parent=1 // pred_fallthru
      _
    // Predicated region
    $region42: #{tpu_custom_call.1} parent=1 // pred_check
      _
    $region43: #{tpu_custom_call.1} parent=1 // pred_check_branch
      %80 = sbr.rel (0) target = $region45
    $region44: #{tpu_custom_call.1} parent=1 // pred_region
      %81 = dma.done [#allocation9], 3072
    $region45: #{tpu_custom_call.1} parent=1 // pred_fallthru
      _
    %v83 = vld [vmem:[#allocation2] sm:$0xf]
    %v84 = vld [vmem:[#allocation2 + $0x4] sm:$0xf]
    %v85 = vld [vmem:[#allocation2 + $0x8] sm:$0xf]
    %v86 = vld [vmem:[#allocation2 + $0xc] sm:$0xf]
    %v87 = vld [vmem:[#allocation2 + $0x10] sm:$0xf]
    %v88 = vld [vmem:[#allocation2 + $0x14] sm:$0xf]
    %v89 = vld [vmem:[#allocation2 + $0x18] sm:$0xf]
    %v90 = vld [vmem:[#allocation2 + $0x1c] sm:$0xf]
    %v91 = vld [vmem:[#allocation2 + $0x20] sm:$0xf]
    %v92 = vld [vmem:[#allocation2 + $0x24] sm:$0xf]
    %v93 = vld [vmem:[#allocation2 + $0x28] sm:$0xf]
    %v94 = vld [vmem:[#allocation2 + $0x2c] sm:$0xf]
    %v95 = vld [vmem:[#allocation2 + $0x30] sm:$0xf]
    %v96 = vld [vmem:[#allocation2 + $0x34] sm:$0xf]
    %v97 = vld [vmem:[#allocation2 + $0x38] sm:$0xf]
    %v98 = vld [vmem:[#allocation2 + $0x3c] sm:$0xf]
    %v99 = vld [vmem:[%s1] sm:$0x1]
    %v100 = vld [vmem:[%s1 + $0x1] sm:$0x1]
    %v101 = vld [vmem:[%s2] sm:$0xf]
    %v102 = vld [vmem:[%s2 + $0x4] sm:$0xf]
    %v103 = vld [vmem:[%s2 + $0x8] sm:$0xf]
    %v104 = vld [vmem:[%s2 + $0xc] sm:$0xf]
    %v105 = vld [vmem:[%s2 + $0x10] sm:$0xf]
    %v106 = vld [vmem:[%s2 + $0x14] sm:$0xf]
    %v107 = vld [vmem:[%s2 + $0x18] sm:$0xf]
    %v108 = vld [vmem:[%s2 + $0x1c] sm:$0xf]
    %v109 = vlaneseq
    %v110 = vshrl.u32 %v109, 7
    %v111 = vsub.s32 0, %v110
    %v112 = vrot.slane %v99, %v111
    %v129 = vunpack.c.l.b16 %v83
    %v130 = vunpack.c.l.b16 %v84
    %v131 = vunpack.c.l.b16 %v85
    %v132 = vunpack.c.l.b16 %v86
    %v133 = vunpack.c.l.b16 %v87
    %v134 = vunpack.c.l.b16 %v88
    %v135 = vunpack.c.l.b16 %v89
    %v136 = vunpack.c.l.b16 %v90
    %v137 = vunpack.c.l.b16 %v91
    %v138 = vunpack.c.l.b16 %v92
    %v139 = vunpack.c.l.b16 %v93
    %v140 = vunpack.c.l.b16 %v94
    %v141 = vunpack.c.l.b16 %v95
    %v142 = vunpack.c.l.b16 %v96
    %v143 = vunpack.c.l.b16 %v97
    %v144 = vunpack.c.l.b16 %v98
    %v145 = vpack.c.b16 %v130, %v129
    %v146 = vpack.c.b16 %v132, %v131
    %v147 = vpack.c.b16 %v134, %v133
    %v148 = vpack.c.b16 %v136, %v135
    %v149 = vpack.c.b16 %v138, %v137
    %v150 = vpack.c.b16 %v140, %v139
    %v151 = vpack.c.b16 %v142, %v141
    %v152 = vpack.c.b16 %v144, %v143
    %v161 = vunpack.c.l.b16 %v101
    %v162 = vunpack.c.l.b16 %v102
    %v163 = vunpack.c.l.b16 %v103
    %v164 = vunpack.c.l.b16 %v104
    %v165 = vunpack.c.l.b16 %v105
    %v166 = vunpack.c.l.b16 %v106
    %v167 = vunpack.c.l.b16 %v107
    %v168 = vunpack.c.l.b16 %v108
    %v169 = vpack.c.b16 %v162, %v161
    %v170 = vpack.c.b16 %v164, %v163
    %v171 = vpack.c.b16 %v166, %v165
    %v172 = vpack.c.b16 %v168, %v167
    %vm177 = vcmask 523264
    %v179 = vsel %vm177, %v145, 0
    %v182 = vsel %vm177, %v146, 0
    %v185 = vsel %vm177, %v147, 0
    %v188 = vsel %vm177, %v148, 0
    %v191 = vsel %vm177, %v149, 0
    %v194 = vsel %vm177, %v150, 0
    %v197 = vsel %vm177, %v151, 0
    %v200 = vsel %vm177, %v152, 0
    %202 = vmatprep.subr.bf16.mxu0 0
    %203 = vmatpush1.bf16.msra.mxu0 %v169
    %204 = vmatprep.subr.bf16.mxu0 0
    %205 = vmatpush1.bf16.msra.mxu0 %v170
    %206 = vmatprep.subr.bf16.mxu0 0
    %207 = vmatpush1.bf16.msra.mxu0 %v171
    %208 = vmatprep.subr.bf16.mxu0 0
    %209 = vmatpush1.bf16.msra.mxu0 %v172
    %210 = vmatprep.subr.bf16.mxu0 0
    %211 = vmatpush1.bf16.msra.mxu0 0
    %212 = vmatprep.subr.bf16.mxu0 0
    %213 = vmatpush1.bf16.msra.mxu0 0
    %214 = vmatprep.subr.bf16.mxu0 0
    %215 = vmatpush1.bf16.msra.mxu0 0
    %216 = vmatprep.subr.bf16.mxu0 0
    %217 = vmatpush1.bf16.msra.mxu0 0
    %218 = vmatprep.subr.bf16.mxu0 0
    %219 = vmatpush1.bf16.msra.mxu0 0
    %220 = vmatprep.subr.bf16.mxu0 0
    %221 = vmatpush1.bf16.msra.mxu0 0
    %222 = vmatprep.subr.bf16.mxu0 0
    %223 = vmatpush1.bf16.msra.mxu0 0
    %224 = vmatprep.subr.bf16.mxu0 0
    %225 = vmatpush1.bf16.msra.mxu0 0
    %226 = vmatprep.subr.bf16.mxu0 0
    %227 = vmatpush1.bf16.msra.mxu0 0
    %228 = vmatprep.subr.bf16.mxu0 0
    %229 = vmatpush1.bf16.msra.mxu0 0
    %230 = vmatprep.subr.bf16.mxu0 0
    %231 = vmatpush1.bf16.msra.mxu0 0
    %232 = vmatprep.subr.bf16.mxu0 0
    %233 = vmatpush1.bf16.msra.mxu0 0
    %234 = vmatprep.mubr.bf16.mxu0 0
    %235 = vmatmul.mubr.bf16.gmra.mrb[0].mxu0 %v179
    %v236 = vpop.f32.mrb[0].mxu0
    %v237 = vadd.f32 %v112, %v236
    %v238 = vpop.f32.mrb[0].mxu0
    %v239 = vpop.f32.mrb[0].mxu0
    %v240 = vadd.f32 %v112, %v239
    %v241 = vpop.f32.mrb[0].mxu0
    %242 = vmatprep.mubr.bf16.mxu0 0
    %243 = vmatmul.mubr.bf16.gmra.mrb[0].mxu0 %v182
    %v244 = vpop.f32.mrb[0].mxu0
    %v245 = vadd.f32 %v112, %v244
    %v246 = vpop.f32.mrb[0].mxu0
    %v247 = vpop.f32.mrb[0].mxu0
    %v248 = vadd.f32 %v112, %v247
    %v249 = vpop.f32.mrb[0].mxu0
    %250 = vmatprep.mubr.bf16.mxu0 0
    %251 = vmatmul.mubr.bf16.gmra.mrb[0].mxu0 %v185
    %v252 = vpop.f32.mrb[0].mxu0
    %v253 = vadd.f32 %v112, %v252
    %v254 = vpop.f32.mrb[0].mxu0
    %v255 = vpop.f32.mrb[0].mxu0
    %v256 = vadd.f32 %v112, %v255
    %v257 = vpop.f32.mrb[0].mxu0
    %258 = vmatprep.mubr.bf16.mxu0 0
    %259 = vmatmul.mubr.bf16.gmra.mrb[0].mxu0 %v188
    %v260 = vpop.f32.mrb[0].mxu0
    %v261 = vadd.f32 %v112, %v260
    %v262 = vpop.f32.mrb[0].mxu0
    %v263 = vpop.f32.mrb[0].mxu0
    %v264 = vadd.f32 %v112, %v263
    %v265 = vpop.f32.mrb[0].mxu0
    %266 = vmatprep.mubr.bf16.mxu0 0
    %267 = vmatmul.mubr.bf16.gmra.mrb[0].mxu0 %v191
    %v268 = vpop.f32.mrb[0].mxu0
    %v269 = vadd.f32 %v112, %v268
    %v270 = vpop.f32.mrb[0].mxu0
    %v271 = vpop.f32.mrb[0].mxu0
    %v272 = vadd.f32 %v112, %v271
    %v273 = vpop.f32.mrb[0].mxu0
    %274 = vmatprep.mubr.bf16.mxu0 0
    %275 = vmatmul.mubr.bf16.gmra.mrb[0].mxu0 %v194
    %v276 = vpop.f32.mrb[0].mxu0
    %v277 = vadd.f32 %v112, %v276
    %v278 = vpop.f32.mrb[0].mxu0
    %v279 = vpop.f32.mrb[0].mxu0
    %v280 = vadd.f32 %v112, %v279
    %v281 = vpop.f32.mrb[0].mxu0
    %282 = vmatprep.mubr.bf16.mxu0 0
    %283 = vmatmul.mubr.bf16.gmra.mrb[0].mxu0 %v197
    %v284 = vpop.f32.mrb[0].mxu0
    %v285 = vadd.f32 %v112, %v284
    %v286 = vpop.f32.mrb[0].mxu0
    %v287 = vpop.f32.mrb[0].mxu0
    %v288 = vadd.f32 %v112, %v287
    %v289 = vpop.f32.mrb[0].mxu0
    %290 = vmatprep.mubr.bf16.mxu0 0
    %291 = vmatmul.mubr.bf16.gmra.mrb[0].mxu0 %v200
    %v292 = vpop.f32.mrb[0].mxu0
    %v293 = vadd.f32 %v112, %v292
    %v294 = vpop.f32.mrb[0].mxu0
    %v295 = vpop.f32.mrb[0].mxu0
    %v296 = vadd.f32 %v112, %v295
    %v297 = vpop.f32.mrb[0].mxu0
    %298 = vdwg.mxu0
    %vm299 = vcmp.ge.f32.partialorder %v237, 0.0
    %vm300 = vcmp.ge.f32.partialorder %v240, 0.0
    %vm301 = vcmp.ge.f32.partialorder %v245, 0.0
    %vm302 = vcmp.ge.f32.partialorder %v248, 0.0
    %vm303 = vcmp.ge.f32.partialorder %v253, 0.0
    %vm304 = vcmp.ge.f32.partialorder %v256, 0.0
    %vm305 = vcmp.ge.f32.partialorder %v261, 0.0
    %vm306 = vcmp.ge.f32.partialorder %v264, 0.0
    %vm307 = vcmp.ge.f32.partialorder %v269, 0.0
    %vm308 = vcmp.ge.f32.partialorder %v272, 0.0
    %vm309 = vcmp.ge.f32.partialorder %v277, 0.0
    %vm310 = vcmp.ge.f32.partialorder %v280, 0.0
    %vm311 = vcmp.ge.f32.partialorder %v285, 0.0
    %vm312 = vcmp.ge.f32.partialorder %v288, 0.0
    %vm313 = vcmp.ge.f32.partialorder %v293, 0.0
    %vm314 = vcmp.ge.f32.partialorder %v296, 0.0
    %v315 = vlaneseq
    %v316 = vshrl.u32 %v315, 7
    %v317 = vsub.s32 0, %v316
    %v318 = vrot.slane %v100, %v317
    %v319 = vmul.f32 %v237, %v318
    %v320 = vmul.f32 %v240, %v318
    %v321 = vmul.f32 %v245, %v318
    %v322 = vmul.f32 %v248, %v318
    %v323 = vmul.f32 %v253, %v318
    %v324 = vmul.f32 %v256, %v318
    %v325 = vmul.f32 %v261, %v318
    %v326 = vmul.f32 %v264, %v318
    %v327 = vmul.f32 %v269, %v318
    %v328 = vmul.f32 %v272, %v318
    %v329 = vmul.f32 %v277, %v318
    %v330 = vmul.f32 %v280, %v318
    %v331 = vmul.f32 %v285, %v318
    %v332 = vmul.f32 %v288, %v318
    %v333 = vmul.f32 %v293, %v318
    %v334 = vmul.f32 %v296, %v318
    %v335 = vsel %vm299, %v237, %v319
    %v336 = vsel %vm300, %v240, %v320
    %v337 = vsel %vm301, %v245, %v321
    %v338 = vsel %vm302, %v248, %v322
    %v339 = vsel %vm303, %v253, %v323
    %v340 = vsel %vm304, %v256, %v324
    %v341 = vsel %vm305, %v261, %v325
    %v342 = vsel %vm306, %v264, %v326
    %v343 = vsel %vm307, %v269, %v327
    %v344 = vsel %vm308, %v272, %v328
    %v345 = vsel %vm309, %v277, %v329
    %v346 = vsel %vm310, %v280, %v330
    %v347 = vsel %vm311, %v285, %v331
    %v348 = vsel %vm312, %v288, %v332
    %v349 = vsel %vm313, %v293, %v333
    %v350 = vsel %vm314, %v296, %v334
    %v351 = vld [vmem:[#allocation5] sm:$0xff]
    %v352 = vld [vmem:[#allocation5 + $0x8] sm:$0xff]
    %v353 = vld [vmem:[#allocation5 + $0x10] sm:$0xff]
    %v354 = vld [vmem:[#allocation5 + $0x18] sm:$0xff]
    %v355 = vld [vmem:[#allocation5 + $0x20] sm:$0xff]
    %v356 = vld [vmem:[#allocation5 + $0x28] sm:$0xff]
    %v357 = vld [vmem:[#allocation5 + $0x30] sm:$0xff]
    %v358 = vld [vmem:[#allocation5 + $0x38] sm:$0xff]
    %v359 = vld [vmem:[#allocation7] sm:$0xff]
    %v360 = vld [vmem:[#allocation7 + $0x8] sm:$0xff]
    %v361 = vld [vmem:[#allocation7 + $0x10] sm:$0xff]
    %v362 = vld [vmem:[#allocation7 + $0x18] sm:$0xff]
    %v363 = vld [vmem:[#allocation8] sm:$0xf]
    %v364 = vld [vmem:[#allocation8 + $0x4] sm:$0xf]
    %v365 = vld [vmem:[#allocation8 + $0x8] sm:$0xf]
    %v366 = vld [vmem:[#allocation8 + $0xc] sm:$0xf]
    %v367 = vld [vmem:[#allocation8 + $0x10] sm:$0xf]
    %v368 = vld [vmem:[#allocation8 + $0x14] sm:$0xf]
    %v369 = vld [vmem:[#allocation8 + $0x18] sm:$0xf]
    %v370 = vld [vmem:[#allocation8 + $0x1c] sm:$0xf]
    %s371 = scalar_lea.vmem [#allocation8], 32
    %v372 = vld [vmem:[%s371] sm:$0xf]
    %v373 = vld [vmem:[%s371 + $0x4] sm:$0xf]
    %v374 = vld [vmem:[%s371 + $0x8] sm:$0xf]
    %v375 = vld [vmem:[%s371 + $0xc] sm:$0xf]
    %v376 = vld [vmem:[%s371 + $0x10] sm:$0xf]
    %v377 = vld [vmem:[%s371 + $0x14] sm:$0xf]
    %v378 = vld [vmem:[%s371 + $0x18] sm:$0xf]
    %v379 = vld [vmem:[%s371 + $0x1c] sm:$0xf]
    %s380 = scalar_lea.vmem [#allocation8], 64
    %v381 = vld [vmem:[%s380] sm:$0xf]
    %v382 = vld [vmem:[%s380 + $0x4] sm:$0xf]
    %v383 = vld [vmem:[%s380 + $0x8] sm:$0xf]
    %v384 = vld [vmem:[%s380 + $0xc] sm:$0xf]
    %v385 = vld [vmem:[%s380 + $0x10] sm:$0xf]
    %v386 = vld [vmem:[%s380 + $0x14] sm:$0xf]
    %v387 = vld [vmem:[%s380 + $0x18] sm:$0xf]
    %v388 = vld [vmem:[%s380 + $0x1c] sm:$0xf]
    %v389 = vld [vmem:[%s6] sm:$0x1]
    %v390 = vld [vmem:[%s6 + $0x1] sm:$0x1]
    %v391 = vld [vmem:[%s6 + $0x2] sm:$0x1]
    %v392 = vld [vmem:[%s6 + $0x3] sm:$0x1]
    %v393 = vld [vmem:[%s6 + $0x4] sm:$0x1]
    %v394 = vld [vmem:[%s6 + $0x5] sm:$0x1]
    %v395 = vld [vmem:[%s6 + $0x6] sm:$0x1]
    %v396 = vpack.c.bf16 %v336, %v335
    %v397 = vpack.c.bf16 %v338, %v337
    %v398 = vpack.c.bf16 %v340, %v339
    %v399 = vpack.c.bf16 %v342, %v341
    %v400 = vpack.c.bf16 %v344, %v343
    %v401 = vpack.c.bf16 %v346, %v345
    %v402 = vpack.c.bf16 %v348, %v347
    %v403 = vpack.c.bf16 %v350, %v349
    %v412 = vunpack.c.l.b16 %v351
    %v413 = vunpack.c.h.b16 %v351
    %v414 = vunpack.c.l.b16 %v352
    %v415 = vunpack.c.h.b16 %v352
    %v416 = vunpack.c.l.b16 %v353
    %v417 = vunpack.c.h.b16 %v353
    %v418 = vunpack.c.l.b16 %v354
    %v419 = vunpack.c.h.b16 %v354
    %v420 = vunpack.c.l.b16 %v355
    %v421 = vunpack.c.h.b16 %v355
    %v422 = vunpack.c.l.b16 %v356
    %v423 = vunpack.c.h.b16 %v356
    %v424 = vunpack.c.l.b16 %v357
    %v425 = vunpack.c.h.b16 %v357
    %v426 = vunpack.c.l.b16 %v358
    %v427 = vunpack.c.h.b16 %v358
    %v428 = vpack.c.b16 %v414, %v412
    %v429 = vpack.c.b16 %v415, %v413
    %v430 = vpack.c.b16 %v418, %v416
    %v431 = vpack.c.b16 %v419, %v417
    %v432 = vpack.c.b16 %v422, %v420
    %v433 = vpack.c.b16 %v423, %v421
    %v434 = vpack.c.b16 %v426, %v424
    %v435 = vpack.c.b16 %v427, %v425
    %v445 = vsel %vm177, %v396, 0
    %v448 = vsel %vm177, %v397, 0
    %v451 = vsel %vm177, %v398, 0
    %v454 = vsel %vm177, %v399, 0
    %v457 = vsel %vm177, %v400, 0
    %v460 = vsel %vm177, %v401, 0
    %v463 = vsel %vm177, %v402, 0
    %v466 = vsel %vm177, %v403, 0
    %468 = vmatprep.subr.bf16.mxu0 %v429
    %469 = vmatpush1.bf16.msra.mxu0 %v428
    %470 = vmatprep.subr.bf16.mxu0 %v431
    %471 = vmatpush1.bf16.msra.mxu0 %v430
    %472 = vmatprep.subr.bf16.mxu0 %v433
    %473 = vmatpush1.bf16.msra.mxu0 %v432
    %474 = vmatprep.subr.bf16.mxu0 %v435
    %475 = vmatpush1.bf16.msra.mxu0 %v434
    %476 = vmatprep.subr.bf16.mxu0 0
    %477 = vmatpush1.bf16.msra.mxu0 0
    %478 = vmatprep.subr.bf16.mxu0 0
    %479 = vmatpush1.bf16.msra.mxu0 0
    %480 = vmatprep.subr.bf16.mxu0 0
    %481 = vmatpush1.bf16.msra.mxu0 0
    %482 = vmatprep.subr.bf16.mxu0 0
    %483 = vmatpush1.bf16.msra.mxu0 0
    %484 = vmatprep.subr.bf16.mxu0 0
    %485 = vmatpush1.bf16.msra.mxu0 0
    %486 = vmatprep.subr.bf16.mxu0 0
    %487 = vmatpush1.bf16.msra.mxu0 0
    %488 = vmatprep.subr.bf16.mxu0 0
    %489 = vmatpush1.bf16.msra.mxu0 0
    %490 = vmatprep.subr.bf16.mxu0 0
    %491 = vmatpush1.bf16.msra.mxu0 0
    %492 = vmatprep.subr.bf16.mxu0 0
    %493 = vmatpush1.bf16.msra.mxu0 0
    %494 = vmatprep.subr.bf16.mxu0 0
    %495 = vmatpush1.bf16.msra.mxu0 0
    %496 = vmatprep.subr.bf16.mxu0 0
    %497 = vmatpush1.bf16.msra.mxu0 0
    %498 = vmatprep.subr.bf16.mxu0 0
    %499 = vmatpush1.bf16.msra.mxu0 0
    %500 = vmatprep.mubr.bf16.mxu0 0
    %501 = vmatmul.mubr.bf16.gmra.mrb[0].mxu0 %v445
    %v502 = vpop.f32.mrb[0].mxu0
    %v503 = vadd.f32 0.0, %v502
    %v504 = vpop.f32.mrb[0].mxu0
    %v505 = vadd.f32 0.0, %v504
    %v506 = vpop.f32.mrb[0].mxu0
    %v507 = vadd.f32 0.0, %v506
    %v508 = vpop.f32.mrb[0].mxu0
    %v509 = vadd.f32 0.0, %v508
    %510 = vmatprep.mubr.bf16.mxu0 0
    %511 = vmatmul.mubr.bf16.gmra.mrb[0].mxu0 %v448
    %v512 = vpop.f32.mrb[0].mxu0
    %v513 = vadd.f32 0.0, %v512
    %v514 = vpop.f32.mrb[0].mxu0
    %v515 = vadd.f32 0.0, %v514
    %v516 = vpop.f32.mrb[0].mxu0
    %v517 = vadd.f32 0.0, %v516
    %v518 = vpop.f32.mrb[0].mxu0
    %v519 = vadd.f32 0.0, %v518
    %520 = vmatprep.mubr.bf16.mxu0 0
    %521 = vmatmul.mubr.bf16.gmra.mrb[0].mxu0 %v451
    %v522 = vpop.f32.mrb[0].mxu0
    %v523 = vadd.f32 0.0, %v522
    %v524 = vpop.f32.mrb[0].mxu0
    %v525 = vadd.f32 0.0, %v524
    %v526 = vpop.f32.mrb[0].mxu0
    %v527 = vadd.f32 0.0, %v526
    %v528 = vpop.f32.mrb[0].mxu0
    %v529 = vadd.f32 0.0, %v528
    %530 = vmatprep.mubr.bf16.mxu0 0
    %531 = vmatmul.mubr.bf16.gmra.mrb[0].mxu0 %v454
    %v532 = vpop.f32.mrb[0].mxu0
    %v533 = vadd.f32 0.0, %v532
    %v534 = vpop.f32.mrb[0].mxu0
    %v535 = vadd.f32 0.0, %v534
    %v536 = vpop.f32.mrb[0].mxu0
    %v537 = vadd.f32 0.0, %v536
    %v538 = vpop.f32.mrb[0].mxu0
    %v539 = vadd.f32 0.0, %v538
    %540 = vmatprep.mubr.bf16.mxu0 0
    %541 = vmatmul.mubr.bf16.gmra.mrb[0].mxu0 %v457
    %v542 = vpop.f32.mrb[0].mxu0
    %v543 = vadd.f32 0.0, %v542
    %v544 = vpop.f32.mrb[0].mxu0
    %v545 = vadd.f32 0.0, %v544
    %v546 = vpop.f32.mrb[0].mxu0
    %v547 = vadd.f32 0.0, %v546
    %v548 = vpop.f32.mrb[0].mxu0
    %v549 = vadd.f32 0.0, %v548
    %550 = vmatprep.mubr.bf16.mxu0 0
    %551 = vmatmul.mubr.bf16.gmra.mrb[0].mxu0 %v460
    %v552 = vpop.f32.mrb[0].mxu0
    %v553 = vadd.f32 0.0, %v552
    %v554 = vpop.f32.mrb[0].mxu0
    %v555 = vadd.f32 0.0, %v554
    %v556 = vpop.f32.mrb[0].mxu0
    %v557 = vadd.f32 0.0, %v556
    %v558 = vpop.f32.mrb[0].mxu0
    %v559 = vadd.f32 0.0, %v558
    %560 = vmatprep.mubr.bf16.mxu0 0
    %561 = vmatmul.mubr.bf16.gmra.mrb[0].mxu0 %v463
    %v562 = vpop.f32.mrb[0].mxu0
    %v563 = vadd.f32 0.0, %v562
    %v564 = vpop.f32.mrb[0].mxu0
    %v565 = vadd.f32 0.0, %v564
    %v566 = vpop.f32.mrb[0].mxu0
    %v567 = vadd.f32 0.0, %v566
    %v568 = vpop.f32.mrb[0].mxu0
    %v569 = vadd.f32 0.0, %v568
    %570 = vmatprep.mubr.bf16.mxu0 0
    %571 = vmatmul.mubr.bf16.gmra.mrb[0].mxu0 %v466
    %v572 = vpop.f32.mrb[0].mxu0
    %v573 = vadd.f32 0.0, %v572
    %v574 = vpop.f32.mrb[0].mxu0
    %v575 = vadd.f32 0.0, %v574
    %v576 = vpop.f32.mrb[0].mxu0
    %v577 = vadd.f32 0.0, %v576
    %v578 = vpop.f32.mrb[0].mxu0
    %v579 = vadd.f32 0.0, %v578
    %580 = vdwg.mxu0
    %v581 = vadd.f32 %v503, %v359
    %v582 = vadd.f32 %v505, %v360
    %v583 = vadd.f32 %v507, %v361
    %v584 = vadd.f32 %v509, %v362
    %v585 = vadd.f32 %v513, %v359
    %v586 = vadd.f32 %v515, %v360
    %v587 = vadd.f32 %v517, %v361
    %v588 = vadd.f32 %v519, %v362
    %v589 = vadd.f32 %v523, %v359
    %v590 = vadd.f32 %v525, %v360
    %v591 = vadd.f32 %v527, %v361
    %v592 = vadd.f32 %v529, %v362
    %v593 = vadd.f32 %v533, %v359
    %v594 = vadd.f32 %v535, %v360
    %v595 = vadd.f32 %v537, %v361
    %v596 = vadd.f32 %v539, %v362
    %v597 = vadd.f32 %v543, %v359
    %v598 = vadd.f32 %v545, %v360
    %v599 = vadd.f32 %v547, %v361
    %v600 = vadd.f32 %v549, %v362
    %v601 = vadd.f32 %v553, %v359
    %v602 = vadd.f32 %v555, %v360
    %v603 = vadd.f32 %v557, %v361
    %v604 = vadd.f32 %v559, %v362
    %v605 = vadd.f32 %v563, %v359
    %v606 = vadd.f32 %v565, %v360
    %v607 = vadd.f32 %v567, %v361
    %v608 = vadd.f32 %v569, %v362
    %v609 = vadd.f32 %v573, %v359
    %v610 = vadd.f32 %v575, %v360
    %v611 = vadd.f32 %v577, %v361
    %v612 = vadd.f32 %v579, %v362
    %v613 = vpack.c.bf16 %v583, %v581
    %v614 = vpack.c.bf16 %v587, %v585
    %v615 = vpack.c.bf16 %v591, %v589
    %v616 = vpack.c.bf16 %v595, %v593
    %v617 = vpack.c.bf16 %v599, %v597
    %v618 = vpack.c.bf16 %v603, %v601
    %v619 = vpack.c.bf16 %v607, %v605
    %v620 = vpack.c.bf16 %v611, %v609
    %v621 = vpack.c.bf16 %v584, %v582
    %v622 = vpack.c.bf16 %v588, %v586
    %v623 = vpack.c.bf16 %v592, %v590
    %v624 = vpack.c.bf16 %v596, %v594
    %v625 = vpack.c.bf16 %v600, %v598
    %v626 = vpack.c.bf16 %v604, %v602
    %v627 = vpack.c.bf16 %v608, %v606
    %v628 = vpack.c.bf16 %v612, %v610
    %630 = vrot.lane.b32.xlu0 %v613, 64
    %v631 = vpop.permute.xlu0 %630
    %vm632 = vcmask 130048
    %v634 = vsel %vm632, %v613, 0
    %v637 = vsel %vm632, %v631, 0
    %639 = vmatprep.subr.bf16.mxu0 0
    %640 = vmatpush1.bf16.xpose.msra.mxu0 %v637
    %641 = vmatprep.subr.bf16.mxu0 0
    %642 = vmatpush1.bf16.xpose.msra.mxu0 0
    %643 = vmatprep.subr.bf16.mxu0 0
    %644 = vmatpush1.bf16.xpose.msra.mxu0 0
    %645 = vmatprep.subr.bf16.mxu0 0
    %646 = vmatpush1.bf16.xpose.msra.mxu0 0
    %647 = vmatprep.subr.bf16.mxu0 0
    %648 = vmatpush1.bf16.xpose.msra.mxu0 0
    %649 = vmatprep.subr.bf16.mxu0 0
    %650 = vmatpush1.bf16.xpose.msra.mxu0 0
    %651 = vmatprep.subr.bf16.mxu0 0
    %652 = vmatpush1.bf16.xpose.msra.mxu0 0
    %653 = vmatprep.subr.bf16.mxu0 0
    %654 = vmatpush1.bf16.xpose.msra.mxu0 0
    %655 = vmatprep.subr.bf16.mxu0 0
    %656 = vmatpush1.bf16.xpose.msra.mxu0 0
    %657 = vmatprep.subr.bf16.mxu0 0
    %658 = vmatpush1.bf16.xpose.msra.mxu0 0
    %659 = vmatprep.subr.bf16.mxu0 0
    %660 = vmatpush1.bf16.xpose.msra.mxu0 0
    %661 = vmatprep.subr.bf16.mxu0 0
    %662 = vmatpush1.bf16.xpose.msra.mxu0 0
    %663 = vmatprep.subr.bf16.mxu0 0
    %664 = vmatpush1.bf16.xpose.msra.mxu0 0
    %665 = vmatprep.subr.bf16.mxu0 0
    %666 = vmatpush1.bf16.xpose.msra.mxu0 0
    %667 = vmatprep.subr.bf16.mxu0 0
    %668 = vmatpush1.bf16.xpose.msra.mxu0 0
    %669 = vmatprep.subr.bf16.mxu0 0
    %670 = vmatpush1.bf16.xpose.msra.mxu0 0
    %671 = vmatprep.mubr.bf16.mxu0 0
    %672 = vmatmul.mubr.bf16.gmra.mrb[0].mxu0 %v634
    %v673 = vpop.f32.mrb[0].mxu0
    %v674 = vadd.f32 0.0, %v673
    %v675 = vpop.f32.mrb[0].mxu0
    %v676 = vpop.f32.mrb[0].mxu0
    %v677 = vadd.f32 0.0, %v676
    %v678 = vpop.f32.mrb[0].mxu0
    %679 = vdwg.mxu0
    %681 = vrot.lane.b32.xlu0 %v614, 64
    %v682 = vpop.permute.xlu0 %681
    %v684 = vsel %vm632, %v614, 0
    %v687 = vsel %vm632, %v682, 0
    %689 = vmatprep.subr.bf16.mxu0 0
    %690 = vmatpush1.bf16.xpose.msra.mxu0 %v687
    %691 = vmatprep.subr.bf16.mxu0 0
    %692 = vmatpush1.bf16.xpose.msra.mxu0 0
    %693 = vmatprep.subr.bf16.mxu0 0
    %694 = vmatpush1.bf16.xpose.msra.mxu0 0
    %695 = vmatprep.subr.bf16.mxu0 0
    %696 = vmatpush1.bf16.xpose.msra.mxu0 0
    %697 = vmatprep.subr.bf16.mxu0 0
    %698 = vmatpush1.bf16.xpose.msra.mxu0 0
    %699 = vmatprep.subr.bf16.mxu0 0
    %700 = vmatpush1.bf16.xpose.msra.mxu0 0
    %701 = vmatprep.subr.bf16.mxu0 0
    %702 = vmatpush1.bf16.xpose.msra.mxu0 0
    %703 = vmatprep.subr.bf16.mxu0 0
    %704 = vmatpush1.bf16.xpose.msra.mxu0 0
    %705 = vmatprep.subr.bf16.mxu0 0
    %706 = vmatpush1.bf16.xpose.msra.mxu0 0
    %707 = vmatprep.subr.bf16.mxu0 0
    %708 = vmatpush1.bf16.xpose.msra.mxu0 0
    %709 = vmatprep.subr.bf16.mxu0 0
    %710 = vmatpush1.bf16.xpose.msra.mxu0 0
    %711 = vmatprep.subr.bf16.mxu0 0
    %712 = vmatpush1.bf16.xpose.msra.mxu0 0
    %713 = vmatprep.subr.bf16.mxu0 0
    %714 = vmatpush1.bf16.xpose.msra.mxu0 0
    %715 = vmatprep.subr.bf16.mxu0 0
    %716 = vmatpush1.bf16.xpose.msra.mxu0 0
    %717 = vmatprep.subr.bf16.mxu0 0
    %718 = vmatpush1.bf16.xpose.msra.mxu0 0
    %719 = vmatprep.subr.bf16.mxu0 0
    %720 = vmatpush1.bf16.xpose.msra.mxu0 0
    %721 = vmatprep.mubr.bf16.mxu0 0
    %722 = vmatmul.mubr.bf16.gmra.mrb[0].mxu0 %v684
    %v723 = vpop.f32.mrb[0].mxu0
    %v724 = vadd.f32 0.0, %v723
    %v725 = vpop.f32.mrb[0].mxu0
    %v726 = vpop.f32.mrb[0].mxu0
    %v727 = vadd.f32 0.0, %v726
    %v728 = vpop.f32.mrb[0].mxu0
    %729 = vdwg.mxu0
    %731 = vrot.lane.b32.xlu0 %v615, 64
    %v732 = vpop.permute.xlu0 %731
    %v734 = vsel %vm632, %v615, 0
    %v737 = vsel %vm632, %v732, 0
    %739 = vmatprep.subr.bf16.mxu0 0
    %740 = vmatpush1.bf16.xpose.msra.mxu0 %v737
    %741 = vmatprep.subr.bf16.mxu0 0
    %742 = vmatpush1.bf16.xpose.msra.mxu0 0
    %743 = vmatprep.subr.bf16.mxu0 0
    %744 = vmatpush1.bf16.xpose.msra.mxu0 0
    %745 = vmatprep.subr.bf16.mxu0 0
    %746 = vmatpush1.bf16.xpose.msra.mxu0 0
    %747 = vmatprep.subr.bf16.mxu0 0
    %748 = vmatpush1.bf16.xpose.msra.mxu0 0
    %749 = vmatprep.subr.bf16.mxu0 0
    %750 = vmatpush1.bf16.xpose.msra.mxu0 0
    %751 = vmatprep.subr.bf16.mxu0 0
    %752 = vmatpush1.bf16.xpose.msra.mxu0 0
    %753 = vmatprep.subr.bf16.mxu0 0
    %754 = vmatpush1.bf16.xpose.msra.mxu0 0
    %755 = vmatprep.subr.bf16.mxu0 0
    %756 = vmatpush1.bf16.xpose.msra.mxu0 0
    %757 = vmatprep.subr.bf16.mxu0 0
    %758 = vmatpush1.bf16.xpose.msra.mxu0 0
    %759 = vmatprep.subr.bf16.mxu0 0
    %760 = vmatpush1.bf16.xpose.msra.mxu0 0
    %761 = vmatprep.subr.bf16.mxu0 0
    %762 = vmatpush1.bf16.xpose.msra.mxu0 0
    %763 = vmatprep.subr.bf16.mxu0 0
    %764 = vmatpush1.bf16.xpose.msra.mxu0 0
    %765 = vmatprep.subr.bf16.mxu0 0
    %766 = vmatpush1.bf16.xpose.msra.mxu0 0
    %767 = vmatprep.subr.bf16.mxu0 0
    %768 = vmatpush1.bf16.xpose.msra.mxu0 0
    %769 = vmatprep.subr.bf16.mxu0 0
    %770 = vmatpush1.bf16.xpose.msra.mxu0 0
    %771 = vmatprep.mubr.bf16.mxu0 0
    %772 = vmatmul.mubr.bf16.gmra.mrb[0].mxu0 %v734
    %v773 = vpop.f32.mrb[0].mxu0
    %v774 = vadd.f32 0.0, %v773
    %v775 = vpop.f32.mrb[0].mxu0
    %v776 = vpop.f32.mrb[0].mxu0
    %v777 = vadd.f32 0.0, %v776
    %v778 = vpop.f32.mrb[0].mxu0
    %779 = vdwg.mxu0
    %781 = vrot.lane.b32.xlu0 %v616, 64
    %v782 = vpop.permute.xlu0 %781
    %v784 = vsel %vm632, %v616, 0
    %v787 = vsel %vm632, %v782, 0
    %789 = vmatprep.subr.bf16.mxu0 0
    %790 = vmatpush1.bf16.xpose.msra.mxu0 %v787
    %791 = vmatprep.subr.bf16.mxu0 0
    %792 = vmatpush1.bf16.xpose.msra.mxu0 0
    %793 = vmatprep.subr.bf16.mxu0 0
    %794 = vmatpush1.bf16.xpose.msra.mxu0 0
    %795 = vmatprep.subr.bf16.mxu0 0
    %796 = vmatpush1.bf16.xpose.msra.mxu0 0
    %797 = vmatprep.subr.bf16.mxu0 0
    %798 = vmatpush1.bf16.xpose.msra.mxu0 0
    %799 = vmatprep.subr.bf16.mxu0 0
    %800 = vmatpush1.bf16.xpose.msra.mxu0 0
    %801 = vmatprep.subr.bf16.mxu0 0
    %802 = vmatpush1.bf16.xpose.msra.mxu0 0
    %803 = vmatprep.subr.bf16.mxu0 0
    %804 = vmatpush1.bf16.xpose.msra.mxu0 0
    %805 = vmatprep.subr.bf16.mxu0 0
    %806 = vmatpush1.bf16.xpose.msra.mxu0 0
    %807 = vmatprep.subr.bf16.mxu0 0
    %808 = vmatpush1.bf16.xpose.msra.mxu0 0
    %809 = vmatprep.subr.bf16.mxu0 0
    %810 = vmatpush1.bf16.xpose.msra.mxu0 0
    %811 = vmatprep.subr.bf16.mxu0 0
    %812 = vmatpush1.bf16.xpose.msra.mxu0 0
    %813 = vmatprep.subr.bf16.mxu0 0
    %814 = vmatpush1.bf16.xpose.msra.mxu0 0
    %815 = vmatprep.subr.bf16.mxu0 0
    %816 = vmatpush1.bf16.xpose.msra.mxu0 0
    %817 = vmatprep.subr.bf16.mxu0 0
    %818 = vmatpush1.bf16.xpose.msra.mxu0 0
    %819 = vmatprep.subr.bf16.mxu0 0
    %820 = vmatpush1.bf16.xpose.msra.mxu0 0
    %821 = vmatprep.mubr.bf16.mxu0 0
    %822 = vmatmul.mubr.bf16.gmra.mrb[0].mxu0 %v784
    %v823 = vpop.f32.mrb[0].mxu0
    %v824 = vadd.f32 0.0, %v823
    %v825 = vpop.f32.mrb[0].mxu0
    %v826 = vpop.f32.mrb[0].mxu0
    %v827 = vadd.f32 0.0, %v826
    %v828 = vpop.f32.mrb[0].mxu0
    %829 = vdwg.mxu0
    %831 = vrot.lane.b32.xlu0 %v617, 64
    %v832 = vpop.permute.xlu0 %831
    %v834 = vsel %vm632, %v617, 0
    %v837 = vsel %vm632, %v832, 0
    %839 = vmatprep.subr.bf16.mxu0 0
    %840 = vmatpush1.bf16.xpose.msra.mxu0 %v837
    %841 = vmatprep.subr.bf16.mxu0 0
    %842 = vmatpush1.bf16.xpose.msra.mxu0 0
    %843 = vmatprep.subr.bf16.mxu0 0
    %844 = vmatpush1.bf16.xpose.msra.mxu0 0
    %845 = vmatprep.subr.bf16.mxu0 0
    %846 = vmatpush1.bf16.xpose.msra.mxu0 0
    %847 = vmatprep.subr.bf16.mxu0 0
    %848 = vmatpush1.bf16.xpose.msra.mxu0 0
    %849 = vmatprep.subr.bf16.mxu0 0
    %850 = vmatpush1.bf16.xpose.msra.mxu0 0
    %851 = vmatprep.subr.bf16.mxu0 0
    %852 = vmatpush1.bf16.xpose.msra.mxu0 0
    %853 = vmatprep.subr.bf16.mxu0 0
    %854 = vmatpush1.bf16.xpose.msra.mxu0 0
    %855 = vmatprep.subr.bf16.mxu0 0
    %856 = vmatpush1.bf16.xpose.msra.mxu0 0
    %857 = vmatprep.subr.bf16.mxu0 0
    %858 = vmatpush1.bf16.xpose.msra.mxu0 0
    %859 = vmatprep.subr.bf16.mxu0 0
    %860 = vmatpush1.bf16.xpose.msra.mxu0 0
    %861 = vmatprep.subr.bf16.mxu0 0
    %862 = vmatpush1.bf16.xpose.msra.mxu0 0
    %863 = vmatprep.subr.bf16.mxu0 0
    %864 = vmatpush1.bf16.xpose.msra.mxu0 0
    %865 = vmatprep.subr.bf16.mxu0 0
    %866 = vmatpush1.bf16.xpose.msra.mxu0 0
    %867 = vmatprep.subr.bf16.mxu0 0
    %868 = vmatpush1.bf16.xpose.msra.mxu0 0
    %869 = vmatprep.subr.bf16.mxu0 0
    %870 = vmatpush1.bf16.xpose.msra.mxu0 0
    %871 = vmatprep.mubr.bf16.mxu0 0
    %872 = vmatmul.mubr.bf16.gmra.mrb[0].mxu0 %v834
    %v873 = vpop.f32.mrb[0].mxu0
    %v874 = vadd.f32 0.0, %v873
    %v875 = vpop.f32.mrb[0].mxu0
    %v876 = vpop.f32.mrb[0].mxu0
    %v877 = vadd.f32 0.0, %v876
    %v878 = vpop.f32.mrb[0].mxu0
    %879 = vdwg.mxu0
    %881 = vrot.lane.b32.xlu0 %v618, 64
    %v882 = vpop.permute.xlu0 %881
    %v884 = vsel %vm632, %v618, 0
    %v887 = vsel %vm632, %v882, 0
    %889 = vmatprep.subr.bf16.mxu0 0
    %890 = vmatpush1.bf16.xpose.msra.mxu0 %v887
    %891 = vmatprep.subr.bf16.mxu0 0
    %892 = vmatpush1.bf16.xpose.msra.mxu0 0
    %893 = vmatprep.subr.bf16.mxu0 0
    %894 = vmatpush1.bf16.xpose.msra.mxu0 0
    %895 = vmatprep.subr.bf16.mxu0 0
    %896 = vmatpush1.bf16.xpose.msra.mxu0 0
    %897 = vmatprep.subr.bf16.mxu0 0
    %898 = vmatpush1.bf16.xpose.msra.mxu0 0
    %899 = vmatprep.subr.bf16.mxu0 0
    %900 = vmatpush1.bf16.xpose.msra.mxu0 0
    %901 = vmatprep.subr.bf16.mxu0 0
    %902 = vmatpush1.bf16.xpose.msra.mxu0 0
    %903 = vmatprep.subr.bf16.mxu0 0
    %904 = vmatpush1.bf16.xpose.msra.mxu0 0
    %905 = vmatprep.subr.bf16.mxu0 0
    %906 = vmatpush1.bf16.xpose.msra.mxu0 0
    %907 = vmatprep.subr.bf16.mxu0 0
    %908 = vmatpush1.bf16.xpose.msra.mxu0 0
    %909 = vmatprep.subr.bf16.mxu0 0
    %910 = vmatpush1.bf16.xpose.msra.mxu0 0
    %911 = vmatprep.subr.bf16.mxu0 0
    %912 = vmatpush1.bf16.xpose.msra.mxu0 0
    %913 = vmatprep.subr.bf16.mxu0 0
    %914 = vmatpush1.bf16.xpose.msra.mxu0 0
    %915 = vmatprep.subr.bf16.mxu0 0
    %916 = vmatpush1.bf16.xpose.msra.mxu0 0
    %917 = vmatprep.subr.bf16.mxu0 0
    %918 = vmatpush1.bf16.xpose.msra.mxu0 0
    %919 = vmatprep.subr.bf16.mxu0 0
    %920 = vmatpush1.bf16.xpose.msra.mxu0 0
    %921 = vmatprep.mubr.bf16.mxu0 0
    %922 = vmatmul.mubr.bf16.gmra.mrb[0].mxu0 %v884
    %v923 = vpop.f32.mrb[0].mxu0
    %v924 = vadd.f32 0.0, %v923
    %v925 = vpop.f32.mrb[0].mxu0
    %v926 = vpop.f32.mrb[0].mxu0
    %v927 = vadd.f32 0.0, %v926
    %v928 = vpop.f32.mrb[0].mxu0
    %929 = vdwg.mxu0
    %931 = vrot.lane.b32.xlu0 %v619, 64
    %v932 = vpop.permute.xlu0 %931
    %v934 = vsel %vm632, %v619, 0
    %v937 = vsel %vm632, %v932, 0
    %939 = vmatprep.subr.bf16.mxu0 0
    %940 = vmatpush1.bf16.xpose.msra.mxu0 %v937
    %941 = vmatprep.subr.bf16.mxu0 0
    %942 = vmatpush1.bf16.xpose.msra.mxu0 0
    %943 = vmatprep.subr.bf16.mxu0 0
    %944 = vmatpush1.bf16.xpose.msra.mxu0 0
    %945 = vmatprep.subr.bf16.mxu0 0
    %946 = vmatpush1.bf16.xpose.msra.mxu0 0
    %947 = vmatprep.subr.bf16.mxu0 0
    %948 = vmatpush1.bf16.xpose.msra.mxu0 0
    %949 = vmatprep.subr.bf16.mxu0 0
    %950 = vmatpush1.bf16.xpose.msra.mxu0 0
    %951 = vmatprep.subr.bf16.mxu0 0
    %952 = vmatpush1.bf16.xpose.msra.mxu0 0
    %953 = vmatprep.subr.bf16.mxu0 0
    %954 = vmatpush1.bf16.xpose.msra.mxu0 0
    %955 = vmatprep.subr.bf16.mxu0 0
    %956 = vmatpush1.bf16.xpose.msra.mxu0 0
    %957 = vmatprep.subr.bf16.mxu0 0
    %958 = vmatpush1.bf16.xpose.msra.mxu0 0
    %959 = vmatprep.subr.bf16.mxu0 0
    %960 = vmatpush1.bf16.xpose.msra.mxu0 0
    %961 = vmatprep.subr.bf16.mxu0 0
    %962 = vmatpush1.bf16.xpose.msra.mxu0 0
    %963 = vmatprep.subr.bf16.mxu0 0
    %964 = vmatpush1.bf16.xpose.msra.mxu0 0
    %965 = vmatprep.subr.bf16.mxu0 0
    %966 = vmatpush1.bf16.xpose.msra.mxu0 0
    %967 = vmatprep.subr.bf16.mxu0 0
    %968 = vmatpush1.bf16.xpose.msra.mxu0 0
    %969 = vmatprep.subr.bf16.mxu0 0
    %970 = vmatpush1.bf16.xpose.msra.mxu0 0
    %971 = vmatprep.mubr.bf16.mxu0 0
    %972 = vmatmul.mubr.bf16.gmra.mrb[0].mxu0 %v934
    %v973 = vpop.f32.mrb[0].mxu0
    %v974 = vadd.f32 0.0, %v973
    %v975 = vpop.f32.mrb[0].mxu0
    %v976 = vpop.f32.mrb[0].mxu0
    %v977 = vadd.f32 0.0, %v976
    %v978 = vpop.f32.mrb[0].mxu0
    %979 = vdwg.mxu0
    %981 = vrot.lane.b32.xlu0 %v620, 64
    %v982 = vpop.permute.xlu0 %981
    %v984 = vsel %vm632, %v620, 0
    %v987 = vsel %vm632, %v982, 0
    %989 = vmatprep.subr.bf16.mxu0 0
    %990 = vmatpush1.bf16.xpose.msra.mxu0 %v987
    %991 = vmatprep.subr.bf16.mxu0 0
    %992 = vmatpush1.bf16.xpose.msra.mxu0 0
    %993 = vmatprep.subr.bf16.mxu0 0
    %994 = vmatpush1.bf16.xpose.msra.mxu0 0
    %995 = vmatprep.subr.bf16.mxu0 0
    %996 = vmatpush1.bf16.xpose.msra.mxu0 0
    %997 = vmatprep.subr.bf16.mxu0 0
    %998 = vmatpush1.bf16.xpose.msra.mxu0 0
    %999 = vmatprep.subr.bf16.mxu0 0
    %1000 = vmatpush1.bf16.xpose.msra.mxu0 0
    %1001 = vmatprep.subr.bf16.mxu0 0
    %1002 = vmatpush1.bf16.xpose.msra.mxu0 0
    %1003 = vmatprep.subr.bf16.mxu0 0
    %1004 = vmatpush1.bf16.xpose.msra.mxu0 0
    %1005 = vmatprep.subr.bf16.mxu0 0
    %1006 = vmatpush1.bf16.xpose.msra.mxu0 0
    %1007 = vmatprep.subr.bf16.mxu0 0
    %1008 = vmatpush1.bf16.xpose.msra.mxu0 0
    %1009 = vmatprep.subr.bf16.mxu0 0
    %1010 = vmatpush1.bf16.xpose.msra.mxu0 0
    %1011 = vmatprep.subr.bf16.mxu0 0
    %1012 = vmatpush1.bf16.xpose.msra.mxu0 0
    %1013 = vmatprep.subr.bf16.mxu0 0
    %1014 = vmatpush1.bf16.xpose.msra.mxu0 0
    %1015 = vmatprep.subr.bf16.mxu0 0
    %1016 = vmatpush1.bf16.xpose.msra.mxu0 0
    %1017 = vmatprep.subr.bf16.mxu0 0
    %1018 = vmatpush1.bf16.xpose.msra.mxu0 0
    %1019 = vmatprep.subr.bf16.mxu0 0
    %1020 = vmatpush1.bf16.xpose.msra.mxu0 0
    %1021 = vmatprep.mubr.bf16.mxu0 0
    %1022 = vmatmul.mubr.bf16.gmra.mrb[0].mxu0 %v984
    %v1023 = vpop.f32.mrb[0].mxu0
    %v1024 = vadd.f32 0.0, %v1023
    %v1025 = vpop.f32.mrb[0].mxu0
    %v1026 = vpop.f32.mrb[0].mxu0
    %v1027 = vadd.f32 0.0, %v1026
    %v1028 = vpop.f32.mrb[0].mxu0
    %1029 = vdwg.mxu0
    %v1030 = vsel %vm632, %v674, -inf
    %1031 = vmax.xlane.f32.xlu0 %v1030
    %v1032 = vpop.xlane.xlu0 %1031
    %v1033 = vsel %vm632, %v677, -inf
    %1034 = vmax.xlane.f32.xlu0 %v1033
    %v1035 = vpop.xlane.xlu0 %1034
    %v1036 = vsel %vm632, %v724, -inf
    %1037 = vmax.xlane.f32.xlu0 %v1036
    %v1038 = vpop.xlane.xlu0 %1037
    %v1039 = vsel %vm632, %v727, -inf
    %1040 = vmax.xlane.f32.xlu0 %v1039
    %v1041 = vpop.xlane.xlu0 %1040
    %v1042 = vsel %vm632, %v774, -inf
    %1043 = vmax.xlane.f32.xlu0 %v1042
    %v1044 = vpop.xlane.xlu0 %1043
    %v1045 = vsel %vm632, %v777, -inf
    %1046 = vmax.xlane.f32.xlu0 %v1045
    %v1047 = vpop.xlane.xlu0 %1046
    %v1048 = vsel %vm632, %v824, -inf
    %1049 = vmax.xlane.f32.xlu0 %v1048
    %v1050 = vpop.xlane.xlu0 %1049
    %v1051 = vsel %vm632, %v827, -inf
    %1052 = vmax.xlane.f32.xlu0 %v1051
    %v1053 = vpop.xlane.xlu0 %1052
    %v1054 = vsel %vm632, %v874, -inf
    %1055 = vmax.xlane.f32.xlu0 %v1054
    %v1056 = vpop.xlane.xlu0 %1055
    %v1057 = vsel %vm632, %v877, -inf
    %1058 = vmax.xlane.f32.xlu0 %v1057
    %v1059 = vpop.xlane.xlu0 %1058
    %v1060 = vsel %vm632, %v924, -inf
    %1061 = vmax.xlane.f32.xlu0 %v1060
    %v1062 = vpop.xlane.xlu0 %1061
    %v1063 = vsel %vm632, %v927, -inf
    %1064 = vmax.xlane.f32.xlu0 %v1063
    %v1065 = vpop.xlane.xlu0 %1064
    %v1066 = vsel %vm632, %v974, -inf
    %1067 = vmax.xlane.f32.xlu0 %v1066
    %v1068 = vpop.xlane.xlu0 %1067
    %v1069 = vsel %vm632, %v977, -inf
    %1070 = vmax.xlane.f32.xlu0 %v1069
    %v1071 = vpop.xlane.xlu0 %1070
    %v1072 = vsel %vm632, %v1024, -inf
    %1073 = vmax.xlane.f32.xlu0 %v1072
    %v1074 = vpop.xlane.xlu0 %1073
    %v1075 = vsel %vm632, %v1027, -inf
    %1076 = vmax.xlane.f32.xlu0 %v1075
    %v1077 = vpop.xlane.xlu0 %1076
    %v1078 = vsub.f32 %v674, %v1032
    %v1079 = vsub.f32 %v677, %v1035
    %v1080 = vsub.f32 %v724, %v1038
    %v1081 = vsub.f32 %v727, %v1041
    %v1082 = vsub.f32 %v774, %v1044
    %v1083 = vsub.f32 %v777, %v1047
    %v1084 = vsub.f32 %v824, %v1050
    %v1085 = vsub.f32 %v827, %v1053
    %v1086 = vsub.f32 %v874, %v1056
    %v1087 = vsub.f32 %v877, %v1059
    %v1088 = vsub.f32 %v924, %v1062
    %v1089 = vsub.f32 %v927, %v1065
    %v1090 = vsub.f32 %v974, %v1068
    %v1091 = vsub.f32 %v977, %v1071
    %v1092 = vsub.f32 %v1024, %v1074
    %v1093 = vsub.f32 %v1027, %v1077
    %v1094 = vmul.f32 %v1078, 1.442695
    %v1095 = vpow.pop %v1094
    %v1096 = vmul.f32 %v1079, 1.442695
    %v1097 = vpow.pop %v1096
    %v1098 = vmul.f32 %v1080, 1.442695
    %v1099 = vpow.pop %v1098
    %v1100 = vmul.f32 %v1081, 1.442695
    %v1101 = vpow.pop %v1100
    %v1102 = vmul.f32 %v1082, 1.442695
    %v1103 = vpow.pop %v1102
    %v1104 = vmul.f32 %v1083, 1.442695
    %v1105 = vpow.pop %v1104
    %v1106 = vmul.f32 %v1084, 1.442695
    %v1107 = vpow.pop %v1106
    %v1108 = vmul.f32 %v1085, 1.442695
    %v1109 = vpow.pop %v1108
    %v1110 = vmul.f32 %v1086, 1.442695
    %v1111 = vpow.pop %v1110
    %v1112 = vmul.f32 %v1087, 1.442695
    %v1113 = vpow.pop %v1112
    %v1114 = vmul.f32 %v1088, 1.442695
    %v1115 = vpow.pop %v1114
    %v1116 = vmul.f32 %v1089, 1.442695
    %v1117 = vpow.pop %v1116
    %v1118 = vmul.f32 %v1090, 1.442695
    %v1119 = vpow.pop %v1118
    %v1120 = vmul.f32 %v1091, 1.442695
    %v1121 = vpow.pop %v1120
    %v1122 = vmul.f32 %v1092, 1.442695
    %v1123 = vpow.pop %v1122
    %v1124 = vmul.f32 %v1093, 1.442695
    %v1125 = vpow.pop %v1124
    %v1126 = vsel %vm632, %v1095, 0.0
    %1127 = vadd.xlane.f32.xlu0 %v1126
    %v1128 = vpop.xlane.xlu0 %1127
    %v1129 = vsel %vm632, %v1097, 0.0
    %1130 = vadd.xlane.f32.xlu0 %v1129
    %v1131 = vpop.xlane.xlu0 %1130
    %v1132 = vsel %vm632, %v1099, 0.0
    %1133 = vadd.xlane.f32.xlu0 %v1132
    %v1134 = vpop.xlane.xlu0 %1133
    %v1135 = vsel %vm632, %v1101, 0.0
    %1136 = vadd.xlane.f32.xlu0 %v1135
    %v1137 = vpop.xlane.xlu0 %1136
    %v1138 = vsel %vm632, %v1103, 0.0
    %1139 = vadd.xlane.f32.xlu0 %v1138
    %v1140 = vpop.xlane.xlu0 %1139
    %v1141 = vsel %vm632, %v1105, 0.0
    %1142 = vadd.xlane.f32.xlu0 %v1141
    %v1143 = vpop.xlane.xlu0 %1142
    %v1144 = vsel %vm632, %v1107, 0.0
    %1145 = vadd.xlane.f32.xlu0 %v1144
    %v1146 = vpop.xlane.xlu0 %1145
    %v1147 = vsel %vm632, %v1109, 0.0
    %1148 = vadd.xlane.f32.xlu0 %v1147
    %v1149 = vpop.xlane.xlu0 %1148
    %v1150 = vsel %vm632, %v1111, 0.0
    %1151 = vadd.xlane.f32.xlu0 %v1150
    %v1152 = vpop.xlane.xlu0 %1151
    %v1153 = vsel %vm632, %v1113, 0.0
    %1154 = vadd.xlane.f32.xlu0 %v1153
    %v1155 = vpop.xlane.xlu0 %1154
    %v1156 = vsel %vm632, %v1115, 0.0
    %1157 = vadd.xlane.f32.xlu0 %v1156
    %v1158 = vpop.xlane.xlu0 %1157
    %v1159 = vsel %vm632, %v1117, 0.0
    %1160 = vadd.xlane.f32.xlu0 %v1159
    %v1161 = vpop.xlane.xlu0 %1160
    %v1162 = vsel %vm632, %v1119, 0.0
    %1163 = vadd.xlane.f32.xlu0 %v1162
    %v1164 = vpop.xlane.xlu0 %1163
    %v1165 = vsel %vm632, %v1121, 0.0
    %1166 = vadd.xlane.f32.xlu0 %v1165
    %v1167 = vpop.xlane.xlu0 %1166
    %v1168 = vsel %vm632, %v1123, 0.0
    %1169 = vadd.xlane.f32.xlu0 %v1168
    %v1170 = vpop.xlane.xlu0 %1169
    %v1171 = vsel %vm632, %v1125, 0.0
    %1172 = vadd.xlane.f32.xlu0 %v1171
    %v1173 = vpop.xlane.xlu0 %1172
    %v1174 = vrcp.pop %v1128
    %v1175 = vmul.f32 %v1095, %v1174
    %v1176 = vrcp.pop %v1131
    %v1177 = vmul.f32 %v1097, %v1176
    %v1178 = vrcp.pop %v1134
    %v1179 = vmul.f32 %v1099, %v1178
    %v1180 = vrcp.pop %v1137
    %v1181 = vmul.f32 %v1101, %v1180
    %v1182 = vrcp.pop %v1140
    %v1183 = vmul.f32 %v1103, %v1182
    %v1184 = vrcp.pop %v1143
    %v1185 = vmul.f32 %v1105, %v1184
    %v1186 = vrcp.pop %v1146
    %v1187 = vmul.f32 %v1107, %v1186
    %v1188 = vrcp.pop %v1149
    %v1189 = vmul.f32 %v1109, %v1188
    %v1190 = vrcp.pop %v1152
    %v1191 = vmul.f32 %v1111, %v1190
    %v1192 = vrcp.pop %v1155
    %v1193 = vmul.f32 %v1113, %v1192
    %v1194 = vrcp.pop %v1158
    %v1195 = vmul.f32 %v1115, %v1194
    %v1196 = vrcp.pop %v1161
    %v1197 = vmul.f32 %v1117, %v1196
    %v1198 = vrcp.pop %v1164
    %v1199 = vmul.f32 %v1119, %v1198
    %v1200 = vrcp.pop %v1167
    %v1201 = vmul.f32 %v1121, %v1200
    %v1202 = vrcp.pop %v1170
    %v1203 = vmul.f32 %v1123, %v1202
    %v1204 = vrcp.pop %v1173
    %v1205 = vmul.f32 %v1125, %v1204
    %v1206 = vpack.c.bf16 %v1177, %v1175
    %v1207 = vpack.c.bf16 %v1181, %v1179
    %v1208 = vpack.c.bf16 %v1185, %v1183
    %v1209 = vpack.c.bf16 %v1189, %v1187
    %v1210 = vpack.c.bf16 %v1193, %v1191
    %v1211 = vpack.c.bf16 %v1197, %v1195
    %v1212 = vpack.c.bf16 %v1201, %v1199
    %v1213 = vpack.c.bf16 %v1205, %v1203
    %v1215 = vsel %vm632, %v1206, 0
    %1217 = vmatprep.subr.bf16.mxu0 0
    %1218 = vmatpush1.bf16.msra.mxu0 %v621
    %1219 = vmatprep.subr.bf16.mxu0 0
    %1220 = vmatpush1.bf16.msra.mxu0 0
    %1221 = vmatprep.subr.bf16.mxu0 0
    %1222 = vmatpush1.bf16.msra.mxu0 0
    %1223 = vmatprep.subr.bf16.mxu0 0
    %1224 = vmatpush1.bf16.msra.mxu0 0
    %1225 = vmatprep.subr.bf16.mxu0 0
    %1226 = vmatpush1.bf16.msra.mxu0 0
    %1227 = vmatprep.subr.bf16.mxu0 0
    %1228 = vmatpush1.bf16.msra.mxu0 0
    %1229 = vmatprep.subr.bf16.mxu0 0
    %1230 = vmatpush1.bf16.msra.mxu0 0
    %1231 = vmatprep.subr.bf16.mxu0 0
    %1232 = vmatpush1.bf16.msra.mxu0 0
    %1233 = vmatprep.subr.bf16.mxu0 0
    %1234 = vmatpush1.bf16.msra.mxu0 0
    %1235 = vmatprep.subr.bf16.mxu0 0
    %1236 = vmatpush1.bf16.msra.mxu0 0
    %1237 = vmatprep.subr.bf16.mxu0 0
    %1238 = vmatpush1.bf16.msra.mxu0 0
    %1239 = vmatprep.subr.bf16.mxu0 0
    %1240 = vmatpush1.bf16.msra.mxu0 0
    %1241 = vmatprep.subr.bf16.mxu0 0
    %1242 = vmatpush1.bf16.msra.mxu0 0
    %1243 = vmatprep.subr.bf16.mxu0 0
    %1244 = vmatpush1.bf16.msra.mxu0 0
    %1245 = vmatprep.subr.bf16.mxu0 0
    %1246 = vmatpush1.bf16.msra.mxu0 0
    %1247 = vmatprep.subr.bf16.mxu0 0
    %1248 = vmatpush1.bf16.msra.mxu0 0
    %1249 = vmatprep.mubr.bf16.mxu0 0
    %1250 = vmatmul.mubr.bf16.gmra.mrb[0].mxu0 %v1215
    %v1251 = vpop.f32.mrb[0].mxu0
    %v1252 = vadd.f32 0.0, %v1251
    %v1253 = vpop.f32.mrb[0].mxu0
    %v1254 = vpop.f32.mrb[0].mxu0
    %v1255 = vadd.f32 0.0, %v1254
    %v1256 = vpop.f32.mrb[0].mxu0
    %1257 = vdwg.mxu0
    %v1259 = vsel %vm632, %v1207, 0
    %1261 = vmatprep.subr.bf16.mxu0 0
    %1262 = vmatpush1.bf16.msra.mxu0 %v622
    %1263 = vmatprep.subr.bf16.mxu0 0
    %1264 = vmatpush1.bf16.msra.mxu0 0
    %1265 = vmatprep.subr.bf16.mxu0 0
    %1266 = vmatpush1.bf16.msra.mxu0 0
    %1267 = vmatprep.subr.bf16.mxu0 0
    %1268 = vmatpush1.bf16.msra.mxu0 0
    %1269 = vmatprep.subr.bf16.mxu0 0
    %1270 = vmatpush1.bf16.msra.mxu0 0
    %1271 = vmatprep.subr.bf16.mxu0 0
    %1272 = vmatpush1.bf16.msra.mxu0 0
    %1273 = vmatprep.subr.bf16.mxu0 0
    %1274 = vmatpush1.bf16.msra.mxu0 0
    %1275 = vmatprep.subr.bf16.mxu0 0
    %1276 = vmatpush1.bf16.msra.mxu0 0
    %1277 = vmatprep.subr.bf16.mxu0 0
    %1278 = vmatpush1.bf16.msra.mxu0 0
    %1279 = vmatprep.subr.bf16.mxu0 0
    %1280 = vmatpush1.bf16.msra.mxu0 0
    %1281 = vmatprep.subr.bf16.mxu0 0
    %1282 = vmatpush1.bf16.msra.mxu0 0
    %1283 = vmatprep.subr.bf16.mxu0 0
    %1284 = vmatpush1.bf16.msra.mxu0 0
    %1285 = vmatprep.subr.bf16.mxu0 0
    %1286 = vmatpush1.bf16.msra.mxu0 0
    %1287 = vmatprep.subr.bf16.mxu0 0
    %1288 = vmatpush1.bf16.msra.mxu0 0
    %1289 = vmatprep.subr.bf16.mxu0 0
    %1290 = vmatpush1.bf16.msra.mxu0 0
    %1291 = vmatprep.subr.bf16.mxu0 0
    %1292 = vmatpush1.bf16.msra.mxu0 0
    %1293 = vmatprep.mubr.bf16.mxu0 0
    %1294 = vmatmul.mubr.bf16.gmra.mrb[0].mxu0 %v1259
    %v1295 = vpop.f32.mrb[0].mxu0
    %v1296 = vadd.f32 0.0, %v1295
    %v1297 = vpop.f32.mrb[0].mxu0
    %v1298 = vpop.f32.mrb[0].mxu0
    %v1299 = vadd.f32 0.0, %v1298
    %v1300 = vpop.f32.mrb[0].mxu0
    %1301 = vdwg.mxu0
    %v1303 = vsel %vm632, %v1208, 0
    %1305 = vmatprep.subr.bf16.mxu0 0
    %1306 = vmatpush1.bf16.msra.mxu0 %v623
    %1307 = vmatprep.subr.bf16.mxu0 0
    %1308 = vmatpush1.bf16.msra.mxu0 0
    %1309 = vmatprep.subr.bf16.mxu0 0
    %1310 = vmatpush1.bf16.msra.mxu0 0
    %1311 = vmatprep.subr.bf16.mxu0 0
    %1312 = vmatpush1.bf16.msra.mxu0 0
    %1313 = vmatprep.subr.bf16.mxu0 0
    %1314 = vmatpush1.bf16.msra.mxu0 0
    %1315 = vmatprep.subr.bf16.mxu0 0
    %1316 = vmatpush1.bf16.msra.mxu0 0
    %1317 = vmatprep.subr.bf16.mxu0 0
    %1318 = vmatpush1.bf16.msra.mxu0 0
    %1319 = vmatprep.subr.bf16.mxu0 0
    %1320 = vmatpush1.bf16.msra.mxu0 0
    %1321 = vmatprep.subr.bf16.mxu0 0
    %1322 = vmatpush1.bf16.msra.mxu0 0
    %1323 = vmatprep.subr.bf16.mxu0 0
    %1324 = vmatpush1.bf16.msra.mxu0 0
    %1325 = vmatprep.subr.bf16.mxu0 0
    %1326 = vmatpush1.bf16.msra.mxu0 0
    %1327 = vmatprep.subr.bf16.mxu0 0
    %1328 = vmatpush1.bf16.msra.mxu0 0
    %1329 = vmatprep.subr.bf16.mxu0 0
    %1330 = vmatpush1.bf16.msra.mxu0 0
    %1331 = vmatprep.subr.bf16.mxu0 0
    %1332 = vmatpush1.bf16.msra.mxu0 0
    %1333 = vmatprep.subr.bf16.mxu0 0
    %1334 = vmatpush1.bf16.msra.mxu0 0
    %1335 = vmatprep.subr.bf16.mxu0 0
    %1336 = vmatpush1.bf16.msra.mxu0 0
    %1337 = vmatprep.mubr.bf16.mxu0 0
    %1338 = vmatmul.mubr.bf16.gmra.mrb[0].mxu0 %v1303
    %v1339 = vpop.f32.mrb[0].mxu0
    %v1340 = vadd.f32 0.0, %v1339
    %v1341 = vpop.f32.mrb[0].mxu0
    %v1342 = vpop.f32.mrb[0].mxu0
    %v1343 = vadd.f32 0.0, %v1342
    %v1344 = vpop.f32.mrb[0].mxu0
    %1345 = vdwg.mxu0
    %v1347 = vsel %vm632, %v1209, 0
    %1349 = vmatprep.subr.bf16.mxu0 0
    %1350 = vmatpush1.bf16.msra.mxu0 %v624
    %1351 = vmatprep.subr.bf16.mxu0 0
    %1352 = vmatpush1.bf16.msra.mxu0 0
    %1353 = vmatprep.subr.bf16.mxu0 0
    %1354 = vmatpush1.bf16.msra.mxu0 0
    %1355 = vmatprep.subr.bf16.mxu0 0
    %1356 = vmatpush1.bf16.msra.mxu0 0
    %1357 = vmatprep.subr.bf16.mxu0 0
    %1358 = vmatpush1.bf16.msra.mxu0 0
    %1359 = vmatprep.subr.bf16.mxu0 0
    %1360 = vmatpush1.bf16.msra.mxu0 0
    %1361 = vmatprep.subr.bf16.mxu0 0
    %1362 = vmatpush1.bf16.msra.mxu0 0
    %1363 = vmatprep.subr.bf16.mxu0 0
    %1364 = vmatpush1.bf16.msra.mxu0 0
    %1365 = vmatprep.subr.bf16.mxu0 0
    %1366 = vmatpush1.bf16.msra.mxu0 0
    %1367 = vmatprep.subr.bf16.mxu0 0
    %1368 = vmatpush1.bf16.msra.mxu0 0
    %1369 = vmatprep.subr.bf16.mxu0 0
    %1370 = vmatpush1.bf16.msra.mxu0 0
    %1371 = vmatprep.subr.bf16.mxu0 0
    %1372 = vmatpush1.bf16.msra.mxu0 0
    %1373 = vmatprep.subr.bf16.mxu0 0
    %1374 = vmatpush1.bf16.msra.mxu0 0
    %1375 = vmatprep.subr.bf16.mxu0 0
    %1376 = vmatpush1.bf16.msra.mxu0 0
    %1377 = vmatprep.subr.bf16.mxu0 0
    %1378 = vmatpush1.bf16.msra.mxu0 0
    %1379 = vmatprep.subr.bf16.mxu0 0
    %1380 = vmatpush1.bf16.msra.mxu0 0
    %1381 = vmatprep.mubr.bf16.mxu0 0
    %1382 = vmatmul.mubr.bf16.gmra.mrb[0].mxu0 %v1347
    %v1383 = vpop.f32.mrb[0].mxu0
    %v1384 = vadd.f32 0.0, %v1383
    %v1385 = vpop.f32.mrb[0].mxu0
    %v1386 = vpop.f32.mrb[0].mxu0
    %v1387 = vadd.f32 0.0, %v1386
    %v1388 = vpop.f32.mrb[0].mxu0
    %1389 = vdwg.mxu0
    %v1391 = vsel %vm632, %v1210, 0
    %1393 = vmatprep.subr.bf16.mxu0 0
    %1394 = vmatpush1.bf16.msra.mxu0 %v625
    %1395 = vmatprep.subr.bf16.mxu0 0
    %1396 = vmatpush1.bf16.msra.mxu0 0
    %1397 = vmatprep.subr.bf16.mxu0 0
    %1398 = vmatpush1.bf16.msra.mxu0 0
    %1399 = vmatprep.subr.bf16.mxu0 0
    %1400 = vmatpush1.bf16.msra.mxu0 0
    %1401 = vmatprep.subr.bf16.mxu0 0
    %1402 = vmatpush1.bf16.msra.mxu0 0
    %1403 = vmatprep.subr.bf16.mxu0 0
    %1404 = vmatpush1.bf16.msra.mxu0 0
    %1405 = vmatprep.subr.bf16.mxu0 0
    %1406 = vmatpush1.bf16.msra.mxu0 0
    %1407 = vmatprep.subr.bf16.mxu0 0
    %1408 = vmatpush1.bf16.msra.mxu0 0
    %1409 = vmatprep.subr.bf16.mxu0 0
    %1410 = vmatpush1.bf16.msra.mxu0 0
    %1411 = vmatprep.subr.bf16.mxu0 0
    %1412 = vmatpush1.bf16.msra.mxu0 0
    %1413 = vmatprep.subr.bf16.mxu0 0
    %1414 = vmatpush1.bf16.msra.mxu0 0
    %1415 = vmatprep.subr.bf16.mxu0 0
    %1416 = vmatpush1.bf16.msra.mxu0 0
    %1417 = vmatprep.subr.bf16.mxu0 0
    %1418 = vmatpush1.bf16.msra.mxu0 0
    %1419 = vmatprep.subr.bf16.mxu0 0
    %1420 = vmatpush1.bf16.msra.mxu0 0
    %1421 = vmatprep.subr.bf16.mxu0 0
    %1422 = vmatpush1.bf16.msra.mxu0 0
    %1423 = vmatprep.subr.bf16.mxu0 0
    %1424 = vmatpush1.bf16.msra.mxu0 0
    %1425 = vmatprep.mubr.bf16.mxu0 0
    %1426 = vmatmul.mubr.bf16.gmra.mrb[0].mxu0 %v1391
    %v1427 = vpop.f32.mrb[0].mxu0
    %v1428 = vadd.f32 0.0, %v1427
    %v1429 = vpop.f32.mrb[0].mxu0
    %v1430 = vpop.f32.mrb[0].mxu0
    %v1431 = vadd.f32 0.0, %v1430
    %v1432 = vpop.f32.mrb[0].mxu0
    %1433 = vdwg.mxu0
    %v1435 = vsel %vm632, %v1211, 0
    %1437 = vmatprep.subr.bf16.mxu0 0
    %1438 = vmatpush1.bf16.msra.mxu0 %v626
    %1439 = vmatprep.subr.bf16.mxu0 0
    %1440 = vmatpush1.bf16.msra.mxu0 0
    %1441 = vmatprep.subr.bf16.mxu0 0
    %1442 = vmatpush1.bf16.msra.mxu0 0
    %1443 = vmatprep.subr.bf16.mxu0 0
    %1444 = vmatpush1.bf16.msra.mxu0 0
    %1445 = vmatprep.subr.bf16.mxu0 0
    %1446 = vmatpush1.bf16.msra.mxu0 0
    %1447 = vmatprep.subr.bf16.mxu0 0
    %1448 = vmatpush1.bf16.msra.mxu0 0
    %1449 = vmatprep.subr.bf16.mxu0 0
    %1450 = vmatpush1.bf16.msra.mxu0 0
    %1451 = vmatprep.subr.bf16.mxu0 0
    %1452 = vmatpush1.bf16.msra.mxu0 0
    %1453 = vmatprep.subr.bf16.mxu0 0
    %1454 = vmatpush1.bf16.msra.mxu0 0
    %1455 = vmatprep.subr.bf16.mxu0 0
    %1456 = vmatpush1.bf16.msra.mxu0 0
    %1457 = vmatprep.subr.bf16.mxu0 0
    %1458 = vmatpush1.bf16.msra.mxu0 0
    %1459 = vmatprep.subr.bf16.mxu0 0
    %1460 = vmatpush1.bf16.msra.mxu0 0
    %1461 = vmatprep.subr.bf16.mxu0 0
    %1462 = vmatpush1.bf16.msra.mxu0 0
    %1463 = vmatprep.subr.bf16.mxu0 0
    %1464 = vmatpush1.bf16.msra.mxu0 0
    %1465 = vmatprep.subr.bf16.mxu0 0
    %1466 = vmatpush1.bf16.msra.mxu0 0
    %1467 = vmatprep.subr.bf16.mxu0 0
    %1468 = vmatpush1.bf16.msra.mxu0 0
    %1469 = vmatprep.mubr.bf16.mxu0 0
    %1470 = vmatmul.mubr.bf16.gmra.mrb[0].mxu0 %v1435
    %v1471 = vpop.f32.mrb[0].mxu0
    %v1472 = vadd.f32 0.0, %v1471
    %v1473 = vpop.f32.mrb[0].mxu0
    %v1474 = vpop.f32.mrb[0].mxu0
    %v1475 = vadd.f32 0.0, %v1474
    %v1476 = vpop.f32.mrb[0].mxu0
    %1477 = vdwg.mxu0
    %v1479 = vsel %vm632, %v1212, 0
    %1481 = vmatprep.subr.bf16.mxu0 0
    %1482 = vmatpush1.bf16.msra.mxu0 %v627
    %1483 = vmatprep.subr.bf16.mxu0 0
    %1484 = vmatpush1.bf16.msra.mxu0 0
    %1485 = vmatprep.subr.bf16.mxu0 0
    %1486 = vmatpush1.bf16.msra.mxu0 0
    %1487 = vmatprep.subr.bf16.mxu0 0
    %1488 = vmatpush1.bf16.msra.mxu0 0
    %1489 = vmatprep.subr.bf16.mxu0 0
    %1490 = vmatpush1.bf16.msra.mxu0 0
    %1491 = vmatprep.subr.bf16.mxu0 0
    %1492 = vmatpush1.bf16.msra.mxu0 0
    %1493 = vmatprep.subr.bf16.mxu0 0
    %1494 = vmatpush1.bf16.msra.mxu0 0
    %1495 = vmatprep.subr.bf16.mxu0 0
    %1496 = vmatpush1.bf16.msra.mxu0 0
    %1497 = vmatprep.subr.bf16.mxu0 0
    %1498 = vmatpush1.bf16.msra.mxu0 0
    %1499 = vmatprep.subr.bf16.mxu0 0
    %1500 = vmatpush1.bf16.msra.mxu0 0
    %1501 = vmatprep.subr.bf16.mxu0 0
    %1502 = vmatpush1.bf16.msra.mxu0 0
    %1503 = vmatprep.subr.bf16.mxu0 0
    %1504 = vmatpush1.bf16.msra.mxu0 0
    %1505 = vmatprep.subr.bf16.mxu0 0
    %1506 = vmatpush1.bf16.msra.mxu0 0
    %1507 = vmatprep.subr.bf16.mxu0 0
    %1508 = vmatpush1.bf16.msra.mxu0 0
    %1509 = vmatprep.subr.bf16.mxu0 0
    %1510 = vmatpush1.bf16.msra.mxu0 0
    %1511 = vmatprep.subr.bf16.mxu0 0
    %1512 = vmatpush1.bf16.msra.mxu0 0
    %1513 = vmatprep.mubr.bf16.mxu0 0
    %1514 = vmatmul.mubr.bf16.gmra.mrb[0].mxu0 %v1479
    %v1515 = vpop.f32.mrb[0].mxu0
    %v1516 = vadd.f32 0.0, %v1515
    %v1517 = vpop.f32.mrb[0].mxu0
    %v1518 = vpop.f32.mrb[0].mxu0
    %v1519 = vadd.f32 0.0, %v1518
    %v1520 = vpop.f32.mrb[0].mxu0
    %1521 = vdwg.mxu0
    %v1523 = vsel %vm632, %v1213, 0
    %1525 = vmatprep.subr.bf16.mxu0 0
    %1526 = vmatpush1.bf16.msra.mxu0 %v628
    %1527 = vmatprep.subr.bf16.mxu0 0
    %1528 = vmatpush1.bf16.msra.mxu0 0
    %1529 = vmatprep.subr.bf16.mxu0 0
    %1530 = vmatpush1.bf16.msra.mxu0 0
    %1531 = vmatprep.subr.bf16.mxu0 0
    %1532 = vmatpush1.bf16.msra.mxu0 0
    %1533 = vmatprep.subr.bf16.mxu0 0
    %1534 = vmatpush1.bf16.msra.mxu0 0
    %1535 = vmatprep.subr.bf16.mxu0 0
    %1536 = vmatpush1.bf16.msra.mxu0 0
    %1537 = vmatprep.subr.bf16.mxu0 0
    %1538 = vmatpush1.bf16.msra.mxu0 0
    %1539 = vmatprep.subr.bf16.mxu0 0
    %1540 = vmatpush1.bf16.msra.mxu0 0
    %1541 = vmatprep.subr.bf16.mxu0 0
    %1542 = vmatpush1.bf16.msra.mxu0 0
    %1543 = vmatprep.subr.bf16.mxu0 0
    %1544 = vmatpush1.bf16.msra.mxu0 0
    %1545 = vmatprep.subr.bf16.mxu0 0
    %1546 = vmatpush1.bf16.msra.mxu0 0
    %1547 = vmatprep.subr.bf16.mxu0 0
    %1548 = vmatpush1.bf16.msra.mxu0 0
    %1549 = vmatprep.subr.bf16.mxu0 0
    %1550 = vmatpush1.bf16.msra.mxu0 0
    %1551 = vmatprep.subr.bf16.mxu0 0
    %1552 = vmatpush1.bf16.msra.mxu0 0
    %1553 = vmatprep.subr.bf16.mxu0 0
    %1554 = vmatpush1.bf16.msra.mxu0 0
    %1555 = vmatprep.subr.bf16.mxu0 0
    %1556 = vmatpush1.bf16.msra.mxu0 0
    %1557 = vmatprep.mubr.bf16.mxu0 0
    %1558 = vmatmul.mubr.bf16.gmra.mrb[0].mxu0 %v1523
    %v1559 = vpop.f32.mrb[0].mxu0
    %v1560 = vadd.f32 0.0, %v1559
    %v1561 = vpop.f32.mrb[0].mxu0
    %v1562 = vpop.f32.mrb[0].mxu0
    %v1563 = vadd.f32 0.0, %v1562
    %v1564 = vpop.f32.mrb[0].mxu0
    %1565 = vdwg.mxu0
    %1566 = vrot.lane.b32.xlu0 %v613, 112
    %v1567 = vpop.permute.xlu0 %1566
    %1568 = vrot.lane.b32.xlu0 %v613, 48
    %v1569 = vpop.permute.xlu0 %1568
    %v1571 = vsel %vm632, %v1567, 0
    %v1574 = vsel %vm632, %v1569, 0
    %1576 = vmatprep.subr.bf16.mxu0 0
    %1577 = vmatpush1.bf16.xpose.msra.mxu0 %v1574
    %1578 = vmatprep.subr.bf16.mxu0 0
    %1579 = vmatpush1.bf16.xpose.msra.mxu0 0
    %1580 = vmatprep.subr.bf16.mxu0 0
    %1581 = vmatpush1.bf16.xpose.msra.mxu0 0
    %1582 = vmatprep.subr.bf16.mxu0 0
    %1583 = vmatpush1.bf16.xpose.msra.mxu0 0
    %1584 = vmatprep.subr.bf16.mxu0 0
    %1585 = vmatpush1.bf16.xpose.msra.mxu0 0
    %1586 = vmatprep.subr.bf16.mxu0 0
    %1587 = vmatpush1.bf16.xpose.msra.mxu0 0
    %1588 = vmatprep.subr.bf16.mxu0 0
    %1589 = vmatpush1.bf16.xpose.msra.mxu0 0
    %1590 = vmatprep.subr.bf16.mxu0 0
    %1591 = vmatpush1.bf16.xpose.msra.mxu0 0
    %1592 = vmatprep.subr.bf16.mxu0 0
    %1593 = vmatpush1.bf16.xpose.msra.mxu0 0
    %1594 = vmatprep.subr.bf16.mxu0 0
    %1595 = vmatpush1.bf16.xpose.msra.mxu0 0
    %1596 = vmatprep.subr.bf16.mxu0 0
    %1597 = vmatpush1.bf16.xpose.msra.mxu0 0
    %1598 = vmatprep.subr.bf16.mxu0 0
    %1599 = vmatpush1.bf16.xpose.msra.mxu0 0
    %1600 = vmatprep.subr.bf16.mxu0 0
    %1601 = vmatpush1.bf16.xpose.msra.mxu0 0
    %1602 = vmatprep.subr.bf16.mxu0 0
    %1603 = vmatpush1.bf16.xpose.msra.mxu0 0
    %1604 = vmatprep.subr.bf16.mxu0 0
    %1605 = vmatpush1.bf16.xpose.msra.mxu0 0
    %1606 = vmatprep.subr.bf16.mxu0 0
    %1607 = vmatpush1.bf16.xpose.msra.mxu0 0
    %1608 = vmatprep.mubr.bf16.mxu0 0
    %1609 = vmatmul.mubr.bf16.gmra.mrb[0].mxu0 %v1571
    %v1610 = vpop.f32.mrb[0].mxu0
    %v1611 = vadd.f32 0.0, %v1610
    %v1612 = vpop.f32.mrb[0].mxu0
    %v1613 = vpop.f32.mrb[0].mxu0
    %v1614 = vadd.f32 0.0, %v1613
    %v1615 = vpop.f32.mrb[0].mxu0
    %1616 = vdwg.mxu0
    %1617 = vrot.lane.b32.xlu0 %v614, 112
    %v1618 = vpop.permute.xlu0 %1617
    %1619 = vrot.lane.b32.xlu0 %v614, 48
    %v1620 = vpop.permute.xlu0 %1619
    %v1622 = vsel %vm632, %v1618, 0
    %v1625 = vsel %vm632, %v1620, 0
    %1627 = vmatprep.subr.bf16.mxu0 0
    %1628 = vmatpush1.bf16.xpose.msra.mxu0 %v1625
    %1629 = vmatprep.subr.bf16.mxu0 0
    %1630 = vmatpush1.bf16.xpose.msra.mxu0 0
    %1631 = vmatprep.subr.bf16.mxu0 0
    %1632 = vmatpush1.bf16.xpose.msra.mxu0 0
    %1633 = vmatprep.subr.bf16.mxu0 0
    %1634 = vmatpush1.bf16.xpose.msra.mxu0 0
    %1635 = vmatprep.subr.bf16.mxu0 0
    %1636 = vmatpush1.bf16.xpose.msra.mxu0 0
    %1637 = vmatprep.subr.bf16.mxu0 0
    %1638 = vmatpush1.bf16.xpose.msra.mxu0 0
    %1639 = vmatprep.subr.bf16.mxu0 0
    %1640 = vmatpush1.bf16.xpose.msra.mxu0 0
    %1641 = vmatprep.subr.bf16.mxu0 0
    %1642 = vmatpush1.bf16.xpose.msra.mxu0 0
    %1643 = vmatprep.subr.bf16.mxu0 0
    %1644 = vmatpush1.bf16.xpose.msra.mxu0 0
    %1645 = vmatprep.subr.bf16.mxu0 0
    %1646 = vmatpush1.bf16.xpose.msra.mxu0 0
    %1647 = vmatprep.subr.bf16.mxu0 0
    %1648 = vmatpush1.bf16.xpose.msra.mxu0 0
    %1649 = vmatprep.subr.bf16.mxu0 0
    %1650 = vmatpush1.bf16.xpose.msra.mxu0 0
    %1651 = vmatprep.subr.bf16.mxu0 0
    %1652 = vmatpush1.bf16.xpose.msra.mxu0 0
    %1653 = vmatprep.subr.bf16.mxu0 0
    %1654 = vmatpush1.bf16.xpose.msra.mxu0 0
    %1655 = vmatprep.subr.bf16.mxu0 0
    %1656 = vmatpush1.bf16.xpose.msra.mxu0 0
    %1657 = vmatprep.subr.bf16.mxu0 0
    %1658 = vmatpush1.bf16.xpose.msra.mxu0 0
    %1659 = vmatprep.mubr.bf16.mxu0 0
    %1660 = vmatmul.mubr.bf16.gmra.mrb[0].mxu0 %v1622
    %v1661 = vpop.f32.mrb[0].mxu0
    %v1662 = vadd.f32 0.0, %v1661
    %v1663 = vpop.f32.mrb[0].mxu0
    %v1664 = vpop.f32.mrb[0].mxu0
    %v1665 = vadd.f32 0.0, %v1664
    %v1666 = vpop.f32.mrb[0].mxu0
    %1667 = vdwg.mxu0
    %1668 = vrot.lane.b32.xlu0 %v615, 112
    %v1669 = vpop.permute.xlu0 %1668
    %1670 = vrot.lane.b32.xlu0 %v615, 48
    %v1671 = vpop.permute.xlu0 %1670
    %v1673 = vsel %vm632, %v1669, 0
    %v1676 = vsel %vm632, %v1671, 0
    %1678 = vmatprep.subr.bf16.mxu0 0
    %1679 = vmatpush1.bf16.xpose.msra.mxu0 %v1676
    %1680 = vmatprep.subr.bf16.mxu0 0
    %1681 = vmatpush1.bf16.xpose.msra.mxu0 0
    %1682 = vmatprep.subr.bf16.mxu0 0
    %1683 = vmatpush1.bf16.xpose.msra.mxu0 0
    %1684 = vmatprep.subr.bf16.mxu0 0
    %1685 = vmatpush1.bf16.xpose.msra.mxu0 0
    %1686 = vmatprep.subr.bf16.mxu0 0
    %1687 = vmatpush1.bf16.xpose.msra.mxu0 0
    %1688 = vmatprep.subr.bf16.mxu0 0
    %1689 = vmatpush1.bf16.xpose.msra.mxu0 0
    %1690 = vmatprep.subr.bf16.mxu0 0
    %1691 = vmatpush1.bf16.xpose.msra.mxu0 0
    %1692 = vmatprep.subr.bf16.mxu0 0
    %1693 = vmatpush1.bf16.xpose.msra.mxu0 0
    %1694 = vmatprep.subr.bf16.mxu0 0
    %1695 = vmatpush1.bf16.xpose.msra.mxu0 0
    %1696 = vmatprep.subr.bf16.mxu0 0
    %1697 = vmatpush1.bf16.xpose.msra.mxu0 0
    %1698 = vmatprep.subr.bf16.mxu0 0
    %1699 = vmatpush1.bf16.xpose.msra.mxu0 0
    %1700 = vmatprep.subr.bf16.mxu0 0
    %1701 = vmatpush1.bf16.xpose.msra.mxu0 0
    %1702 = vmatprep.subr.bf16.mxu0 0
    %1703 = vmatpush1.bf16.xpose.msra.mxu0 0
    %1704 = vmatprep.subr.bf16.mxu0 0
    %1705 = vmatpush1.bf16.xpose.msra.mxu0 0
    %1706 = vmatprep.subr.bf16.mxu0 0
    %1707 = vmatpush1.bf16.xpose.msra.mxu0 0
    %1708 = vmatprep.subr.bf16.mxu0 0
    %1709 = vmatpush1.bf16.xpose.msra.mxu0 0
    %1710 = vmatprep.mubr.bf16.mxu0 0
    %1711 = vmatmul.mubr.bf16.gmra.mrb[0].mxu0 %v1673
    %v1712 = vpop.f32.mrb[0].mxu0
    %v1713 = vadd.f32 0.0, %v1712
    %v1714 = vpop.f32.mrb[0].mxu0
    %v1715 = vpop.f32.mrb[0].mxu0
    %v1716 = vadd.f32 0.0, %v1715
    %v1717 = vpop.f32.mrb[0].mxu0
    %1718 = vdwg.mxu0
    %1719 = vrot.lane.b32.xlu0 %v616, 112
    %v1720 = vpop.permute.xlu0 %1719
    %1721 = vrot.lane.b32.xlu0 %v616, 48
    %v1722 = vpop.permute.xlu0 %1721
    %v1724 = vsel %vm632, %v1720, 0
    %v1727 = vsel %vm632, %v1722, 0
    %1729 = vmatprep.subr.bf16.mxu0 0
    %1730 = vmatpush1.bf16.xpose.msra.mxu0 %v1727
    %1731 = vmatprep.subr.bf16.mxu0 0
    %1732 = vmatpush1.bf16.xpose.msra.mxu0 0
    %1733 = vmatprep.subr.bf16.mxu0 0
    %1734 = vmatpush1.bf16.xpose.msra.mxu0 0
    %1735 = vmatprep.subr.bf16.mxu0 0
    %1736 = vmatpush1.bf16.xpose.msra.mxu0 0
    %1737 = vmatprep.subr.bf16.mxu0 0
    %1738 = vmatpush1.bf16.xpose.msra.mxu0 0
    %1739 = vmatprep.subr.bf16.mxu0 0
    %1740 = vmatpush1.bf16.xpose.msra.mxu0 0
    %1741 = vmatprep.subr.bf16.mxu0 0
    %1742 = vmatpush1.bf16.xpose.msra.mxu0 0
    %1743 = vmatprep.subr.bf16.mxu0 0
    %1744 = vmatpush1.bf16.xpose.msra.mxu0 0
    %1745 = vmatprep.subr.bf16.mxu0 0
    %1746 = vmatpush1.bf16.xpose.msra.mxu0 0
    %1747 = vmatprep.subr.bf16.mxu0 0
    %1748 = vmatpush1.bf16.xpose.msra.mxu0 0
    %1749 = vmatprep.subr.bf16.mxu0 0
    %1750 = vmatpush1.bf16.xpose.msra.mxu0 0
    %1751 = vmatprep.subr.bf16.mxu0 0
    %1752 = vmatpush1.bf16.xpose.msra.mxu0 0
    %1753 = vmatprep.subr.bf16.mxu0 0
    %1754 = vmatpush1.bf16.xpose.msra.mxu0 0
    %1755 = vmatprep.subr.bf16.mxu0 0
    %1756 = vmatpush1.bf16.xpose.msra.mxu0 0
    %1757 = vmatprep.subr.bf16.mxu0 0
    %1758 = vmatpush1.bf16.xpose.msra.mxu0 0
    %1759 = vmatprep.subr.bf16.mxu0 0
    %1760 = vmatpush1.bf16.xpose.msra.mxu0 0
    %1761 = vmatprep.mubr.bf16.mxu0 0
    %1762 = vmatmul.mubr.bf16.gmra.mrb[0].mxu0 %v1724
    %v1763 = vpop.f32.mrb[0].mxu0
    %v1764 = vadd.f32 0.0, %v1763
    %v1765 = vpop.f32.mrb[0].mxu0
    %v1766 = vpop.f32.mrb[0].mxu0
    %v1767 = vadd.f32 0.0, %v1766
    %v1768 = vpop.f32.mrb[0].mxu0
    %1769 = vdwg.mxu0
    %1770 = vrot.lane.b32.xlu0 %v617, 112
    %v1771 = vpop.permute.xlu0 %1770
    %1772 = vrot.lane.b32.xlu0 %v617, 48
    %v1773 = vpop.permute.xlu0 %1772
    %v1775 = vsel %vm632, %v1771, 0
    %v1778 = vsel %vm632, %v1773, 0
    %1780 = vmatprep.subr.bf16.mxu0 0
    %1781 = vmatpush1.bf16.xpose.msra.mxu0 %v1778
    %1782 = vmatprep.subr.bf16.mxu0 0
    %1783 = vmatpush1.bf16.xpose.msra.mxu0 0
    %1784 = vmatprep.subr.bf16.mxu0 0
    %1785 = vmatpush1.bf16.xpose.msra.mxu0 0
    %1786 = vmatprep.subr.bf16.mxu0 0
    %1787 = vmatpush1.bf16.xpose.msra.mxu0 0
    %1788 = vmatprep.subr.bf16.mxu0 0
    %1789 = vmatpush1.bf16.xpose.msra.mxu0 0
    %1790 = vmatprep.subr.bf16.mxu0 0
    %1791 = vmatpush1.bf16.xpose.msra.mxu0 0
    %1792 = vmatprep.subr.bf16.mxu0 0
    %1793 = vmatpush1.bf16.xpose.msra.mxu0 0
    %1794 = vmatprep.subr.bf16.mxu0 0
    %1795 = vmatpush1.bf16.xpose.msra.mxu0 0
    %1796 = vmatprep.subr.bf16.mxu0 0
    %1797 = vmatpush1.bf16.xpose.msra.mxu0 0
    %1798 = vmatprep.subr.bf16.mxu0 0
    %1799 = vmatpush1.bf16.xpose.msra.mxu0 0
    %1800 = vmatprep.subr.bf16.mxu0 0
    %1801 = vmatpush1.bf16.xpose.msra.mxu0 0
    %1802 = vmatprep.subr.bf16.mxu0 0
    %1803 = vmatpush1.bf16.xpose.msra.mxu0 0
    %1804 = vmatprep.subr.bf16.mxu0 0
    %1805 = vmatpush1.bf16.xpose.msra.mxu0 0
    %1806 = vmatprep.subr.bf16.mxu0 0
    %1807 = vmatpush1.bf16.xpose.msra.mxu0 0
    %1808 = vmatprep.subr.bf16.mxu0 0
    %1809 = vmatpush1.bf16.xpose.msra.mxu0 0
    %1810 = vmatprep.subr.bf16.mxu0 0
    %1811 = vmatpush1.bf16.xpose.msra.mxu0 0
    %1812 = vmatprep.mubr.bf16.mxu0 0
    %1813 = vmatmul.mubr.bf16.gmra.mrb[0].mxu0 %v1775
    %v1814 = vpop.f32.mrb[0].mxu0
    %v1815 = vadd.f32 0.0, %v1814
    %v1816 = vpop.f32.mrb[0].mxu0
    %v1817 = vpop.f32.mrb[0].mxu0
    %v1818 = vadd.f32 0.0, %v1817
    %v1819 = vpop.f32.mrb[0].mxu0
    %1820 = vdwg.mxu0
    %1821 = vrot.lane.b32.xlu0 %v618, 112
    %v1822 = vpop.permute.xlu0 %1821
    %1823 = vrot.lane.b32.xlu0 %v618, 48
    %v1824 = vpop.permute.xlu0 %1823
    %v1826 = vsel %vm632, %v1822, 0
    %v1829 = vsel %vm632, %v1824, 0
    %1831 = vmatprep.subr.bf16.mxu0 0
    %1832 = vmatpush1.bf16.xpose.msra.mxu0 %v1829
    %1833 = vmatprep.subr.bf16.mxu0 0
    %1834 = vmatpush1.bf16.xpose.msra.mxu0 0
    %1835 = vmatprep.subr.bf16.mxu0 0
    %1836 = vmatpush1.bf16.xpose.msra.mxu0 0
    %1837 = vmatprep.subr.bf16.mxu0 0
    %1838 = vmatpush1.bf16.xpose.msra.mxu0 0
    %1839 = vmatprep.subr.bf16.mxu0 0
    %1840 = vmatpush1.bf16.xpose.msra.mxu0 0
    %1841 = vmatprep.subr.bf16.mxu0 0
    %1842 = vmatpush1.bf16.xpose.msra.mxu0 0
    %1843 = vmatprep.subr.bf16.mxu0 0
    %1844 = vmatpush1.bf16.xpose.msra.mxu0 0
    %1845 = vmatprep.subr.bf16.mxu0 0
    %1846 = vmatpush1.bf16.xpose.msra.mxu0 0
    %1847 = vmatprep.subr.bf16.mxu0 0
    %1848 = vmatpush1.bf16.xpose.msra.mxu0 0
    %1849 = vmatprep.subr.bf16.mxu0 0
    %1850 = vmatpush1.bf16.xpose.msra.mxu0 0
    %1851 = vmatprep.subr.bf16.mxu0 0
    %1852 = vmatpush1.bf16.xpose.msra.mxu0 0
    %1853 = vmatprep.subr.bf16.mxu0 0
    %1854 = vmatpush1.bf16.xpose.msra.mxu0 0
    %1855 = vmatprep.subr.bf16.mxu0 0
    %1856 = vmatpush1.bf16.xpose.msra.mxu0 0
    %1857 = vmatprep.subr.bf16.mxu0 0
    %1858 = vmatpush1.bf16.xpose.msra.mxu0 0
    %1859 = vmatprep.subr.bf16.mxu0 0
    %1860 = vmatpush1.bf16.xpose.msra.mxu0 0
    %1861 = vmatprep.subr.bf16.mxu0 0
    %1862 = vmatpush1.bf16.xpose.msra.mxu0 0
    %1863 = vmatprep.mubr.bf16.mxu0 0
    %1864 = vmatmul.mubr.bf16.gmra.mrb[0].mxu0 %v1826
    %v1865 = vpop.f32.mrb[0].mxu0
    %v1866 = vadd.f32 0.0, %v1865
    %v1867 = vpop.f32.mrb[0].mxu0
    %v1868 = vpop.f32.mrb[0].mxu0
    %v1869 = vadd.f32 0.0, %v1868
    %v1870 = vpop.f32.mrb[0].mxu0
    %1871 = vdwg.mxu0
    %1872 = vrot.lane.b32.xlu0 %v619, 112
    %v1873 = vpop.permute.xlu0 %1872
    %1874 = vrot.lane.b32.xlu0 %v619, 48
    %v1875 = vpop.permute.xlu0 %1874
    %v1877 = vsel %vm632, %v1873, 0
    %v1880 = vsel %vm632, %v1875, 0
    %1882 = vmatprep.subr.bf16.mxu0 0
    %1883 = vmatpush1.bf16.xpose.msra.mxu0 %v1880
    %1884 = vmatprep.subr.bf16.mxu0 0
    %1885 = vmatpush1.bf16.xpose.msra.mxu0 0
    %1886 = vmatprep.subr.bf16.mxu0 0
    %1887 = vmatpush1.bf16.xpose.msra.mxu0 0
    %1888 = vmatprep.subr.bf16.mxu0 0
    %1889 = vmatpush1.bf16.xpose.msra.mxu0 0
    %1890 = vmatprep.subr.bf16.mxu0 0
    %1891 = vmatpush1.bf16.xpose.msra.mxu0 0
    %1892 = vmatprep.subr.bf16.mxu0 0
    %1893 = vmatpush1.bf16.xpose.msra.mxu0 0
    %1894 = vmatprep.subr.bf16.mxu0 0
    %1895 = vmatpush1.bf16.xpose.msra.mxu0 0
    %1896 = vmatprep.subr.bf16.mxu0 0
    %1897 = vmatpush1.bf16.xpose.msra.mxu0 0
    %1898 = vmatprep.subr.bf16.mxu0 0
    %1899 = vmatpush1.bf16.xpose.msra.mxu0 0
    %1900 = vmatprep.subr.bf16.mxu0 0
    %1901 = vmatpush1.bf16.xpose.msra.mxu0 0
    %1902 = vmatprep.subr.bf16.mxu0 0
    %1903 = vmatpush1.bf16.xpose.msra.mxu0 0
    %1904 = vmatprep.subr.bf16.mxu0 0
    %1905 = vmatpush1.bf16.xpose.msra.mxu0 0
    %1906 = vmatprep.subr.bf16.mxu0 0
    %1907 = vmatpush1.bf16.xpose.msra.mxu0 0
    %1908 = vmatprep.subr.bf16.mxu0 0
    %1909 = vmatpush1.bf16.xpose.msra.mxu0 0
    %1910 = vmatprep.subr.bf16.mxu0 0
    %1911 = vmatpush1.bf16.xpose.msra.mxu0 0
    %1912 = vmatprep.subr.bf16.mxu0 0
    %1913 = vmatpush1.bf16.xpose.msra.mxu0 0
    %1914 = vmatprep.mubr.bf16.mxu0 0
    %1915 = vmatmul.mubr.bf16.gmra.mrb[0].mxu0 %v1877
    %v1916 = vpop.f32.mrb[0].mxu0
    %v1917 = vadd.f32 0.0, %v1916
    %v1918 = vpop.f32.mrb[0].mxu0
    %v1919 = vpop.f32.mrb[0].mxu0
    %v1920 = vadd.f32 0.0, %v1919
    %v1921 = vpop.f32.mrb[0].mxu0
    %1922 = vdwg.mxu0
    %1923 = vrot.lane.b32.xlu0 %v620, 112
    %v1924 = vpop.permute.xlu0 %1923
    %1925 = vrot.lane.b32.xlu0 %v620, 48
    %v1926 = vpop.permute.xlu0 %1925
    %v1928 = vsel %vm632, %v1924, 0
    %v1931 = vsel %vm632, %v1926, 0
    %1933 = vmatprep.subr.bf16.mxu0 0
    %1934 = vmatpush1.bf16.xpose.msra.mxu0 %v1931
    %1935 = vmatprep.subr.bf16.mxu0 0
    %1936 = vmatpush1.bf16.xpose.msra.mxu0 0
    %1937 = vmatprep.subr.bf16.mxu0 0
    %1938 = vmatpush1.bf16.xpose.msra.mxu0 0
    %1939 = vmatprep.subr.bf16.mxu0 0
    %1940 = vmatpush1.bf16.xpose.msra.mxu0 0
    %1941 = vmatprep.subr.bf16.mxu0 0
    %1942 = vmatpush1.bf16.xpose.msra.mxu0 0
    %1943 = vmatprep.subr.bf16.mxu0 0
    %1944 = vmatpush1.bf16.xpose.msra.mxu0 0
    %1945 = vmatprep.subr.bf16.mxu0 0
    %1946 = vmatpush1.bf16.xpose.msra.mxu0 0
    %1947 = vmatprep.subr.bf16.mxu0 0
    %1948 = vmatpush1.bf16.xpose.msra.mxu0 0
    %1949 = vmatprep.subr.bf16.mxu0 0
    %1950 = vmatpush1.bf16.xpose.msra.mxu0 0
    %1951 = vmatprep.subr.bf16.mxu0 0
    %1952 = vmatpush1.bf16.xpose.msra.mxu0 0
    %1953 = vmatprep.subr.bf16.mxu0 0
    %1954 = vmatpush1.bf16.xpose.msra.mxu0 0
    %1955 = vmatprep.subr.bf16.mxu0 0
    %1956 = vmatpush1.bf16.xpose.msra.mxu0 0
    %1957 = vmatprep.subr.bf16.mxu0 0
    %1958 = vmatpush1.bf16.xpose.msra.mxu0 0
    %1959 = vmatprep.subr.bf16.mxu0 0
    %1960 = vmatpush1.bf16.xpose.msra.mxu0 0
    %1961 = vmatprep.subr.bf16.mxu0 0
    %1962 = vmatpush1.bf16.xpose.msra.mxu0 0
    %1963 = vmatprep.subr.bf16.mxu0 0
    %1964 = vmatpush1.bf16.xpose.msra.mxu0 0
    %1965 = vmatprep.mubr.bf16.mxu0 0
    %1966 = vmatmul.mubr.bf16.gmra.mrb[0].mxu0 %v1928
    %v1967 = vpop.f32.mrb[0].mxu0
    %v1968 = vadd.f32 0.0, %v1967
    %v1969 = vpop.f32.mrb[0].mxu0
    %v1970 = vpop.f32.mrb[0].mxu0
    %v1971 = vadd.f32 0.0, %v1970
    %v1972 = vpop.f32.mrb[0].mxu0
    %1973 = vdwg.mxu0
    %v1974 = vsel %vm632, %v1611, -inf
    %1975 = vmax.xlane.f32.xlu0 %v1974
    %v1976 = vpop.xlane.xlu0 %1975
    %v1977 = vsel %vm632, %v1614, -inf
    %1978 = vmax.xlane.f32.xlu0 %v1977
    %v1979 = vpop.xlane.xlu0 %1978
    %v1980 = vsel %vm632, %v1662, -inf
    %1981 = vmax.xlane.f32.xlu0 %v1980
    %v1982 = vpop.xlane.xlu0 %1981
    %v1983 = vsel %vm632, %v1665, -inf
    %1984 = vmax.xlane.f32.xlu0 %v1983
    %v1985 = vpop.xlane.xlu0 %1984
    %v1986 = vsel %vm632, %v1713, -inf
    %1987 = vmax.xlane.f32.xlu0 %v1986
    %v1988 = vpop.xlane.xlu0 %1987
    %v1989 = vsel %vm632, %v1716, -inf
    %1990 = vmax.xlane.f32.xlu0 %v1989
    %v1991 = vpop.xlane.xlu0 %1990
    %v1992 = vsel %vm632, %v1764, -inf
    %1993 = vmax.xlane.f32.xlu0 %v1992
    %v1994 = vpop.xlane.xlu0 %1993
    %v1995 = vsel %vm632, %v1767, -inf
    %1996 = vmax.xlane.f32.xlu0 %v1995
    %v1997 = vpop.xlane.xlu0 %1996
    %v1998 = vsel %vm632, %v1815, -inf
    %1999 = vmax.xlane.f32.xlu0 %v1998
    %v2000 = vpop.xlane.xlu0 %1999
    %v2001 = vsel %vm632, %v1818, -inf
    %2002 = vmax.xlane.f32.xlu0 %v2001
    %v2003 = vpop.xlane.xlu0 %2002
    %v2004 = vsel %vm632, %v1866, -inf
    %2005 = vmax.xlane.f32.xlu0 %v2004
    %v2006 = vpop.xlane.xlu0 %2005
    %v2007 = vsel %vm632, %v1869, -inf
    %2008 = vmax.xlane.f32.xlu0 %v2007
    %v2009 = vpop.xlane.xlu0 %2008
    %v2010 = vsel %vm632, %v1917, -inf
    %2011 = vmax.xlane.f32.xlu0 %v2010
    %v2012 = vpop.xlane.xlu0 %2011
    %v2013 = vsel %vm632, %v1920, -inf
    %2014 = vmax.xlane.f32.xlu0 %v2013
    %v2015 = vpop.xlane.xlu0 %2014
    %v2016 = vsel %vm632, %v1968, -inf
    %2017 = vmax.xlane.f32.xlu0 %v2016
    %v2018 = vpop.xlane.xlu0 %2017
    %v2019 = vsel %vm632, %v1971, -inf
    %2020 = vmax.xlane.f32.xlu0 %v2019
    %v2021 = vpop.xlane.xlu0 %2020
    %v2022 = vsub.f32 %v1611, %v1976
    %v2023 = vsub.f32 %v1614, %v1979
    %v2024 = vsub.f32 %v1662, %v1982
    %v2025 = vsub.f32 %v1665, %v1985
    %v2026 = vsub.f32 %v1713, %v1988
    %v2027 = vsub.f32 %v1716, %v1991
    %v2028 = vsub.f32 %v1764, %v1994
    %v2029 = vsub.f32 %v1767, %v1997
    %v2030 = vsub.f32 %v1815, %v2000
    %v2031 = vsub.f32 %v1818, %v2003
    %v2032 = vsub.f32 %v1866, %v2006
    %v2033 = vsub.f32 %v1869, %v2009
    %v2034 = vsub.f32 %v1917, %v2012
    %v2035 = vsub.f32 %v1920, %v2015
    %v2036 = vsub.f32 %v1968, %v2018
    %v2037 = vsub.f32 %v1971, %v2021
    %v2038 = vmul.f32 %v2022, 1.442695
    %v2039 = vpow.pop %v2038
    %v2040 = vmul.f32 %v2023, 1.442695
    %v2041 = vpow.pop %v2040
    %v2042 = vmul.f32 %v2024, 1.442695
    %v2043 = vpow.pop %v2042
    %v2044 = vmul.f32 %v2025, 1.442695
    %v2045 = vpow.pop %v2044
    %v2046 = vmul.f32 %v2026, 1.442695
    %v2047 = vpow.pop %v2046
    %v2048 = vmul.f32 %v2027, 1.442695
    %v2049 = vpow.pop %v2048
    %v2050 = vmul.f32 %v2028, 1.442695
    %v2051 = vpow.pop %v2050
    %v2052 = vmul.f32 %v2029, 1.442695
    %v2053 = vpow.pop %v2052
    %v2054 = vmul.f32 %v2030, 1.442695
    %v2055 = vpow.pop %v2054
    %v2056 = vmul.f32 %v2031, 1.442695
    %v2057 = vpow.pop %v2056
    %v2058 = vmul.f32 %v2032, 1.442695
    %v2059 = vpow.pop %v2058
    %v2060 = vmul.f32 %v2033, 1.442695
    %v2061 = vpow.pop %v2060
    %v2062 = vmul.f32 %v2034, 1.442695
    %v2063 = vpow.pop %v2062
    %v2064 = vmul.f32 %v2035, 1.442695
    %v2065 = vpow.pop %v2064
    %v2066 = vmul.f32 %v2036, 1.442695
    %v2067 = vpow.pop %v2066
    %v2068 = vmul.f32 %v2037, 1.442695
    %v2069 = vpow.pop %v2068
    %v2070 = vsel %vm632, %v2039, 0.0
    %2071 = vadd.xlane.f32.xlu0 %v2070
    %v2072 = vpop.xlane.xlu0 %2071
    %v2073 = vsel %vm632, %v2041, 0.0
    %2074 = vadd.xlane.f32.xlu0 %v2073
    %v2075 = vpop.xlane.xlu0 %2074
    %v2076 = vsel %vm632, %v2043, 0.0
    %2077 = vadd.xlane.f32.xlu0 %v2076
    %v2078 = vpop.xlane.xlu0 %2077
    %v2079 = vsel %vm632, %v2045, 0.0
    %2080 = vadd.xlane.f32.xlu0 %v2079
    %v2081 = vpop.xlane.xlu0 %2080
    %v2082 = vsel %vm632, %v2047, 0.0
    %2083 = vadd.xlane.f32.xlu0 %v2082
    %v2084 = vpop.xlane.xlu0 %2083
    %v2085 = vsel %vm632, %v2049, 0.0
    %2086 = vadd.xlane.f32.xlu0 %v2085
    %v2087 = vpop.xlane.xlu0 %2086
    %v2088 = vsel %vm632, %v2051, 0.0
    %2089 = vadd.xlane.f32.xlu0 %v2088
    %v2090 = vpop.xlane.xlu0 %2089
    %v2091 = vsel %vm632, %v2053, 0.0
    %2092 = vadd.xlane.f32.xlu0 %v2091
    %v2093 = vpop.xlane.xlu0 %2092
    %v2094 = vsel %vm632, %v2055, 0.0
    %2095 = vadd.xlane.f32.xlu0 %v2094
    %v2096 = vpop.xlane.xlu0 %2095
    %v2097 = vsel %vm632, %v2057, 0.0
    %2098 = vadd.xlane.f32.xlu0 %v2097
    %v2099 = vpop.xlane.xlu0 %2098
    %v2100 = vsel %vm632, %v2059, 0.0
    %2101 = vadd.xlane.f32.xlu0 %v2100
    %v2102 = vpop.xlane.xlu0 %2101
    %v2103 = vsel %vm632, %v2061, 0.0
    %2104 = vadd.xlane.f32.xlu0 %v2103
    %v2105 = vpop.xlane.xlu0 %2104
    %v2106 = vsel %vm632, %v2063, 0.0
    %2107 = vadd.xlane.f32.xlu0 %v2106
    %v2108 = vpop.xlane.xlu0 %2107
    %v2109 = vsel %vm632, %v2065, 0.0
    %2110 = vadd.xlane.f32.xlu0 %v2109
    %v2111 = vpop.xlane.xlu0 %2110
    %v2112 = vsel %vm632, %v2067, 0.0
    %2113 = vadd.xlane.f32.xlu0 %v2112
    %v2114 = vpop.xlane.xlu0 %2113
    %v2115 = vsel %vm632, %v2069, 0.0
    %2116 = vadd.xlane.f32.xlu0 %v2115
    %v2117 = vpop.xlane.xlu0 %2116
    %v2118 = vrcp.pop %v2072
    %v2119 = vmul.f32 %v2039, %v2118
    %v2120 = vrcp.pop %v2075
    %v2121 = vmul.f32 %v2041, %v2120
    %v2122 = vrcp.pop %v2078
    %v2123 = vmul.f32 %v2043, %v2122
    %v2124 = vrcp.pop %v2081
    %v2125 = vmul.f32 %v2045, %v2124
    %v2126 = vrcp.pop %v2084
    %v2127 = vmul.f32 %v2047, %v2126
    %v2128 = vrcp.pop %v2087
    %v2129 = vmul.f32 %v2049, %v2128
    %v2130 = vrcp.pop %v2090
    %v2131 = vmul.f32 %v2051, %v2130
    %v2132 = vrcp.pop %v2093
    %v2133 = vmul.f32 %v2053, %v2132
    %v2134 = vrcp.pop %v2096
    %v2135 = vmul.f32 %v2055, %v2134
    %v2136 = vrcp.pop %v2099
    %v2137 = vmul.f32 %v2057, %v2136
    %v2138 = vrcp.pop %v2102
    %v2139 = vmul.f32 %v2059, %v2138
    %v2140 = vrcp.pop %v2105
    %v2141 = vmul.f32 %v2061, %v2140
    %v2142 = vrcp.pop %v2108
    %v2143 = vmul.f32 %v2063, %v2142
    %v2144 = vrcp.pop %v2111
    %v2145 = vmul.f32 %v2065, %v2144
    %v2146 = vrcp.pop %v2114
    %v2147 = vmul.f32 %v2067, %v2146
    %v2148 = vrcp.pop %v2117
    %v2149 = vmul.f32 %v2069, %v2148
    %v2150 = vpack.c.bf16 %v2121, %v2119
    %v2151 = vpack.c.bf16 %v2125, %v2123
    %v2152 = vpack.c.bf16 %v2129, %v2127
    %v2153 = vpack.c.bf16 %v2133, %v2131
    %v2154 = vpack.c.bf16 %v2137, %v2135
    %v2155 = vpack.c.bf16 %v2141, %v2139
    %v2156 = vpack.c.bf16 %v2145, %v2143
    %v2157 = vpack.c.bf16 %v2149, %v2147
    %2159 = vrot.lane.b32.xlu0 %v621, 112
    %v2160 = vpop.permute.xlu0 %2159
    %v2163 = vsel %vm632, %v2150, 0
    %2165 = vmatprep.subr.bf16.mxu0 0
    %2166 = vmatpush1.bf16.msra.mxu0 %v2160
    %2167 = vmatprep.subr.bf16.mxu0 0
    %2168 = vmatpush1.bf16.msra.mxu0 0
    %2169 = vmatprep.subr.bf16.mxu0 0
    %2170 = vmatpush1.bf16.msra.mxu0 0
    %2171 = vmatprep.subr.bf16.mxu0 0
    %2172 = vmatpush1.bf16.msra.mxu0 0
    %2173 = vmatprep.subr.bf16.mxu0 0
    %2174 = vmatpush1.bf16.msra.mxu0 0
    %2175 = vmatprep.subr.bf16.mxu0 0
    %2176 = vmatpush1.bf16.msra.mxu0 0
    %2177 = vmatprep.subr.bf16.mxu0 0
    %2178 = vmatpush1.bf16.msra.mxu0 0
    %2179 = vmatprep.subr.bf16.mxu0 0
    %2180 = vmatpush1.bf16.msra.mxu0 0
    %2181 = vmatprep.subr.bf16.mxu0 0
    %2182 = vmatpush1.bf16.msra.mxu0 0
    %2183 = vmatprep.subr.bf16.mxu0 0
    %2184 = vmatpush1.bf16.msra.mxu0 0
    %2185 = vmatprep.subr.bf16.mxu0 0
    %2186 = vmatpush1.bf16.msra.mxu0 0
    %2187 = vmatprep.subr.bf16.mxu0 0
    %2188 = vmatpush1.bf16.msra.mxu0 0
    %2189 = vmatprep.subr.bf16.mxu0 0
    %2190 = vmatpush1.bf16.msra.mxu0 0
    %2191 = vmatprep.subr.bf16.mxu0 0
    %2192 = vmatpush1.bf16.msra.mxu0 0
    %2193 = vmatprep.subr.bf16.mxu0 0
    %2194 = vmatpush1.bf16.msra.mxu0 0
    %2195 = vmatprep.subr.bf16.mxu0 0
    %2196 = vmatpush1.bf16.msra.mxu0 0
    %2197 = vmatprep.mubr.bf16.mxu0 0
    %2198 = vmatmul.mubr.bf16.gmra.mrb[0].mxu0 %v2163
    %v2199 = vpop.f32.mrb[0].mxu0
    %v2200 = vadd.f32 0.0, %v2199
    %v2201 = vpop.f32.mrb[0].mxu0
    %v2202 = vpop.f32.mrb[0].mxu0
    %v2203 = vadd.f32 0.0, %v2202
    %v2204 = vpop.f32.mrb[0].mxu0
    %2205 = vdwg.mxu0
    %2207 = vrot.lane.b32.xlu0 %v622, 112
    %v2208 = vpop.permute.xlu0 %2207
    %v2211 = vsel %vm632, %v2151, 0
    %2213 = vmatprep.subr.bf16.mxu0 0
    %2214 = vmatpush1.bf16.msra.mxu0 %v2208
    %2215 = vmatprep.subr.bf16.mxu0 0
    %2216 = vmatpush1.bf16.msra.mxu0 0
    %2217 = vmatprep.subr.bf16.mxu0 0
    %2218 = vmatpush1.bf16.msra.mxu0 0
    %2219 = vmatprep.subr.bf16.mxu0 0
    %2220 = vmatpush1.bf16.msra.mxu0 0
    %2221 = vmatprep.subr.bf16.mxu0 0
    %2222 = vmatpush1.bf16.msra.mxu0 0
    %2223 = vmatprep.subr.bf16.mxu0 0
    %2224 = vmatpush1.bf16.msra.mxu0 0
    %2225 = vmatprep.subr.bf16.mxu0 0
    %2226 = vmatpush1.bf16.msra.mxu0 0
    %2227 = vmatprep.subr.bf16.mxu0 0
    %2228 = vmatpush1.bf16.msra.mxu0 0
    %2229 = vmatprep.subr.bf16.mxu0 0
    %2230 = vmatpush1.bf16.msra.mxu0 0
    %2231 = vmatprep.subr.bf16.mxu0 0
    %2232 = vmatpush1.bf16.msra.mxu0 0
    %2233 = vmatprep.subr.bf16.mxu0 0
    %2234 = vmatpush1.bf16.msra.mxu0 0
    %2235 = vmatprep.subr.bf16.mxu0 0
    %2236 = vmatpush1.bf16.msra.mxu0 0
    %2237 = vmatprep.subr.bf16.mxu0 0
    %2238 = vmatpush1.bf16.msra.mxu0 0
    %2239 = vmatprep.subr.bf16.mxu0 0
    %2240 = vmatpush1.bf16.msra.mxu0 0
    %2241 = vmatprep.subr.bf16.mxu0 0
    %2242 = vmatpush1.bf16.msra.mxu0 0
    %2243 = vmatprep.subr.bf16.mxu0 0
    %2244 = vmatpush1.bf16.msra.mxu0 0
    %2245 = vmatprep.mubr.bf16.mxu0 0
    %2246 = vmatmul.mubr.bf16.gmra.mrb[0].mxu0 %v2211
    %v2247 = vpop.f32.mrb[0].mxu0
    %v2248 = vadd.f32 0.0, %v2247
    %v2249 = vpop.f32.mrb[0].mxu0
    %v2250 = vpop.f32.mrb[0].mxu0
    %v2251 = vadd.f32 0.0, %v2250
    %v2252 = vpop.f32.mrb[0].mxu0
    %2253 = vdwg.mxu0
    %2255 = vrot.lane.b32.xlu0 %v623, 112
    %v2256 = vpop.permute.xlu0 %2255
    %v2259 = vsel %vm632, %v2152, 0
    %2261 = vmatprep.subr.bf16.mxu0 0
    %2262 = vmatpush1.bf16.msra.mxu0 %v2256
    %2263 = vmatprep.subr.bf16.mxu0 0
    %2264 = vmatpush1.bf16.msra.mxu0 0
    %2265 = vmatprep.subr.bf16.mxu0 0
    %2266 = vmatpush1.bf16.msra.mxu0 0
    %2267 = vmatprep.subr.bf16.mxu0 0
    %2268 = vmatpush1.bf16.msra.mxu0 0
    %2269 = vmatprep.subr.bf16.mxu0 0
    %2270 = vmatpush1.bf16.msra.mxu0 0
    %2271 = vmatprep.subr.bf16.mxu0 0
    %2272 = vmatpush1.bf16.msra.mxu0 0
    %2273 = vmatprep.subr.bf16.mxu0 0
    %2274 = vmatpush1.bf16.msra.mxu0 0
    %2275 = vmatprep.subr.bf16.mxu0 0
    %2276 = vmatpush1.bf16.msra.mxu0 0
    %2277 = vmatprep.subr.bf16.mxu0 0
    %2278 = vmatpush1.bf16.msra.mxu0 0
    %2279 = vmatprep.subr.bf16.mxu0 0
    %2280 = vmatpush1.bf16.msra.mxu0 0
    %2281 = vmatprep.subr.bf16.mxu0 0
    %2282 = vmatpush1.bf16.msra.mxu0 0
    %2283 = vmatprep.subr.bf16.mxu0 0
    %2284 = vmatpush1.bf16.msra.mxu0 0
    %2285 = vmatprep.subr.bf16.mxu0 0
    %2286 = vmatpush1.bf16.msra.mxu0 0
    %2287 = vmatprep.subr.bf16.mxu0 0
    %2288 = vmatpush1.bf16.msra.mxu0 0
    %2289 = vmatprep.subr.bf16.mxu0 0
    %2290 = vmatpush1.bf16.msra.mxu0 0
    %2291 = vmatprep.subr.bf16.mxu0 0
    %2292 = vmatpush1.bf16.msra.mxu0 0
    %2293 = vmatprep.mubr.bf16.mxu0 0
    %2294 = vmatmul.mubr.bf16.gmra.mrb[0].mxu0 %v2259
    %v2295 = vpop.f32.mrb[0].mxu0
    %v2296 = vadd.f32 0.0, %v2295
    %v2297 = vpop.f32.mrb[0].mxu0
    %v2298 = vpop.f32.mrb[0].mxu0
    %v2299 = vadd.f32 0.0, %v2298
    %v2300 = vpop.f32.mrb[0].mxu0
    %2301 = vdwg.mxu0
    %2303 = vrot.lane.b32.xlu0 %v624, 112
    %v2304 = vpop.permute.xlu0 %2303
    %v2307 = vsel %vm632, %v2153, 0
    %2309 = vmatprep.subr.bf16.mxu0 0
    %2310 = vmatpush1.bf16.msra.mxu0 %v2304
    %2311 = vmatprep.subr.bf16.mxu0 0
    %2312 = vmatpush1.bf16.msra.mxu0 0
    %2313 = vmatprep.subr.bf16.mxu0 0
    %2314 = vmatpush1.bf16.msra.mxu0 0
    %2315 = vmatprep.subr.bf16.mxu0 0
    %2316 = vmatpush1.bf16.msra.mxu0 0
    %2317 = vmatprep.subr.bf16.mxu0 0
    %2318 = vmatpush1.bf16.msra.mxu0 0
    %2319 = vmatprep.subr.bf16.mxu0 0
    %2320 = vmatpush1.bf16.msra.mxu0 0
    %2321 = vmatprep.subr.bf16.mxu0 0
    %2322 = vmatpush1.bf16.msra.mxu0 0
    %2323 = vmatprep.subr.bf16.mxu0 0
    %2324 = vmatpush1.bf16.msra.mxu0 0
    %2325 = vmatprep.subr.bf16.mxu0 0
    %2326 = vmatpush1.bf16.msra.mxu0 0
    %2327 = vmatprep.subr.bf16.mxu0 0
    %2328 = vmatpush1.bf16.msra.mxu0 0
    %2329 = vmatprep.subr.bf16.mxu0 0
    %2330 = vmatpush1.bf16.msra.mxu0 0
    %2331 = vmatprep.subr.bf16.mxu0 0
    %2332 = vmatpush1.bf16.msra.mxu0 0
    %2333 = vmatprep.subr.bf16.mxu0 0
    %2334 = vmatpush1.bf16.msra.mxu0 0
    %2335 = vmatprep.subr.bf16.mxu0 0
    %2336 = vmatpush1.bf16.msra.mxu0 0
    %2337 = vmatprep.subr.bf16.mxu0 0
    %2338 = vmatpush1.bf16.msra.mxu0 0
    %2339 = vmatprep.subr.bf16.mxu0 0
    %2340 = vmatpush1.bf16.msra.mxu0 0
    %2341 = vmatprep.mubr.bf16.mxu0 0
    %2342 = vmatmul.mubr.bf16.gmra.mrb[0].mxu0 %v2307
    %v2343 = vpop.f32.mrb[0].mxu0
    %v2344 = vadd.f32 0.0, %v2343
    %v2345 = vpop.f32.mrb[0].mxu0
    %v2346 = vpop.f32.mrb[0].mxu0
    %v2347 = vadd.f32 0.0, %v2346
    %v2348 = vpop.f32.mrb[0].mxu0
    %2349 = vdwg.mxu0
    %2351 = vrot.lane.b32.xlu0 %v625, 112
    %v2352 = vpop.permute.xlu0 %2351
    %v2355 = vsel %vm632, %v2154, 0
    %2357 = vmatprep.subr.bf16.mxu0 0
    %2358 = vmatpush1.bf16.msra.mxu0 %v2352
    %2359 = vmatprep.subr.bf16.mxu0 0
    %2360 = vmatpush1.bf16.msra.mxu0 0
    %2361 = vmatprep.subr.bf16.mxu0 0
    %2362 = vmatpush1.bf16.msra.mxu0 0
    %2363 = vmatprep.subr.bf16.mxu0 0
    %2364 = vmatpush1.bf16.msra.mxu0 0
    %2365 = vmatprep.subr.bf16.mxu0 0
    %2366 = vmatpush1.bf16.msra.mxu0 0
    %2367 = vmatprep.subr.bf16.mxu0 0
    %2368 = vmatpush1.bf16.msra.mxu0 0
    %2369 = vmatprep.subr.bf16.mxu0 0
    %2370 = vmatpush1.bf16.msra.mxu0 0
    %2371 = vmatprep.subr.bf16.mxu0 0
    %2372 = vmatpush1.bf16.msra.mxu0 0
    %2373 = vmatprep.subr.bf16.mxu0 0
    %2374 = vmatpush1.bf16.msra.mxu0 0
    %2375 = vmatprep.subr.bf16.mxu0 0
    %2376 = vmatpush1.bf16.msra.mxu0 0
    %2377 = vmatprep.subr.bf16.mxu0 0
    %2378 = vmatpush1.bf16.msra.mxu0 0
    %2379 = vmatprep.subr.bf16.mxu0 0
    %2380 = vmatpush1.bf16.msra.mxu0 0
    %2381 = vmatprep.subr.bf16.mxu0 0
    %2382 = vmatpush1.bf16.msra.mxu0 0
    %2383 = vmatprep.subr.bf16.mxu0 0
    %2384 = vmatpush1.bf16.msra.mxu0 0
    %2385 = vmatprep.subr.bf16.mxu0 0
    %2386 = vmatpush1.bf16.msra.mxu0 0
    %2387 = vmatprep.subr.bf16.mxu0 0
    %2388 = vmatpush1.bf16.msra.mxu0 0
    %2389 = vmatprep.mubr.bf16.mxu0 0
    %2390 = vmatmul.mubr.bf16.gmra.mrb[0].mxu0 %v2355
    %v2391 = vpop.f32.mrb[0].mxu0
    %v2392 = vadd.f32 0.0, %v2391
    %v2393 = vpop.f32.mrb[0].mxu0
    %v2394 = vpop.f32.mrb[0].mxu0
    %v2395 = vadd.f32 0.0, %v2394
    %v2396 = vpop.f32.mrb[0].mxu0
    %2397 = vdwg.mxu0
    %2399 = vrot.lane.b32.xlu0 %v626, 112
    %v2400 = vpop.permute.xlu0 %2399
    %v2403 = vsel %vm632, %v2155, 0
    %2405 = vmatprep.subr.bf16.mxu0 0
    %2406 = vmatpush1.bf16.msra.mxu0 %v2400
    %2407 = vmatprep.subr.bf16.mxu0 0
    %2408 = vmatpush1.bf16.msra.mxu0 0
    %2409 = vmatprep.subr.bf16.mxu0 0
    %2410 = vmatpush1.bf16.msra.mxu0 0
    %2411 = vmatprep.subr.bf16.mxu0 0
    %2412 = vmatpush1.bf16.msra.mxu0 0
    %2413 = vmatprep.subr.bf16.mxu0 0
    %2414 = vmatpush1.bf16.msra.mxu0 0
    %2415 = vmatprep.subr.bf16.mxu0 0
    %2416 = vmatpush1.bf16.msra.mxu0 0
    %2417 = vmatprep.subr.bf16.mxu0 0
    %2418 = vmatpush1.bf16.msra.mxu0 0
    %2419 = vmatprep.subr.bf16.mxu0 0
    %2420 = vmatpush1.bf16.msra.mxu0 0
    %2421 = vmatprep.subr.bf16.mxu0 0
    %2422 = vmatpush1.bf16.msra.mxu0 0
    %2423 = vmatprep.subr.bf16.mxu0 0
    %2424 = vmatpush1.bf16.msra.mxu0 0
    %2425 = vmatprep.subr.bf16.mxu0 0
    %2426 = vmatpush1.bf16.msra.mxu0 0
    %2427 = vmatprep.subr.bf16.mxu0 0
    %2428 = vmatpush1.bf16.msra.mxu0 0
    %2429 = vmatprep.subr.bf16.mxu0 0
    %2430 = vmatpush1.bf16.msra.mxu0 0
    %2431 = vmatprep.subr.bf16.mxu0 0
    %2432 = vmatpush1.bf16.msra.mxu0 0
    %2433 = vmatprep.subr.bf16.mxu0 0
    %2434 = vmatpush1.bf16.msra.mxu0 0
    %2435 = vmatprep.subr.bf16.mxu0 0
    %2436 = vmatpush1.bf16.msra.mxu0 0
    %2437 = vmatprep.mubr.bf16.mxu0 0
    %2438 = vmatmul.mubr.bf16.gmra.mrb[0].mxu0 %v2403
    %v2439 = vpop.f32.mrb[0].mxu0
    %v2440 = vadd.f32 0.0, %v2439
    %v2441 = vpop.f32.mrb[0].mxu0
    %v2442 = vpop.f32.mrb[0].mxu0
    %v2443 = vadd.f32 0.0, %v2442
    %v2444 = vpop.f32.mrb[0].mxu0
    %2445 = vdwg.mxu0
    %2447 = vrot.lane.b32.xlu0 %v627, 112
    %v2448 = vpop.permute.xlu0 %2447
    %v2451 = vsel %vm632, %v2156, 0
    %2453 = vmatprep.subr.bf16.mxu0 0
    %2454 = vmatpush1.bf16.msra.mxu0 %v2448
    %2455 = vmatprep.subr.bf16.mxu0 0
    %2456 = vmatpush1.bf16.msra.mxu0 0
    %2457 = vmatprep.subr.bf16.mxu0 0
    %2458 = vmatpush1.bf16.msra.mxu0 0
    %2459 = vmatprep.subr.bf16.mxu0 0
    %2460 = vmatpush1.bf16.msra.mxu0 0
    %2461 = vmatprep.subr.bf16.mxu0 0
    %2462 = vmatpush1.bf16.msra.mxu0 0
    %2463 = vmatprep.subr.bf16.mxu0 0
    %2464 = vmatpush1.bf16.msra.mxu0 0
    %2465 = vmatprep.subr.bf16.mxu0 0
    %2466 = vmatpush1.bf16.msra.mxu0 0
    %2467 = vmatprep.subr.bf16.mxu0 0
    %2468 = vmatpush1.bf16.msra.mxu0 0
    %2469 = vmatprep.subr.bf16.mxu0 0
    %2470 = vmatpush1.bf16.msra.mxu0 0
    %2471 = vmatprep.subr.bf16.mxu0 0
    %2472 = vmatpush1.bf16.msra.mxu0 0
    %2473 = vmatprep.subr.bf16.mxu0 0
    %2474 = vmatpush1.bf16.msra.mxu0 0
    %2475 = vmatprep.subr.bf16.mxu0 0
    %2476 = vmatpush1.bf16.msra.mxu0 0
    %2477 = vmatprep.subr.bf16.mxu0 0
    %2478 = vmatpush1.bf16.msra.mxu0 0
    %2479 = vmatprep.subr.bf16.mxu0 0
    %2480 = vmatpush1.bf16.msra.mxu0 0
    %2481 = vmatprep.subr.bf16.mxu0 0
    %2482 = vmatpush1.bf16.msra.mxu0 0
    %2483 = vmatprep.subr.bf16.mxu0 0
    %2484 = vmatpush1.bf16.msra.mxu0 0
    %2485 = vmatprep.mubr.bf16.mxu0 0
    %2486 = vmatmul.mubr.bf16.gmra.mrb[0].mxu0 %v2451
    %v2487 = vpop.f32.mrb[0].mxu0
    %v2488 = vadd.f32 0.0, %v2487
    %v2489 = vpop.f32.mrb[0].mxu0
    %v2490 = vpop.f32.mrb[0].mxu0
    %v2491 = vadd.f32 0.0, %v2490
    %v2492 = vpop.f32.mrb[0].mxu0
    %2493 = vdwg.mxu0
    %2495 = vrot.lane.b32.xlu0 %v628, 112
    %v2496 = vpop.permute.xlu0 %2495
    %v2499 = vsel %vm632, %v2157, 0
    %2501 = vmatprep.subr.bf16.mxu0 0
    %2502 = vmatpush1.bf16.msra.mxu0 %v2496
    %2503 = vmatprep.subr.bf16.mxu0 0
    %2504 = vmatpush1.bf16.msra.mxu0 0
    %2505 = vmatprep.subr.bf16.mxu0 0
    %2506 = vmatpush1.bf16.msra.mxu0 0
    %2507 = vmatprep.subr.bf16.mxu0 0
    %2508 = vmatpush1.bf16.msra.mxu0 0
    %2509 = vmatprep.subr.bf16.mxu0 0
    %2510 = vmatpush1.bf16.msra.mxu0 0
    %2511 = vmatprep.subr.bf16.mxu0 0
    %2512 = vmatpush1.bf16.msra.mxu0 0
    %2513 = vmatprep.subr.bf16.mxu0 0
    %2514 = vmatpush1.bf16.msra.mxu0 0
    %2515 = vmatprep.subr.bf16.mxu0 0
    %2516 = vmatpush1.bf16.msra.mxu0 0
    %2517 = vmatprep.subr.bf16.mxu0 0
    %2518 = vmatpush1.bf16.msra.mxu0 0
    %2519 = vmatprep.subr.bf16.mxu0 0
    %2520 = vmatpush1.bf16.msra.mxu0 0
    %2521 = vmatprep.subr.bf16.mxu0 0
    %2522 = vmatpush1.bf16.msra.mxu0 0
    %2523 = vmatprep.subr.bf16.mxu0 0
    %2524 = vmatpush1.bf16.msra.mxu0 0
    %2525 = vmatprep.subr.bf16.mxu0 0
    %2526 = vmatpush1.bf16.msra.mxu0 0
    %2527 = vmatprep.subr.bf16.mxu0 0
    %2528 = vmatpush1.bf16.msra.mxu0 0
    %2529 = vmatprep.subr.bf16.mxu0 0
    %2530 = vmatpush1.bf16.msra.mxu0 0
    %2531 = vmatprep.subr.bf16.mxu0 0
    %2532 = vmatpush1.bf16.msra.mxu0 0
    %2533 = vmatprep.mubr.bf16.mxu0 0
    %2534 = vmatmul.mubr.bf16.gmra.mrb[0].mxu0 %v2499
    %v2535 = vpop.f32.mrb[0].mxu0
    %v2536 = vadd.f32 0.0, %v2535
    %v2537 = vpop.f32.mrb[0].mxu0
    %v2538 = vpop.f32.mrb[0].mxu0
    %v2539 = vadd.f32 0.0, %v2538
    %v2540 = vpop.f32.mrb[0].mxu0
    %2541 = vdwg.mxu0
    %2542 = vrot.lane.b32.xlu0 %v613, 96
    %v2543 = vpop.permute.xlu0 %2542
    %2544 = vrot.lane.b32.xlu0 %v613, 32
    %v2545 = vpop.permute.xlu0 %2544
    %v2547 = vsel %vm632, %v2543, 0
    %v2550 = vsel %vm632, %v2545, 0
    %2552 = vmatprep.subr.bf16.mxu0 0
    %2553 = vmatpush1.bf16.xpose.msra.mxu0 %v2550
    %2554 = vmatprep.subr.bf16.mxu0 0
    %2555 = vmatpush1.bf16.xpose.msra.mxu0 0
    %2556 = vmatprep.subr.bf16.mxu0 0
    %2557 = vmatpush1.bf16.xpose.msra.mxu0 0
    %2558 = vmatprep.subr.bf16.mxu0 0
    %2559 = vmatpush1.bf16.xpose.msra.mxu0 0
    %2560 = vmatprep.subr.bf16.mxu0 0
    %2561 = vmatpush1.bf16.xpose.msra.mxu0 0
    %2562 = vmatprep.subr.bf16.mxu0 0
    %2563 = vmatpush1.bf16.xpose.msra.mxu0 0
    %2564 = vmatprep.subr.bf16.mxu0 0
    %2565 = vmatpush1.bf16.xpose.msra.mxu0 0
    %2566 = vmatprep.subr.bf16.mxu0 0
    %2567 = vmatpush1.bf16.xpose.msra.mxu0 0
    %2568 = vmatprep.subr.bf16.mxu0 0
    %2569 = vmatpush1.bf16.xpose.msra.mxu0 0
    %2570 = vmatprep.subr.bf16.mxu0 0
    %2571 = vmatpush1.bf16.xpose.msra.mxu0 0
    %2572 = vmatprep.subr.bf16.mxu0 0
    %2573 = vmatpush1.bf16.xpose.msra.mxu0 0
    %2574 = vmatprep.subr.bf16.mxu0 0
    %2575 = vmatpush1.bf16.xpose.msra.mxu0 0
    %2576 = vmatprep.subr.bf16.mxu0 0
    %2577 = vmatpush1.bf16.xpose.msra.mxu0 0
    %2578 = vmatprep.subr.bf16.mxu0 0
    %2579 = vmatpush1.bf16.xpose.msra.mxu0 0
    %2580 = vmatprep.subr.bf16.mxu0 0
    %2581 = vmatpush1.bf16.xpose.msra.mxu0 0
    %2582 = vmatprep.subr.bf16.mxu0 0
    %2583 = vmatpush1.bf16.xpose.msra.mxu0 0
    %2584 = vmatprep.mubr.bf16.mxu0 0
    %2585 = vmatmul.mubr.bf16.gmra.mrb[0].mxu0 %v2547
    %v2586 = vpop.f32.mrb[0].mxu0
    %v2587 = vadd.f32 0.0, %v2586
    %v2588 = vpop.f32.mrb[0].mxu0
    %v2589 = vpop.f32.mrb[0].mxu0
    %v2590 = vadd.f32 0.0, %v2589
    %v2591 = vpop.f32.mrb[0].mxu0
    %2592 = vdwg.mxu0
    %2593 = vrot.lane.b32.xlu0 %v614, 96
    %v2594 = vpop.permute.xlu0 %2593
    %2595 = vrot.lane.b32.xlu0 %v614, 32
    %v2596 = vpop.permute.xlu0 %2595
    %v2598 = vsel %vm632, %v2594, 0
    %v2601 = vsel %vm632, %v2596, 0
    %2603 = vmatprep.subr.bf16.mxu0 0
    %2604 = vmatpush1.bf16.xpose.msra.mxu0 %v2601
    %2605 = vmatprep.subr.bf16.mxu0 0
    %2606 = vmatpush1.bf16.xpose.msra.mxu0 0
    %2607 = vmatprep.subr.bf16.mxu0 0
    %2608 = vmatpush1.bf16.xpose.msra.mxu0 0
    %2609 = vmatprep.subr.bf16.mxu0 0
    %2610 = vmatpush1.bf16.xpose.msra.mxu0 0
    %2611 = vmatprep.subr.bf16.mxu0 0
    %2612 = vmatpush1.bf16.xpose.msra.mxu0 0
    %2613 = vmatprep.subr.bf16.mxu0 0
    %2614 = vmatpush1.bf16.xpose.msra.mxu0 0
    %2615 = vmatprep.subr.bf16.mxu0 0
    %2616 = vmatpush1.bf16.xpose.msra.mxu0 0
    %2617 = vmatprep.subr.bf16.mxu0 0
    %2618 = vmatpush1.bf16.xpose.msra.mxu0 0
    %2619 = vmatprep.subr.bf16.mxu0 0
    %2620 = vmatpush1.bf16.xpose.msra.mxu0 0
    %2621 = vmatprep.subr.bf16.mxu0 0
    %2622 = vmatpush1.bf16.xpose.msra.mxu0 0
    %2623 = vmatprep.subr.bf16.mxu0 0
    %2624 = vmatpush1.bf16.xpose.msra.mxu0 0
    %2625 = vmatprep.subr.bf16.mxu0 0
    %2626 = vmatpush1.bf16.xpose.msra.mxu0 0
    %2627 = vmatprep.subr.bf16.mxu0 0
    %2628 = vmatpush1.bf16.xpose.msra.mxu0 0
    %2629 = vmatprep.subr.bf16.mxu0 0
    %2630 = vmatpush1.bf16.xpose.msra.mxu0 0
    %2631 = vmatprep.subr.bf16.mxu0 0
    %2632 = vmatpush1.bf16.xpose.msra.mxu0 0
    %2633 = vmatprep.subr.bf16.mxu0 0
    %2634 = vmatpush1.bf16.xpose.msra.mxu0 0
    %2635 = vmatprep.mubr.bf16.mxu0 0
    %2636 = vmatmul.mubr.bf16.gmra.mrb[0].mxu0 %v2598
    %v2637 = vpop.f32.mrb[0].mxu0
    %v2638 = vadd.f32 0.0, %v2637
    %v2639 = vpop.f32.mrb[0].mxu0
    %v2640 = vpop.f32.mrb[0].mxu0
    %v2641 = vadd.f32 0.0, %v2640
    %v2642 = vpop.f32.mrb[0].mxu0
    %2643 = vdwg.mxu0
    %2644 = vrot.lane.b32.xlu0 %v615, 96
    %v2645 = vpop.permute.xlu0 %2644
    %2646 = vrot.lane.b32.xlu0 %v615, 32
    %v2647 = vpop.permute.xlu0 %2646
    %v2649 = vsel %vm632, %v2645, 0
    %v2652 = vsel %vm632, %v2647, 0
    %2654 = vmatprep.subr.bf16.mxu0 0
    %2655 = vmatpush1.bf16.xpose.msra.mxu0 %v2652
    %2656 = vmatprep.subr.bf16.mxu0 0
    %2657 = vmatpush1.bf16.xpose.msra.mxu0 0
    %2658 = vmatprep.subr.bf16.mxu0 0
    %2659 = vmatpush1.bf16.xpose.msra.mxu0 0
    %2660 = vmatprep.subr.bf16.mxu0 0
    %2661 = vmatpush1.bf16.xpose.msra.mxu0 0
    %2662 = vmatprep.subr.bf16.mxu0 0
    %2663 = vmatpush1.bf16.xpose.msra.mxu0 0
    %2664 = vmatprep.subr.bf16.mxu0 0
    %2665 = vmatpush1.bf16.xpose.msra.mxu0 0
    %2666 = vmatprep.subr.bf16.mxu0 0
    %2667 = vmatpush1.bf16.xpose.msra.mxu0 0
    %2668 = vmatprep.subr.bf16.mxu0 0
    %2669 = vmatpush1.bf16.xpose.msra.mxu0 0
    %2670 = vmatprep.subr.bf16.mxu0 0
    %2671 = vmatpush1.bf16.xpose.msra.mxu0 0
    %2672 = vmatprep.subr.bf16.mxu0 0
    %2673 = vmatpush1.bf16.xpose.msra.mxu0 0
    %2674 = vmatprep.subr.bf16.mxu0 0
    %2675 = vmatpush1.bf16.xpose.msra.mxu0 0
    %2676 = vmatprep.subr.bf16.mxu0 0
    %2677 = vmatpush1.bf16.xpose.msra.mxu0 0
    %2678 = vmatprep.subr.bf16.mxu0 0
    %2679 = vmatpush1.bf16.xpose.msra.mxu0 0
    %2680 = vmatprep.subr.bf16.mxu0 0
    %2681 = vmatpush1.bf16.xpose.msra.mxu0 0
    %2682 = vmatprep.subr.bf16.mxu0 0
    %2683 = vmatpush1.bf16.xpose.msra.mxu0 0
    %2684 = vmatprep.subr.bf16.mxu0 0
    %2685 = vmatpush1.bf16.xpose.msra.mxu0 0
    %2686 = vmatprep.mubr.bf16.mxu0 0
    %2687 = vmatmul.mubr.bf16.gmra.mrb[0].mxu0 %v2649
    %v2688 = vpop.f32.mrb[0].mxu0
    %v2689 = vadd.f32 0.0, %v2688
    %v2690 = vpop.f32.mrb[0].mxu0
    %v2691 = vpop.f32.mrb[0].mxu0
    %v2692 = vadd.f32 0.0, %v2691
    %v2693 = vpop.f32.mrb[0].mxu0
    %2694 = vdwg.mxu0
    %2695 = vrot.lane.b32.xlu0 %v616, 96
    %v2696 = vpop.permute.xlu0 %2695
    %2697 = vrot.lane.b32.xlu0 %v616, 32
    %v2698 = vpop.permute.xlu0 %2697
    %v2700 = vsel %vm632, %v2696, 0
    %v2703 = vsel %vm632, %v2698, 0
    %2705 = vmatprep.subr.bf16.mxu0 0
    %2706 = vmatpush1.bf16.xpose.msra.mxu0 %v2703
    %2707 = vmatprep.subr.bf16.mxu0 0
    %2708 = vmatpush1.bf16.xpose.msra.mxu0 0
    %2709 = vmatprep.subr.bf16.mxu0 0
    %2710 = vmatpush1.bf16.xpose.msra.mxu0 0
    %2711 = vmatprep.subr.bf16.mxu0 0
    %2712 = vmatpush1.bf16.xpose.msra.mxu0 0
    %2713 = vmatprep.subr.bf16.mxu0 0
    %2714 = vmatpush1.bf16.xpose.msra.mxu0 0
    %2715 = vmatprep.subr.bf16.mxu0 0
    %2716 = vmatpush1.bf16.xpose.msra.mxu0 0
    %2717 = vmatprep.subr.bf16.mxu0 0
    %2718 = vmatpush1.bf16.xpose.msra.mxu0 0
    %2719 = vmatprep.subr.bf16.mxu0 0
    %2720 = vmatpush1.bf16.xpose.msra.mxu0 0
    %2721 = vmatprep.subr.bf16.mxu0 0
    %2722 = vmatpush1.bf16.xpose.msra.mxu0 0
    %2723 = vmatprep.subr.bf16.mxu0 0
    %2724 = vmatpush1.bf16.xpose.msra.mxu0 0
    %2725 = vmatprep.subr.bf16.mxu0 0
    %2726 = vmatpush1.bf16.xpose.msra.mxu0 0
    %2727 = vmatprep.subr.bf16.mxu0 0
    %2728 = vmatpush1.bf16.xpose.msra.mxu0 0
    %2729 = vmatprep.subr.bf16.mxu0 0
    %2730 = vmatpush1.bf16.xpose.msra.mxu0 0
    %2731 = vmatprep.subr.bf16.mxu0 0
    %2732 = vmatpush1.bf16.xpose.msra.mxu0 0
    %2733 = vmatprep.subr.bf16.mxu0 0
    %2734 = vmatpush1.bf16.xpose.msra.mxu0 0
    %2735 = vmatprep.subr.bf16.mxu0 0
    %2736 = vmatpush1.bf16.xpose.msra.mxu0 0
    %2737 = vmatprep.mubr.bf16.mxu0 0
    %2738 = vmatmul.mubr.bf16.gmra.mrb[0].mxu0 %v2700
    %v2739 = vpop.f32.mrb[0].mxu0
    %v2740 = vadd.f32 0.0, %v2739
    %v2741 = vpop.f32.mrb[0].mxu0
    %v2742 = vpop.f32.mrb[0].mxu0
    %v2743 = vadd.f32 0.0, %v2742
    %v2744 = vpop.f32.mrb[0].mxu0
    %2745 = vdwg.mxu0
    %2746 = vrot.lane.b32.xlu0 %v617, 96
    %v2747 = vpop.permute.xlu0 %2746
    %2748 = vrot.lane.b32.xlu0 %v617, 32
    %v2749 = vpop.permute.xlu0 %2748
    %v2751 = vsel %vm632, %v2747, 0
    %v2754 = vsel %vm632, %v2749, 0
    %2756 = vmatprep.subr.bf16.mxu0 0
    %2757 = vmatpush1.bf16.xpose.msra.mxu0 %v2754
    %2758 = vmatprep.subr.bf16.mxu0 0
    %2759 = vmatpush1.bf16.xpose.msra.mxu0 0
    %2760 = vmatprep.subr.bf16.mxu0 0
    %2761 = vmatpush1.bf16.xpose.msra.mxu0 0
    %2762 = vmatprep.subr.bf16.mxu0 0
    %2763 = vmatpush1.bf16.xpose.msra.mxu0 0
    %2764 = vmatprep.subr.bf16.mxu0 0
    %2765 = vmatpush1.bf16.xpose.msra.mxu0 0
    %2766 = vmatprep.subr.bf16.mxu0 0
    %2767 = vmatpush1.bf16.xpose.msra.mxu0 0
    %2768 = vmatprep.subr.bf16.mxu0 0
    %2769 = vmatpush1.bf16.xpose.msra.mxu0 0
    %2770 = vmatprep.subr.bf16.mxu0 0
    %2771 = vmatpush1.bf16.xpose.msra.mxu0 0
    %2772 = vmatprep.subr.bf16.mxu0 0
    %2773 = vmatpush1.bf16.xpose.msra.mxu0 0
    %2774 = vmatprep.subr.bf16.mxu0 0
    %2775 = vmatpush1.bf16.xpose.msra.mxu0 0
    %2776 = vmatprep.subr.bf16.mxu0 0
    %2777 = vmatpush1.bf16.xpose.msra.mxu0 0
    %2778 = vmatprep.subr.bf16.mxu0 0
    %2779 = vmatpush1.bf16.xpose.msra.mxu0 0
    %2780 = vmatprep.subr.bf16.mxu0 0
    %2781 = vmatpush1.bf16.xpose.msra.mxu0 0
    %2782 = vmatprep.subr.bf16.mxu0 0
    %2783 = vmatpush1.bf16.xpose.msra.mxu0 0
    %2784 = vmatprep.subr.bf16.mxu0 0
    %2785 = vmatpush1.bf16.xpose.msra.mxu0 0
    %2786 = vmatprep.subr.bf16.mxu0 0
    %2787 = vmatpush1.bf16.xpose.msra.mxu0 0
    %2788 = vmatprep.mubr.bf16.mxu0 0
    %2789 = vmatmul.mubr.bf16.gmra.mrb[0].mxu0 %v2751
    %v2790 = vpop.f32.mrb[0].mxu0
    %v2791 = vadd.f32 0.0, %v2790
    %v2792 = vpop.f32.mrb[0].mxu0
    %v2793 = vpop.f32.mrb[0].mxu0
    %v2794 = vadd.f32 0.0, %v2793
    %v2795 = vpop.f32.mrb[0].mxu0
    %2796 = vdwg.mxu0
    %2797 = vrot.lane.b32.xlu0 %v618, 96
    %v2798 = vpop.permute.xlu0 %2797
    %2799 = vrot.lane.b32.xlu0 %v618, 32
    %v2800 = vpop.permute.xlu0 %2799
    %v2802 = vsel %vm632, %v2798, 0
    %v2805 = vsel %vm632, %v2800, 0
    %2807 = vmatprep.subr.bf16.mxu0 0
    %2808 = vmatpush1.bf16.xpose.msra.mxu0 %v2805
    %2809 = vmatprep.subr.bf16.mxu0 0
    %2810 = vmatpush1.bf16.xpose.msra.mxu0 0
    %2811 = vmatprep.subr.bf16.mxu0 0
    %2812 = vmatpush1.bf16.xpose.msra.mxu0 0
    %2813 = vmatprep.subr.bf16.mxu0 0
    %2814 = vmatpush1.bf16.xpose.msra.mxu0 0
    %2815 = vmatprep.subr.bf16.mxu0 0
    %2816 = vmatpush1.bf16.xpose.msra.mxu0 0
    %2817 = vmatprep.subr.bf16.mxu0 0
    %2818 = vmatpush1.bf16.xpose.msra.mxu0 0
    %2819 = vmatprep.subr.bf16.mxu0 0
    %2820 = vmatpush1.bf16.xpose.msra.mxu0 0
    %2821 = vmatprep.subr.bf16.mxu0 0
    %2822 = vmatpush1.bf16.xpose.msra.mxu0 0
    %2823 = vmatprep.subr.bf16.mxu0 0
    %2824 = vmatpush1.bf16.xpose.msra.mxu0 0
    %2825 = vmatprep.subr.bf16.mxu0 0
    %2826 = vmatpush1.bf16.xpose.msra.mxu0 0
    %2827 = vmatprep.subr.bf16.mxu0 0
    %2828 = vmatpush1.bf16.xpose.msra.mxu0 0
    %2829 = vmatprep.subr.bf16.mxu0 0
    %2830 = vmatpush1.bf16.xpose.msra.mxu0 0
    %2831 = vmatprep.subr.bf16.mxu0 0
    %2832 = vmatpush1.bf16.xpose.msra.mxu0 0
    %2833 = vmatprep.subr.bf16.mxu0 0
    %2834 = vmatpush1.bf16.xpose.msra.mxu0 0
    %2835 = vmatprep.subr.bf16.mxu0 0
    %2836 = vmatpush1.bf16.xpose.msra.mxu0 0
    %2837 = vmatprep.subr.bf16.mxu0 0
    %2838 = vmatpush1.bf16.xpose.msra.mxu0 0
    %2839 = vmatprep.mubr.bf16.mxu0 0
    %2840 = vmatmul.mubr.bf16.gmra.mrb[0].mxu0 %v2802
    %v2841 = vpop.f32.mrb[0].mxu0
    %v2842 = vadd.f32 0.0, %v2841
    %v2843 = vpop.f32.mrb[0].mxu0
    %v2844 = vpop.f32.mrb[0].mxu0
    %v2845 = vadd.f32 0.0, %v2844
    %v2846 = vpop.f32.mrb[0].mxu0
    %2847 = vdwg.mxu0
    %2848 = vrot.lane.b32.xlu0 %v619, 96
    %v2849 = vpop.permute.xlu0 %2848
    %2850 = vrot.lane.b32.xlu0 %v619, 32
    %v2851 = vpop.permute.xlu0 %2850
    %v2853 = vsel %vm632, %v2849, 0
    %v2856 = vsel %vm632, %v2851, 0
    %2858 = vmatprep.subr.bf16.mxu0 0
    %2859 = vmatpush1.bf16.xpose.msra.mxu0 %v2856
    %2860 = vmatprep.subr.bf16.mxu0 0
    %2861 = vmatpush1.bf16.xpose.msra.mxu0 0
    %2862 = vmatprep.subr.bf16.mxu0 0
    %2863 = vmatpush1.bf16.xpose.msra.mxu0 0
    %2864 = vmatprep.subr.bf16.mxu0 0
    %2865 = vmatpush1.bf16.xpose.msra.mxu0 0
    %2866 = vmatprep.subr.bf16.mxu0 0
    %2867 = vmatpush1.bf16.xpose.msra.mxu0 0
    %2868 = vmatprep.subr.bf16.mxu0 0
    %2869 = vmatpush1.bf16.xpose.msra.mxu0 0
    %2870 = vmatprep.subr.bf16.mxu0 0
    %2871 = vmatpush1.bf16.xpose.msra.mxu0 0
    %2872 = vmatprep.subr.bf16.mxu0 0
    %2873 = vmatpush1.bf16.xpose.msra.mxu0 0
    %2874 = vmatprep.subr.bf16.mxu0 0
    %2875 = vmatpush1.bf16.xpose.msra.mxu0 0
    %2876 = vmatprep.subr.bf16.mxu0 0
    %2877 = vmatpush1.bf16.xpose.msra.mxu0 0
    %2878 = vmatprep.subr.bf16.mxu0 0
    %2879 = vmatpush1.bf16.xpose.msra.mxu0 0
    %2880 = vmatprep.subr.bf16.mxu0 0
    %2881 = vmatpush1.bf16.xpose.msra.mxu0 0
    %2882 = vmatprep.subr.bf16.mxu0 0
    %2883 = vmatpush1.bf16.xpose.msra.mxu0 0
    %2884 = vmatprep.subr.bf16.mxu0 0
    %2885 = vmatpush1.bf16.xpose.msra.mxu0 0
    %2886 = vmatprep.subr.bf16.mxu0 0
    %2887 = vmatpush1.bf16.xpose.msra.mxu0 0
    %2888 = vmatprep.subr.bf16.mxu0 0
    %2889 = vmatpush1.bf16.xpose.msra.mxu0 0
    %2890 = vmatprep.mubr.bf16.mxu0 0
    %2891 = vmatmul.mubr.bf16.gmra.mrb[0].mxu0 %v2853
    %v2892 = vpop.f32.mrb[0].mxu0
    %v2893 = vadd.f32 0.0, %v2892
    %v2894 = vpop.f32.mrb[0].mxu0
    %v2895 = vpop.f32.mrb[0].mxu0
    %v2896 = vadd.f32 0.0, %v2895
    %v2897 = vpop.f32.mrb[0].mxu0
    %2898 = vdwg.mxu0
    %2899 = vrot.lane.b32.xlu0 %v620, 96
    %v2900 = vpop.permute.xlu0 %2899
    %2901 = vrot.lane.b32.xlu0 %v620, 32
    %v2902 = vpop.permute.xlu0 %2901
    %v2904 = vsel %vm632, %v2900, 0
    %v2907 = vsel %vm632, %v2902, 0
    %2909 = vmatprep.subr.bf16.mxu0 0
    %2910 = vmatpush1.bf16.xpose.msra.mxu0 %v2907
    %2911 = vmatprep.subr.bf16.mxu0 0
    %2912 = vmatpush1.bf16.xpose.msra.mxu0 0
    %2913 = vmatprep.subr.bf16.mxu0 0
    %2914 = vmatpush1.bf16.xpose.msra.mxu0 0
    %2915 = vmatprep.subr.bf16.mxu0 0
    %2916 = vmatpush1.bf16.xpose.msra.mxu0 0
    %2917 = vmatprep.subr.bf16.mxu0 0
    %2918 = vmatpush1.bf16.xpose.msra.mxu0 0
    %2919 = vmatprep.subr.bf16.mxu0 0
    %2920 = vmatpush1.bf16.xpose.msra.mxu0 0
    %2921 = vmatprep.subr.bf16.mxu0 0
    %2922 = vmatpush1.bf16.xpose.msra.mxu0 0
    %2923 = vmatprep.subr.bf16.mxu0 0
    %2924 = vmatpush1.bf16.xpose.msra.mxu0 0
    %2925 = vmatprep.subr.bf16.mxu0 0
    %2926 = vmatpush1.bf16.xpose.msra.mxu0 0
    %2927 = vmatprep.subr.bf16.mxu0 0
    %2928 = vmatpush1.bf16.xpose.msra.mxu0 0
    %2929 = vmatprep.subr.bf16.mxu0 0
    %2930 = vmatpush1.bf16.xpose.msra.mxu0 0
    %2931 = vmatprep.subr.bf16.mxu0 0
    %2932 = vmatpush1.bf16.xpose.msra.mxu0 0
    %2933 = vmatprep.subr.bf16.mxu0 0
    %2934 = vmatpush1.bf16.xpose.msra.mxu0 0
    %2935 = vmatprep.subr.bf16.mxu0 0
    %2936 = vmatpush1.bf16.xpose.msra.mxu0 0
    %2937 = vmatprep.subr.bf16.mxu0 0
    %2938 = vmatpush1.bf16.xpose.msra.mxu0 0
    %2939 = vmatprep.subr.bf16.mxu0 0
    %2940 = vmatpush1.bf16.xpose.msra.mxu0 0
    %2941 = vmatprep.mubr.bf16.mxu0 0
    %2942 = vmatmul.mubr.bf16.gmra.mrb[0].mxu0 %v2904
    %v2943 = vpop.f32.mrb[0].mxu0
    %v2944 = vadd.f32 0.0, %v2943
    %v2945 = vpop.f32.mrb[0].mxu0
    %v2946 = vpop.f32.mrb[0].mxu0
    %v2947 = vadd.f32 0.0, %v2946
    %v2948 = vpop.f32.mrb[0].mxu0
    %2949 = vdwg.mxu0
    %v2950 = vsel %vm632, %v2587, -inf
    %2951 = vmax.xlane.f32.xlu0 %v2950
    %v2952 = vpop.xlane.xlu0 %2951
    %v2953 = vsel %vm632, %v2590, -inf
    %2954 = vmax.xlane.f32.xlu0 %v2953
    %v2955 = vpop.xlane.xlu0 %2954
    %v2956 = vsel %vm632, %v2638, -inf
    %2957 = vmax.xlane.f32.xlu0 %v2956
    %v2958 = vpop.xlane.xlu0 %2957
    %v2959 = vsel %vm632, %v2641, -inf
    %2960 = vmax.xlane.f32.xlu0 %v2959
    %v2961 = vpop.xlane.xlu0 %2960
    %v2962 = vsel %vm632, %v2689, -inf
    %2963 = vmax.xlane.f32.xlu0 %v2962
    %v2964 = vpop.xlane.xlu0 %2963
    %v2965 = vsel %vm632, %v2692, -inf
    %2966 = vmax.xlane.f32.xlu0 %v2965
    %v2967 = vpop.xlane.xlu0 %2966
    %v2968 = vsel %vm632, %v2740, -inf
    %2969 = vmax.xlane.f32.xlu0 %v2968
    %v2970 = vpop.xlane.xlu0 %2969
    %v2971 = vsel %vm632, %v2743, -inf
    %2972 = vmax.xlane.f32.xlu0 %v2971
    %v2973 = vpop.xlane.xlu0 %2972
    %v2974 = vsel %vm632, %v2791, -inf
    %2975 = vmax.xlane.f32.xlu0 %v2974
    %v2976 = vpop.xlane.xlu0 %2975
    %v2977 = vsel %vm632, %v2794, -inf
    %2978 = vmax.xlane.f32.xlu0 %v2977
    %v2979 = vpop.xlane.xlu0 %2978
    %v2980 = vsel %vm632, %v2842, -inf
    %2981 = vmax.xlane.f32.xlu0 %v2980
    %v2982 = vpop.xlane.xlu0 %2981
    %v2983 = vsel %vm632, %v2845, -inf
    %2984 = vmax.xlane.f32.xlu0 %v2983
    %v2985 = vpop.xlane.xlu0 %2984
    %v2986 = vsel %vm632, %v2893, -inf
    %2987 = vmax.xlane.f32.xlu0 %v2986
    %v2988 = vpop.xlane.xlu0 %2987
    %v2989 = vsel %vm632, %v2896, -inf
    %2990 = vmax.xlane.f32.xlu0 %v2989
    %v2991 = vpop.xlane.xlu0 %2990
    %v2992 = vsel %vm632, %v2944, -inf
    %2993 = vmax.xlane.f32.xlu0 %v2992
    %v2994 = vpop.xlane.xlu0 %2993
    %v2995 = vsel %vm632, %v2947, -inf
    %2996 = vmax.xlane.f32.xlu0 %v2995
    %v2997 = vpop.xlane.xlu0 %2996
    %v2998 = vsub.f32 %v2587, %v2952
    %v2999 = vsub.f32 %v2590, %v2955
    %v3000 = vsub.f32 %v2638, %v2958
    %v3001 = vsub.f32 %v2641, %v2961
    %v3002 = vsub.f32 %v2689, %v2964
    %v3003 = vsub.f32 %v2692, %v2967
    %v3004 = vsub.f32 %v2740, %v2970
    %v3005 = vsub.f32 %v2743, %v2973
    %v3006 = vsub.f32 %v2791, %v2976
    %v3007 = vsub.f32 %v2794, %v2979
    %v3008 = vsub.f32 %v2842, %v2982
    %v3009 = vsub.f32 %v2845, %v2985
    %v3010 = vsub.f32 %v2893, %v2988
    %v3011 = vsub.f32 %v2896, %v2991
    %v3012 = vsub.f32 %v2944, %v2994
    %v3013 = vsub.f32 %v2947, %v2997
    %v3014 = vmul.f32 %v2998, 1.442695
    %v3015 = vpow.pop %v3014
    %v3016 = vmul.f32 %v2999, 1.442695
    %v3017 = vpow.pop %v3016
    %v3018 = vmul.f32 %v3000, 1.442695
    %v3019 = vpow.pop %v3018
    %v3020 = vmul.f32 %v3001, 1.442695
    %v3021 = vpow.pop %v3020
    %v3022 = vmul.f32 %v3002, 1.442695
    %v3023 = vpow.pop %v3022
    %v3024 = vmul.f32 %v3003, 1.442695
    %v3025 = vpow.pop %v3024
    %v3026 = vmul.f32 %v3004, 1.442695
    %v3027 = vpow.pop %v3026
    %v3028 = vmul.f32 %v3005, 1.442695
    %v3029 = vpow.pop %v3028
    %v3030 = vmul.f32 %v3006, 1.442695
    %v3031 = vpow.pop %v3030
    %v3032 = vmul.f32 %v3007, 1.442695
    %v3033 = vpow.pop %v3032
    %v3034 = vmul.f32 %v3008, 1.442695
    %v3035 = vpow.pop %v3034
    %v3036 = vmul.f32 %v3009, 1.442695
    %v3037 = vpow.pop %v3036
    %v3038 = vmul.f32 %v3010, 1.442695
    %v3039 = vpow.pop %v3038
    %v3040 = vmul.f32 %v3011, 1.442695
    %v3041 = vpow.pop %v3040
    %v3042 = vmul.f32 %v3012, 1.442695
    %v3043 = vpow.pop %v3042
    %v3044 = vmul.f32 %v3013, 1.442695
    %v3045 = vpow.pop %v3044
    %v3046 = vsel %vm632, %v3015, 0.0
    %3047 = vadd.xlane.f32.xlu0 %v3046
    %v3048 = vpop.xlane.xlu0 %3047
    %v3049 = vsel %vm632, %v3017, 0.0
    %3050 = vadd.xlane.f32.xlu0 %v3049
    %v3051 = vpop.xlane.xlu0 %3050
    %v3052 = vsel %vm632, %v3019, 0.0
    %3053 = vadd.xlane.f32.xlu0 %v3052
    %v3054 = vpop.xlane.xlu0 %3053
    %v3055 = vsel %vm632, %v3021, 0.0
    %3056 = vadd.xlane.f32.xlu0 %v3055
    %v3057 = vpop.xlane.xlu0 %3056
    %v3058 = vsel %vm632, %v3023, 0.0
    %3059 = vadd.xlane.f32.xlu0 %v3058
    %v3060 = vpop.xlane.xlu0 %3059
    %v3061 = vsel %vm632, %v3025, 0.0
    %3062 = vadd.xlane.f32.xlu0 %v3061
    %v3063 = vpop.xlane.xlu0 %3062
    %v3064 = vsel %vm632, %v3027, 0.0
    %3065 = vadd.xlane.f32.xlu0 %v3064
    %v3066 = vpop.xlane.xlu0 %3065
    %v3067 = vsel %vm632, %v3029, 0.0
    %3068 = vadd.xlane.f32.xlu0 %v3067
    %v3069 = vpop.xlane.xlu0 %3068
    %v3070 = vsel %vm632, %v3031, 0.0
    %3071 = vadd.xlane.f32.xlu0 %v3070
    %v3072 = vpop.xlane.xlu0 %3071
    %v3073 = vsel %vm632, %v3033, 0.0
    %3074 = vadd.xlane.f32.xlu0 %v3073
    %v3075 = vpop.xlane.xlu0 %3074
    %v3076 = vsel %vm632, %v3035, 0.0
    %3077 = vadd.xlane.f32.xlu0 %v3076
    %v3078 = vpop.xlane.xlu0 %3077
    %v3079 = vsel %vm632, %v3037, 0.0
    %3080 = vadd.xlane.f32.xlu0 %v3079
    %v3081 = vpop.xlane.xlu0 %3080
    %v3082 = vsel %vm632, %v3039, 0.0
    %3083 = vadd.xlane.f32.xlu0 %v3082
    %v3084 = vpop.xlane.xlu0 %3083
    %v3085 = vsel %vm632, %v3041, 0.0
    %3086 = vadd.xlane.f32.xlu0 %v3085
    %v3087 = vpop.xlane.xlu0 %3086
    %v3088 = vsel %vm632, %v3043, 0.0
    %3089 = vadd.xlane.f32.xlu0 %v3088
    %v3090 = vpop.xlane.xlu0 %3089
    %v3091 = vsel %vm632, %v3045, 0.0
    %3092 = vadd.xlane.f32.xlu0 %v3091
    %v3093 = vpop.xlane.xlu0 %3092
    %v3094 = vrcp.pop %v3048
    %v3095 = vmul.f32 %v3015, %v3094
    %v3096 = vrcp.pop %v3051
    %v3097 = vmul.f32 %v3017, %v3096
    %v3098 = vrcp.pop %v3054
    %v3099 = vmul.f32 %v3019, %v3098
    %v3100 = vrcp.pop %v3057
    %v3101 = vmul.f32 %v3021, %v3100
    %v3102 = vrcp.pop %v3060
    %v3103 = vmul.f32 %v3023, %v3102
    %v3104 = vrcp.pop %v3063
    %v3105 = vmul.f32 %v3025, %v3104
    %v3106 = vrcp.pop %v3066
    %v3107 = vmul.f32 %v3027, %v3106
    %v3108 = vrcp.pop %v3069
    %v3109 = vmul.f32 %v3029, %v3108
    %v3110 = vrcp.pop %v3072
    %v3111 = vmul.f32 %v3031, %v3110
    %v3112 = vrcp.pop %v3075
    %v3113 = vmul.f32 %v3033, %v3112
    %v3114 = vrcp.pop %v3078
    %v3115 = vmul.f32 %v3035, %v3114
    %v3116 = vrcp.pop %v3081
    %v3117 = vmul.f32 %v3037, %v3116
    %v3118 = vrcp.pop %v3084
    %v3119 = vmul.f32 %v3039, %v3118
    %v3120 = vrcp.pop %v3087
    %v3121 = vmul.f32 %v3041, %v3120
    %v3122 = vrcp.pop %v3090
    %v3123 = vmul.f32 %v3043, %v3122
    %v3124 = vrcp.pop %v3093
    %v3125 = vmul.f32 %v3045, %v3124
    %v3126 = vpack.c.bf16 %v3097, %v3095
    %v3127 = vpack.c.bf16 %v3101, %v3099
    %v3128 = vpack.c.bf16 %v3105, %v3103
    %v3129 = vpack.c.bf16 %v3109, %v3107
    %v3130 = vpack.c.bf16 %v3113, %v3111
    %v3131 = vpack.c.bf16 %v3117, %v3115
    %v3132 = vpack.c.bf16 %v3121, %v3119
    %v3133 = vpack.c.bf16 %v3125, %v3123
    %3134 = vrot.lane.b32.xlu0 %v621, 96
    %v3135 = vpop.permute.xlu0 %3134
    %v3138 = vsel %vm632, %v3126, 0
    %3140 = vmatprep.subr.bf16.mxu0 0
    %3141 = vmatpush1.bf16.msra.mxu0 %v3135
    %3142 = vmatprep.subr.bf16.mxu0 0
    %3143 = vmatpush1.bf16.msra.mxu0 0
    %3144 = vmatprep.subr.bf16.mxu0 0
    %3145 = vmatpush1.bf16.msra.mxu0 0
    %3146 = vmatprep.subr.bf16.mxu0 0
    %3147 = vmatpush1.bf16.msra.mxu0 0
    %3148 = vmatprep.subr.bf16.mxu0 0
    %3149 = vmatpush1.bf16.msra.mxu0 0
    %3150 = vmatprep.subr.bf16.mxu0 0
    %3151 = vmatpush1.bf16.msra.mxu0 0
    %3152 = vmatprep.subr.bf16.mxu0 0
    %3153 = vmatpush1.bf16.msra.mxu0 0
    %3154 = vmatprep.subr.bf16.mxu0 0
    %3155 = vmatpush1.bf16.msra.mxu0 0
    %3156 = vmatprep.subr.bf16.mxu0 0
    %3157 = vmatpush1.bf16.msra.mxu0 0
    %3158 = vmatprep.subr.bf16.mxu0 0
    %3159 = vmatpush1.bf16.msra.mxu0 0
    %3160 = vmatprep.subr.bf16.mxu0 0
    %3161 = vmatpush1.bf16.msra.mxu0 0
    %3162 = vmatprep.subr.bf16.mxu0 0
    %3163 = vmatpush1.bf16.msra.mxu0 0
    %3164 = vmatprep.subr.bf16.mxu0 0
    %3165 = vmatpush1.bf16.msra.mxu0 0
    %3166 = vmatprep.subr.bf16.mxu0 0
    %3167 = vmatpush1.bf16.msra.mxu0 0
    %3168 = vmatprep.subr.bf16.mxu0 0
    %3169 = vmatpush1.bf16.msra.mxu0 0
    %3170 = vmatprep.subr.bf16.mxu0 0
    %3171 = vmatpush1.bf16.msra.mxu0 0
    %3172 = vmatprep.mubr.bf16.mxu0 0
    %3173 = vmatmul.mubr.bf16.gmra.mrb[0].mxu0 %v3138
    %v3174 = vpop.f32.mrb[0].mxu0
    %v3175 = vadd.f32 0.0, %v3174
    %v3176 = vpop.f32.mrb[0].mxu0
    %v3177 = vpop.f32.mrb[0].mxu0
    %v3178 = vadd.f32 0.0, %v3177
    %v3179 = vpop.f32.mrb[0].mxu0
    %3180 = vdwg.mxu0
    %3181 = vrot.lane.b32.xlu0 %v622, 96
    %v3182 = vpop.permute.xlu0 %3181
    %v3185 = vsel %vm632, %v3127, 0
    %3187 = vmatprep.subr.bf16.mxu0 0
    %3188 = vmatpush1.bf16.msra.mxu0 %v3182
    %3189 = vmatprep.subr.bf16.mxu0 0
    %3190 = vmatpush1.bf16.msra.mxu0 0
    %3191 = vmatprep.subr.bf16.mxu0 0
    %3192 = vmatpush1.bf16.msra.mxu0 0
    %3193 = vmatprep.subr.bf16.mxu0 0
    %3194 = vmatpush1.bf16.msra.mxu0 0
    %3195 = vmatprep.subr.bf16.mxu0 0
    %3196 = vmatpush1.bf16.msra.mxu0 0
    %3197 = vmatprep.subr.bf16.mxu0 0
    %3198 = vmatpush1.bf16.msra.mxu0 0
    %3199 = vmatprep.subr.bf16.mxu0 0
    %3200 = vmatpush1.bf16.msra.mxu0 0
    %3201 = vmatprep.subr.bf16.mxu0 0
    %3202 = vmatpush1.bf16.msra.mxu0 0
    %3203 = vmatprep.subr.bf16.mxu0 0
    %3204 = vmatpush1.bf16.msra.mxu0 0
    %3205 = vmatprep.subr.bf16.mxu0 0
    %3206 = vmatpush1.bf16.msra.mxu0 0
    %3207 = vmatprep.subr.bf16.mxu0 0
    %3208 = vmatpush1.bf16.msra.mxu0 0
    %3209 = vmatprep.subr.bf16.mxu0 0
    %3210 = vmatpush1.bf16.msra.mxu0 0
    %3211 = vmatprep.subr.bf16.mxu0 0
    %3212 = vmatpush1.bf16.msra.mxu0 0
    %3213 = vmatprep.subr.bf16.mxu0 0
    %3214 = vmatpush1.bf16.msra.mxu0 0
    %3215 = vmatprep.subr.bf16.mxu0 0
    %3216 = vmatpush1.bf16.msra.mxu0 0
    %3217 = vmatprep.subr.bf16.mxu0 0
    %3218 = vmatpush1.bf16.msra.mxu0 0
    %3219 = vmatprep.mubr.bf16.mxu0 0
    %3220 = vmatmul.mubr.bf16.gmra.mrb[0].mxu0 %v3185
    %v3221 = vpop.f32.mrb[0].mxu0
    %v3222 = vadd.f32 0.0, %v3221
    %v3223 = vpop.f32.mrb[0].mxu0
    %v3224 = vpop.f32.mrb[0].mxu0
    %v3225 = vadd.f32 0.0, %v3224
    %v3226 = vpop.f32.mrb[0].mxu0
    %3227 = vdwg.mxu0
    %3228 = vrot.lane.b32.xlu0 %v623, 96
    %v3229 = vpop.permute.xlu0 %3228
    %v3232 = vsel %vm632, %v3128, 0
    %3234 = vmatprep.subr.bf16.mxu0 0
    %3235 = vmatpush1.bf16.msra.mxu0 %v3229
    %3236 = vmatprep.subr.bf16.mxu0 0
    %3237 = vmatpush1.bf16.msra.mxu0 0
    %3238 = vmatprep.subr.bf16.mxu0 0
    %3239 = vmatpush1.bf16.msra.mxu0 0
    %3240 = vmatprep.subr.bf16.mxu0 0
    %3241 = vmatpush1.bf16.msra.mxu0 0
    %3242 = vmatprep.subr.bf16.mxu0 0
    %3243 = vmatpush1.bf16.msra.mxu0 0
    %3244 = vmatprep.subr.bf16.mxu0 0
    %3245 = vmatpush1.bf16.msra.mxu0 0
    %3246 = vmatprep.subr.bf16.mxu0 0
    %3247 = vmatpush1.bf16.msra.mxu0 0
    %3248 = vmatprep.subr.bf16.mxu0 0
    %3249 = vmatpush1.bf16.msra.mxu0 0
    %3250 = vmatprep.subr.bf16.mxu0 0
    %3251 = vmatpush1.bf16.msra.mxu0 0
    %3252 = vmatprep.subr.bf16.mxu0 0
    %3253 = vmatpush1.bf16.msra.mxu0 0
    %3254 = vmatprep.subr.bf16.mxu0 0
    %3255 = vmatpush1.bf16.msra.mxu0 0
    %3256 = vmatprep.subr.bf16.mxu0 0
    %3257 = vmatpush1.bf16.msra.mxu0 0
    %3258 = vmatprep.subr.bf16.mxu0 0
    %3259 = vmatpush1.bf16.msra.mxu0 0
    %3260 = vmatprep.subr.bf16.mxu0 0
    %3261 = vmatpush1.bf16.msra.mxu0 0
    %3262 = vmatprep.subr.bf16.mxu0 0
    %3263 = vmatpush1.bf16.msra.mxu0 0
    %3264 = vmatprep.subr.bf16.mxu0 0
    %3265 = vmatpush1.bf16.msra.mxu0 0
    %3266 = vmatprep.mubr.bf16.mxu0 0
    %3267 = vmatmul.mubr.bf16.gmra.mrb[0].mxu0 %v3232
    %v3268 = vpop.f32.mrb[0].mxu0
    %v3269 = vadd.f32 0.0, %v3268
    %v3270 = vpop.f32.mrb[0].mxu0
    %v3271 = vpop.f32.mrb[0].mxu0
    %v3272 = vadd.f32 0.0, %v3271
    %v3273 = vpop.f32.mrb[0].mxu0
    %3274 = vdwg.mxu0
    %3275 = vrot.lane.b32.xlu0 %v624, 96
    %v3276 = vpop.permute.xlu0 %3275
    %v3279 = vsel %vm632, %v3129, 0
    %3281 = vmatprep.subr.bf16.mxu0 0
    %3282 = vmatpush1.bf16.msra.mxu0 %v3276
    %3283 = vmatprep.subr.bf16.mxu0 0
    %3284 = vmatpush1.bf16.msra.mxu0 0
    %3285 = vmatprep.subr.bf16.mxu0 0
    %3286 = vmatpush1.bf16.msra.mxu0 0
    %3287 = vmatprep.subr.bf16.mxu0 0
    %3288 = vmatpush1.bf16.msra.mxu0 0
    %3289 = vmatprep.subr.bf16.mxu0 0
    %3290 = vmatpush1.bf16.msra.mxu0 0
    %3291 = vmatprep.subr.bf16.mxu0 0
    %3292 = vmatpush1.bf16.msra.mxu0 0
    %3293 = vmatprep.subr.bf16.mxu0 0
    %3294 = vmatpush1.bf16.msra.mxu0 0
    %3295 = vmatprep.subr.bf16.mxu0 0
    %3296 = vmatpush1.bf16.msra.mxu0 0
    %3297 = vmatprep.subr.bf16.mxu0 0
    %3298 = vmatpush1.bf16.msra.mxu0 0
    %3299 = vmatprep.subr.bf16.mxu0 0
    %3300 = vmatpush1.bf16.msra.mxu0 0
    %3301 = vmatprep.subr.bf16.mxu0 0
    %3302 = vmatpush1.bf16.msra.mxu0 0
    %3303 = vmatprep.subr.bf16.mxu0 0
    %3304 = vmatpush1.bf16.msra.mxu0 0
    %3305 = vmatprep.subr.bf16.mxu0 0
    %3306 = vmatpush1.bf16.msra.mxu0 0
    %3307 = vmatprep.subr.bf16.mxu0 0
    %3308 = vmatpush1.bf16.msra.mxu0 0
    %3309 = vmatprep.subr.bf16.mxu0 0
    %3310 = vmatpush1.bf16.msra.mxu0 0
    %3311 = vmatprep.subr.bf16.mxu0 0
    %3312 = vmatpush1.bf16.msra.mxu0 0
    %3313 = vmatprep.mubr.bf16.mxu0 0
    %3314 = vmatmul.mubr.bf16.gmra.mrb[0].mxu0 %v3279
    %v3315 = vpop.f32.mrb[0].mxu0
    %v3316 = vadd.f32 0.0, %v3315
    %v3317 = vpop.f32.mrb[0].mxu0
    %v3318 = vpop.f32.mrb[0].mxu0
    %v3319 = vadd.f32 0.0, %v3318
    %v3320 = vpop.f32.mrb[0].mxu0
    %3321 = vdwg.mxu0
    %3322 = vrot.lane.b32.xlu0 %v625, 96
    %v3323 = vpop.permute.xlu0 %3322
    %v3326 = vsel %vm632, %v3130, 0
    %3328 = vmatprep.subr.bf16.mxu0 0
    %3329 = vmatpush1.bf16.msra.mxu0 %v3323
    %3330 = vmatprep.subr.bf16.mxu0 0
    %3331 = vmatpush1.bf16.msra.mxu0 0
    %3332 = vmatprep.subr.bf16.mxu0 0
    %3333 = vmatpush1.bf16.msra.mxu0 0
    %3334 = vmatprep.subr.bf16.mxu0 0
    %3335 = vmatpush1.bf16.msra.mxu0 0
    %3336 = vmatprep.subr.bf16.mxu0 0
    %3337 = vmatpush1.bf16.msra.mxu0 0
    %3338 = vmatprep.subr.bf16.mxu0 0
    %3339 = vmatpush1.bf16.msra.mxu0 0
    %3340 = vmatprep.subr.bf16.mxu0 0
    %3341 = vmatpush1.bf16.msra.mxu0 0
    %3342 = vmatprep.subr.bf16.mxu0 0
    %3343 = vmatpush1.bf16.msra.mxu0 0
    %3344 = vmatprep.subr.bf16.mxu0 0
    %3345 = vmatpush1.bf16.msra.mxu0 0
    %3346 = vmatprep.subr.bf16.mxu0 0
    %3347 = vmatpush1.bf16.msra.mxu0 0
    %3348 = vmatprep.subr.bf16.mxu0 0
    %3349 = vmatpush1.bf16.msra.mxu0 0
    %3350 = vmatprep.subr.bf16.mxu0 0
    %3351 = vmatpush1.bf16.msra.mxu0 0
    %3352 = vmatprep.subr.bf16.mxu0 0
    %3353 = vmatpush1.bf16.msra.mxu0 0
    %3354 = vmatprep.subr.bf16.mxu0 0
    %3355 = vmatpush1.bf16.msra.mxu0 0
    %3356 = vmatprep.subr.bf16.mxu0 0
    %3357 = vmatpush1.bf16.msra.mxu0 0
    %3358 = vmatprep.subr.bf16.mxu0 0
    %3359 = vmatpush1.bf16.msra.mxu0 0
    %3360 = vmatprep.mubr.bf16.mxu0 0
    %3361 = vmatmul.mubr.bf16.gmra.mrb[0].mxu0 %v3326
    %v3362 = vpop.f32.mrb[0].mxu0
    %v3363 = vadd.f32 0.0, %v3362
    %v3364 = vpop.f32.mrb[0].mxu0
    %v3365 = vpop.f32.mrb[0].mxu0
    %v3366 = vadd.f32 0.0, %v3365
    %v3367 = vpop.f32.mrb[0].mxu0
    %3368 = vdwg.mxu0
    %3369 = vrot.lane.b32.xlu0 %v626, 96
    %v3370 = vpop.permute.xlu0 %3369
    %v3373 = vsel %vm632, %v3131, 0
    %3375 = vmatprep.subr.bf16.mxu0 0
    %3376 = vmatpush1.bf16.msra.mxu0 %v3370
    %3377 = vmatprep.subr.bf16.mxu0 0
    %3378 = vmatpush1.bf16.msra.mxu0 0
    %3379 = vmatprep.subr.bf16.mxu0 0
    %3380 = vmatpush1.bf16.msra.mxu0 0
    %3381 = vmatprep.subr.bf16.mxu0 0
    %3382 = vmatpush1.bf16.msra.mxu0 0
    %3383 = vmatprep.subr.bf16.mxu0 0
    %3384 = vmatpush1.bf16.msra.mxu0 0
    %3385 = vmatprep.subr.bf16.mxu0 0
    %3386 = vmatpush1.bf16.msra.mxu0 0
    %3387 = vmatprep.subr.bf16.mxu0 0
    %3388 = vmatpush1.bf16.msra.mxu0 0
    %3389 = vmatprep.subr.bf16.mxu0 0
    %3390 = vmatpush1.bf16.msra.mxu0 0
    %3391 = vmatprep.subr.bf16.mxu0 0
    %3392 = vmatpush1.bf16.msra.mxu0 0
    %3393 = vmatprep.subr.bf16.mxu0 0
    %3394 = vmatpush1.bf16.msra.mxu0 0
    %3395 = vmatprep.subr.bf16.mxu0 0
    %3396 = vmatpush1.bf16.msra.mxu0 0
    %3397 = vmatprep.subr.bf16.mxu0 0
    %3398 = vmatpush1.bf16.msra.mxu0 0
    %3399 = vmatprep.subr.bf16.mxu0 0
    %3400 = vmatpush1.bf16.msra.mxu0 0
    %3401 = vmatprep.subr.bf16.mxu0 0
    %3402 = vmatpush1.bf16.msra.mxu0 0
    %3403 = vmatprep.subr.bf16.mxu0 0
    %3404 = vmatpush1.bf16.msra.mxu0 0
    %3405 = vmatprep.subr.bf16.mxu0 0
    %3406 = vmatpush1.bf16.msra.mxu0 0
    %3407 = vmatprep.mubr.bf16.mxu0 0
    %3408 = vmatmul.mubr.bf16.gmra.mrb[0].mxu0 %v3373
    %v3409 = vpop.f32.mrb[0].mxu0
    %v3410 = vadd.f32 0.0, %v3409
    %v3411 = vpop.f32.mrb[0].mxu0
    %v3412 = vpop.f32.mrb[0].mxu0
    %v3413 = vadd.f32 0.0, %v3412
    %v3414 = vpop.f32.mrb[0].mxu0
    %3415 = vdwg.mxu0
    %3416 = vrot.lane.b32.xlu0 %v627, 96
    %v3417 = vpop.permute.xlu0 %3416
    %v3420 = vsel %vm632, %v3132, 0
    %3422 = vmatprep.subr.bf16.mxu0 0
    %3423 = vmatpush1.bf16.msra.mxu0 %v3417
    %3424 = vmatprep.subr.bf16.mxu0 0
    %3425 = vmatpush1.bf16.msra.mxu0 0
    %3426 = vmatprep.subr.bf16.mxu0 0
    %3427 = vmatpush1.bf16.msra.mxu0 0
    %3428 = vmatprep.subr.bf16.mxu0 0
    %3429 = vmatpush1.bf16.msra.mxu0 0
    %3430 = vmatprep.subr.bf16.mxu0 0
    %3431 = vmatpush1.bf16.msra.mxu0 0
    %3432 = vmatprep.subr.bf16.mxu0 0
    %3433 = vmatpush1.bf16.msra.mxu0 0
    %3434 = vmatprep.subr.bf16.mxu0 0
    %3435 = vmatpush1.bf16.msra.mxu0 0
    %3436 = vmatprep.subr.bf16.mxu0 0
    %3437 = vmatpush1.bf16.msra.mxu0 0
    %3438 = vmatprep.subr.bf16.mxu0 0
    %3439 = vmatpush1.bf16.msra.mxu0 0
    %3440 = vmatprep.subr.bf16.mxu0 0
    %3441 = vmatpush1.bf16.msra.mxu0 0
    %3442 = vmatprep.subr.bf16.mxu0 0
    %3443 = vmatpush1.bf16.msra.mxu0 0
    %3444 = vmatprep.subr.bf16.mxu0 0
    %3445 = vmatpush1.bf16.msra.mxu0 0
    %3446 = vmatprep.subr.bf16.mxu0 0
    %3447 = vmatpush1.bf16.msra.mxu0 0
    %3448 = vmatprep.subr.bf16.mxu0 0
    %3449 = vmatpush1.bf16.msra.mxu0 0
    %3450 = vmatprep.subr.bf16.mxu0 0
    %3451 = vmatpush1.bf16.msra.mxu0 0
    %3452 = vmatprep.subr.bf16.mxu0 0
    %3453 = vmatpush1.bf16.msra.mxu0 0
    %3454 = vmatprep.mubr.bf16.mxu0 0
    %3455 = vmatmul.mubr.bf16.gmra.mrb[0].mxu0 %v3420
    %v3456 = vpop.f32.mrb[0].mxu0
    %v3457 = vadd.f32 0.0, %v3456
    %v3458 = vpop.f32.mrb[0].mxu0
    %v3459 = vpop.f32.mrb[0].mxu0
    %v3460 = vadd.f32 0.0, %v3459
    %v3461 = vpop.f32.mrb[0].mxu0
    %3462 = vdwg.mxu0
    %3463 = vrot.lane.b32.xlu0 %v628, 96
    %v3464 = vpop.permute.xlu0 %3463
    %v3467 = vsel %vm632, %v3133, 0
    %3469 = vmatprep.subr.bf16.mxu0 0
    %3470 = vmatpush1.bf16.msra.mxu0 %v3464
    %3471 = vmatprep.subr.bf16.mxu0 0
    %3472 = vmatpush1.bf16.msra.mxu0 0
    %3473 = vmatprep.subr.bf16.mxu0 0
    %3474 = vmatpush1.bf16.msra.mxu0 0
    %3475 = vmatprep.subr.bf16.mxu0 0
    %3476 = vmatpush1.bf16.msra.mxu0 0
    %3477 = vmatprep.subr.bf16.mxu0 0
    %3478 = vmatpush1.bf16.msra.mxu0 0
    %3479 = vmatprep.subr.bf16.mxu0 0
    %3480 = vmatpush1.bf16.msra.mxu0 0
    %3481 = vmatprep.subr.bf16.mxu0 0
    %3482 = vmatpush1.bf16.msra.mxu0 0
    %3483 = vmatprep.subr.bf16.mxu0 0
    %3484 = vmatpush1.bf16.msra.mxu0 0
    %3485 = vmatprep.subr.bf16.mxu0 0
    %3486 = vmatpush1.bf16.msra.mxu0 0
    %3487 = vmatprep.subr.bf16.mxu0 0
    %3488 = vmatpush1.bf16.msra.mxu0 0
    %3489 = vmatprep.subr.bf16.mxu0 0
    %3490 = vmatpush1.bf16.msra.mxu0 0
    %3491 = vmatprep.subr.bf16.mxu0 0
    %3492 = vmatpush1.bf16.msra.mxu0 0
    %3493 = vmatprep.subr.bf16.mxu0 0
    %3494 = vmatpush1.bf16.msra.mxu0 0
    %3495 = vmatprep.subr.bf16.mxu0 0
    %3496 = vmatpush1.bf16.msra.mxu0 0
    %3497 = vmatprep.subr.bf16.mxu0 0
    %3498 = vmatpush1.bf16.msra.mxu0 0
    %3499 = vmatprep.subr.bf16.mxu0 0
    %3500 = vmatpush1.bf16.msra.mxu0 0
    %3501 = vmatprep.mubr.bf16.mxu0 0
    %3502 = vmatmul.mubr.bf16.gmra.mrb[0].mxu0 %v3467
    %v3503 = vpop.f32.mrb[0].mxu0
    %v3504 = vadd.f32 0.0, %v3503
    %v3505 = vpop.f32.mrb[0].mxu0
    %v3506 = vpop.f32.mrb[0].mxu0
    %v3507 = vadd.f32 0.0, %v3506
    %v3508 = vpop.f32.mrb[0].mxu0
    %3509 = vdwg.mxu0
    %3510 = vrot.lane.b32.xlu0 %v613, 80
    %v3511 = vpop.permute.xlu0 %3510
    %3512 = vrot.lane.b32.xlu0 %v613, 16
    %v3513 = vpop.permute.xlu0 %3512
    %v3515 = vsel %vm632, %v3511, 0
    %v3518 = vsel %vm632, %v3513, 0
    %3520 = vmatprep.subr.bf16.mxu0 0
    %3521 = vmatpush1.bf16.xpose.msra.mxu0 %v3518
    %3522 = vmatprep.subr.bf16.mxu0 0
    %3523 = vmatpush1.bf16.xpose.msra.mxu0 0
    %3524 = vmatprep.subr.bf16.mxu0 0
    %3525 = vmatpush1.bf16.xpose.msra.mxu0 0
    %3526 = vmatprep.subr.bf16.mxu0 0
    %3527 = vmatpush1.bf16.xpose.msra.mxu0 0
    %3528 = vmatprep.subr.bf16.mxu0 0
    %3529 = vmatpush1.bf16.xpose.msra.mxu0 0
    %3530 = vmatprep.subr.bf16.mxu0 0
    %3531 = vmatpush1.bf16.xpose.msra.mxu0 0
    %3532 = vmatprep.subr.bf16.mxu0 0
    %3533 = vmatpush1.bf16.xpose.msra.mxu0 0
    %3534 = vmatprep.subr.bf16.mxu0 0
    %3535 = vmatpush1.bf16.xpose.msra.mxu0 0
    %3536 = vmatprep.subr.bf16.mxu0 0
    %3537 = vmatpush1.bf16.xpose.msra.mxu0 0
    %3538 = vmatprep.subr.bf16.mxu0 0
    %3539 = vmatpush1.bf16.xpose.msra.mxu0 0
    %3540 = vmatprep.subr.bf16.mxu0 0
    %3541 = vmatpush1.bf16.xpose.msra.mxu0 0
    %3542 = vmatprep.subr.bf16.mxu0 0
    %3543 = vmatpush1.bf16.xpose.msra.mxu0 0
    %3544 = vmatprep.subr.bf16.mxu0 0
    %3545 = vmatpush1.bf16.xpose.msra.mxu0 0
    %3546 = vmatprep.subr.bf16.mxu0 0
    %3547 = vmatpush1.bf16.xpose.msra.mxu0 0
    %3548 = vmatprep.subr.bf16.mxu0 0
    %3549 = vmatpush1.bf16.xpose.msra.mxu0 0
    %3550 = vmatprep.subr.bf16.mxu0 0
    %3551 = vmatpush1.bf16.xpose.msra.mxu0 0
    %3552 = vmatprep.mubr.bf16.mxu0 0
    %3553 = vmatmul.mubr.bf16.gmra.mrb[0].mxu0 %v3515
    %v3554 = vpop.f32.mrb[0].mxu0
    %v3555 = vadd.f32 0.0, %v3554
    %v3556 = vpop.f32.mrb[0].mxu0
    %v3557 = vpop.f32.mrb[0].mxu0
    %v3558 = vadd.f32 0.0, %v3557
    %v3559 = vpop.f32.mrb[0].mxu0
    %3560 = vdwg.mxu0
    %3561 = vrot.lane.b32.xlu0 %v614, 80
    %v3562 = vpop.permute.xlu0 %3561
    %3563 = vrot.lane.b32.xlu0 %v614, 16
    %v3564 = vpop.permute.xlu0 %3563
    %v3566 = vsel %vm632, %v3562, 0
    %v3569 = vsel %vm632, %v3564, 0
    %3571 = vmatprep.subr.bf16.mxu0 0
    %3572 = vmatpush1.bf16.xpose.msra.mxu0 %v3569
    %3573 = vmatprep.subr.bf16.mxu0 0
    %3574 = vmatpush1.bf16.xpose.msra.mxu0 0
    %3575 = vmatprep.subr.bf16.mxu0 0
    %3576 = vmatpush1.bf16.xpose.msra.mxu0 0
    %3577 = vmatprep.subr.bf16.mxu0 0
    %3578 = vmatpush1.bf16.xpose.msra.mxu0 0
    %3579 = vmatprep.subr.bf16.mxu0 0
    %3580 = vmatpush1.bf16.xpose.msra.mxu0 0
    %3581 = vmatprep.subr.bf16.mxu0 0
    %3582 = vmatpush1.bf16.xpose.msra.mxu0 0
    %3583 = vmatprep.subr.bf16.mxu0 0
    %3584 = vmatpush1.bf16.xpose.msra.mxu0 0
    %3585 = vmatprep.subr.bf16.mxu0 0
    %3586 = vmatpush1.bf16.xpose.msra.mxu0 0
    %3587 = vmatprep.subr.bf16.mxu0 0
    %3588 = vmatpush1.bf16.xpose.msra.mxu0 0
    %3589 = vmatprep.subr.bf16.mxu0 0
    %3590 = vmatpush1.bf16.xpose.msra.mxu0 0
    %3591 = vmatprep.subr.bf16.mxu0 0
    %3592 = vmatpush1.bf16.xpose.msra.mxu0 0
    %3593 = vmatprep.subr.bf16.mxu0 0
    %3594 = vmatpush1.bf16.xpose.msra.mxu0 0
    %3595 = vmatprep.subr.bf16.mxu0 0
    %3596 = vmatpush1.bf16.xpose.msra.mxu0 0
    %3597 = vmatprep.subr.bf16.mxu0 0
    %3598 = vmatpush1.bf16.xpose.msra.mxu0 0
    %3599 = vmatprep.subr.bf16.mxu0 0
    %3600 = vmatpush1.bf16.xpose.msra.mxu0 0
    %3601 = vmatprep.subr.bf16.mxu0 0
    %3602 = vmatpush1.bf16.xpose.msra.mxu0 0
    %3603 = vmatprep.mubr.bf16.mxu0 0
    %3604 = vmatmul.mubr.bf16.gmra.mrb[0].mxu0 %v3566
    %v3605 = vpop.f32.mrb[0].mxu0
    %v3606 = vadd.f32 0.0, %v3605
    %v3607 = vpop.f32.mrb[0].mxu0
    %v3608 = vpop.f32.mrb[0].mxu0
    %v3609 = vadd.f32 0.0, %v3608
    %v3610 = vpop.f32.mrb[0].mxu0
    %3611 = vdwg.mxu0
    %3612 = vrot.lane.b32.xlu0 %v615, 80
    %v3613 = vpop.permute.xlu0 %3612
    %3614 = vrot.lane.b32.xlu0 %v615, 16
    %v3615 = vpop.permute.xlu0 %3614
    %v3617 = vsel %vm632, %v3613, 0
    %v3620 = vsel %vm632, %v3615, 0
    %3622 = vmatprep.subr.bf16.mxu0 0
    %3623 = vmatpush1.bf16.xpose.msra.mxu0 %v3620
    %3624 = vmatprep.subr.bf16.mxu0 0
    %3625 = vmatpush1.bf16.xpose.msra.mxu0 0
    %3626 = vmatprep.subr.bf16.mxu0 0
    %3627 = vmatpush1.bf16.xpose.msra.mxu0 0
    %3628 = vmatprep.subr.bf16.mxu0 0
    %3629 = vmatpush1.bf16.xpose.msra.mxu0 0
    %3630 = vmatprep.subr.bf16.mxu0 0
    %3631 = vmatpush1.bf16.xpose.msra.mxu0 0
    %3632 = vmatprep.subr.bf16.mxu0 0
    %3633 = vmatpush1.bf16.xpose.msra.mxu0 0
    %3634 = vmatprep.subr.bf16.mxu0 0
    %3635 = vmatpush1.bf16.xpose.msra.mxu0 0
    %3636 = vmatprep.subr.bf16.mxu0 0
    %3637 = vmatpush1.bf16.xpose.msra.mxu0 0
    %3638 = vmatprep.subr.bf16.mxu0 0
    %3639 = vmatpush1.bf16.xpose.msra.mxu0 0
    %3640 = vmatprep.subr.bf16.mxu0 0
    %3641 = vmatpush1.bf16.xpose.msra.mxu0 0
    %3642 = vmatprep.subr.bf16.mxu0 0
    %3643 = vmatpush1.bf16.xpose.msra.mxu0 0
    %3644 = vmatprep.subr.bf16.mxu0 0
    %3645 = vmatpush1.bf16.xpose.msra.mxu0 0
    %3646 = vmatprep.subr.bf16.mxu0 0
    %3647 = vmatpush1.bf16.xpose.msra.mxu0 0
    %3648 = vmatprep.subr.bf16.mxu0 0
    %3649 = vmatpush1.bf16.xpose.msra.mxu0 0
    %3650 = vmatprep.subr.bf16.mxu0 0
    %3651 = vmatpush1.bf16.xpose.msra.mxu0 0
    %3652 = vmatprep.subr.bf16.mxu0 0
    %3653 = vmatpush1.bf16.xpose.msra.mxu0 0
    %3654 = vmatprep.mubr.bf16.mxu0 0
    %3655 = vmatmul.mubr.bf16.gmra.mrb[0].mxu0 %v3617
    %v3656 = vpop.f32.mrb[0].mxu0
    %v3657 = vadd.f32 0.0, %v3656
    %v3658 = vpop.f32.mrb[0].mxu0
    %v3659 = vpop.f32.mrb[0].mxu0
    %v3660 = vadd.f32 0.0, %v3659
    %v3661 = vpop.f32.mrb[0].mxu0
    %3662 = vdwg.mxu0
    %3663 = vrot.lane.b32.xlu0 %v616, 80
    %v3664 = vpop.permute.xlu0 %3663
    %3665 = vrot.lane.b32.xlu0 %v616, 16
    %v3666 = vpop.permute.xlu0 %3665
    %v3668 = vsel %vm632, %v3664, 0
    %v3671 = vsel %vm632, %v3666, 0
    %3673 = vmatprep.subr.bf16.mxu0 0
    %3674 = vmatpush1.bf16.xpose.msra.mxu0 %v3671
    %3675 = vmatprep.subr.bf16.mxu0 0
    %3676 = vmatpush1.bf16.xpose.msra.mxu0 0
    %3677 = vmatprep.subr.bf16.mxu0 0
    %3678 = vmatpush1.bf16.xpose.msra.mxu0 0
    %3679 = vmatprep.subr.bf16.mxu0 0
    %3680 = vmatpush1.bf16.xpose.msra.mxu0 0
    %3681 = vmatprep.subr.bf16.mxu0 0
    %3682 = vmatpush1.bf16.xpose.msra.mxu0 0
    %3683 = vmatprep.subr.bf16.mxu0 0
    %3684 = vmatpush1.bf16.xpose.msra.mxu0 0
    %3685 = vmatprep.subr.bf16.mxu0 0
    %3686 = vmatpush1.bf16.xpose.msra.mxu0 0
    %3687 = vmatprep.subr.bf16.mxu0 0
    %3688 = vmatpush1.bf16.xpose.msra.mxu0 0
    %3689 = vmatprep.subr.bf16.mxu0 0
    %3690 = vmatpush1.bf16.xpose.msra.mxu0 0
    %3691 = vmatprep.subr.bf16.mxu0 0
    %3692 = vmatpush1.bf16.xpose.msra.mxu0 0
    %3693 = vmatprep.subr.bf16.mxu0 0
    %3694 = vmatpush1.bf16.xpose.msra.mxu0 0
    %3695 = vmatprep.subr.bf16.mxu0 0
    %3696 = vmatpush1.bf16.xpose.msra.mxu0 0
    %3697 = vmatprep.subr.bf16.mxu0 0
    %3698 = vmatpush1.bf16.xpose.msra.mxu0 0
    %3699 = vmatprep.subr.bf16.mxu0 0
    %3700 = vmatpush1.bf16.xpose.msra.mxu0 0
    %3701 = vmatprep.subr.bf16.mxu0 0
    %3702 = vmatpush1.bf16.xpose.msra.mxu0 0
    %3703 = vmatprep.subr.bf16.mxu0 0
    %3704 = vmatpush1.bf16.xpose.msra.mxu0 0
    %3705 = vmatprep.mubr.bf16.mxu0 0
    %3706 = vmatmul.mubr.bf16.gmra.mrb[0].mxu0 %v3668
    %v3707 = vpop.f32.mrb[0].mxu0
    %v3708 = vadd.f32 0.0, %v3707
    %v3709 = vpop.f32.mrb[0].mxu0
    %v3710 = vpop.f32.mrb[0].mxu0
    %v3711 = vadd.f32 0.0, %v3710
    %v3712 = vpop.f32.mrb[0].mxu0
    %3713 = vdwg.mxu0
    %3714 = vrot.lane.b32.xlu0 %v617, 80
    %v3715 = vpop.permute.xlu0 %3714
    %3716 = vrot.lane.b32.xlu0 %v617, 16
    %v3717 = vpop.permute.xlu0 %3716
    %v3719 = vsel %vm632, %v3715, 0
    %v3722 = vsel %vm632, %v3717, 0
    %3724 = vmatprep.subr.bf16.mxu0 0
    %3725 = vmatpush1.bf16.xpose.msra.mxu0 %v3722
    %3726 = vmatprep.subr.bf16.mxu0 0
    %3727 = vmatpush1.bf16.xpose.msra.mxu0 0
    %3728 = vmatprep.subr.bf16.mxu0 0
    %3729 = vmatpush1.bf16.xpose.msra.mxu0 0
    %3730 = vmatprep.subr.bf16.mxu0 0
    %3731 = vmatpush1.bf16.xpose.msra.mxu0 0
    %3732 = vmatprep.subr.bf16.mxu0 0
    %3733 = vmatpush1.bf16.xpose.msra.mxu0 0
    %3734 = vmatprep.subr.bf16.mxu0 0
    %3735 = vmatpush1.bf16.xpose.msra.mxu0 0
    %3736 = vmatprep.subr.bf16.mxu0 0
    %3737 = vmatpush1.bf16.xpose.msra.mxu0 0
    %3738 = vmatprep.subr.bf16.mxu0 0
    %3739 = vmatpush1.bf16.xpose.msra.mxu0 0
    %3740 = vmatprep.subr.bf16.mxu0 0
    %3741 = vmatpush1.bf16.xpose.msra.mxu0 0
    %3742 = vmatprep.subr.bf16.mxu0 0
    %3743 = vmatpush1.bf16.xpose.msra.mxu0 0
    %3744 = vmatprep.subr.bf16.mxu0 0
    %3745 = vmatpush1.bf16.xpose.msra.mxu0 0
    %3746 = vmatprep.subr.bf16.mxu0 0
    %3747 = vmatpush1.bf16.xpose.msra.mxu0 0
    %3748 = vmatprep.subr.bf16.mxu0 0
    %3749 = vmatpush1.bf16.xpose.msra.mxu0 0
    %3750 = vmatprep.subr.bf16.mxu0 0
    %3751 = vmatpush1.bf16.xpose.msra.mxu0 0
    %3752 = vmatprep.subr.bf16.mxu0 0
    %3753 = vmatpush1.bf16.xpose.msra.mxu0 0
    %3754 = vmatprep.subr.bf16.mxu0 0
    %3755 = vmatpush1.bf16.xpose.msra.mxu0 0
    %3756 = vmatprep.mubr.bf16.mxu0 0
    %3757 = vmatmul.mubr.bf16.gmra.mrb[0].mxu0 %v3719
    %v3758 = vpop.f32.mrb[0].mxu0
    %v3759 = vadd.f32 0.0, %v3758
    %v3760 = vpop.f32.mrb[0].mxu0
    %v3761 = vpop.f32.mrb[0].mxu0
    %v3762 = vadd.f32 0.0, %v3761
    %v3763 = vpop.f32.mrb[0].mxu0
    %3764 = vdwg.mxu0
    %3765 = vrot.lane.b32.xlu0 %v618, 80
    %v3766 = vpop.permute.xlu0 %3765
    %3767 = vrot.lane.b32.xlu0 %v618, 16
    %v3768 = vpop.permute.xlu0 %3767
    %v3770 = vsel %vm632, %v3766, 0
    %v3773 = vsel %vm632, %v3768, 0
    %3775 = vmatprep.subr.bf16.mxu0 0
    %3776 = vmatpush1.bf16.xpose.msra.mxu0 %v3773
    %3777 = vmatprep.subr.bf16.mxu0 0
    %3778 = vmatpush1.bf16.xpose.msra.mxu0 0
    %3779 = vmatprep.subr.bf16.mxu0 0
    %3780 = vmatpush1.bf16.xpose.msra.mxu0 0
    %3781 = vmatprep.subr.bf16.mxu0 0
    %3782 = vmatpush1.bf16.xpose.msra.mxu0 0
    %3783 = vmatprep.subr.bf16.mxu0 0
    %3784 = vmatpush1.bf16.xpose.msra.mxu0 0
    %3785 = vmatprep.subr.bf16.mxu0 0
    %3786 = vmatpush1.bf16.xpose.msra.mxu0 0
    %3787 = vmatprep.subr.bf16.mxu0 0
    %3788 = vmatpush1.bf16.xpose.msra.mxu0 0
    %3789 = vmatprep.subr.bf16.mxu0 0
    %3790 = vmatpush1.bf16.xpose.msra.mxu0 0
    %3791 = vmatprep.subr.bf16.mxu0 0
    %3792 = vmatpush1.bf16.xpose.msra.mxu0 0
    %3793 = vmatprep.subr.bf16.mxu0 0
    %3794 = vmatpush1.bf16.xpose.msra.mxu0 0
    %3795 = vmatprep.subr.bf16.mxu0 0
    %3796 = vmatpush1.bf16.xpose.msra.mxu0 0
    %3797 = vmatprep.subr.bf16.mxu0 0
    %3798 = vmatpush1.bf16.xpose.msra.mxu0 0
    %3799 = vmatprep.subr.bf16.mxu0 0
    %3800 = vmatpush1.bf16.xpose.msra.mxu0 0
    %3801 = vmatprep.subr.bf16.mxu0 0
    %3802 = vmatpush1.bf16.xpose.msra.mxu0 0
    %3803 = vmatprep.subr.bf16.mxu0 0
    %3804 = vmatpush1.bf16.xpose.msra.mxu0 0
    %3805 = vmatprep.subr.bf16.mxu0 0
    %3806 = vmatpush1.bf16.xpose.msra.mxu0 0
    %3807 = vmatprep.mubr.bf16.mxu0 0
    %3808 = vmatmul.mubr.bf16.gmra.mrb[0].mxu0 %v3770
    %v3809 = vpop.f32.mrb[0].mxu0
    %v3810 = vadd.f32 0.0, %v3809
    %v3811 = vpop.f32.mrb[0].mxu0
    %v3812 = vpop.f32.mrb[0].mxu0
    %v3813 = vadd.f32 0.0, %v3812
    %v3814 = vpop.f32.mrb[0].mxu0
    %3815 = vdwg.mxu0
    %3816 = vrot.lane.b32.xlu0 %v619, 80
    %v3817 = vpop.permute.xlu0 %3816
    %3818 = vrot.lane.b32.xlu0 %v619, 16
    %v3819 = vpop.permute.xlu0 %3818
    %v3821 = vsel %vm632, %v3817, 0
    %v3824 = vsel %vm632, %v3819, 0
    %3826 = vmatprep.subr.bf16.mxu0 0
    %3827 = vmatpush1.bf16.xpose.msra.mxu0 %v3824
    %3828 = vmatprep.subr.bf16.mxu0 0
    %3829 = vmatpush1.bf16.xpose.msra.mxu0 0
    %3830 = vmatprep.subr.bf16.mxu0 0
    %3831 = vmatpush1.bf16.xpose.msra.mxu0 0
    %3832 = vmatprep.subr.bf16.mxu0 0
    %3833 = vmatpush1.bf16.xpose.msra.mxu0 0
    %3834 = vmatprep.subr.bf16.mxu0 0
    %3835 = vmatpush1.bf16.xpose.msra.mxu0 0
    %3836 = vmatprep.subr.bf16.mxu0 0
    %3837 = vmatpush1.bf16.xpose.msra.mxu0 0
    %3838 = vmatprep.subr.bf16.mxu0 0
    %3839 = vmatpush1.bf16.xpose.msra.mxu0 0
    %3840 = vmatprep.subr.bf16.mxu0 0
    %3841 = vmatpush1.bf16.xpose.msra.mxu0 0
    %3842 = vmatprep.subr.bf16.mxu0 0
    %3843 = vmatpush1.bf16.xpose.msra.mxu0 0
    %3844 = vmatprep.subr.bf16.mxu0 0
    %3845 = vmatpush1.bf16.xpose.msra.mxu0 0
    %3846 = vmatprep.subr.bf16.mxu0 0
    %3847 = vmatpush1.bf16.xpose.msra.mxu0 0
    %3848 = vmatprep.subr.bf16.mxu0 0
    %3849 = vmatpush1.bf16.xpose.msra.mxu0 0
    %3850 = vmatprep.subr.bf16.mxu0 0
    %3851 = vmatpush1.bf16.xpose.msra.mxu0 0
    %3852 = vmatprep.subr.bf16.mxu0 0
    %3853 = vmatpush1.bf16.xpose.msra.mxu0 0
    %3854 = vmatprep.subr.bf16.mxu0 0
    %3855 = vmatpush1.bf16.xpose.msra.mxu0 0
    %3856 = vmatprep.subr.bf16.mxu0 0
    %3857 = vmatpush1.bf16.xpose.msra.mxu0 0
    %3858 = vmatprep.mubr.bf16.mxu0 0
    %3859 = vmatmul.mubr.bf16.gmra.mrb[0].mxu0 %v3821
    %v3860 = vpop.f32.mrb[0].mxu0
    %v3861 = vadd.f32 0.0, %v3860
    %v3862 = vpop.f32.mrb[0].mxu0
    %v3863 = vpop.f32.mrb[0].mxu0
    %v3864 = vadd.f32 0.0, %v3863
    %v3865 = vpop.f32.mrb[0].mxu0
    %3866 = vdwg.mxu0
    %3867 = vrot.lane.b32.xlu0 %v620, 80
    %v3868 = vpop.permute.xlu0 %3867
    %3869 = vrot.lane.b32.xlu0 %v620, 16
    %v3870 = vpop.permute.xlu0 %3869
    %v3872 = vsel %vm632, %v3868, 0
    %v3875 = vsel %vm632, %v3870, 0
    %3877 = vmatprep.subr.bf16.mxu0 0
    %3878 = vmatpush1.bf16.xpose.msra.mxu0 %v3875
    %3879 = vmatprep.subr.bf16.mxu0 0
    %3880 = vmatpush1.bf16.xpose.msra.mxu0 0
    %3881 = vmatprep.subr.bf16.mxu0 0
    %3882 = vmatpush1.bf16.xpose.msra.mxu0 0
    %3883 = vmatprep.subr.bf16.mxu0 0
    %3884 = vmatpush1.bf16.xpose.msra.mxu0 0
    %3885 = vmatprep.subr.bf16.mxu0 0
    %3886 = vmatpush1.bf16.xpose.msra.mxu0 0
    %3887 = vmatprep.subr.bf16.mxu0 0
    %3888 = vmatpush1.bf16.xpose.msra.mxu0 0
    %3889 = vmatprep.subr.bf16.mxu0 0
    %3890 = vmatpush1.bf16.xpose.msra.mxu0 0
    %3891 = vmatprep.subr.bf16.mxu0 0
    %3892 = vmatpush1.bf16.xpose.msra.mxu0 0
    %3893 = vmatprep.subr.bf16.mxu0 0
    %3894 = vmatpush1.bf16.xpose.msra.mxu0 0
    %3895 = vmatprep.subr.bf16.mxu0 0
    %3896 = vmatpush1.bf16.xpose.msra.mxu0 0
    %3897 = vmatprep.subr.bf16.mxu0 0
    %3898 = vmatpush1.bf16.xpose.msra.mxu0 0
    %3899 = vmatprep.subr.bf16.mxu0 0
    %3900 = vmatpush1.bf16.xpose.msra.mxu0 0
    %3901 = vmatprep.subr.bf16.mxu0 0
    %3902 = vmatpush1.bf16.xpose.msra.mxu0 0
    %3903 = vmatprep.subr.bf16.mxu0 0
    %3904 = vmatpush1.bf16.xpose.msra.mxu0 0
    %3905 = vmatprep.subr.bf16.mxu0 0
    %3906 = vmatpush1.bf16.xpose.msra.mxu0 0
    %3907 = vmatprep.subr.bf16.mxu0 0
    %3908 = vmatpush1.bf16.xpose.msra.mxu0 0
    %3909 = vmatprep.mubr.bf16.mxu0 0
    %3910 = vmatmul.mubr.bf16.gmra.mrb[0].mxu0 %v3872
    %v3911 = vpop.f32.mrb[0].mxu0
    %v3912 = vadd.f32 0.0, %v3911
    %v3913 = vpop.f32.mrb[0].mxu0
    %v3914 = vpop.f32.mrb[0].mxu0
    %v3915 = vadd.f32 0.0, %v3914
    %v3916 = vpop.f32.mrb[0].mxu0
    %3917 = vdwg.mxu0
    %v3918 = vsel %vm632, %v3555, -inf
    %3919 = vmax.xlane.f32.xlu0 %v3918
    %v3920 = vpop.xlane.xlu0 %3919
    %v3921 = vsel %vm632, %v3558, -inf
    %3922 = vmax.xlane.f32.xlu0 %v3921
    %v3923 = vpop.xlane.xlu0 %3922
    %v3924 = vsel %vm632, %v3606, -inf
    %3925 = vmax.xlane.f32.xlu0 %v3924
    %v3926 = vpop.xlane.xlu0 %3925
    %v3927 = vsel %vm632, %v3609, -inf
    %3928 = vmax.xlane.f32.xlu0 %v3927
    %v3929 = vpop.xlane.xlu0 %3928
    %v3930 = vsel %vm632, %v3657, -inf
    %3931 = vmax.xlane.f32.xlu0 %v3930
    %v3932 = vpop.xlane.xlu0 %3931
    %v3933 = vsel %vm632, %v3660, -inf
    %3934 = vmax.xlane.f32.xlu0 %v3933
    %v3935 = vpop.xlane.xlu0 %3934
    %v3936 = vsel %vm632, %v3708, -inf
    %3937 = vmax.xlane.f32.xlu0 %v3936
    %v3938 = vpop.xlane.xlu0 %3937
    %v3939 = vsel %vm632, %v3711, -inf
    %3940 = vmax.xlane.f32.xlu0 %v3939
    %v3941 = vpop.xlane.xlu0 %3940
    %v3942 = vsel %vm632, %v3759, -inf
    %3943 = vmax.xlane.f32.xlu0 %v3942
    %v3944 = vpop.xlane.xlu0 %3943
    %v3945 = vsel %vm632, %v3762, -inf
    %3946 = vmax.xlane.f32.xlu0 %v3945
    %v3947 = vpop.xlane.xlu0 %3946
    %v3948 = vsel %vm632, %v3810, -inf
    %3949 = vmax.xlane.f32.xlu0 %v3948
    %v3950 = vpop.xlane.xlu0 %3949
    %v3951 = vsel %vm632, %v3813, -inf
    %3952 = vmax.xlane.f32.xlu0 %v3951
    %v3953 = vpop.xlane.xlu0 %3952
    %v3954 = vsel %vm632, %v3861, -inf
    %3955 = vmax.xlane.f32.xlu0 %v3954
    %v3956 = vpop.xlane.xlu0 %3955
    %v3957 = vsel %vm632, %v3864, -inf
    %3958 = vmax.xlane.f32.xlu0 %v3957
    %v3959 = vpop.xlane.xlu0 %3958
    %v3960 = vsel %vm632, %v3912, -inf
    %3961 = vmax.xlane.f32.xlu0 %v3960
    %v3962 = vpop.xlane.xlu0 %3961
    %v3963 = vsel %vm632, %v3915, -inf
    %3964 = vmax.xlane.f32.xlu0 %v3963
    %v3965 = vpop.xlane.xlu0 %3964
    %v3966 = vsub.f32 %v3555, %v3920
    %v3967 = vsub.f32 %v3558, %v3923
    %v3968 = vsub.f32 %v3606, %v3926
    %v3969 = vsub.f32 %v3609, %v3929
    %v3970 = vsub.f32 %v3657, %v3932
    %v3971 = vsub.f32 %v3660, %v3935
    %v3972 = vsub.f32 %v3708, %v3938
    %v3973 = vsub.f32 %v3711, %v3941
    %v3974 = vsub.f32 %v3759, %v3944
    %v3975 = vsub.f32 %v3762, %v3947
    %v3976 = vsub.f32 %v3810, %v3950
    %v3977 = vsub.f32 %v3813, %v3953
    %v3978 = vsub.f32 %v3861, %v3956
    %v3979 = vsub.f32 %v3864, %v3959
    %v3980 = vsub.f32 %v3912, %v3962
    %v3981 = vsub.f32 %v3915, %v3965
    %v3982 = vmul.f32 %v3966, 1.442695
    %v3983 = vpow.pop %v3982
    %v3984 = vmul.f32 %v3967, 1.442695
    %v3985 = vpow.pop %v3984
    %v3986 = vmul.f32 %v3968, 1.442695
    %v3987 = vpow.pop %v3986
    %v3988 = vmul.f32 %v3969, 1.442695
    %v3989 = vpow.pop %v3988
    %v3990 = vmul.f32 %v3970, 1.442695
    %v3991 = vpow.pop %v3990
    %v3992 = vmul.f32 %v3971, 1.442695
    %v3993 = vpow.pop %v3992
    %v3994 = vmul.f32 %v3972, 1.442695
    %v3995 = vpow.pop %v3994
    %v3996 = vmul.f32 %v3973, 1.442695
    %v3997 = vpow.pop %v3996
    %v3998 = vmul.f32 %v3974, 1.442695
    %v3999 = vpow.pop %v3998
    %v4000 = vmul.f32 %v3975, 1.442695
    %v4001 = vpow.pop %v4000
    %v4002 = vmul.f32 %v3976, 1.442695
    %v4003 = vpow.pop %v4002
    %v4004 = vmul.f32 %v3977, 1.442695
    %v4005 = vpow.pop %v4004
    %v4006 = vmul.f32 %v3978, 1.442695
    %v4007 = vpow.pop %v4006
    %v4008 = vmul.f32 %v3979, 1.442695
    %v4009 = vpow.pop %v4008
    %v4010 = vmul.f32 %v3980, 1.442695
    %v4011 = vpow.pop %v4010
    %v4012 = vmul.f32 %v3981, 1.442695
    %v4013 = vpow.pop %v4012
    %v4014 = vsel %vm632, %v3983, 0.0
    %4015 = vadd.xlane.f32.xlu0 %v4014
    %v4016 = vpop.xlane.xlu0 %4015
    %v4017 = vsel %vm632, %v3985, 0.0
    %4018 = vadd.xlane.f32.xlu0 %v4017
    %v4019 = vpop.xlane.xlu0 %4018
    %v4020 = vsel %vm632, %v3987, 0.0
    %4021 = vadd.xlane.f32.xlu0 %v4020
    %v4022 = vpop.xlane.xlu0 %4021
    %v4023 = vsel %vm632, %v3989, 0.0
    %4024 = vadd.xlane.f32.xlu0 %v4023
    %v4025 = vpop.xlane.xlu0 %4024
    %v4026 = vsel %vm632, %v3991, 0.0
    %4027 = vadd.xlane.f32.xlu0 %v4026
    %v4028 = vpop.xlane.xlu0 %4027
    %v4029 = vsel %vm632, %v3993, 0.0
    %4030 = vadd.xlane.f32.xlu0 %v4029
    %v4031 = vpop.xlane.xlu0 %4030
    %v4032 = vsel %vm632, %v3995, 0.0
    %4033 = vadd.xlane.f32.xlu0 %v4032
    %v4034 = vpop.xlane.xlu0 %4033
    %v4035 = vsel %vm632, %v3997, 0.0
    %4036 = vadd.xlane.f32.xlu0 %v4035
    %v4037 = vpop.xlane.xlu0 %4036
    %v4038 = vsel %vm632, %v3999, 0.0
    %4039 = vadd.xlane.f32.xlu0 %v4038
    %v4040 = vpop.xlane.xlu0 %4039
    %v4041 = vsel %vm632, %v4001, 0.0
    %4042 = vadd.xlane.f32.xlu0 %v4041
    %v4043 = vpop.xlane.xlu0 %4042
    %v4044 = vsel %vm632, %v4003, 0.0
    %4045 = vadd.xlane.f32.xlu0 %v4044
    %v4046 = vpop.xlane.xlu0 %4045
    %v4047 = vsel %vm632, %v4005, 0.0
    %4048 = vadd.xlane.f32.xlu0 %v4047
    %v4049 = vpop.xlane.xlu0 %4048
    %v4050 = vsel %vm632, %v4007, 0.0
    %4051 = vadd.xlane.f32.xlu0 %v4050
    %v4052 = vpop.xlane.xlu0 %4051
    %v4053 = vsel %vm632, %v4009, 0.0
    %4054 = vadd.xlane.f32.xlu0 %v4053
    %v4055 = vpop.xlane.xlu0 %4054
    %v4056 = vsel %vm632, %v4011, 0.0
    %4057 = vadd.xlane.f32.xlu0 %v4056
    %v4058 = vpop.xlane.xlu0 %4057
    %v4059 = vsel %vm632, %v4013, 0.0
    %4060 = vadd.xlane.f32.xlu0 %v4059
    %v4061 = vpop.xlane.xlu0 %4060
    %v4062 = vrcp.pop %v4016
    %v4063 = vmul.f32 %v3983, %v4062
    %v4064 = vrcp.pop %v4019
    %v4065 = vmul.f32 %v3985, %v4064
    %v4066 = vrcp.pop %v4022
    %v4067 = vmul.f32 %v3987, %v4066
    %v4068 = vrcp.pop %v4025
    %v4069 = vmul.f32 %v3989, %v4068
    %v4070 = vrcp.pop %v4028
    %v4071 = vmul.f32 %v3991, %v4070
    %v4072 = vrcp.pop %v4031
    %v4073 = vmul.f32 %v3993, %v4072
    %v4074 = vrcp.pop %v4034
    %v4075 = vmul.f32 %v3995, %v4074
    %v4076 = vrcp.pop %v4037
    %v4077 = vmul.f32 %v3997, %v4076
    %v4078 = vrcp.pop %v4040
    %v4079 = vmul.f32 %v3999, %v4078
    %v4080 = vrcp.pop %v4043
    %v4081 = vmul.f32 %v4001, %v4080
    %v4082 = vrcp.pop %v4046
    %v4083 = vmul.f32 %v4003, %v4082
    %v4084 = vrcp.pop %v4049
    %v4085 = vmul.f32 %v4005, %v4084
    %v4086 = vrcp.pop %v4052
    %v4087 = vmul.f32 %v4007, %v4086
    %v4088 = vrcp.pop %v4055
    %v4089 = vmul.f32 %v4009, %v4088
    %v4090 = vrcp.pop %v4058
    %v4091 = vmul.f32 %v4011, %v4090
    %v4092 = vrcp.pop %v4061
    %v4093 = vmul.f32 %v4013, %v4092
    %v4094 = vpack.c.bf16 %v4065, %v4063
    %v4095 = vpack.c.bf16 %v4069, %v4067
    %v4096 = vpack.c.bf16 %v4073, %v4071
    %v4097 = vpack.c.bf16 %v4077, %v4075
    %v4098 = vpack.c.bf16 %v4081, %v4079
    %v4099 = vpack.c.bf16 %v4085, %v4083
    %v4100 = vpack.c.bf16 %v4089, %v4087
    %v4101 = vpack.c.bf16 %v4093, %v4091
    %4102 = vrot.lane.b32.xlu0 %v621, 80
    %v4103 = vpop.permute.xlu0 %4102
    %v4106 = vsel %vm632, %v4094, 0
    %4108 = vmatprep.subr.bf16.mxu0 0
    %4109 = vmatpush1.bf16.msra.mxu0 %v4103
    %4110 = vmatprep.subr.bf16.mxu0 0
    %4111 = vmatpush1.bf16.msra.mxu0 0
    %4112 = vmatprep.subr.bf16.mxu0 0
    %4113 = vmatpush1.bf16.msra.mxu0 0
    %4114 = vmatprep.subr.bf16.mxu0 0
    %4115 = vmatpush1.bf16.msra.mxu0 0
    %4116 = vmatprep.subr.bf16.mxu0 0
    %4117 = vmatpush1.bf16.msra.mxu0 0
    %4118 = vmatprep.subr.bf16.mxu0 0
    %4119 = vmatpush1.bf16.msra.mxu0 0
    %4120 = vmatprep.subr.bf16.mxu0 0
    %4121 = vmatpush1.bf16.msra.mxu0 0
    %4122 = vmatprep.subr.bf16.mxu0 0
    %4123 = vmatpush1.bf16.msra.mxu0 0
    %4124 = vmatprep.subr.bf16.mxu0 0
    %4125 = vmatpush1.bf16.msra.mxu0 0
    %4126 = vmatprep.subr.bf16.mxu0 0
    %4127 = vmatpush1.bf16.msra.mxu0 0
    %4128 = vmatprep.subr.bf16.mxu0 0
    %4129 = vmatpush1.bf16.msra.mxu0 0
    %4130 = vmatprep.subr.bf16.mxu0 0
    %4131 = vmatpush1.bf16.msra.mxu0 0
    %4132 = vmatprep.subr.bf16.mxu0 0
    %4133 = vmatpush1.bf16.msra.mxu0 0
    %4134 = vmatprep.subr.bf16.mxu0 0
    %4135 = vmatpush1.bf16.msra.mxu0 0
    %4136 = vmatprep.subr.bf16.mxu0 0
    %4137 = vmatpush1.bf16.msra.mxu0 0
    %4138 = vmatprep.subr.bf16.mxu0 0
    %4139 = vmatpush1.bf16.msra.mxu0 0
    %4140 = vmatprep.mubr.bf16.mxu0 0
    %4141 = vmatmul.mubr.bf16.gmra.mrb[0].mxu0 %v4106
    %v4142 = vpop.f32.mrb[0].mxu0
    %v4143 = vadd.f32 0.0, %v4142
    %v4144 = vpop.f32.mrb[0].mxu0
    %v4145 = vpop.f32.mrb[0].mxu0
    %v4146 = vadd.f32 0.0, %v4145
    %v4147 = vpop.f32.mrb[0].mxu0
    %4148 = vdwg.mxu0
    %4149 = vrot.lane.b32.xlu0 %v622, 80
    %v4150 = vpop.permute.xlu0 %4149
    %v4153 = vsel %vm632, %v4095, 0
    %4155 = vmatprep.subr.bf16.mxu0 0
    %4156 = vmatpush1.bf16.msra.mxu0 %v4150
    %4157 = vmatprep.subr.bf16.mxu0 0
    %4158 = vmatpush1.bf16.msra.mxu0 0
    %4159 = vmatprep.subr.bf16.mxu0 0
    %4160 = vmatpush1.bf16.msra.mxu0 0
    %4161 = vmatprep.subr.bf16.mxu0 0
    %4162 = vmatpush1.bf16.msra.mxu0 0
    %4163 = vmatprep.subr.bf16.mxu0 0
    %4164 = vmatpush1.bf16.msra.mxu0 0
    %4165 = vmatprep.subr.bf16.mxu0 0
    %4166 = vmatpush1.bf16.msra.mxu0 0
    %4167 = vmatprep.subr.bf16.mxu0 0
    %4168 = vmatpush1.bf16.msra.mxu0 0
    %4169 = vmatprep.subr.bf16.mxu0 0
    %4170 = vmatpush1.bf16.msra.mxu0 0
    %4171 = vmatprep.subr.bf16.mxu0 0
    %4172 = vmatpush1.bf16.msra.mxu0 0
    %4173 = vmatprep.subr.bf16.mxu0 0
    %4174 = vmatpush1.bf16.msra.mxu0 0
    %4175 = vmatprep.subr.bf16.mxu0 0
    %4176 = vmatpush1.bf16.msra.mxu0 0
    %4177 = vmatprep.subr.bf16.mxu0 0
    %4178 = vmatpush1.bf16.msra.mxu0 0
    %4179 = vmatprep.subr.bf16.mxu0 0
    %4180 = vmatpush1.bf16.msra.mxu0 0
    %4181 = vmatprep.subr.bf16.mxu0 0
    %4182 = vmatpush1.bf16.msra.mxu0 0
    %4183 = vmatprep.subr.bf16.mxu0 0
    %4184 = vmatpush1.bf16.msra.mxu0 0
    %4185 = vmatprep.subr.bf16.mxu0 0
    %4186 = vmatpush1.bf16.msra.mxu0 0
    %4187 = vmatprep.mubr.bf16.mxu0 0
    %4188 = vmatmul.mubr.bf16.gmra.mrb[0].mxu0 %v4153
    %v4189 = vpop.f32.mrb[0].mxu0
    %v4190 = vadd.f32 0.0, %v4189
    %v4191 = vpop.f32.mrb[0].mxu0
    %v4192 = vpop.f32.mrb[0].mxu0
    %v4193 = vadd.f32 0.0, %v4192
    %v4194 = vpop.f32.mrb[0].mxu0
    %4195 = vdwg.mxu0
    %4196 = vrot.lane.b32.xlu0 %v623, 80
    %v4197 = vpop.permute.xlu0 %4196
    %v4200 = vsel %vm632, %v4096, 0
    %4202 = vmatprep.subr.bf16.mxu0 0
    %4203 = vmatpush1.bf16.msra.mxu0 %v4197
    %4204 = vmatprep.subr.bf16.mxu0 0
    %4205 = vmatpush1.bf16.msra.mxu0 0
    %4206 = vmatprep.subr.bf16.mxu0 0
    %4207 = vmatpush1.bf16.msra.mxu0 0
    %4208 = vmatprep.subr.bf16.mxu0 0
    %4209 = vmatpush1.bf16.msra.mxu0 0
    %4210 = vmatprep.subr.bf16.mxu0 0
    %4211 = vmatpush1.bf16.msra.mxu0 0
    %4212 = vmatprep.subr.bf16.mxu0 0
    %4213 = vmatpush1.bf16.msra.mxu0 0
    %4214 = vmatprep.subr.bf16.mxu0 0
    %4215 = vmatpush1.bf16.msra.mxu0 0
    %4216 = vmatprep.subr.bf16.mxu0 0
    %4217 = vmatpush1.bf16.msra.mxu0 0
    %4218 = vmatprep.subr.bf16.mxu0 0
    %4219 = vmatpush1.bf16.msra.mxu0 0
    %4220 = vmatprep.subr.bf16.mxu0 0
    %4221 = vmatpush1.bf16.msra.mxu0 0
    %4222 = vmatprep.subr.bf16.mxu0 0
    %4223 = vmatpush1.bf16.msra.mxu0 0
    %4224 = vmatprep.subr.bf16.mxu0 0
    %4225 = vmatpush1.bf16.msra.mxu0 0
    %4226 = vmatprep.subr.bf16.mxu0 0
    %4227 = vmatpush1.bf16.msra.mxu0 0
    %4228 = vmatprep.subr.bf16.mxu0 0
    %4229 = vmatpush1.bf16.msra.mxu0 0
    %4230 = vmatprep.subr.bf16.mxu0 0
    %4231 = vmatpush1.bf16.msra.mxu0 0
    %4232 = vmatprep.subr.bf16.mxu0 0
    %4233 = vmatpush1.bf16.msra.mxu0 0
    %4234 = vmatprep.mubr.bf16.mxu0 0
    %4235 = vmatmul.mubr.bf16.gmra.mrb[0].mxu0 %v4200
    %v4236 = vpop.f32.mrb[0].mxu0
    %v4237 = vadd.f32 0.0, %v4236
    %v4238 = vpop.f32.mrb[0].mxu0
    %v4239 = vpop.f32.mrb[0].mxu0
    %v4240 = vadd.f32 0.0, %v4239
    %v4241 = vpop.f32.mrb[0].mxu0
    %4242 = vdwg.mxu0
    %4243 = vrot.lane.b32.xlu0 %v624, 80
    %v4244 = vpop.permute.xlu0 %4243
    %v4247 = vsel %vm632, %v4097, 0
    %4249 = vmatprep.subr.bf16.mxu0 0
    %4250 = vmatpush1.bf16.msra.mxu0 %v4244
    %4251 = vmatprep.subr.bf16.mxu0 0
    %4252 = vmatpush1.bf16.msra.mxu0 0
    %4253 = vmatprep.subr.bf16.mxu0 0
    %4254 = vmatpush1.bf16.msra.mxu0 0
    %4255 = vmatprep.subr.bf16.mxu0 0
    %4256 = vmatpush1.bf16.msra.mxu0 0
    %4257 = vmatprep.subr.bf16.mxu0 0
    %4258 = vmatpush1.bf16.msra.mxu0 0
    %4259 = vmatprep.subr.bf16.mxu0 0
    %4260 = vmatpush1.bf16.msra.mxu0 0
    %4261 = vmatprep.subr.bf16.mxu0 0
    %4262 = vmatpush1.bf16.msra.mxu0 0
    %4263 = vmatprep.subr.bf16.mxu0 0
    %4264 = vmatpush1.bf16.msra.mxu0 0
    %4265 = vmatprep.subr.bf16.mxu0 0
    %4266 = vmatpush1.bf16.msra.mxu0 0
    %4267 = vmatprep.subr.bf16.mxu0 0
    %4268 = vmatpush1.bf16.msra.mxu0 0
    %4269 = vmatprep.subr.bf16.mxu0 0
    %4270 = vmatpush1.bf16.msra.mxu0 0
    %4271 = vmatprep.subr.bf16.mxu0 0
    %4272 = vmatpush1.bf16.msra.mxu0 0
    %4273 = vmatprep.subr.bf16.mxu0 0
    %4274 = vmatpush1.bf16.msra.mxu0 0
    %4275 = vmatprep.subr.bf16.mxu0 0
    %4276 = vmatpush1.bf16.msra.mxu0 0
    %4277 = vmatprep.subr.bf16.mxu0 0
    %4278 = vmatpush1.bf16.msra.mxu0 0
    %4279 = vmatprep.subr.bf16.mxu0 0
    %4280 = vmatpush1.bf16.msra.mxu0 0
    %4281 = vmatprep.mubr.bf16.mxu0 0
    %4282 = vmatmul.mubr.bf16.gmra.mrb[0].mxu0 %v4247
    %v4283 = vpop.f32.mrb[0].mxu0
    %v4284 = vadd.f32 0.0, %v4283
    %v4285 = vpop.f32.mrb[0].mxu0
    %v4286 = vpop.f32.mrb[0].mxu0
    %v4287 = vadd.f32 0.0, %v4286
    %v4288 = vpop.f32.mrb[0].mxu0
    %4289 = vdwg.mxu0
    %4290 = vrot.lane.b32.xlu0 %v625, 80
    %v4291 = vpop.permute.xlu0 %4290
    %v4294 = vsel %vm632, %v4098, 0
    %4296 = vmatprep.subr.bf16.mxu0 0
    %4297 = vmatpush1.bf16.msra.mxu0 %v4291
    %4298 = vmatprep.subr.bf16.mxu0 0
    %4299 = vmatpush1.bf16.msra.mxu0 0
    %4300 = vmatprep.subr.bf16.mxu0 0
    %4301 = vmatpush1.bf16.msra.mxu0 0
    %4302 = vmatprep.subr.bf16.mxu0 0
    %4303 = vmatpush1.bf16.msra.mxu0 0
    %4304 = vmatprep.subr.bf16.mxu0 0
    %4305 = vmatpush1.bf16.msra.mxu0 0
    %4306 = vmatprep.subr.bf16.mxu0 0
    %4307 = vmatpush1.bf16.msra.mxu0 0
    %4308 = vmatprep.subr.bf16.mxu0 0
    %4309 = vmatpush1.bf16.msra.mxu0 0
    %4310 = vmatprep.subr.bf16.mxu0 0
    %4311 = vmatpush1.bf16.msra.mxu0 0
    %4312 = vmatprep.subr.bf16.mxu0 0
    %4313 = vmatpush1.bf16.msra.mxu0 0
    %4314 = vmatprep.subr.bf16.mxu0 0
    %4315 = vmatpush1.bf16.msra.mxu0 0
    %4316 = vmatprep.subr.bf16.mxu0 0
    %4317 = vmatpush1.bf16.msra.mxu0 0
    %4318 = vmatprep.subr.bf16.mxu0 0
    %4319 = vmatpush1.bf16.msra.mxu0 0
    %4320 = vmatprep.subr.bf16.mxu0 0
    %4321 = vmatpush1.bf16.msra.mxu0 0
    %4322 = vmatprep.subr.bf16.mxu0 0
    %4323 = vmatpush1.bf16.msra.mxu0 0
    %4324 = vmatprep.subr.bf16.mxu0 0
    %4325 = vmatpush1.bf16.msra.mxu0 0
    %4326 = vmatprep.subr.bf16.mxu0 0
    %4327 = vmatpush1.bf16.msra.mxu0 0
    %4328 = vmatprep.mubr.bf16.mxu0 0
    %4329 = vmatmul.mubr.bf16.gmra.mrb[0].mxu0 %v4294
    %v4330 = vpop.f32.mrb[0].mxu0
    %v4331 = vadd.f32 0.0, %v4330
    %v4332 = vpop.f32.mrb[0].mxu0
    %v4333 = vpop.f32.mrb[0].mxu0
    %v4334 = vadd.f32 0.0, %v4333
    %v4335 = vpop.f32.mrb[0].mxu0
    %4336 = vdwg.mxu0
    %4337 = vrot.lane.b32.xlu0 %v626, 80
    %v4338 = vpop.permute.xlu0 %4337
    %v4341 = vsel %vm632, %v4099, 0
    %4343 = vmatprep.subr.bf16.mxu0 0
    %4344 = vmatpush1.bf16.msra.mxu0 %v4338
    %4345 = vmatprep.subr.bf16.mxu0 0
    %4346 = vmatpush1.bf16.msra.mxu0 0
    %4347 = vmatprep.subr.bf16.mxu0 0
    %4348 = vmatpush1.bf16.msra.mxu0 0
    %4349 = vmatprep.subr.bf16.mxu0 0
    %4350 = vmatpush1.bf16.msra.mxu0 0
    %4351 = vmatprep.subr.bf16.mxu0 0
    %4352 = vmatpush1.bf16.msra.mxu0 0
    %4353 = vmatprep.subr.bf16.mxu0 0
    %4354 = vmatpush1.bf16.msra.mxu0 0
    %4355 = vmatprep.subr.bf16.mxu0 0
    %4356 = vmatpush1.bf16.msra.mxu0 0
    %4357 = vmatprep.subr.bf16.mxu0 0
    %4358 = vmatpush1.bf16.msra.mxu0 0
    %4359 = vmatprep.subr.bf16.mxu0 0
    %4360 = vmatpush1.bf16.msra.mxu0 0
    %4361 = vmatprep.subr.bf16.mxu0 0
    %4362 = vmatpush1.bf16.msra.mxu0 0
    %4363 = vmatprep.subr.bf16.mxu0 0
    %4364 = vmatpush1.bf16.msra.mxu0 0
    %4365 = vmatprep.subr.bf16.mxu0 0
    %4366 = vmatpush1.bf16.msra.mxu0 0
    %4367 = vmatprep.subr.bf16.mxu0 0
    %4368 = vmatpush1.bf16.msra.mxu0 0
    %4369 = vmatprep.subr.bf16.mxu0 0
    %4370 = vmatpush1.bf16.msra.mxu0 0
    %4371 = vmatprep.subr.bf16.mxu0 0
    %4372 = vmatpush1.bf16.msra.mxu0 0
    %4373 = vmatprep.subr.bf16.mxu0 0
    %4374 = vmatpush1.bf16.msra.mxu0 0
    %4375 = vmatprep.mubr.bf16.mxu0 0
    %4376 = vmatmul.mubr.bf16.gmra.mrb[0].mxu0 %v4341
    %v4377 = vpop.f32.mrb[0].mxu0
    %v4378 = vadd.f32 0.0, %v4377
    %v4379 = vpop.f32.mrb[0].mxu0
    %v4380 = vpop.f32.mrb[0].mxu0
    %v4381 = vadd.f32 0.0, %v4380
    %v4382 = vpop.f32.mrb[0].mxu0
    %4383 = vdwg.mxu0
    %4384 = vrot.lane.b32.xlu0 %v627, 80
    %v4385 = vpop.permute.xlu0 %4384
    %v4388 = vsel %vm632, %v4100, 0
    %4390 = vmatprep.subr.bf16.mxu0 0
    %4391 = vmatpush1.bf16.msra.mxu0 %v4385
    %4392 = vmatprep.subr.bf16.mxu0 0
    %4393 = vmatpush1.bf16.msra.mxu0 0
    %4394 = vmatprep.subr.bf16.mxu0 0
    %4395 = vmatpush1.bf16.msra.mxu0 0
    %4396 = vmatprep.subr.bf16.mxu0 0
    %4397 = vmatpush1.bf16.msra.mxu0 0
    %4398 = vmatprep.subr.bf16.mxu0 0
    %4399 = vmatpush1.bf16.msra.mxu0 0
    %4400 = vmatprep.subr.bf16.mxu0 0
    %4401 = vmatpush1.bf16.msra.mxu0 0
    %4402 = vmatprep.subr.bf16.mxu0 0
    %4403 = vmatpush1.bf16.msra.mxu0 0
    %4404 = vmatprep.subr.bf16.mxu0 0
    %4405 = vmatpush1.bf16.msra.mxu0 0
    %4406 = vmatprep.subr.bf16.mxu0 0
    %4407 = vmatpush1.bf16.msra.mxu0 0
    %4408 = vmatprep.subr.bf16.mxu0 0
    %4409 = vmatpush1.bf16.msra.mxu0 0
    %4410 = vmatprep.subr.bf16.mxu0 0
    %4411 = vmatpush1.bf16.msra.mxu0 0
    %4412 = vmatprep.subr.bf16.mxu0 0
    %4413 = vmatpush1.bf16.msra.mxu0 0
    %4414 = vmatprep.subr.bf16.mxu0 0
    %4415 = vmatpush1.bf16.msra.mxu0 0
    %4416 = vmatprep.subr.bf16.mxu0 0
    %4417 = vmatpush1.bf16.msra.mxu0 0
    %4418 = vmatprep.subr.bf16.mxu0 0
    %4419 = vmatpush1.bf16.msra.mxu0 0
    %4420 = vmatprep.subr.bf16.mxu0 0
    %4421 = vmatpush1.bf16.msra.mxu0 0
    %4422 = vmatprep.mubr.bf16.mxu0 0
    %4423 = vmatmul.mubr.bf16.gmra.mrb[0].mxu0 %v4388
    %v4424 = vpop.f32.mrb[0].mxu0
    %v4425 = vadd.f32 0.0, %v4424
    %v4426 = vpop.f32.mrb[0].mxu0
    %v4427 = vpop.f32.mrb[0].mxu0
    %v4428 = vadd.f32 0.0, %v4427
    %v4429 = vpop.f32.mrb[0].mxu0
    %4430 = vdwg.mxu0
    %4431 = vrot.lane.b32.xlu0 %v628, 80
    %v4432 = vpop.permute.xlu0 %4431
    %v4435 = vsel %vm632, %v4101, 0
    %4437 = vmatprep.subr.bf16.mxu0 0
    %4438 = vmatpush1.bf16.msra.mxu0 %v4432
    %4439 = vmatprep.subr.bf16.mxu0 0
    %4440 = vmatpush1.bf16.msra.mxu0 0
    %4441 = vmatprep.subr.bf16.mxu0 0
    %4442 = vmatpush1.bf16.msra.mxu0 0
    %4443 = vmatprep.subr.bf16.mxu0 0
    %4444 = vmatpush1.bf16.msra.mxu0 0
    %4445 = vmatprep.subr.bf16.mxu0 0
    %4446 = vmatpush1.bf16.msra.mxu0 0
    %4447 = vmatprep.subr.bf16.mxu0 0
    %4448 = vmatpush1.bf16.msra.mxu0 0
    %4449 = vmatprep.subr.bf16.mxu0 0
    %4450 = vmatpush1.bf16.msra.mxu0 0
    %4451 = vmatprep.subr.bf16.mxu0 0
    %4452 = vmatpush1.bf16.msra.mxu0 0
    %4453 = vmatprep.subr.bf16.mxu0 0
    %4454 = vmatpush1.bf16.msra.mxu0 0
    %4455 = vmatprep.subr.bf16.mxu0 0
    %4456 = vmatpush1.bf16.msra.mxu0 0
    %4457 = vmatprep.subr.bf16.mxu0 0
    %4458 = vmatpush1.bf16.msra.mxu0 0
    %4459 = vmatprep.subr.bf16.mxu0 0
    %4460 = vmatpush1.bf16.msra.mxu0 0
    %4461 = vmatprep.subr.bf16.mxu0 0
    %4462 = vmatpush1.bf16.msra.mxu0 0
    %4463 = vmatprep.subr.bf16.mxu0 0
    %4464 = vmatpush1.bf16.msra.mxu0 0
    %4465 = vmatprep.subr.bf16.mxu0 0
    %4466 = vmatpush1.bf16.msra.mxu0 0
    %4467 = vmatprep.subr.bf16.mxu0 0
    %4468 = vmatpush1.bf16.msra.mxu0 0
    %4469 = vmatprep.mubr.bf16.mxu0 0
    %4470 = vmatmul.mubr.bf16.gmra.mrb[0].mxu0 %v4435
    %v4471 = vpop.f32.mrb[0].mxu0
    %v4472 = vadd.f32 0.0, %v4471
    %v4473 = vpop.f32.mrb[0].mxu0
    %v4474 = vpop.f32.mrb[0].mxu0
    %v4475 = vadd.f32 0.0, %v4474
    %v4476 = vpop.f32.mrb[0].mxu0
    %4477 = vdwg.mxu0
    %4494 = vrot.lane.b32.xlu0 %v2200, 16
    %v4495 = vpop.permute.xlu0 %4494
    %4496 = vrot.lane.b32.xlu0 %v2203, 16
    %v4497 = vpop.permute.xlu0 %4496
    %4498 = vrot.lane.b32.xlu0 %v2248, 16
    %v4499 = vpop.permute.xlu0 %4498
    %4500 = vrot.lane.b32.xlu0 %v2251, 16
    %v4501 = vpop.permute.xlu0 %4500
    %4502 = vrot.lane.b32.xlu0 %v2296, 16
    %v4503 = vpop.permute.xlu0 %4502
    %4504 = vrot.lane.b32.xlu0 %v2299, 16
    %v4505 = vpop.permute.xlu0 %4504
    %4506 = vrot.lane.b32.xlu0 %v2344, 16
    %v4507 = vpop.permute.xlu0 %4506
    %4508 = vrot.lane.b32.xlu0 %v2347, 16
    %v4509 = vpop.permute.xlu0 %4508
    %4510 = vrot.lane.b32.xlu0 %v2392, 16
    %v4511 = vpop.permute.xlu0 %4510
    %4512 = vrot.lane.b32.xlu0 %v2395, 16
    %v4513 = vpop.permute.xlu0 %4512
    %4514 = vrot.lane.b32.xlu0 %v2440, 16
    %v4515 = vpop.permute.xlu0 %4514
    %4516 = vrot.lane.b32.xlu0 %v2443, 16
    %v4517 = vpop.permute.xlu0 %4516
    %4518 = vrot.lane.b32.xlu0 %v2488, 16
    %v4519 = vpop.permute.xlu0 %4518
    %4520 = vrot.lane.b32.xlu0 %v2491, 16
    %v4521 = vpop.permute.xlu0 %4520
    %4522 = vrot.lane.b32.xlu0 %v2536, 16
    %v4523 = vpop.permute.xlu0 %4522
    %4524 = vrot.lane.b32.xlu0 %v2539, 16
    %v4525 = vpop.permute.xlu0 %4524
    %4558 = vrot.lane.b32.xlu0 %v3175, 32
    %v4559 = vpop.permute.xlu0 %4558
    %4560 = vrot.lane.b32.xlu0 %v3178, 32
    %v4561 = vpop.permute.xlu0 %4560
    %4562 = vrot.lane.b32.xlu0 %v3222, 32
    %v4563 = vpop.permute.xlu0 %4562
    %4564 = vrot.lane.b32.xlu0 %v3225, 32
    %v4565 = vpop.permute.xlu0 %4564
    %4566 = vrot.lane.b32.xlu0 %v3269, 32
    %v4567 = vpop.permute.xlu0 %4566
    %4568 = vrot.lane.b32.xlu0 %v3272, 32
    %v4569 = vpop.permute.xlu0 %4568
    %4570 = vrot.lane.b32.xlu0 %v3316, 32
    %v4571 = vpop.permute.xlu0 %4570
    %4572 = vrot.lane.b32.xlu0 %v3319, 32
    %v4573 = vpop.permute.xlu0 %4572
    %4574 = vrot.lane.b32.xlu0 %v3363, 32
    %v4575 = vpop.permute.xlu0 %4574
    %4576 = vrot.lane.b32.xlu0 %v3366, 32
    %v4577 = vpop.permute.xlu0 %4576
    %4578 = vrot.lane.b32.xlu0 %v3410, 32
    %v4579 = vpop.permute.xlu0 %4578
    %4580 = vrot.lane.b32.xlu0 %v3413, 32
    %v4581 = vpop.permute.xlu0 %4580
    %4582 = vrot.lane.b32.xlu0 %v3457, 32
    %v4583 = vpop.permute.xlu0 %4582
    %4584 = vrot.lane.b32.xlu0 %v3460, 32
    %v4585 = vpop.permute.xlu0 %4584
    %4586 = vrot.lane.b32.xlu0 %v3504, 32
    %v4587 = vpop.permute.xlu0 %4586
    %4588 = vrot.lane.b32.xlu0 %v3507, 32
    %v4589 = vpop.permute.xlu0 %4588
    %4622 = vrot.lane.b32.xlu0 %v4143, 48
    %v4623 = vpop.permute.xlu0 %4622
    %4624 = vrot.lane.b32.xlu0 %v4146, 48
    %v4625 = vpop.permute.xlu0 %4624
    %4626 = vrot.lane.b32.xlu0 %v4190, 48
    %v4627 = vpop.permute.xlu0 %4626
    %4628 = vrot.lane.b32.xlu0 %v4193, 48
    %v4629 = vpop.permute.xlu0 %4628
    %4630 = vrot.lane.b32.xlu0 %v4237, 48
    %v4631 = vpop.permute.xlu0 %4630
    %4632 = vrot.lane.b32.xlu0 %v4240, 48
    %v4633 = vpop.permute.xlu0 %4632
    %4634 = vrot.lane.b32.xlu0 %v4284, 48
    %v4635 = vpop.permute.xlu0 %4634
    %4636 = vrot.lane.b32.xlu0 %v4287, 48
    %v4637 = vpop.permute.xlu0 %4636
    %4638 = vrot.lane.b32.xlu0 %v4331, 48
    %v4639 = vpop.permute.xlu0 %4638
    %4640 = vrot.lane.b32.xlu0 %v4334, 48
    %v4641 = vpop.permute.xlu0 %4640
    %4642 = vrot.lane.b32.xlu0 %v4378, 48
    %v4643 = vpop.permute.xlu0 %4642
    %4644 = vrot.lane.b32.xlu0 %v4381, 48
    %v4645 = vpop.permute.xlu0 %4644
    %4646 = vrot.lane.b32.xlu0 %v4425, 48
    %v4647 = vpop.permute.xlu0 %4646
    %4648 = vrot.lane.b32.xlu0 %v4428, 48
    %v4649 = vpop.permute.xlu0 %4648
    %4650 = vrot.lane.b32.xlu0 %v4472, 48
    %v4651 = vpop.permute.xlu0 %4650
    %4652 = vrot.lane.b32.xlu0 %v4475, 48
    %v4653 = vpop.permute.xlu0 %4652
    %v4670 = vsel %vm632, %v1252, %v4495
    %v4671 = vsel %vm632, %v1255, %v4497
    %v4672 = vsel %vm632, %v1296, %v4499
    %v4673 = vsel %vm632, %v1299, %v4501
    %v4674 = vsel %vm632, %v1340, %v4503
    %v4675 = vsel %vm632, %v1343, %v4505
    %v4676 = vsel %vm632, %v1384, %v4507
    %v4677 = vsel %vm632, %v1387, %v4509
    %v4678 = vsel %vm632, %v1428, %v4511
    %v4679 = vsel %vm632, %v1431, %v4513
    %v4680 = vsel %vm632, %v1472, %v4515
    %v4681 = vsel %vm632, %v1475, %v4517
    %v4682 = vsel %vm632, %v1516, %v4519
    %v4683 = vsel %vm632, %v1519, %v4521
    %v4684 = vsel %vm632, %v1560, %v4523
    %v4685 = vsel %vm632, %v1563, %v4525
    %vm4686 = vcmask 261120
    %v4687 = vsel %vm4686, %v4670, %v4559
    %v4688 = vsel %vm4686, %v4671, %v4561
    %v4689 = vsel %vm4686, %v4672, %v4563
    %v4690 = vsel %vm4686, %v4673, %v4565
    %v4691 = vsel %vm4686, %v4674, %v4567
    %v4692 = vsel %vm4686, %v4675, %v4569
    %v4693 = vsel %vm4686, %v4676, %v4571
    %v4694 = vsel %vm4686, %v4677, %v4573
    %v4695 = vsel %vm4686, %v4678, %v4575
    %v4696 = vsel %vm4686, %v4679, %v4577
    %v4697 = vsel %vm4686, %v4680, %v4579
    %v4698 = vsel %vm4686, %v4681, %v4581
    %v4699 = vsel %vm4686, %v4682, %v4583
    %v4700 = vsel %vm4686, %v4683, %v4585
    %v4701 = vsel %vm4686, %v4684, %v4587
    %v4702 = vsel %vm4686, %v4685, %v4589
    %vm4703 = vcmask 392192
    %v4704 = vsel %vm4703, %v4687, %v4623
    %v4705 = vsel %vm4703, %v4688, %v4625
    %v4706 = vsel %vm4703, %v4689, %v4627
    %v4707 = vsel %vm4703, %v4690, %v4629
    %v4708 = vsel %vm4703, %v4691, %v4631
    %v4709 = vsel %vm4703, %v4692, %v4633
    %v4710 = vsel %vm4703, %v4693, %v4635
    %v4711 = vsel %vm4703, %v4694, %v4637
    %v4712 = vsel %vm4703, %v4695, %v4639
    %v4713 = vsel %vm4703, %v4696, %v4641
    %v4714 = vsel %vm4703, %v4697, %v4643
    %v4715 = vsel %vm4703, %v4698, %v4645
    %v4716 = vsel %vm4703, %v4699, %v4647
    %v4717 = vsel %vm4703, %v4700, %v4649
    %v4718 = vsel %vm4703, %v4701, %v4651
    %v4719 = vsel %vm4703, %v4702, %v4653
    %v4720 = vpack.c.bf16 %v4705, %v4704
    %v4721 = vpack.c.bf16 %v4707, %v4706
    %v4722 = vpack.c.bf16 %v4709, %v4708
    %v4723 = vpack.c.bf16 %v4711, %v4710
    %v4724 = vpack.c.bf16 %v4713, %v4712
    %v4725 = vpack.c.bf16 %v4715, %v4714
    %v4726 = vpack.c.bf16 %v4717, %v4716
    %v4727 = vpack.c.bf16 %v4719, %v4718
    %v4728 = vlaneseq
    %v4729 = vshrl.u32 %v4728, 7
    %v4730 = vsub.s32 0, %v4729
    %v4731 = vrot.slane %v389, %v4730
    %v4740 = vunpack.c.l.b16 %v363
    %v4741 = vunpack.c.l.b16 %v364
    %v4742 = vunpack.c.l.b16 %v365
    %v4743 = vunpack.c.l.b16 %v366
    %v4744 = vunpack.c.l.b16 %v367
    %v4745 = vunpack.c.l.b16 %v368
    %v4746 = vunpack.c.l.b16 %v369
    %v4747 = vunpack.c.l.b16 %v370
    %v4748 = vpack.c.b16 %v4741, %v4740
    %v4749 = vpack.c.b16 %v4743, %v4742
    %v4750 = vpack.c.b16 %v4745, %v4744
    %v4751 = vpack.c.b16 %v4747, %v4746
    %v4757 = vsel %vm177, %v4720, 0
    %v4760 = vsel %vm177, %v4721, 0
    %v4763 = vsel %vm177, %v4722, 0
    %v4766 = vsel %vm177, %v4723, 0
    %v4769 = vsel %vm177, %v4724, 0
    %v4772 = vsel %vm177, %v4725, 0
    %v4775 = vsel %vm177, %v4726, 0
    %v4778 = vsel %vm177, %v4727, 0
    %4780 = vmatprep.subr.bf16.mxu0 0
    %4781 = vmatpush1.bf16.msra.mxu0 %v4748
    %4782 = vmatprep.subr.bf16.mxu0 0
    %4783 = vmatpush1.bf16.msra.mxu0 %v4749
    %4784 = vmatprep.subr.bf16.mxu0 0
    %4785 = vmatpush1.bf16.msra.mxu0 %v4750
    %4786 = vmatprep.subr.bf16.mxu0 0
    %4787 = vmatpush1.bf16.msra.mxu0 %v4751
    %4788 = vmatprep.subr.bf16.mxu0 0
    %4789 = vmatpush1.bf16.msra.mxu0 0
    %4790 = vmatprep.subr.bf16.mxu0 0
    %4791 = vmatpush1.bf16.msra.mxu0 0
    %4792 = vmatprep.subr.bf16.mxu0 0
    %4793 = vmatpush1.bf16.msra.mxu0 0
    %4794 = vmatprep.subr.bf16.mxu0 0
    %4795 = vmatpush1.bf16.msra.mxu0 0
    %4796 = vmatprep.subr.bf16.mxu0 0
    %4797 = vmatpush1.bf16.msra.mxu0 0
    %4798 = vmatprep.subr.bf16.mxu0 0
    %4799 = vmatpush1.bf16.msra.mxu0 0
    %4800 = vmatprep.subr.bf16.mxu0 0
    %4801 = vmatpush1.bf16.msra.mxu0 0
    %4802 = vmatprep.subr.bf16.mxu0 0
    %4803 = vmatpush1.bf16.msra.mxu0 0
    %4804 = vmatprep.subr.bf16.mxu0 0
    %4805 = vmatpush1.bf16.msra.mxu0 0
    %4806 = vmatprep.subr.bf16.mxu0 0
    %4807 = vmatpush1.bf16.msra.mxu0 0
    %4808 = vmatprep.subr.bf16.mxu0 0
    %4809 = vmatpush1.bf16.msra.mxu0 0
    %4810 = vmatprep.subr.bf16.mxu0 0
    %4811 = vmatpush1.bf16.msra.mxu0 0
    %4812 = vmatprep.mubr.bf16.mxu0 0
    %4813 = vmatmul.mubr.bf16.gmra.mrb[0].mxu0 %v4757
    %v4814 = vpop.f32.mrb[0].mxu0
    %v4815 = vadd.f32 %v4731, %v4814
    %v4816 = vpop.f32.mrb[0].mxu0
    %v4817 = vpop.f32.mrb[0].mxu0
    %v4818 = vadd.f32 %v4731, %v4817
    %v4819 = vpop.f32.mrb[0].mxu0
    %4820 = vmatprep.mubr.bf16.mxu0 0
    %4821 = vmatmul.mubr.bf16.gmra.mrb[0].mxu0 %v4760
    %v4822 = vpop.f32.mrb[0].mxu0
    %v4823 = vadd.f32 %v4731, %v4822
    %v4824 = vpop.f32.mrb[0].mxu0
    %v4825 = vpop.f32.mrb[0].mxu0
    %v4826 = vadd.f32 %v4731, %v4825
    %v4827 = vpop.f32.mrb[0].mxu0
    %4828 = vmatprep.mubr.bf16.mxu0 0
    %4829 = vmatmul.mubr.bf16.gmra.mrb[0].mxu0 %v4763
    %v4830 = vpop.f32.mrb[0].mxu0
    %v4831 = vadd.f32 %v4731, %v4830
    %v4832 = vpop.f32.mrb[0].mxu0
    %v4833 = vpop.f32.mrb[0].mxu0
    %v4834 = vadd.f32 %v4731, %v4833
    %v4835 = vpop.f32.mrb[0].mxu0
    %4836 = vmatprep.mubr.bf16.mxu0 0
    %4837 = vmatmul.mubr.bf16.gmra.mrb[0].mxu0 %v4766
    %v4838 = vpop.f32.mrb[0].mxu0
    %v4839 = vadd.f32 %v4731, %v4838
    %v4840 = vpop.f32.mrb[0].mxu0
    %v4841 = vpop.f32.mrb[0].mxu0
    %v4842 = vadd.f32 %v4731, %v4841
    %v4843 = vpop.f32.mrb[0].mxu0
    %4844 = vmatprep.mubr.bf16.mxu0 0
    %4845 = vmatmul.mubr.bf16.gmra.mrb[0].mxu0 %v4769
    %v4846 = vpop.f32.mrb[0].mxu0
    %v4847 = vadd.f32 %v4731, %v4846
    %v4848 = vpop.f32.mrb[0].mxu0
    %v4849 = vpop.f32.mrb[0].mxu0
    %v4850 = vadd.f32 %v4731, %v4849
    %v4851 = vpop.f32.mrb[0].mxu0
    %4852 = vmatprep.mubr.bf16.mxu0 0
    %4853 = vmatmul.mubr.bf16.gmra.mrb[0].mxu0 %v4772
    %v4854 = vpop.f32.mrb[0].mxu0
    %v4855 = vadd.f32 %v4731, %v4854
    %v4856 = vpop.f32.mrb[0].mxu0
    %v4857 = vpop.f32.mrb[0].mxu0
    %v4858 = vadd.f32 %v4731, %v4857
    %v4859 = vpop.f32.mrb[0].mxu0
    %4860 = vmatprep.mubr.bf16.mxu0 0
    %4861 = vmatmul.mubr.bf16.gmra.mrb[0].mxu0 %v4775
    %v4862 = vpop.f32.mrb[0].mxu0
    %v4863 = vadd.f32 %v4731, %v4862
    %v4864 = vpop.f32.mrb[0].mxu0
    %v4865 = vpop.f32.mrb[0].mxu0
    %v4866 = vadd.f32 %v4731, %v4865
    %v4867 = vpop.f32.mrb[0].mxu0
    %4868 = vmatprep.mubr.bf16.mxu0 0
    %4869 = vmatmul.mubr.bf16.gmra.mrb[0].mxu0 %v4778
    %v4870 = vpop.f32.mrb[0].mxu0
    %v4871 = vadd.f32 %v4731, %v4870
    %v4872 = vpop.f32.mrb[0].mxu0
    %v4873 = vpop.f32.mrb[0].mxu0
    %v4874 = vadd.f32 %v4731, %v4873
    %v4875 = vpop.f32.mrb[0].mxu0
    %4876 = vdwg.mxu0
    %v4877 = vadd.f32 %v335, %v4815
    %v4878 = vadd.f32 %v336, %v4818
    %v4879 = vadd.f32 %v337, %v4823
    %v4880 = vadd.f32 %v338, %v4826
    %v4881 = vadd.f32 %v339, %v4831
    %v4882 = vadd.f32 %v340, %v4834
    %v4883 = vadd.f32 %v341, %v4839
    %v4884 = vadd.f32 %v342, %v4842
    %v4885 = vadd.f32 %v343, %v4847
    %v4886 = vadd.f32 %v344, %v4850
    %v4887 = vadd.f32 %v345, %v4855
    %v4888 = vadd.f32 %v346, %v4858
    %v4889 = vadd.f32 %v347, %v4863
    %v4890 = vadd.f32 %v348, %v4866
    %v4891 = vadd.f32 %v349, %v4871
    %v4892 = vadd.f32 %v350, %v4874
    %v4893 = vsel %vm177, %v4877, 0.0
    %4894 = vadd.xlane.f32.xlu0 %v4893
    %v4895 = vpop.xlane.xlu0 %4894
    %v4896 = vsel %vm177, %v4878, 0.0
    %4897 = vadd.xlane.f32.xlu0 %v4896
    %v4898 = vpop.xlane.xlu0 %4897
    %v4899 = vsel %vm177, %v4879, 0.0
    %4900 = vadd.xlane.f32.xlu0 %v4899
    %v4901 = vpop.xlane.xlu0 %4900
    %v4902 = vsel %vm177, %v4880, 0.0
    %4903 = vadd.xlane.f32.xlu0 %v4902
    %v4904 = vpop.xlane.xlu0 %4903
    %v4905 = vsel %vm177, %v4881, 0.0
    %4906 = vadd.xlane.f32.xlu0 %v4905
    %v4907 = vpop.xlane.xlu0 %4906
    %v4908 = vsel %vm177, %v4882, 0.0
    %4909 = vadd.xlane.f32.xlu0 %v4908
    %v4910 = vpop.xlane.xlu0 %4909
    %v4911 = vsel %vm177, %v4883, 0.0
    %4912 = vadd.xlane.f32.xlu0 %v4911
    %v4913 = vpop.xlane.xlu0 %4912
    %v4914 = vsel %vm177, %v4884, 0.0
    %4915 = vadd.xlane.f32.xlu0 %v4914
    %v4916 = vpop.xlane.xlu0 %4915
    %v4917 = vsel %vm177, %v4885, 0.0
    %4918 = vadd.xlane.f32.xlu0 %v4917
    %v4919 = vpop.xlane.xlu0 %4918
    %v4920 = vsel %vm177, %v4886, 0.0
    %4921 = vadd.xlane.f32.xlu0 %v4920
    %v4922 = vpop.xlane.xlu0 %4921
    %v4923 = vsel %vm177, %v4887, 0.0
    %4924 = vadd.xlane.f32.xlu0 %v4923
    %v4925 = vpop.xlane.xlu0 %4924
    %v4926 = vsel %vm177, %v4888, 0.0
    %4927 = vadd.xlane.f32.xlu0 %v4926
    %v4928 = vpop.xlane.xlu0 %4927
    %v4929 = vsel %vm177, %v4889, 0.0
    %4930 = vadd.xlane.f32.xlu0 %v4929
    %v4931 = vpop.xlane.xlu0 %4930
    %v4932 = vsel %vm177, %v4890, 0.0
    %4933 = vadd.xlane.f32.xlu0 %v4932
    %v4934 = vpop.xlane.xlu0 %4933
    %v4935 = vsel %vm177, %v4891, 0.0
    %4936 = vadd.xlane.f32.xlu0 %v4935
    %v4937 = vpop.xlane.xlu0 %4936
    %v4938 = vsel %vm177, %v4892, 0.0
    %4939 = vadd.xlane.f32.xlu0 %v4938
    %v4940 = vpop.xlane.xlu0 %4939
    %v4941 = vrcp.pop 64.0
    %v4942 = vmul.f32 %v4895, %v4941
    %v4943 = vmul.f32 %v4898, %v4941
    %v4944 = vmul.f32 %v4901, %v4941
    %v4945 = vmul.f32 %v4904, %v4941
    %v4946 = vmul.f32 %v4907, %v4941
    %v4947 = vmul.f32 %v4910, %v4941
    %v4948 = vmul.f32 %v4913, %v4941
    %v4949 = vmul.f32 %v4916, %v4941
    %v4950 = vmul.f32 %v4919, %v4941
    %v4951 = vmul.f32 %v4922, %v4941
    %v4952 = vmul.f32 %v4925, %v4941
    %v4953 = vmul.f32 %v4928, %v4941
    %v4954 = vmul.f32 %v4931, %v4941
    %v4955 = vmul.f32 %v4934, %v4941
    %v4956 = vmul.f32 %v4937, %v4941
    %v4957 = vmul.f32 %v4940, %v4941
    %v4958 = vsub.f32 %v4877, %v4942
    %v4959 = vsub.f32 %v4878, %v4943
    %v4960 = vsub.f32 %v4879, %v4944
    %v4961 = vsub.f32 %v4880, %v4945
    %v4962 = vsub.f32 %v4881, %v4946
    %v4963 = vsub.f32 %v4882, %v4947
    %v4964 = vsub.f32 %v4883, %v4948
    %v4965 = vsub.f32 %v4884, %v4949
    %v4966 = vsub.f32 %v4885, %v4950
    %v4967 = vsub.f32 %v4886, %v4951
    %v4968 = vsub.f32 %v4887, %v4952
    %v4969 = vsub.f32 %v4888, %v4953
    %v4970 = vsub.f32 %v4889, %v4954
    %v4971 = vsub.f32 %v4890, %v4955
    %v4972 = vsub.f32 %v4891, %v4956
    %v4973 = vsub.f32 %v4892, %v4957
    %v4974 = vmul.f32 %v4958, %v4958
    %v4975 = vmul.f32 %v4959, %v4959
    %v4976 = vmul.f32 %v4960, %v4960
    %v4977 = vmul.f32 %v4961, %v4961
    %v4978 = vmul.f32 %v4962, %v4962
    %v4979 = vmul.f32 %v4963, %v4963
    %v4980 = vmul.f32 %v4964, %v4964
    %v4981 = vmul.f32 %v4965, %v4965
    %v4982 = vmul.f32 %v4966, %v4966
    %v4983 = vmul.f32 %v4967, %v4967
    %v4984 = vmul.f32 %v4968, %v4968
    %v4985 = vmul.f32 %v4969, %v4969
    %v4986 = vmul.f32 %v4970, %v4970
    %v4987 = vmul.f32 %v4971, %v4971
    %v4988 = vmul.f32 %v4972, %v4972
    %v4989 = vmul.f32 %v4973, %v4973
    %v4990 = vsel %vm177, %v4974, 0.0
    %4991 = vadd.xlane.f32.xlu0 %v4990
    %v4992 = vpop.xlane.xlu0 %4991
    %v4993 = vsel %vm177, %v4975, 0.0
    %4994 = vadd.xlane.f32.xlu0 %v4993
    %v4995 = vpop.xlane.xlu0 %4994
    %v4996 = vsel %vm177, %v4976, 0.0
    %4997 = vadd.xlane.f32.xlu0 %v4996
    %v4998 = vpop.xlane.xlu0 %4997
    %v4999 = vsel %vm177, %v4977, 0.0
    %5000 = vadd.xlane.f32.xlu0 %v4999
    %v5001 = vpop.xlane.xlu0 %5000
    %v5002 = vsel %vm177, %v4978, 0.0
    %5003 = vadd.xlane.f32.xlu0 %v5002
    %v5004 = vpop.xlane.xlu0 %5003
    %v5005 = vsel %vm177, %v4979, 0.0
    %5006 = vadd.xlane.f32.xlu0 %v5005
    %v5007 = vpop.xlane.xlu0 %5006
    %v5008 = vsel %vm177, %v4980, 0.0
    %5009 = vadd.xlane.f32.xlu0 %v5008
    %v5010 = vpop.xlane.xlu0 %5009
    %v5011 = vsel %vm177, %v4981, 0.0
    %5012 = vadd.xlane.f32.xlu0 %v5011
    %v5013 = vpop.xlane.xlu0 %5012
    %v5014 = vsel %vm177, %v4982, 0.0
    %5015 = vadd.xlane.f32.xlu0 %v5014
    %v5016 = vpop.xlane.xlu0 %5015
    %v5017 = vsel %vm177, %v4983, 0.0
    %5018 = vadd.xlane.f32.xlu0 %v5017
    %v5019 = vpop.xlane.xlu0 %5018
    %v5020 = vsel %vm177, %v4984, 0.0
    %5021 = vadd.xlane.f32.xlu0 %v5020
    %v5022 = vpop.xlane.xlu0 %5021
    %v5023 = vsel %vm177, %v4985, 0.0
    %5024 = vadd.xlane.f32.xlu0 %v5023
    %v5025 = vpop.xlane.xlu0 %5024
    %v5026 = vsel %vm177, %v4986, 0.0
    %5027 = vadd.xlane.f32.xlu0 %v5026
    %v5028 = vpop.xlane.xlu0 %5027
    %v5029 = vsel %vm177, %v4987, 0.0
    %5030 = vadd.xlane.f32.xlu0 %v5029
    %v5031 = vpop.xlane.xlu0 %5030
    %v5032 = vsel %vm177, %v4988, 0.0
    %5033 = vadd.xlane.f32.xlu0 %v5032
    %v5034 = vpop.xlane.xlu0 %5033
    %v5035 = vsel %vm177, %v4989, 0.0
    %5036 = vadd.xlane.f32.xlu0 %v5035
    %v5037 = vpop.xlane.xlu0 %5036
    %v5038 = vmul.f32 %v4992, %v4941
    %v5039 = vmul.f32 %v4995, %v4941
    %v5040 = vmul.f32 %v4998, %v4941
    %v5041 = vmul.f32 %v5001, %v4941
    %v5042 = vmul.f32 %v5004, %v4941
    %v5043 = vmul.f32 %v5007, %v4941
    %v5044 = vmul.f32 %v5010, %v4941
    %v5045 = vmul.f32 %v5013, %v4941
    %v5046 = vmul.f32 %v5016, %v4941
    %v5047 = vmul.f32 %v5019, %v4941
    %v5048 = vmul.f32 %v5022, %v4941
    %v5049 = vmul.f32 %v5025, %v4941
    %v5050 = vmul.f32 %v5028, %v4941
    %v5051 = vmul.f32 %v5031, %v4941
    %v5052 = vmul.f32 %v5034, %v4941
    %v5053 = vmul.f32 %v5037, %v4941
    %v5054 = vadd.f32 %v5038, 1e-05
    %v5055 = vadd.f32 %v5039, 1e-05
    %v5056 = vadd.f32 %v5040, 1e-05
    %v5057 = vadd.f32 %v5041, 1e-05
    %v5058 = vadd.f32 %v5042, 1e-05
    %v5059 = vadd.f32 %v5043, 1e-05
    %v5060 = vadd.f32 %v5044, 1e-05
    %v5061 = vadd.f32 %v5045, 1e-05
    %v5062 = vadd.f32 %v5046, 1e-05
    %v5063 = vadd.f32 %v5047, 1e-05
    %v5064 = vadd.f32 %v5048, 1e-05
    %v5065 = vadd.f32 %v5049, 1e-05
    %v5066 = vadd.f32 %v5050, 1e-05
    %v5067 = vadd.f32 %v5051, 1e-05
    %v5068 = vadd.f32 %v5052, 1e-05
    %v5069 = vadd.f32 %v5053, 1e-05
    %v5070 = vrsqrt.pop %v5054
    %v5071 = vrsqrt.pop %v5055
    %v5072 = vrsqrt.pop %v5056
    %v5073 = vrsqrt.pop %v5057
    %v5074 = vrsqrt.pop %v5058
    %v5075 = vrsqrt.pop %v5059
    %v5076 = vrsqrt.pop %v5060
    %v5077 = vrsqrt.pop %v5061
    %v5078 = vrsqrt.pop %v5062
    %v5079 = vrsqrt.pop %v5063
    %v5080 = vrsqrt.pop %v5064
    %v5081 = vrsqrt.pop %v5065
    %v5082 = vrsqrt.pop %v5066
    %v5083 = vrsqrt.pop %v5067
    %v5084 = vrsqrt.pop %v5068
    %v5085 = vrsqrt.pop %v5069
    %v5086 = vmul.f32 %v4958, %v5070
    %v5087 = vmul.f32 %v4959, %v5071
    %v5088 = vmul.f32 %v4960, %v5072
    %v5089 = vmul.f32 %v4961, %v5073
    %v5090 = vmul.f32 %v4962, %v5074
    %v5091 = vmul.f32 %v4963, %v5075
    %v5092 = vmul.f32 %v4964, %v5076
    %v5093 = vmul.f32 %v4965, %v5077
    %v5094 = vmul.f32 %v4966, %v5078
    %v5095 = vmul.f32 %v4967, %v5079
    %v5096 = vmul.f32 %v4968, %v5080
    %v5097 = vmul.f32 %v4969, %v5081
    %v5098 = vmul.f32 %v4970, %v5082
    %v5099 = vmul.f32 %v4971, %v5083
    %v5100 = vmul.f32 %v4972, %v5084
    %v5101 = vmul.f32 %v4973, %v5085
    %v5102 = vlaneseq
    %v5103 = vshrl.u32 %v5102, 7
    %v5104 = vsub.s32 0, %v5103
    %v5105 = vrot.slane %v392, %v5104
    %v5106 = vmul.f32 %v5086, %v5105
    %v5107 = vmul.f32 %v5087, %v5105
    %v5108 = vmul.f32 %v5088, %v5105
    %v5109 = vmul.f32 %v5089, %v5105
    %v5110 = vmul.f32 %v5090, %v5105
    %v5111 = vmul.f32 %v5091, %v5105
    %v5112 = vmul.f32 %v5092, %v5105
    %v5113 = vmul.f32 %v5093, %v5105
    %v5114 = vmul.f32 %v5094, %v5105
    %v5115 = vmul.f32 %v5095, %v5105
    %v5116 = vmul.f32 %v5096, %v5105
    %v5117 = vmul.f32 %v5097, %v5105
    %v5118 = vmul.f32 %v5098, %v5105
    %v5119 = vmul.f32 %v5099, %v5105
    %v5120 = vmul.f32 %v5100, %v5105
    %v5121 = vmul.f32 %v5101, %v5105
    %v5122 = vlaneseq
    %v5123 = vshrl.u32 %v5122, 7
    %v5124 = vsub.s32 0, %v5123
    %v5125 = vrot.slane %v393, %v5124
    %v5126 = vadd.f32 %v5106, %v5125
    %v5127 = vadd.f32 %v5107, %v5125
    %v5128 = vadd.f32 %v5108, %v5125
    %v5129 = vadd.f32 %v5109, %v5125
    %v5130 = vadd.f32 %v5110, %v5125
    %v5131 = vadd.f32 %v5111, %v5125
    %v5132 = vadd.f32 %v5112, %v5125
    %v5133 = vadd.f32 %v5113, %v5125
    %v5134 = vadd.f32 %v5114, %v5125
    %v5135 = vadd.f32 %v5115, %v5125
    %v5136 = vadd.f32 %v5116, %v5125
    %v5137 = vadd.f32 %v5117, %v5125
    %v5138 = vadd.f32 %v5118, %v5125
    %v5139 = vadd.f32 %v5119, %v5125
    %v5140 = vadd.f32 %v5120, %v5125
    %v5141 = vadd.f32 %v5121, %v5125
    %v5142 = vpack.c.bf16 %v5127, %v5126
    %v5143 = vpack.c.bf16 %v5129, %v5128
    %v5144 = vpack.c.bf16 %v5131, %v5130
    %v5145 = vpack.c.bf16 %v5133, %v5132
    %v5146 = vpack.c.bf16 %v5135, %v5134
    %v5147 = vpack.c.bf16 %v5137, %v5136
    %v5148 = vpack.c.bf16 %v5139, %v5138
    %v5149 = vpack.c.bf16 %v5141, %v5140
    %v5150 = vlaneseq
    %v5151 = vshrl.u32 %v5150, 7
    %v5152 = vsub.s32 0, %v5151
    %v5153 = vrot.slane %v390, %v5152
    %v5162 = vunpack.c.l.b16 %v372
    %v5163 = vunpack.c.l.b16 %v373
    %v5164 = vunpack.c.l.b16 %v374
    %v5165 = vunpack.c.l.b16 %v375
    %v5166 = vunpack.c.l.b16 %v376
    %v5167 = vunpack.c.l.b16 %v377
    %v5168 = vunpack.c.l.b16 %v378
    %v5169 = vunpack.c.l.b16 %v379
    %v5170 = vpack.c.b16 %v5163, %v5162
    %v5171 = vpack.c.b16 %v5165, %v5164
    %v5172 = vpack.c.b16 %v5167, %v5166
    %v5173 = vpack.c.b16 %v5169, %v5168
    %v5179 = vsel %vm177, %v5142, 0
    %v5182 = vsel %vm177, %v5143, 0
    %v5185 = vsel %vm177, %v5144, 0
    %v5188 = vsel %vm177, %v5145, 0
    %v5191 = vsel %vm177, %v5146, 0
    %v5194 = vsel %vm177, %v5147, 0
    %v5197 = vsel %vm177, %v5148, 0
    %v5200 = vsel %vm177, %v5149, 0
    %5202 = vmatprep.subr.bf16.mxu0 0
    %5203 = vmatpush1.bf16.msra.mxu0 %v5170
    %5204 = vmatprep.subr.bf16.mxu0 0
    %5205 = vmatpush1.bf16.msra.mxu0 %v5171
    %5206 = vmatprep.subr.bf16.mxu0 0
    %5207 = vmatpush1.bf16.msra.mxu0 %v5172
    %5208 = vmatprep.subr.bf16.mxu0 0
    %5209 = vmatpush1.bf16.msra.mxu0 %v5173
    %5210 = vmatprep.subr.bf16.mxu0 0
    %5211 = vmatpush1.bf16.msra.mxu0 0
    %5212 = vmatprep.subr.bf16.mxu0 0
    %5213 = vmatpush1.bf16.msra.mxu0 0
    %5214 = vmatprep.subr.bf16.mxu0 0
    %5215 = vmatpush1.bf16.msra.mxu0 0
    %5216 = vmatprep.subr.bf16.mxu0 0
    %5217 = vmatpush1.bf16.msra.mxu0 0
    %5218 = vmatprep.subr.bf16.mxu0 0
    %5219 = vmatpush1.bf16.msra.mxu0 0
    %5220 = vmatprep.subr.bf16.mxu0 0
    %5221 = vmatpush1.bf16.msra.mxu0 0
    %5222 = vmatprep.subr.bf16.mxu0 0
    %5223 = vmatpush1.bf16.msra.mxu0 0
    %5224 = vmatprep.subr.bf16.mxu0 0
    %5225 = vmatpush1.bf16.msra.mxu0 0
    %5226 = vmatprep.subr.bf16.mxu0 0
    %5227 = vmatpush1.bf16.msra.mxu0 0
    %5228 = vmatprep.subr.bf16.mxu0 0
    %5229 = vmatpush1.bf16.msra.mxu0 0
    %5230 = vmatprep.subr.bf16.mxu0 0
    %5231 = vmatpush1.bf16.msra.mxu0 0
    %5232 = vmatprep.subr.bf16.mxu0 0
    %5233 = vmatpush1.bf16.msra.mxu0 0
    %5234 = vmatprep.mubr.bf16.mxu0 0
    %5235 = vmatmul.mubr.bf16.gmra.mrb[0].mxu0 %v5179
    %v5236 = vpop.f32.mrb[0].mxu0
    %v5237 = vadd.f32 %v5153, %v5236
    %v5238 = vpop.f32.mrb[0].mxu0
    %v5239 = vpop.f32.mrb[0].mxu0
    %v5240 = vadd.f32 %v5153, %v5239
    %v5241 = vpop.f32.mrb[0].mxu0
    %5242 = vmatprep.mubr.bf16.mxu0 0
    %5243 = vmatmul.mubr.bf16.gmra.mrb[0].mxu0 %v5182
    %v5244 = vpop.f32.mrb[0].mxu0
    %v5245 = vadd.f32 %v5153, %v5244
    %v5246 = vpop.f32.mrb[0].mxu0
    %v5247 = vpop.f32.mrb[0].mxu0
    %v5248 = vadd.f32 %v5153, %v5247
    %v5249 = vpop.f32.mrb[0].mxu0
    %5250 = vmatprep.mubr.bf16.mxu0 0
    %5251 = vmatmul.mubr.bf16.gmra.mrb[0].mxu0 %v5185
    %v5252 = vpop.f32.mrb[0].mxu0
    %v5253 = vadd.f32 %v5153, %v5252
    %v5254 = vpop.f32.mrb[0].mxu0
    %v5255 = vpop.f32.mrb[0].mxu0
    %v5256 = vadd.f32 %v5153, %v5255
    %v5257 = vpop.f32.mrb[0].mxu0
    %5258 = vmatprep.mubr.bf16.mxu0 0
    %5259 = vmatmul.mubr.bf16.gmra.mrb[0].mxu0 %v5188
    %v5260 = vpop.f32.mrb[0].mxu0
    %v5261 = vadd.f32 %v5153, %v5260
    %v5262 = vpop.f32.mrb[0].mxu0
    %v5263 = vpop.f32.mrb[0].mxu0
    %v5264 = vadd.f32 %v5153, %v5263
    %v5265 = vpop.f32.mrb[0].mxu0
    %5266 = vmatprep.mubr.bf16.mxu0 0
    %5267 = vmatmul.mubr.bf16.gmra.mrb[0].mxu0 %v5191
    %v5268 = vpop.f32.mrb[0].mxu0
    %v5269 = vadd.f32 %v5153, %v5268
    %v5270 = vpop.f32.mrb[0].mxu0
    %v5271 = vpop.f32.mrb[0].mxu0
    %v5272 = vadd.f32 %v5153, %v5271
    %v5273 = vpop.f32.mrb[0].mxu0
    %5274 = vmatprep.mubr.bf16.mxu0 0
    %5275 = vmatmul.mubr.bf16.gmra.mrb[0].mxu0 %v5194
    %v5276 = vpop.f32.mrb[0].mxu0
    %v5277 = vadd.f32 %v5153, %v5276
    %v5278 = vpop.f32.mrb[0].mxu0
    %v5279 = vpop.f32.mrb[0].mxu0
    %v5280 = vadd.f32 %v5153, %v5279
    %v5281 = vpop.f32.mrb[0].mxu0
    %5282 = vmatprep.mubr.bf16.mxu0 0
    %5283 = vmatmul.mubr.bf16.gmra.mrb[0].mxu0 %v5197
    %v5284 = vpop.f32.mrb[0].mxu0
    %v5285 = vadd.f32 %v5153, %v5284
    %v5286 = vpop.f32.mrb[0].mxu0
    %v5287 = vpop.f32.mrb[0].mxu0
    %v5288 = vadd.f32 %v5153, %v5287
    %v5289 = vpop.f32.mrb[0].mxu0
    %5290 = vmatprep.mubr.bf16.mxu0 0
    %5291 = vmatmul.mubr.bf16.gmra.mrb[0].mxu0 %v5200
    %v5292 = vpop.f32.mrb[0].mxu0
    %v5293 = vadd.f32 %v5153, %v5292
    %v5294 = vpop.f32.mrb[0].mxu0
    %v5295 = vpop.f32.mrb[0].mxu0
    %v5296 = vadd.f32 %v5153, %v5295
    %v5297 = vpop.f32.mrb[0].mxu0
    %5298 = vdwg.mxu0
    %v5299 = vmax.f32 %v5237, 0.0
    %v5300 = vmax.f32 %v5240, 0.0
    %v5301 = vmax.f32 %v5245, 0.0
    %v5302 = vmax.f32 %v5248, 0.0
    %v5303 = vmax.f32 %v5253, 0.0
    %v5304 = vmax.f32 %v5256, 0.0
    %v5305 = vmax.f32 %v5261, 0.0
    %v5306 = vmax.f32 %v5264, 0.0
    %v5307 = vmax.f32 %v5269, 0.0
    %v5308 = vmax.f32 %v5272, 0.0
    %v5309 = vmax.f32 %v5277, 0.0
    %v5310 = vmax.f32 %v5280, 0.0
    %v5311 = vmax.f32 %v5285, 0.0
    %v5312 = vmax.f32 %v5288, 0.0
    %v5313 = vmax.f32 %v5293, 0.0
    %v5314 = vmax.f32 %v5296, 0.0
    %v5315 = vpack.c.bf16 %v5300, %v5299
    %v5316 = vpack.c.bf16 %v5302, %v5301
    %v5317 = vpack.c.bf16 %v5304, %v5303
    %v5318 = vpack.c.bf16 %v5306, %v5305
    %v5319 = vpack.c.bf16 %v5308, %v5307
    %v5320 = vpack.c.bf16 %v5310, %v5309
    %v5321 = vpack.c.bf16 %v5312, %v5311
    %v5322 = vpack.c.bf16 %v5314, %v5313
    %v5323 = vlaneseq
    %v5324 = vshrl.u32 %v5323, 7
    %v5325 = vsub.s32 0, %v5324
    %v5326 = vrot.slane %v391, %v5325
    %v5335 = vunpack.c.l.b16 %v381
    %v5336 = vunpack.c.l.b16 %v382
    %v5337 = vunpack.c.l.b16 %v383
    %v5338 = vunpack.c.l.b16 %v384
    %v5339 = vunpack.c.l.b16 %v385
    %v5340 = vunpack.c.l.b16 %v386
    %v5341 = vunpack.c.l.b16 %v387
    %v5342 = vunpack.c.l.b16 %v388
    %v5343 = vpack.c.b16 %v5336, %v5335
    %v5344 = vpack.c.b16 %v5338, %v5337
    %v5345 = vpack.c.b16 %v5340, %v5339
    %v5346 = vpack.c.b16 %v5342, %v5341
    %v5352 = vsel %vm177, %v5315, 0
    %v5355 = vsel %vm177, %v5316, 0
    %v5358 = vsel %vm177, %v5317, 0
    %v5361 = vsel %vm177, %v5318, 0
    %v5364 = vsel %vm177, %v5319, 0
    %v5367 = vsel %vm177, %v5320, 0
    %v5370 = vsel %vm177, %v5321, 0
    %v5373 = vsel %vm177, %v5322, 0
    %5375 = vmatprep.subr.bf16.mxu0 0
    %5376 = vmatpush1.bf16.msra.mxu0 %v5343
    %5377 = vmatprep.subr.bf16.mxu0 0
    %5378 = vmatpush1.bf16.msra.mxu0 %v5344
    %5379 = vmatprep.subr.bf16.mxu0 0
    %5380 = vmatpush1.bf16.msra.mxu0 %v5345
    %5381 = vmatprep.subr.bf16.mxu0 0
    %5382 = vmatpush1.bf16.msra.mxu0 %v5346
    %5383 = vmatprep.subr.bf16.mxu0 0
    %5384 = vmatpush1.bf16.msra.mxu0 0
    %5385 = vmatprep.subr.bf16.mxu0 0
    %5386 = vmatpush1.bf16.msra.mxu0 0
    %5387 = vmatprep.subr.bf16.mxu0 0
    %5388 = vmatpush1.bf16.msra.mxu0 0
    %5389 = vmatprep.subr.bf16.mxu0 0
    %5390 = vmatpush1.bf16.msra.mxu0 0
    %5391 = vmatprep.subr.bf16.mxu0 0
    %5392 = vmatpush1.bf16.msra.mxu0 0
    %5393 = vmatprep.subr.bf16.mxu0 0
    %5394 = vmatpush1.bf16.msra.mxu0 0
    %5395 = vmatprep.subr.bf16.mxu0 0
    %5396 = vmatpush1.bf16.msra.mxu0 0
    %5397 = vmatprep.subr.bf16.mxu0 0
    %5398 = vmatpush1.bf16.msra.mxu0 0
    %5399 = vmatprep.subr.bf16.mxu0 0
    %5400 = vmatpush1.bf16.msra.mxu0 0
    %5401 = vmatprep.subr.bf16.mxu0 0
    %5402 = vmatpush1.bf16.msra.mxu0 0
    %5403 = vmatprep.subr.bf16.mxu0 0
    %5404 = vmatpush1.bf16.msra.mxu0 0
    %5405 = vmatprep.subr.bf16.mxu0 0
    %5406 = vmatpush1.bf16.msra.mxu0 0
    %5407 = vmatprep.mubr.bf16.mxu0 0
    %5408 = vmatmul.mubr.bf16.gmra.mrb[0].mxu0 %v5352
    %v5409 = vpop.f32.mrb[0].mxu0
    %v5410 = vadd.f32 %v5326, %v5409
    %v5411 = vpop.f32.mrb[0].mxu0
    %v5412 = vpop.f32.mrb[0].mxu0
    %v5413 = vadd.f32 %v5326, %v5412
    %v5414 = vpop.f32.mrb[0].mxu0
    %5415 = vmatprep.mubr.bf16.mxu0 0
    %5416 = vmatmul.mubr.bf16.gmra.mrb[0].mxu0 %v5355
    %v5417 = vpop.f32.mrb[0].mxu0
    %v5418 = vadd.f32 %v5326, %v5417
    %v5419 = vpop.f32.mrb[0].mxu0
    %v5420 = vpop.f32.mrb[0].mxu0
    %v5421 = vadd.f32 %v5326, %v5420
    %v5422 = vpop.f32.mrb[0].mxu0
    %5423 = vmatprep.mubr.bf16.mxu0 0
    %5424 = vmatmul.mubr.bf16.gmra.mrb[0].mxu0 %v5358
    %v5425 = vpop.f32.mrb[0].mxu0
    %v5426 = vadd.f32 %v5326, %v5425
    %v5427 = vpop.f32.mrb[0].mxu0
    %v5428 = vpop.f32.mrb[0].mxu0
    %v5429 = vadd.f32 %v5326, %v5428
    %v5430 = vpop.f32.mrb[0].mxu0
    %5431 = vmatprep.mubr.bf16.mxu0 0
    %5432 = vmatmul.mubr.bf16.gmra.mrb[0].mxu0 %v5361
    %v5433 = vpop.f32.mrb[0].mxu0
    %v5434 = vadd.f32 %v5326, %v5433
    %v5435 = vpop.f32.mrb[0].mxu0
    %v5436 = vpop.f32.mrb[0].mxu0
    %v5437 = vadd.f32 %v5326, %v5436
    %v5438 = vpop.f32.mrb[0].mxu0
    %5439 = vmatprep.mubr.bf16.mxu0 0
    %5440 = vmatmul.mubr.bf16.gmra.mrb[0].mxu0 %v5364
    %v5441 = vpop.f32.mrb[0].mxu0
    %v5442 = vadd.f32 %v5326, %v5441
    %v5443 = vpop.f32.mrb[0].mxu0
    %v5444 = vpop.f32.mrb[0].mxu0
    %v5445 = vadd.f32 %v5326, %v5444
    %v5446 = vpop.f32.mrb[0].mxu0
    %5447 = vmatprep.mubr.bf16.mxu0 0
    %5448 = vmatmul.mubr.bf16.gmra.mrb[0].mxu0 %v5367
    %v5449 = vpop.f32.mrb[0].mxu0
    %v5450 = vadd.f32 %v5326, %v5449
    %v5451 = vpop.f32.mrb[0].mxu0
    %v5452 = vpop.f32.mrb[0].mxu0
    %v5453 = vadd.f32 %v5326, %v5452
    %v5454 = vpop.f32.mrb[0].mxu0
    %5455 = vmatprep.mubr.bf16.mxu0 0
    %5456 = vmatmul.mubr.bf16.gmra.mrb[0].mxu0 %v5370
    %v5457 = vpop.f32.mrb[0].mxu0
    %v5458 = vadd.f32 %v5326, %v5457
    %v5459 = vpop.f32.mrb[0].mxu0
    %v5460 = vpop.f32.mrb[0].mxu0
    %v5461 = vadd.f32 %v5326, %v5460
    %v5462 = vpop.f32.mrb[0].mxu0
    %5463 = vmatprep.mubr.bf16.mxu0 0
    %5464 = vmatmul.mubr.bf16.gmra.mrb[0].mxu0 %v5373
    %v5465 = vpop.f32.mrb[0].mxu0
    %v5466 = vadd.f32 %v5326, %v5465
    %v5467 = vpop.f32.mrb[0].mxu0
    %v5468 = vpop.f32.mrb[0].mxu0
    %v5469 = vadd.f32 %v5326, %v5468
    %v5470 = vpop.f32.mrb[0].mxu0
    %5471 = vdwg.mxu0
    %v5472 = vadd.f32 %v5126, %v5410
    %v5473 = vadd.f32 %v5127, %v5413
    %v5474 = vadd.f32 %v5128, %v5418
    %v5475 = vadd.f32 %v5129, %v5421
    %v5476 = vadd.f32 %v5130, %v5426
    %v5477 = vadd.f32 %v5131, %v5429
    %v5478 = vadd.f32 %v5132, %v5434
    %v5479 = vadd.f32 %v5133, %v5437
    %v5480 = vadd.f32 %v5134, %v5442
    %v5481 = vadd.f32 %v5135, %v5445
    %v5482 = vadd.f32 %v5136, %v5450
    %v5483 = vadd.f32 %v5137, %v5453
    %v5484 = vadd.f32 %v5138, %v5458
    %v5485 = vadd.f32 %v5139, %v5461
    %v5486 = vadd.f32 %v5140, %v5466
    %v5487 = vadd.f32 %v5141, %v5469
    %v5488 = vsel %vm177, %v5472, 0.0
    %5489 = vadd.xlane.f32.xlu0 %v5488
    %v5490 = vpop.xlane.xlu0 %5489
    %v5491 = vsel %vm177, %v5473, 0.0
    %5492 = vadd.xlane.f32.xlu0 %v5491
    %v5493 = vpop.xlane.xlu0 %5492
    %v5494 = vsel %vm177, %v5474, 0.0
    %5495 = vadd.xlane.f32.xlu0 %v5494
    %v5496 = vpop.xlane.xlu0 %5495
    %v5497 = vsel %vm177, %v5475, 0.0
    %5498 = vadd.xlane.f32.xlu0 %v5497
    %v5499 = vpop.xlane.xlu0 %5498
    %v5500 = vsel %vm177, %v5476, 0.0
    %5501 = vadd.xlane.f32.xlu0 %v5500
    %v5502 = vpop.xlane.xlu0 %5501
    %v5503 = vsel %vm177, %v5477, 0.0
    %5504 = vadd.xlane.f32.xlu0 %v5503
    %v5505 = vpop.xlane.xlu0 %5504
    %v5506 = vsel %vm177, %v5478, 0.0
    %5507 = vadd.xlane.f32.xlu0 %v5506
    %v5508 = vpop.xlane.xlu0 %5507
    %v5509 = vsel %vm177, %v5479, 0.0
    %5510 = vadd.xlane.f32.xlu0 %v5509
    %v5511 = vpop.xlane.xlu0 %5510
    %v5512 = vsel %vm177, %v5480, 0.0
    %5513 = vadd.xlane.f32.xlu0 %v5512
    %v5514 = vpop.xlane.xlu0 %5513
    %v5515 = vsel %vm177, %v5481, 0.0
    %5516 = vadd.xlane.f32.xlu0 %v5515
    %v5517 = vpop.xlane.xlu0 %5516
    %v5518 = vsel %vm177, %v5482, 0.0
    %5519 = vadd.xlane.f32.xlu0 %v5518
    %v5520 = vpop.xlane.xlu0 %5519
    %v5521 = vsel %vm177, %v5483, 0.0
    %5522 = vadd.xlane.f32.xlu0 %v5521
    %v5523 = vpop.xlane.xlu0 %5522
    %v5524 = vsel %vm177, %v5484, 0.0
    %5525 = vadd.xlane.f32.xlu0 %v5524
    %v5526 = vpop.xlane.xlu0 %5525
    %v5527 = vsel %vm177, %v5485, 0.0
    %5528 = vadd.xlane.f32.xlu0 %v5527
    %v5529 = vpop.xlane.xlu0 %5528
    %v5530 = vsel %vm177, %v5486, 0.0
    %5531 = vadd.xlane.f32.xlu0 %v5530
    %v5532 = vpop.xlane.xlu0 %5531
    %v5533 = vsel %vm177, %v5487, 0.0
    %5534 = vadd.xlane.f32.xlu0 %v5533
    %v5535 = vpop.xlane.xlu0 %5534
    %v5536 = vmul.f32 %v5490, %v4941
    %v5537 = vmul.f32 %v5493, %v4941
    %v5538 = vmul.f32 %v5496, %v4941
    %v5539 = vmul.f32 %v5499, %v4941
    %v5540 = vmul.f32 %v5502, %v4941
    %v5541 = vmul.f32 %v5505, %v4941
    %v5542 = vmul.f32 %v5508, %v4941
    %v5543 = vmul.f32 %v5511, %v4941
    %v5544 = vmul.f32 %v5514, %v4941
    %v5545 = vmul.f32 %v5517, %v4941
    %v5546 = vmul.f32 %v5520, %v4941
    %v5547 = vmul.f32 %v5523, %v4941
    %v5548 = vmul.f32 %v5526, %v4941
    %v5549 = vmul.f32 %v5529, %v4941
    %v5550 = vmul.f32 %v5532, %v4941
    %v5551 = vmul.f32 %v5535, %v4941
    %v5552 = vsub.f32 %v5472, %v5536
    %v5553 = vsub.f32 %v5473, %v5537
    %v5554 = vsub.f32 %v5474, %v5538
    %v5555 = vsub.f32 %v5475, %v5539
    %v5556 = vsub.f32 %v5476, %v5540
    %v5557 = vsub.f32 %v5477, %v5541
    %v5558 = vsub.f32 %v5478, %v5542
    %v5559 = vsub.f32 %v5479, %v5543
    %v5560 = vsub.f32 %v5480, %v5544
    %v5561 = vsub.f32 %v5481, %v5545
    %v5562 = vsub.f32 %v5482, %v5546
    %v5563 = vsub.f32 %v5483, %v5547
    %v5564 = vsub.f32 %v5484, %v5548
    %v5565 = vsub.f32 %v5485, %v5549
    %v5566 = vsub.f32 %v5486, %v5550
    %v5567 = vsub.f32 %v5487, %v5551
    %v5568 = vmul.f32 %v5552, %v5552
    %v5569 = vmul.f32 %v5553, %v5553
    %v5570 = vmul.f32 %v5554, %v5554
    %v5571 = vmul.f32 %v5555, %v5555
    %v5572 = vmul.f32 %v5556, %v5556
    %v5573 = vmul.f32 %v5557, %v5557
    %v5574 = vmul.f32 %v5558, %v5558
    %v5575 = vmul.f32 %v5559, %v5559
    %v5576 = vmul.f32 %v5560, %v5560
    %v5577 = vmul.f32 %v5561, %v5561
    %v5578 = vmul.f32 %v5562, %v5562
    %v5579 = vmul.f32 %v5563, %v5563
    %v5580 = vmul.f32 %v5564, %v5564
    %v5581 = vmul.f32 %v5565, %v5565
    %v5582 = vmul.f32 %v5566, %v5566
    %v5583 = vmul.f32 %v5567, %v5567
    %v5584 = vsel %vm177, %v5568, 0.0
    %5585 = vadd.xlane.f32.xlu0 %v5584
    %v5586 = vpop.xlane.xlu0 %5585
    %v5587 = vsel %vm177, %v5569, 0.0
    %5588 = vadd.xlane.f32.xlu0 %v5587
    %v5589 = vpop.xlane.xlu0 %5588
    %v5590 = vsel %vm177, %v5570, 0.0
    %5591 = vadd.xlane.f32.xlu0 %v5590
    %v5592 = vpop.xlane.xlu0 %5591
    %v5593 = vsel %vm177, %v5571, 0.0
    %5594 = vadd.xlane.f32.xlu0 %v5593
    %v5595 = vpop.xlane.xlu0 %5594
    %v5596 = vsel %vm177, %v5572, 0.0
    %5597 = vadd.xlane.f32.xlu0 %v5596
    %v5598 = vpop.xlane.xlu0 %5597
    %v5599 = vsel %vm177, %v5573, 0.0
    %5600 = vadd.xlane.f32.xlu0 %v5599
    %v5601 = vpop.xlane.xlu0 %5600
    %v5602 = vsel %vm177, %v5574, 0.0
    %5603 = vadd.xlane.f32.xlu0 %v5602
    %v5604 = vpop.xlane.xlu0 %5603
    %v5605 = vsel %vm177, %v5575, 0.0
    %5606 = vadd.xlane.f32.xlu0 %v5605
    %v5607 = vpop.xlane.xlu0 %5606
    %v5608 = vsel %vm177, %v5576, 0.0
    %5609 = vadd.xlane.f32.xlu0 %v5608
    %v5610 = vpop.xlane.xlu0 %5609
    %v5611 = vsel %vm177, %v5577, 0.0
    %5612 = vadd.xlane.f32.xlu0 %v5611
    %v5613 = vpop.xlane.xlu0 %5612
    %v5614 = vsel %vm177, %v5578, 0.0
    %5615 = vadd.xlane.f32.xlu0 %v5614
    %v5616 = vpop.xlane.xlu0 %5615
    %v5617 = vsel %vm177, %v5579, 0.0
    %5618 = vadd.xlane.f32.xlu0 %v5617
    %v5619 = vpop.xlane.xlu0 %5618
    %v5620 = vsel %vm177, %v5580, 0.0
    %5621 = vadd.xlane.f32.xlu0 %v5620
    %v5622 = vpop.xlane.xlu0 %5621
    %v5623 = vsel %vm177, %v5581, 0.0
    %5624 = vadd.xlane.f32.xlu0 %v5623
    %v5625 = vpop.xlane.xlu0 %5624
    %v5626 = vsel %vm177, %v5582, 0.0
    %5627 = vadd.xlane.f32.xlu0 %v5626
    %v5628 = vpop.xlane.xlu0 %5627
    %v5629 = vsel %vm177, %v5583, 0.0
    %5630 = vadd.xlane.f32.xlu0 %v5629
    %v5631 = vpop.xlane.xlu0 %5630
    %v5632 = vmul.f32 %v5586, %v4941
    %v5633 = vmul.f32 %v5589, %v4941
    %v5634 = vmul.f32 %v5592, %v4941
    %v5635 = vmul.f32 %v5595, %v4941
    %v5636 = vmul.f32 %v5598, %v4941
    %v5637 = vmul.f32 %v5601, %v4941
    %v5638 = vmul.f32 %v5604, %v4941
    %v5639 = vmul.f32 %v5607, %v4941
    %v5640 = vmul.f32 %v5610, %v4941
    %v5641 = vmul.f32 %v5613, %v4941
    %v5642 = vmul.f32 %v5616, %v4941
    %v5643 = vmul.f32 %v5619, %v4941
    %v5644 = vmul.f32 %v5622, %v4941
    %v5645 = vmul.f32 %v5625, %v4941
    %v5646 = vmul.f32 %v5628, %v4941
    %v5647 = vmul.f32 %v5631, %v4941
    %v5648 = vadd.f32 %v5632, 1e-05
    %v5649 = vadd.f32 %v5633, 1e-05
    %v5650 = vadd.f32 %v5634, 1e-05
    %v5651 = vadd.f32 %v5635, 1e-05
    %v5652 = vadd.f32 %v5636, 1e-05
    %v5653 = vadd.f32 %v5637, 1e-05
    %v5654 = vadd.f32 %v5638, 1e-05
    %v5655 = vadd.f32 %v5639, 1e-05
    %v5656 = vadd.f32 %v5640, 1e-05
    %v5657 = vadd.f32 %v5641, 1e-05
    %v5658 = vadd.f32 %v5642, 1e-05
    %v5659 = vadd.f32 %v5643, 1e-05
    %v5660 = vadd.f32 %v5644, 1e-05
    %v5661 = vadd.f32 %v5645, 1e-05
    %v5662 = vadd.f32 %v5646, 1e-05
    %v5663 = vadd.f32 %v5647, 1e-05
    %v5664 = vrsqrt.pop %v5648
    %v5665 = vrsqrt.pop %v5649
    %v5666 = vrsqrt.pop %v5650
    %v5667 = vrsqrt.pop %v5651
    %v5668 = vrsqrt.pop %v5652
    %v5669 = vrsqrt.pop %v5653
    %v5670 = vrsqrt.pop %v5654
    %v5671 = vrsqrt.pop %v5655
    %v5672 = vrsqrt.pop %v5656
    %v5673 = vrsqrt.pop %v5657
    %v5674 = vrsqrt.pop %v5658
    %v5675 = vrsqrt.pop %v5659
    %v5676 = vrsqrt.pop %v5660
    %v5677 = vrsqrt.pop %v5661
    %v5678 = vrsqrt.pop %v5662
    %v5679 = vrsqrt.pop %v5663
    %v5680 = vmul.f32 %v5552, %v5664
    %v5681 = vmul.f32 %v5553, %v5665
    %v5682 = vmul.f32 %v5554, %v5666
    %v5683 = vmul.f32 %v5555, %v5667
    %v5684 = vmul.f32 %v5556, %v5668
    %v5685 = vmul.f32 %v5557, %v5669
    %v5686 = vmul.f32 %v5558, %v5670
    %v5687 = vmul.f32 %v5559, %v5671
    %v5688 = vmul.f32 %v5560, %v5672
    %v5689 = vmul.f32 %v5561, %v5673
    %v5690 = vmul.f32 %v5562, %v5674
    %v5691 = vmul.f32 %v5563, %v5675
    %v5692 = vmul.f32 %v5564, %v5676
    %v5693 = vmul.f32 %v5565, %v5677
    %v5694 = vmul.f32 %v5566, %v5678
    %v5695 = vmul.f32 %v5567, %v5679
    %v5696 = vlaneseq
    %v5697 = vshrl.u32 %v5696, 7
    %v5698 = vsub.s32 0, %v5697
    %v5699 = vrot.slane %v394, %v5698
    %v5700 = vmul.f32 %v5680, %v5699
    %v5701 = vmul.f32 %v5681, %v5699
    %v5702 = vmul.f32 %v5682, %v5699
    %v5703 = vmul.f32 %v5683, %v5699
    %v5704 = vmul.f32 %v5684, %v5699
    %v5705 = vmul.f32 %v5685, %v5699
    %v5706 = vmul.f32 %v5686, %v5699
    %v5707 = vmul.f32 %v5687, %v5699
    %v5708 = vmul.f32 %v5688, %v5699
    %v5709 = vmul.f32 %v5689, %v5699
    %v5710 = vmul.f32 %v5690, %v5699
    %v5711 = vmul.f32 %v5691, %v5699
    %v5712 = vmul.f32 %v5692, %v5699
    %v5713 = vmul.f32 %v5693, %v5699
    %v5714 = vmul.f32 %v5694, %v5699
    %v5715 = vmul.f32 %v5695, %v5699
    %v5716 = vlaneseq
    %v5717 = vshrl.u32 %v5716, 7
    %v5718 = vsub.s32 0, %v5717
    %v5719 = vrot.slane %v395, %v5718
    %v5720 = vadd.f32 %v5700, %v5719
    %v5721 = vadd.f32 %v5701, %v5719
    %v5722 = vadd.f32 %v5702, %v5719
    %v5723 = vadd.f32 %v5703, %v5719
    %v5724 = vadd.f32 %v5704, %v5719
    %v5725 = vadd.f32 %v5705, %v5719
    %v5726 = vadd.f32 %v5706, %v5719
    %v5727 = vadd.f32 %v5707, %v5719
    %v5728 = vadd.f32 %v5708, %v5719
    %v5729 = vadd.f32 %v5709, %v5719
    %v5730 = vadd.f32 %v5710, %v5719
    %v5731 = vadd.f32 %v5711, %v5719
    %v5732 = vadd.f32 %v5712, %v5719
    %v5733 = vadd.f32 %v5713, %v5719
    %v5734 = vadd.f32 %v5714, %v5719
    %v5735 = vadd.f32 %v5715, %v5719
    %s5736 = scalar_lea.vmem [#allocation5], 64
    %v5737 = vld [vmem:[%s5736] sm:$0xff]
    %v5738 = vld [vmem:[%s5736 + $0x8] sm:$0xff]
    %v5739 = vld [vmem:[%s5736 + $0x10] sm:$0xff]
    %v5740 = vld [vmem:[%s5736 + $0x18] sm:$0xff]
    %v5741 = vld [vmem:[%s5736 + $0x20] sm:$0xff]
    %v5742 = vld [vmem:[%s5736 + $0x28] sm:$0xff]
    %v5743 = vld [vmem:[%s5736 + $0x30] sm:$0xff]
    %v5744 = vld [vmem:[%s5736 + $0x38] sm:$0xff]
    %s5745 = scalar_lea.vmem [#allocation7], 32
    %v5746 = vld [vmem:[%s5745] sm:$0xff]
    %v5747 = vld [vmem:[%s5745 + $0x8] sm:$0xff]
    %v5748 = vld [vmem:[%s5745 + $0x10] sm:$0xff]
    %v5749 = vld [vmem:[%s5745 + $0x18] sm:$0xff]
    %s5750 = scalar_lea.vmem [#allocation8], 96
    %v5751 = vld [vmem:[%s5750] sm:$0xf]
    %v5752 = vld [vmem:[%s5750 + $0x4] sm:$0xf]
    %v5753 = vld [vmem:[%s5750 + $0x8] sm:$0xf]
    %v5754 = vld [vmem:[%s5750 + $0xc] sm:$0xf]
    %v5755 = vld [vmem:[%s5750 + $0x10] sm:$0xf]
    %v5756 = vld [vmem:[%s5750 + $0x14] sm:$0xf]
    %v5757 = vld [vmem:[%s5750 + $0x18] sm:$0xf]
    %v5758 = vld [vmem:[%s5750 + $0x1c] sm:$0xf]
    %s5759 = scalar_lea.vmem [#allocation8], 128
    %v5760 = vld [vmem:[%s5759] sm:$0xf]
    %v5761 = vld [vmem:[%s5759 + $0x4] sm:$0xf]
    %v5762 = vld [vmem:[%s5759 + $0x8] sm:$0xf]
    %v5763 = vld [vmem:[%s5759 + $0xc] sm:$0xf]
    %v5764 = vld [vmem:[%s5759 + $0x10] sm:$0xf]
    %v5765 = vld [vmem:[%s5759 + $0x14] sm:$0xf]
    %v5766 = vld [vmem:[%s5759 + $0x18] sm:$0xf]
    %v5767 = vld [vmem:[%s5759 + $0x1c] sm:$0xf]
    %s5768 = scalar_lea.vmem [#allocation8], 160
    %v5769 = vld [vmem:[%s5768] sm:$0xf]
    %v5770 = vld [vmem:[%s5768 + $0x4] sm:$0xf]
    %v5771 = vld [vmem:[%s5768 + $0x8] sm:$0xf]
    %v5772 = vld [vmem:[%s5768 + $0xc] sm:$0xf]
    %v5773 = vld [vmem:[%s5768 + $0x10] sm:$0xf]
    %v5774 = vld [vmem:[%s5768 + $0x14] sm:$0xf]
    %v5775 = vld [vmem:[%s5768 + $0x18] sm:$0xf]
    %v5776 = vld [vmem:[%s5768 + $0x1c] sm:$0xf]
    %s5777 = scalar_lea.vmem %s6, 8
    %v5778 = vld [vmem:[%s5777] sm:$0x1]
    %v5779 = vld [vmem:[%s5777 + $0x1] sm:$0x1]
    %v5780 = vld [vmem:[%s5777 + $0x2] sm:$0x1]
    %v5781 = vld [vmem:[%s5777 + $0x3] sm:$0x1]
    %v5782 = vld [vmem:[%s5777 + $0x4] sm:$0x1]
    %v5783 = vld [vmem:[%s5777 + $0x5] sm:$0x1]
    %v5784 = vld [vmem:[%s5777 + $0x6] sm:$0x1]
    %v5785 = vpack.c.bf16 %v5721, %v5720
    %v5786 = vpack.c.bf16 %v5723, %v5722
    %v5787 = vpack.c.bf16 %v5725, %v5724
    %v5788 = vpack.c.bf16 %v5727, %v5726
    %v5789 = vpack.c.bf16 %v5729, %v5728
    %v5790 = vpack.c.bf16 %v5731, %v5730
    %v5791 = vpack.c.bf16 %v5733, %v5732
    %v5792 = vpack.c.bf16 %v5735, %v5734
    %v5801 = vunpack.c.l.b16 %v5737
    %v5802 = vunpack.c.h.b16 %v5737
    %v5803 = vunpack.c.l.b16 %v5738
    %v5804 = vunpack.c.h.b16 %v5738
    %v5805 = vunpack.c.l.b16 %v5739
    %v5806 = vunpack.c.h.b16 %v5739
    %v5807 = vunpack.c.l.b16 %v5740
    %v5808 = vunpack.c.h.b16 %v5740
    %v5809 = vunpack.c.l.b16 %v5741
    %v5810 = vunpack.c.h.b16 %v5741
    %v5811 = vunpack.c.l.b16 %v5742
    %v5812 = vunpack.c.h.b16 %v5742
    %v5813 = vunpack.c.l.b16 %v5743
    %v5814 = vunpack.c.h.b16 %v5743
    %v5815 = vunpack.c.l.b16 %v5744
    %v5816 = vunpack.c.h.b16 %v5744
    %v5817 = vpack.c.b16 %v5803, %v5801
    %v5818 = vpack.c.b16 %v5804, %v5802
    %v5819 = vpack.c.b16 %v5807, %v5805
    %v5820 = vpack.c.b16 %v5808, %v5806
    %v5821 = vpack.c.b16 %v5811, %v5809
    %v5822 = vpack.c.b16 %v5812, %v5810
    %v5823 = vpack.c.b16 %v5815, %v5813
    %v5824 = vpack.c.b16 %v5816, %v5814
    %v5834 = vsel %vm177, %v5785, 0
    %v5837 = vsel %vm177, %v5786, 0
    %v5840 = vsel %vm177, %v5787, 0
    %v5843 = vsel %vm177, %v5788, 0
    %v5846 = vsel %vm177, %v5789, 0
    %v5849 = vsel %vm177, %v5790, 0
    %v5852 = vsel %vm177, %v5791, 0
    %v5855 = vsel %vm177, %v5792, 0
    %5857 = vmatprep.subr.bf16.mxu0 %v5818
    %5858 = vmatpush1.bf16.msra.mxu0 %v5817
    %5859 = vmatprep.subr.bf16.mxu0 %v5820
    %5860 = vmatpush1.bf16.msra.mxu0 %v5819
    %5861 = vmatprep.subr.bf16.mxu0 %v5822
    %5862 = vmatpush1.bf16.msra.mxu0 %v5821
    %5863 = vmatprep.subr.bf16.mxu0 %v5824
    %5864 = vmatpush1.bf16.msra.mxu0 %v5823
    %5865 = vmatprep.subr.bf16.mxu0 0
    %5866 = vmatpush1.bf16.msra.mxu0 0
    %5867 = vmatprep.subr.bf16.mxu0 0
    %5868 = vmatpush1.bf16.msra.mxu0 0
    %5869 = vmatprep.subr.bf16.mxu0 0
    %5870 = vmatpush1.bf16.msra.mxu0 0
    %5871 = vmatprep.subr.bf16.mxu0 0
    %5872 = vmatpush1.bf16.msra.mxu0 0
    %5873 = vmatprep.subr.bf16.mxu0 0
    %5874 = vmatpush1.bf16.msra.mxu0 0
    %5875 = vmatprep.subr.bf16.mxu0 0
    %5876 = vmatpush1.bf16.msra.mxu0 0
    %5877 = vmatprep.subr.bf16.mxu0 0
    %5878 = vmatpush1.bf16.msra.mxu0 0
    %5879 = vmatprep.subr.bf16.mxu0 0
    %5880 = vmatpush1.bf16.msra.mxu0 0
    %5881 = vmatprep.subr.bf16.mxu0 0
    %5882 = vmatpush1.bf16.msra.mxu0 0
    %5883 = vmatprep.subr.bf16.mxu0 0
    %5884 = vmatpush1.bf16.msra.mxu0 0
    %5885 = vmatprep.subr.bf16.mxu0 0
    %5886 = vmatpush1.bf16.msra.mxu0 0
    %5887 = vmatprep.subr.bf16.mxu0 0
    %5888 = vmatpush1.bf16.msra.mxu0 0
    %5889 = vmatprep.mubr.bf16.mxu0 0
    %5890 = vmatmul.mubr.bf16.gmra.mrb[0].mxu0 %v5834
    %v5891 = vpop.f32.mrb[0].mxu0
    %v5892 = vadd.f32 0.0, %v5891
    %v5893 = vpop.f32.mrb[0].mxu0
    %v5894 = vadd.f32 0.0, %v5893
    %v5895 = vpop.f32.mrb[0].mxu0
    %v5896 = vadd.f32 0.0, %v5895
    %v5897 = vpop.f32.mrb[0].mxu0
    %v5898 = vadd.f32 0.0, %v5897
    %5899 = vmatprep.mubr.bf16.mxu0 0
    %5900 = vmatmul.mubr.bf16.gmra.mrb[0].mxu0 %v5837
    %v5901 = vpop.f32.mrb[0].mxu0
    %v5902 = vadd.f32 0.0, %v5901
    %v5903 = vpop.f32.mrb[0].mxu0
    %v5904 = vadd.f32 0.0, %v5903
    %v5905 = vpop.f32.mrb[0].mxu0
    %v5906 = vadd.f32 0.0, %v5905
    %v5907 = vpop.f32.mrb[0].mxu0
    %v5908 = vadd.f32 0.0, %v5907
    %5909 = vmatprep.mubr.bf16.mxu0 0
    %5910 = vmatmul.mubr.bf16.gmra.mrb[0].mxu0 %v5840
    %v5911 = vpop.f32.mrb[0].mxu0
    %v5912 = vadd.f32 0.0, %v5911
    %v5913 = vpop.f32.mrb[0].mxu0
    %v5914 = vadd.f32 0.0, %v5913
    %v5915 = vpop.f32.mrb[0].mxu0
    %v5916 = vadd.f32 0.0, %v5915
    %v5917 = vpop.f32.mrb[0].mxu0
    %v5918 = vadd.f32 0.0, %v5917
    %5919 = vmatprep.mubr.bf16.mxu0 0
    %5920 = vmatmul.mubr.bf16.gmra.mrb[0].mxu0 %v5843
    %v5921 = vpop.f32.mrb[0].mxu0
    %v5922 = vadd.f32 0.0, %v5921
    %v5923 = vpop.f32.mrb[0].mxu0
    %v5924 = vadd.f32 0.0, %v5923
    %v5925 = vpop.f32.mrb[0].mxu0
    %v5926 = vadd.f32 0.0, %v5925
    %v5927 = vpop.f32.mrb[0].mxu0
    %v5928 = vadd.f32 0.0, %v5927
    %5929 = vmatprep.mubr.bf16.mxu0 0
    %5930 = vmatmul.mubr.bf16.gmra.mrb[0].mxu0 %v5846
    %v5931 = vpop.f32.mrb[0].mxu0
    %v5932 = vadd.f32 0.0, %v5931
    %v5933 = vpop.f32.mrb[0].mxu0
    %v5934 = vadd.f32 0.0, %v5933
    %v5935 = vpop.f32.mrb[0].mxu0
    %v5936 = vadd.f32 0.0, %v5935
    %v5937 = vpop.f32.mrb[0].mxu0
    %v5938 = vadd.f32 0.0, %v5937
    %5939 = vmatprep.mubr.bf16.mxu0 0
    %5940 = vmatmul.mubr.bf16.gmra.mrb[0].mxu0 %v5849
    %v5941 = vpop.f32.mrb[0].mxu0
    %v5942 = vadd.f32 0.0, %v5941
    %v5943 = vpop.f32.mrb[0].mxu0
    %v5944 = vadd.f32 0.0, %v5943
    %v5945 = vpop.f32.mrb[0].mxu0
    %v5946 = vadd.f32 0.0, %v5945
    %v5947 = vpop.f32.mrb[0].mxu0
    %v5948 = vadd.f32 0.0, %v5947
    %5949 = vmatprep.mubr.bf16.mxu0 0
    %5950 = vmatmul.mubr.bf16.gmra.mrb[0].mxu0 %v5852
    %v5951 = vpop.f32.mrb[0].mxu0
    %v5952 = vadd.f32 0.0, %v5951
    %v5953 = vpop.f32.mrb[0].mxu0
    %v5954 = vadd.f32 0.0, %v5953
    %v5955 = vpop.f32.mrb[0].mxu0
    %v5956 = vadd.f32 0.0, %v5955
    %v5957 = vpop.f32.mrb[0].mxu0
    %v5958 = vadd.f32 0.0, %v5957
    %5959 = vmatprep.mubr.bf16.mxu0 0
    %5960 = vmatmul.mubr.bf16.gmra.mrb[0].mxu0 %v5855
    %v5961 = vpop.f32.mrb[0].mxu0
    %v5962 = vadd.f32 0.0, %v5961
    %v5963 = vpop.f32.mrb[0].mxu0
    %v5964 = vadd.f32 0.0, %v5963
    %v5965 = vpop.f32.mrb[0].mxu0
    %v5966 = vadd.f32 0.0, %v5965
    %v5967 = vpop.f32.mrb[0].mxu0
    %v5968 = vadd.f32 0.0, %v5967
    %5969 = vdwg.mxu0
    %v5970 = vadd.f32 %v5892, %v5746
    %v5971 = vadd.f32 %v5894, %v5747
    %v5972 = vadd.f32 %v5896, %v5748
    %v5973 = vadd.f32 %v5898, %v5749
    %v5974 = vadd.f32 %v5902, %v5746
    %v5975 = vadd.f32 %v5904, %v5747
    %v5976 = vadd.f32 %v5906, %v5748
    %v5977 = vadd.f32 %v5908, %v5749
    %v5978 = vadd.f32 %v5912, %v5746
    %v5979 = vadd.f32 %v5914, %v5747
    %v5980 = vadd.f32 %v5916, %v5748
    %v5981 = vadd.f32 %v5918, %v5749
    %v5982 = vadd.f32 %v5922, %v5746
    %v5983 = vadd.f32 %v5924, %v5747
    %v5984 = vadd.f32 %v5926, %v5748
    %v5985 = vadd.f32 %v5928, %v5749
    %v5986 = vadd.f32 %v5932, %v5746
    %v5987 = vadd.f32 %v5934, %v5747
    %v5988 = vadd.f32 %v5936, %v5748
    %v5989 = vadd.f32 %v5938, %v5749
    %v5990 = vadd.f32 %v5942, %v5746
    %v5991 = vadd.f32 %v5944, %v5747
    %v5992 = vadd.f32 %v5946, %v5748
    %v5993 = vadd.f32 %v5948, %v5749
    %v5994 = vadd.f32 %v5952, %v5746
    %v5995 = vadd.f32 %v5954, %v5747
    %v5996 = vadd.f32 %v5956, %v5748
    %v5997 = vadd.f32 %v5958, %v5749
    %v5998 = vadd.f32 %v5962, %v5746
    %v5999 = vadd.f32 %v5964, %v5747
    %v6000 = vadd.f32 %v5966, %v5748
    %v6001 = vadd.f32 %v5968, %v5749
    %v6002 = vpack.c.bf16 %v5972, %v5970
    %v6003 = vpack.c.bf16 %v5976, %v5974
    %v6004 = vpack.c.bf16 %v5980, %v5978
    %v6005 = vpack.c.bf16 %v5984, %v5982
    %v6006 = vpack.c.bf16 %v5988, %v5986
    %v6007 = vpack.c.bf16 %v5992, %v5990
    %v6008 = vpack.c.bf16 %v5996, %v5994
    %v6009 = vpack.c.bf16 %v6000, %v5998
    %v6010 = vpack.c.bf16 %v5973, %v5971
    %v6011 = vpack.c.bf16 %v5977, %v5975
    %v6012 = vpack.c.bf16 %v5981, %v5979
    %v6013 = vpack.c.bf16 %v5985, %v5983
    %v6014 = vpack.c.bf16 %v5989, %v5987
    %v6015 = vpack.c.bf16 %v5993, %v5991
    %v6016 = vpack.c.bf16 %v5997, %v5995
    %v6017 = vpack.c.bf16 %v6001, %v5999
    %6019 = vrot.lane.b32.xlu0 %v6002, 64
    %v6020 = vpop.permute.xlu0 %6019
    %v6022 = vsel %vm632, %v6002, 0
    %v6025 = vsel %vm632, %v6020, 0
    %6027 = vmatprep.subr.bf16.mxu0 0
    %6028 = vmatpush1.bf16.xpose.msra.mxu0 %v6025
    %6029 = vmatprep.subr.bf16.mxu0 0
    %6030 = vmatpush1.bf16.xpose.msra.mxu0 0
    %6031 = vmatprep.subr.bf16.mxu0 0
    %6032 = vmatpush1.bf16.xpose.msra.mxu0 0
    %6033 = vmatprep.subr.bf16.mxu0 0
    %6034 = vmatpush1.bf16.xpose.msra.mxu0 0
    %6035 = vmatprep.subr.bf16.mxu0 0
    %6036 = vmatpush1.bf16.xpose.msra.mxu0 0
    %6037 = vmatprep.subr.bf16.mxu0 0
    %6038 = vmatpush1.bf16.xpose.msra.mxu0 0
    %6039 = vmatprep.subr.bf16.mxu0 0
    %6040 = vmatpush1.bf16.xpose.msra.mxu0 0
    %6041 = vmatprep.subr.bf16.mxu0 0
    %6042 = vmatpush1.bf16.xpose.msra.mxu0 0
    %6043 = vmatprep.subr.bf16.mxu0 0
    %6044 = vmatpush1.bf16.xpose.msra.mxu0 0
    %6045 = vmatprep.subr.bf16.mxu0 0
    %6046 = vmatpush1.bf16.xpose.msra.mxu0 0
    %6047 = vmatprep.subr.bf16.mxu0 0
    %6048 = vmatpush1.bf16.xpose.msra.mxu0 0
    %6049 = vmatprep.subr.bf16.mxu0 0
    %6050 = vmatpush1.bf16.xpose.msra.mxu0 0
    %6051 = vmatprep.subr.bf16.mxu0 0
    %6052 = vmatpush1.bf16.xpose.msra.mxu0 0
    %6053 = vmatprep.subr.bf16.mxu0 0
    %6054 = vmatpush1.bf16.xpose.msra.mxu0 0
    %6055 = vmatprep.subr.bf16.mxu0 0
    %6056 = vmatpush1.bf16.xpose.msra.mxu0 0
    %6057 = vmatprep.subr.bf16.mxu0 0
    %6058 = vmatpush1.bf16.xpose.msra.mxu0 0
    %6059 = vmatprep.mubr.bf16.mxu0 0
    %6060 = vmatmul.mubr.bf16.gmra.mrb[0].mxu0 %v6022
    %v6061 = vpop.f32.mrb[0].mxu0
    %v6062 = vadd.f32 0.0, %v6061
    %v6063 = vpop.f32.mrb[0].mxu0
    %v6064 = vpop.f32.mrb[0].mxu0
    %v6065 = vadd.f32 0.0, %v6064
    %v6066 = vpop.f32.mrb[0].mxu0
    %6067 = vdwg.mxu0
    %6069 = vrot.lane.b32.xlu0 %v6003, 64
    %v6070 = vpop.permute.xlu0 %6069
    %v6072 = vsel %vm632, %v6003, 0
    %v6075 = vsel %vm632, %v6070, 0
    %6077 = vmatprep.subr.bf16.mxu0 0
    %6078 = vmatpush1.bf16.xpose.msra.mxu0 %v6075
    %6079 = vmatprep.subr.bf16.mxu0 0
    %6080 = vmatpush1.bf16.xpose.msra.mxu0 0
    %6081 = vmatprep.subr.bf16.mxu0 0
    %6082 = vmatpush1.bf16.xpose.msra.mxu0 0
    %6083 = vmatprep.subr.bf16.mxu0 0
    %6084 = vmatpush1.bf16.xpose.msra.mxu0 0
    %6085 = vmatprep.subr.bf16.mxu0 0
    %6086 = vmatpush1.bf16.xpose.msra.mxu0 0
    %6087 = vmatprep.subr.bf16.mxu0 0
    %6088 = vmatpush1.bf16.xpose.msra.mxu0 0
    %6089 = vmatprep.subr.bf16.mxu0 0
    %6090 = vmatpush1.bf16.xpose.msra.mxu0 0
    %6091 = vmatprep.subr.bf16.mxu0 0
    %6092 = vmatpush1.bf16.xpose.msra.mxu0 0
    %6093 = vmatprep.subr.bf16.mxu0 0
    %6094 = vmatpush1.bf16.xpose.msra.mxu0 0
    %6095 = vmatprep.subr.bf16.mxu0 0
    %6096 = vmatpush1.bf16.xpose.msra.mxu0 0
    %6097 = vmatprep.subr.bf16.mxu0 0
    %6098 = vmatpush1.bf16.xpose.msra.mxu0 0
    %6099 = vmatprep.subr.bf16.mxu0 0
    %6100 = vmatpush1.bf16.xpose.msra.mxu0 0
    %6101 = vmatprep.subr.bf16.mxu0 0
    %6102 = vmatpush1.bf16.xpose.msra.mxu0 0
    %6103 = vmatprep.subr.bf16.mxu0 0
    %6104 = vmatpush1.bf16.xpose.msra.mxu0 0
    %6105 = vmatprep.subr.bf16.mxu0 0
    %6106 = vmatpush1.bf16.xpose.msra.mxu0 0
    %6107 = vmatprep.subr.bf16.mxu0 0
    %6108 = vmatpush1.bf16.xpose.msra.mxu0 0
    %6109 = vmatprep.mubr.bf16.mxu0 0
    %6110 = vmatmul.mubr.bf16.gmra.mrb[0].mxu0 %v6072
    %v6111 = vpop.f32.mrb[0].mxu0
    %v6112 = vadd.f32 0.0, %v6111
    %v6113 = vpop.f32.mrb[0].mxu0
    %v6114 = vpop.f32.mrb[0].mxu0
    %v6115 = vadd.f32 0.0, %v6114
    %v6116 = vpop.f32.mrb[0].mxu0
    %6117 = vdwg.mxu0
    %6119 = vrot.lane.b32.xlu0 %v6004, 64
    %v6120 = vpop.permute.xlu0 %6119
    %v6122 = vsel %vm632, %v6004, 0
    %v6125 = vsel %vm632, %v6120, 0
    %6127 = vmatprep.subr.bf16.mxu0 0
    %6128 = vmatpush1.bf16.xpose.msra.mxu0 %v6125
    %6129 = vmatprep.subr.bf16.mxu0 0
    %6130 = vmatpush1.bf16.xpose.msra.mxu0 0
    %6131 = vmatprep.subr.bf16.mxu0 0
    %6132 = vmatpush1.bf16.xpose.msra.mxu0 0
    %6133 = vmatprep.subr.bf16.mxu0 0
    %6134 = vmatpush1.bf16.xpose.msra.mxu0 0
    %6135 = vmatprep.subr.bf16.mxu0 0
    %6136 = vmatpush1.bf16.xpose.msra.mxu0 0
    %6137 = vmatprep.subr.bf16.mxu0 0
    %6138 = vmatpush1.bf16.xpose.msra.mxu0 0
    %6139 = vmatprep.subr.bf16.mxu0 0
    %6140 = vmatpush1.bf16.xpose.msra.mxu0 0
    %6141 = vmatprep.subr.bf16.mxu0 0
    %6142 = vmatpush1.bf16.xpose.msra.mxu0 0
    %6143 = vmatprep.subr.bf16.mxu0 0
    %6144 = vmatpush1.bf16.xpose.msra.mxu0 0
    %6145 = vmatprep.subr.bf16.mxu0 0
    %6146 = vmatpush1.bf16.xpose.msra.mxu0 0
    %6147 = vmatprep.subr.bf16.mxu0 0
    %6148 = vmatpush1.bf16.xpose.msra.mxu0 0
    %6149 = vmatprep.subr.bf16.mxu0 0
    %6150 = vmatpush1.bf16.xpose.msra.mxu0 0
    %6151 = vmatprep.subr.bf16.mxu0 0
    %6152 = vmatpush1.bf16.xpose.msra.mxu0 0
    %6153 = vmatprep.subr.bf16.mxu0 0
    %6154 = vmatpush1.bf16.xpose.msra.mxu0 0
    %6155 = vmatprep.subr.bf16.mxu0 0
    %6156 = vmatpush1.bf16.xpose.msra.mxu0 0
    %6157 = vmatprep.subr.bf16.mxu0 0
    %6158 = vmatpush1.bf16.xpose.msra.mxu0 0
    %6159 = vmatprep.mubr.bf16.mxu0 0
    %6160 = vmatmul.mubr.bf16.gmra.mrb[0].mxu0 %v6122
    %v6161 = vpop.f32.mrb[0].mxu0
    %v6162 = vadd.f32 0.0, %v6161
    %v6163 = vpop.f32.mrb[0].mxu0
    %v6164 = vpop.f32.mrb[0].mxu0
    %v6165 = vadd.f32 0.0, %v6164
    %v6166 = vpop.f32.mrb[0].mxu0
    %6167 = vdwg.mxu0
    %6169 = vrot.lane.b32.xlu0 %v6005, 64
    %v6170 = vpop.permute.xlu0 %6169
    %v6172 = vsel %vm632, %v6005, 0
    %v6175 = vsel %vm632, %v6170, 0
    %6177 = vmatprep.subr.bf16.mxu0 0
    %6178 = vmatpush1.bf16.xpose.msra.mxu0 %v6175
    %6179 = vmatprep.subr.bf16.mxu0 0
    %6180 = vmatpush1.bf16.xpose.msra.mxu0 0
    %6181 = vmatprep.subr.bf16.mxu0 0
    %6182 = vmatpush1.bf16.xpose.msra.mxu0 0
    %6183 = vmatprep.subr.bf16.mxu0 0
    %6184 = vmatpush1.bf16.xpose.msra.mxu0 0
    %6185 = vmatprep.subr.bf16.mxu0 0
    %6186 = vmatpush1.bf16.xpose.msra.mxu0 0
    %6187 = vmatprep.subr.bf16.mxu0 0
    %6188 = vmatpush1.bf16.xpose.msra.mxu0 0
    %6189 = vmatprep.subr.bf16.mxu0 0
    %6190 = vmatpush1.bf16.xpose.msra.mxu0 0
    %6191 = vmatprep.subr.bf16.mxu0 0
    %6192 = vmatpush1.bf16.xpose.msra.mxu0 0
    %6193 = vmatprep.subr.bf16.mxu0 0
    %6194 = vmatpush1.bf16.xpose.msra.mxu0 0
    %6195 = vmatprep.subr.bf16.mxu0 0
    %6196 = vmatpush1.bf16.xpose.msra.mxu0 0
    %6197 = vmatprep.subr.bf16.mxu0 0
    %6198 = vmatpush1.bf16.xpose.msra.mxu0 0
    %6199 = vmatprep.subr.bf16.mxu0 0
    %6200 = vmatpush1.bf16.xpose.msra.mxu0 0
    %6201 = vmatprep.subr.bf16.mxu0 0
    %6202 = vmatpush1.bf16.xpose.msra.mxu0 0
    %6203 = vmatprep.subr.bf16.mxu0 0
    %6204 = vmatpush1.bf16.xpose.msra.mxu0 0
    %6205 = vmatprep.subr.bf16.mxu0 0
    %6206 = vmatpush1.bf16.xpose.msra.mxu0 0
    %6207 = vmatprep.subr.bf16.mxu0 0
    %6208 = vmatpush1.bf16.xpose.msra.mxu0 0
    %6209 = vmatprep.mubr.bf16.mxu0 0
    %6210 = vmatmul.mubr.bf16.gmra.mrb[0].mxu0 %v6172
    %v6211 = vpop.f32.mrb[0].mxu0
    %v6212 = vadd.f32 0.0, %v6211
    %v6213 = vpop.f32.mrb[0].mxu0
    %v6214 = vpop.f32.mrb[0].mxu0
    %v6215 = vadd.f32 0.0, %v6214
    %v6216 = vpop.f32.mrb[0].mxu0
    %6217 = vdwg.mxu0
    %6219 = vrot.lane.b32.xlu0 %v6006, 64
    %v6220 = vpop.permute.xlu0 %6219
    %v6222 = vsel %vm632, %v6006, 0
    %v6225 = vsel %vm632, %v6220, 0
    %6227 = vmatprep.subr.bf16.mxu0 0
    %6228 = vmatpush1.bf16.xpose.msra.mxu0 %v6225
    %6229 = vmatprep.subr.bf16.mxu0 0
    %6230 = vmatpush1.bf16.xpose.msra.mxu0 0
    %6231 = vmatprep.subr.bf16.mxu0 0
    %6232 = vmatpush1.bf16.xpose.msra.mxu0 0
    %6233 = vmatprep.subr.bf16.mxu0 0
    %6234 = vmatpush1.bf16.xpose.msra.mxu0 0
    %6235 = vmatprep.subr.bf16.mxu0 0
    %6236 = vmatpush1.bf16.xpose.msra.mxu0 0
    %6237 = vmatprep.subr.bf16.mxu0 0
    %6238 = vmatpush1.bf16.xpose.msra.mxu0 0
    %6239 = vmatprep.subr.bf16.mxu0 0
    %6240 = vmatpush1.bf16.xpose.msra.mxu0 0
    %6241 = vmatprep.subr.bf16.mxu0 0
    %6242 = vmatpush1.bf16.xpose.msra.mxu0 0
    %6243 = vmatprep.subr.bf16.mxu0 0
    %6244 = vmatpush1.bf16.xpose.msra.mxu0 0
    %6245 = vmatprep.subr.bf16.mxu0 0
    %6246 = vmatpush1.bf16.xpose.msra.mxu0 0
    %6247 = vmatprep.subr.bf16.mxu0 0
    %6248 = vmatpush1.bf16.xpose.msra.mxu0 0
    %6249 = vmatprep.subr.bf16.mxu0 0
    %6250 = vmatpush1.bf16.xpose.msra.mxu0 0
    %6251 = vmatprep.subr.bf16.mxu0 0
    %6252 = vmatpush1.bf16.xpose.msra.mxu0 0
    %6253 = vmatprep.subr.bf16.mxu0 0
    %6254 = vmatpush1.bf16.xpose.msra.mxu0 0
    %6255 = vmatprep.subr.bf16.mxu0 0
    %6256 = vmatpush1.bf16.xpose.msra.mxu0 0
    %6257 = vmatprep.subr.bf16.mxu0 0
    %6258 = vmatpush1.bf16.xpose.msra.mxu0 0
    %6259 = vmatprep.mubr.bf16.mxu0 0
    %6260 = vmatmul.mubr.bf16.gmra.mrb[0].mxu0 %v6222
    %v6261 = vpop.f32.mrb[0].mxu0
    %v6262 = vadd.f32 0.0, %v6261
    %v6263 = vpop.f32.mrb[0].mxu0
    %v6264 = vpop.f32.mrb[0].mxu0
    %v6265 = vadd.f32 0.0, %v6264
    %v6266 = vpop.f32.mrb[0].mxu0
    %6267 = vdwg.mxu0
    %6269 = vrot.lane.b32.xlu0 %v6007, 64
    %v6270 = vpop.permute.xlu0 %6269
    %v6272 = vsel %vm632, %v6007, 0
    %v6275 = vsel %vm632, %v6270, 0
    %6277 = vmatprep.subr.bf16.mxu0 0
    %6278 = vmatpush1.bf16.xpose.msra.mxu0 %v6275
    %6279 = vmatprep.subr.bf16.mxu0 0
    %6280 = vmatpush1.bf16.xpose.msra.mxu0 0
    %6281 = vmatprep.subr.bf16.mxu0 0
    %6282 = vmatpush1.bf16.xpose.msra.mxu0 0
    %6283 = vmatprep.subr.bf16.mxu0 0
    %6284 = vmatpush1.bf16.xpose.msra.mxu0 0
    %6285 = vmatprep.subr.bf16.mxu0 0
    %6286 = vmatpush1.bf16.xpose.msra.mxu0 0
    %6287 = vmatprep.subr.bf16.mxu0 0
    %6288 = vmatpush1.bf16.xpose.msra.mxu0 0
    %6289 = vmatprep.subr.bf16.mxu0 0
    %6290 = vmatpush1.bf16.xpose.msra.mxu0 0
    %6291 = vmatprep.subr.bf16.mxu0 0
    %6292 = vmatpush1.bf16.xpose.msra.mxu0 0
    %6293 = vmatprep.subr.bf16.mxu0 0
    %6294 = vmatpush1.bf16.xpose.msra.mxu0 0
    %6295 = vmatprep.subr.bf16.mxu0 0
    %6296 = vmatpush1.bf16.xpose.msra.mxu0 0
    %6297 = vmatprep.subr.bf16.mxu0 0
    %6298 = vmatpush1.bf16.xpose.msra.mxu0 0
    %6299 = vmatprep.subr.bf16.mxu0 0
    %6300 = vmatpush1.bf16.xpose.msra.mxu0 0
    %6301 = vmatprep.subr.bf16.mxu0 0
    %6302 = vmatpush1.bf16.xpose.msra.mxu0 0
    %6303 = vmatprep.subr.bf16.mxu0 0
    %6304 = vmatpush1.bf16.xpose.msra.mxu0 0
    %6305 = vmatprep.subr.bf16.mxu0 0
    %6306 = vmatpush1.bf16.xpose.msra.mxu0 0
    %6307 = vmatprep.subr.bf16.mxu0 0
    %6308 = vmatpush1.bf16.xpose.msra.mxu0 0
    %6309 = vmatprep.mubr.bf16.mxu0 0
    %6310 = vmatmul.mubr.bf16.gmra.mrb[0].mxu0 %v6272
    %v6311 = vpop.f32.mrb[0].mxu0
    %v6312 = vadd.f32 0.0, %v6311
    %v6313 = vpop.f32.mrb[0].mxu0
    %v6314 = vpop.f32.mrb[0].mxu0
    %v6315 = vadd.f32 0.0, %v6314
    %v6316 = vpop.f32.mrb[0].mxu0
    %6317 = vdwg.mxu0
    %6319 = vrot.lane.b32.xlu0 %v6008, 64
    %v6320 = vpop.permute.xlu0 %6319
    %v6322 = vsel %vm632, %v6008, 0
    %v6325 = vsel %vm632, %v6320, 0
    %6327 = vmatprep.subr.bf16.mxu0 0
    %6328 = vmatpush1.bf16.xpose.msra.mxu0 %v6325
    %6329 = vmatprep.subr.bf16.mxu0 0
    %6330 = vmatpush1.bf16.xpose.msra.mxu0 0
    %6331 = vmatprep.subr.bf16.mxu0 0
    %6332 = vmatpush1.bf16.xpose.msra.mxu0 0
    %6333 = vmatprep.subr.bf16.mxu0 0
    %6334 = vmatpush1.bf16.xpose.msra.mxu0 0
    %6335 = vmatprep.subr.bf16.mxu0 0
    %6336 = vmatpush1.bf16.xpose.msra.mxu0 0
    %6337 = vmatprep.subr.bf16.mxu0 0
    %6338 = vmatpush1.bf16.xpose.msra.mxu0 0
    %6339 = vmatprep.subr.bf16.mxu0 0
    %6340 = vmatpush1.bf16.xpose.msra.mxu0 0
    %6341 = vmatprep.subr.bf16.mxu0 0
    %6342 = vmatpush1.bf16.xpose.msra.mxu0 0
    %6343 = vmatprep.subr.bf16.mxu0 0
    %6344 = vmatpush1.bf16.xpose.msra.mxu0 0
    %6345 = vmatprep.subr.bf16.mxu0 0
    %6346 = vmatpush1.bf16.xpose.msra.mxu0 0
    %6347 = vmatprep.subr.bf16.mxu0 0
    %6348 = vmatpush1.bf16.xpose.msra.mxu0 0
    %6349 = vmatprep.subr.bf16.mxu0 0
    %6350 = vmatpush1.bf16.xpose.msra.mxu0 0
    %6351 = vmatprep.subr.bf16.mxu0 0
    %6352 = vmatpush1.bf16.xpose.msra.mxu0 0
    %6353 = vmatprep.subr.bf16.mxu0 0
    %6354 = vmatpush1.bf16.xpose.msra.mxu0 0
    %6355 = vmatprep.subr.bf16.mxu0 0
    %6356 = vmatpush1.bf16.xpose.msra.mxu0 0
    %6357 = vmatprep.subr.bf16.mxu0 0
    %6358 = vmatpush1.bf16.xpose.msra.mxu0 0
    %6359 = vmatprep.mubr.bf16.mxu0 0
    %6360 = vmatmul.mubr.bf16.gmra.mrb[0].mxu0 %v6322
    %v6361 = vpop.f32.mrb[0].mxu0
    %v6362 = vadd.f32 0.0, %v6361
    %v6363 = vpop.f32.mrb[0].mxu0
    %v6364 = vpop.f32.mrb[0].mxu0
    %v6365 = vadd.f32 0.0, %v6364
    %v6366 = vpop.f32.mrb[0].mxu0
    %6367 = vdwg.mxu0
    %6369 = vrot.lane.b32.xlu0 %v6009, 64
    %v6370 = vpop.permute.xlu0 %6369
    %v6372 = vsel %vm632, %v6009, 0
    %v6375 = vsel %vm632, %v6370, 0
    %6377 = vmatprep.subr.bf16.mxu0 0
    %6378 = vmatpush1.bf16.xpose.msra.mxu0 %v6375
    %6379 = vmatprep.subr.bf16.mxu0 0
    %6380 = vmatpush1.bf16.xpose.msra.mxu0 0
    %6381 = vmatprep.subr.bf16.mxu0 0
    %6382 = vmatpush1.bf16.xpose.msra.mxu0 0
    %6383 = vmatprep.subr.bf16.mxu0 0
    %6384 = vmatpush1.bf16.xpose.msra.mxu0 0
    %6385 = vmatprep.subr.bf16.mxu0 0
    %6386 = vmatpush1.bf16.xpose.msra.mxu0 0
    %6387 = vmatprep.subr.bf16.mxu0 0
    %6388 = vmatpush1.bf16.xpose.msra.mxu0 0
    %6389 = vmatprep.subr.bf16.mxu0 0
    %6390 = vmatpush1.bf16.xpose.msra.mxu0 0
    %6391 = vmatprep.subr.bf16.mxu0 0
    %6392 = vmatpush1.bf16.xpose.msra.mxu0 0
    %6393 = vmatprep.subr.bf16.mxu0 0
    %6394 = vmatpush1.bf16.xpose.msra.mxu0 0
    %6395 = vmatprep.subr.bf16.mxu0 0
    %6396 = vmatpush1.bf16.xpose.msra.mxu0 0
    %6397 = vmatprep.subr.bf16.mxu0 0
    %6398 = vmatpush1.bf16.xpose.msra.mxu0 0
    %6399 = vmatprep.subr.bf16.mxu0 0
    %6400 = vmatpush1.bf16.xpose.msra.mxu0 0
    %6401 = vmatprep.subr.bf16.mxu0 0
    %6402 = vmatpush1.bf16.xpose.msra.mxu0 0
    %6403 = vmatprep.subr.bf16.mxu0 0
    %6404 = vmatpush1.bf16.xpose.msra.mxu0 0
    %6405 = vmatprep.subr.bf16.mxu0 0
    %6406 = vmatpush1.bf16.xpose.msra.mxu0 0
    %6407 = vmatprep.subr.bf16.mxu0 0
    %6408 = vmatpush1.bf16.xpose.msra.mxu0 0
    %6409 = vmatprep.mubr.bf16.mxu0 0
    %6410 = vmatmul.mubr.bf16.gmra.mrb[0].mxu0 %v6372
    %v6411 = vpop.f32.mrb[0].mxu0
    %v6412 = vadd.f32 0.0, %v6411
    %v6413 = vpop.f32.mrb[0].mxu0
    %v6414 = vpop.f32.mrb[0].mxu0
    %v6415 = vadd.f32 0.0, %v6414
    %v6416 = vpop.f32.mrb[0].mxu0
    %6417 = vdwg.mxu0
    %v6418 = vsel %vm632, %v6062, -inf
    %6419 = vmax.xlane.f32.xlu0 %v6418
    %v6420 = vpop.xlane.xlu0 %6419
    %v6421 = vsel %vm632, %v6065, -inf
    %6422 = vmax.xlane.f32.xlu0 %v6421
    %v6423 = vpop.xlane.xlu0 %6422
    %v6424 = vsel %vm632, %v6112, -inf
    %6425 = vmax.xlane.f32.xlu0 %v6424
    %v6426 = vpop.xlane.xlu0 %6425
    %v6427 = vsel %vm632, %v6115, -inf
    %6428 = vmax.xlane.f32.xlu0 %v6427
    %v6429 = vpop.xlane.xlu0 %6428
    %v6430 = vsel %vm632, %v6162, -inf
    %6431 = vmax.xlane.f32.xlu0 %v6430
    %v6432 = vpop.xlane.xlu0 %6431
    %v6433 = vsel %vm632, %v6165, -inf
    %6434 = vmax.xlane.f32.xlu0 %v6433
    %v6435 = vpop.xlane.xlu0 %6434
    %v6436 = vsel %vm632, %v6212, -inf
    %6437 = vmax.xlane.f32.xlu0 %v6436
    %v6438 = vpop.xlane.xlu0 %6437
    %v6439 = vsel %vm632, %v6215, -inf
    %6440 = vmax.xlane.f32.xlu0 %v6439
    %v6441 = vpop.xlane.xlu0 %6440
    %v6442 = vsel %vm632, %v6262, -inf
    %6443 = vmax.xlane.f32.xlu0 %v6442
    %v6444 = vpop.xlane.xlu0 %6443
    %v6445 = vsel %vm632, %v6265, -inf
    %6446 = vmax.xlane.f32.xlu0 %v6445
    %v6447 = vpop.xlane.xlu0 %6446
    %v6448 = vsel %vm632, %v6312, -inf
    %6449 = vmax.xlane.f32.xlu0 %v6448
    %v6450 = vpop.xlane.xlu0 %6449
    %v6451 = vsel %vm632, %v6315, -inf
    %6452 = vmax.xlane.f32.xlu0 %v6451
    %v6453 = vpop.xlane.xlu0 %6452
    %v6454 = vsel %vm632, %v6362, -inf
    %6455 = vmax.xlane.f32.xlu0 %v6454
    %v6456 = vpop.xlane.xlu0 %6455
    %v6457 = vsel %vm632, %v6365, -inf
    %6458 = vmax.xlane.f32.xlu0 %v6457
    %v6459 = vpop.xlane.xlu0 %6458
    %v6460 = vsel %vm632, %v6412, -inf
    %6461 = vmax.xlane.f32.xlu0 %v6460
    %v6462 = vpop.xlane.xlu0 %6461
    %v6463 = vsel %vm632, %v6415, -inf
    %6464 = vmax.xlane.f32.xlu0 %v6463
    %v6465 = vpop.xlane.xlu0 %6464
    %v6466 = vsub.f32 %v6062, %v6420
    %v6467 = vsub.f32 %v6065, %v6423
    %v6468 = vsub.f32 %v6112, %v6426
    %v6469 = vsub.f32 %v6115, %v6429
    %v6470 = vsub.f32 %v6162, %v6432
    %v6471 = vsub.f32 %v6165, %v6435
    %v6472 = vsub.f32 %v6212, %v6438
    %v6473 = vsub.f32 %v6215, %v6441
    %v6474 = vsub.f32 %v6262, %v6444
    %v6475 = vsub.f32 %v6265, %v6447
    %v6476 = vsub.f32 %v6312, %v6450
    %v6477 = vsub.f32 %v6315, %v6453
    %v6478 = vsub.f32 %v6362, %v6456
    %v6479 = vsub.f32 %v6365, %v6459
    %v6480 = vsub.f32 %v6412, %v6462
    %v6481 = vsub.f32 %v6415, %v6465
    %v6482 = vmul.f32 %v6466, 1.442695
    %v6483 = vpow.pop %v6482
    %v6484 = vmul.f32 %v6467, 1.442695
    %v6485 = vpow.pop %v6484
    %v6486 = vmul.f32 %v6468, 1.442695
    %v6487 = vpow.pop %v6486
    %v6488 = vmul.f32 %v6469, 1.442695
    %v6489 = vpow.pop %v6488
    %v6490 = vmul.f32 %v6470, 1.442695
    %v6491 = vpow.pop %v6490
    %v6492 = vmul.f32 %v6471, 1.442695
    %v6493 = vpow.pop %v6492
    %v6494 = vmul.f32 %v6472, 1.442695
    %v6495 = vpow.pop %v6494
    %v6496 = vmul.f32 %v6473, 1.442695
    %v6497 = vpow.pop %v6496
    %v6498 = vmul.f32 %v6474, 1.442695
    %v6499 = vpow.pop %v6498
    %v6500 = vmul.f32 %v6475, 1.442695
    %v6501 = vpow.pop %v6500
    %v6502 = vmul.f32 %v6476, 1.442695
    %v6503 = vpow.pop %v6502
    %v6504 = vmul.f32 %v6477, 1.442695
    %v6505 = vpow.pop %v6504
    %v6506 = vmul.f32 %v6478, 1.442695
    %v6507 = vpow.pop %v6506
    %v6508 = vmul.f32 %v6479, 1.442695
    %v6509 = vpow.pop %v6508
    %v6510 = vmul.f32 %v6480, 1.442695
    %v6511 = vpow.pop %v6510
    %v6512 = vmul.f32 %v6481, 1.442695
    %v6513 = vpow.pop %v6512
    %v6514 = vsel %vm632, %v6483, 0.0
    %6515 = vadd.xlane.f32.xlu0 %v6514
    %v6516 = vpop.xlane.xlu0 %6515
    %v6517 = vsel %vm632, %v6485, 0.0
    %6518 = vadd.xlane.f32.xlu0 %v6517
    %v6519 = vpop.xlane.xlu0 %6518
    %v6520 = vsel %vm632, %v6487, 0.0
    %6521 = vadd.xlane.f32.xlu0 %v6520
    %v6522 = vpop.xlane.xlu0 %6521
    %v6523 = vsel %vm632, %v6489, 0.0
    %6524 = vadd.xlane.f32.xlu0 %v6523
    %v6525 = vpop.xlane.xlu0 %6524
    %v6526 = vsel %vm632, %v6491, 0.0
    %6527 = vadd.xlane.f32.xlu0 %v6526
    %v6528 = vpop.xlane.xlu0 %6527
    %v6529 = vsel %vm632, %v6493, 0.0
    %6530 = vadd.xlane.f32.xlu0 %v6529
    %v6531 = vpop.xlane.xlu0 %6530
    %v6532 = vsel %vm632, %v6495, 0.0
    %6533 = vadd.xlane.f32.xlu0 %v6532
    %v6534 = vpop.xlane.xlu0 %6533
    %v6535 = vsel %vm632, %v6497, 0.0
    %6536 = vadd.xlane.f32.xlu0 %v6535
    %v6537 = vpop.xlane.xlu0 %6536
    %v6538 = vsel %vm632, %v6499, 0.0
    %6539 = vadd.xlane.f32.xlu0 %v6538
    %v6540 = vpop.xlane.xlu0 %6539
    %v6541 = vsel %vm632, %v6501, 0.0
    %6542 = vadd.xlane.f32.xlu0 %v6541
    %v6543 = vpop.xlane.xlu0 %6542
    %v6544 = vsel %vm632, %v6503, 0.0
    %6545 = vadd.xlane.f32.xlu0 %v6544
    %v6546 = vpop.xlane.xlu0 %6545
    %v6547 = vsel %vm632, %v6505, 0.0
    %6548 = vadd.xlane.f32.xlu0 %v6547
    %v6549 = vpop.xlane.xlu0 %6548
    %v6550 = vsel %vm632, %v6507, 0.0
    %6551 = vadd.xlane.f32.xlu0 %v6550
    %v6552 = vpop.xlane.xlu0 %6551
    %v6553 = vsel %vm632, %v6509, 0.0
    %6554 = vadd.xlane.f32.xlu0 %v6553
    %v6555 = vpop.xlane.xlu0 %6554
    %v6556 = vsel %vm632, %v6511, 0.0
    %6557 = vadd.xlane.f32.xlu0 %v6556
    %v6558 = vpop.xlane.xlu0 %6557
    %v6559 = vsel %vm632, %v6513, 0.0
    %6560 = vadd.xlane.f32.xlu0 %v6559
    %v6561 = vpop.xlane.xlu0 %6560
    %v6562 = vrcp.pop %v6516
    %v6563 = vmul.f32 %v6483, %v6562
    %v6564 = vrcp.pop %v6519
    %v6565 = vmul.f32 %v6485, %v6564
    %v6566 = vrcp.pop %v6522
    %v6567 = vmul.f32 %v6487, %v6566
    %v6568 = vrcp.pop %v6525
    %v6569 = vmul.f32 %v6489, %v6568
    %v6570 = vrcp.pop %v6528
    %v6571 = vmul.f32 %v6491, %v6570
    %v6572 = vrcp.pop %v6531
    %v6573 = vmul.f32 %v6493, %v6572
    %v6574 = vrcp.pop %v6534
    %v6575 = vmul.f32 %v6495, %v6574
    %v6576 = vrcp.pop %v6537
    %v6577 = vmul.f32 %v6497, %v6576
    %v6578 = vrcp.pop %v6540
    %v6579 = vmul.f32 %v6499, %v6578
    %v6580 = vrcp.pop %v6543
    %v6581 = vmul.f32 %v6501, %v6580
    %v6582 = vrcp.pop %v6546
    %v6583 = vmul.f32 %v6503, %v6582
    %v6584 = vrcp.pop %v6549
    %v6585 = vmul.f32 %v6505, %v6584
    %v6586 = vrcp.pop %v6552
    %v6587 = vmul.f32 %v6507, %v6586
    %v6588 = vrcp.pop %v6555
    %v6589 = vmul.f32 %v6509, %v6588
    %v6590 = vrcp.pop %v6558
    %v6591 = vmul.f32 %v6511, %v6590
    %v6592 = vrcp.pop %v6561
    %v6593 = vmul.f32 %v6513, %v6592
    %v6594 = vpack.c.bf16 %v6565, %v6563
    %v6595 = vpack.c.bf16 %v6569, %v6567
    %v6596 = vpack.c.bf16 %v6573, %v6571
    %v6597 = vpack.c.bf16 %v6577, %v6575
    %v6598 = vpack.c.bf16 %v6581, %v6579
    %v6599 = vpack.c.bf16 %v6585, %v6583
    %v6600 = vpack.c.bf16 %v6589, %v6587
    %v6601 = vpack.c.bf16 %v6593, %v6591
    %v6603 = vsel %vm632, %v6594, 0
    %6605 = vmatprep.subr.bf16.mxu0 0
    %6606 = vmatpush1.bf16.msra.mxu0 %v6010
    %6607 = vmatprep.subr.bf16.mxu0 0
    %6608 = vmatpush1.bf16.msra.mxu0 0
    %6609 = vmatprep.subr.bf16.mxu0 0
    %6610 = vmatpush1.bf16.msra.mxu0 0
    %6611 = vmatprep.subr.bf16.mxu0 0
    %6612 = vmatpush1.bf16.msra.mxu0 0
    %6613 = vmatprep.subr.bf16.mxu0 0
    %6614 = vmatpush1.bf16.msra.mxu0 0
    %6615 = vmatprep.subr.bf16.mxu0 0
    %6616 = vmatpush1.bf16.msra.mxu0 0
    %6617 = vmatprep.subr.bf16.mxu0 0
    %6618 = vmatpush1.bf16.msra.mxu0 0
    %6619 = vmatprep.subr.bf16.mxu0 0
    %6620 = vmatpush1.bf16.msra.mxu0 0
    %6621 = vmatprep.subr.bf16.mxu0 0
    %6622 = vmatpush1.bf16.msra.mxu0 0
    %6623 = vmatprep.subr.bf16.mxu0 0
    %6624 = vmatpush1.bf16.msra.mxu0 0
    %6625 = vmatprep.subr.bf16.mxu0 0
    %6626 = vmatpush1.bf16.msra.mxu0 0
    %6627 = vmatprep.subr.bf16.mxu0 0
    %6628 = vmatpush1.bf16.msra.mxu0 0
    %6629 = vmatprep.subr.bf16.mxu0 0
    %6630 = vmatpush1.bf16.msra.mxu0 0
    %6631 = vmatprep.subr.bf16.mxu0 0
    %6632 = vmatpush1.bf16.msra.mxu0 0
    %6633 = vmatprep.subr.bf16.mxu0 0
    %6634 = vmatpush1.bf16.msra.mxu0 0
    %6635 = vmatprep.subr.bf16.mxu0 0
    %6636 = vmatpush1.bf16.msra.mxu0 0
    %6637 = vmatprep.mubr.bf16.mxu0 0
    %6638 = vmatmul.mubr.bf16.gmra.mrb[0].mxu0 %v6603
    %v6639 = vpop.f32.mrb[0].mxu0
    %v6640 = vadd.f32 0.0, %v6639
    %v6641 = vpop.f32.mrb[0].mxu0
    %v6642 = vpop.f32.mrb[0].mxu0
    %v6643 = vadd.f32 0.0, %v6642
    %v6644 = vpop.f32.mrb[0].mxu0
    %6645 = vdwg.mxu0
    %v6647 = vsel %vm632, %v6595, 0
    %6649 = vmatprep.subr.bf16.mxu0 0
    %6650 = vmatpush1.bf16.msra.mxu0 %v6011
    %6651 = vmatprep.subr.bf16.mxu0 0
    %6652 = vmatpush1.bf16.msra.mxu0 0
    %6653 = vmatprep.subr.bf16.mxu0 0
    %6654 = vmatpush1.bf16.msra.mxu0 0
    %6655 = vmatprep.subr.bf16.mxu0 0
    %6656 = vmatpush1.bf16.msra.mxu0 0
    %6657 = vmatprep.subr.bf16.mxu0 0
    %6658 = vmatpush1.bf16.msra.mxu0 0
    %6659 = vmatprep.subr.bf16.mxu0 0
    %6660 = vmatpush1.bf16.msra.mxu0 0
    %6661 = vmatprep.subr.bf16.mxu0 0
    %6662 = vmatpush1.bf16.msra.mxu0 0
    %6663 = vmatprep.subr.bf16.mxu0 0
    %6664 = vmatpush1.bf16.msra.mxu0 0
    %6665 = vmatprep.subr.bf16.mxu0 0
    %6666 = vmatpush1.bf16.msra.mxu0 0
    %6667 = vmatprep.subr.bf16.mxu0 0
    %6668 = vmatpush1.bf16.msra.mxu0 0
    %6669 = vmatprep.subr.bf16.mxu0 0
    %6670 = vmatpush1.bf16.msra.mxu0 0
    %6671 = vmatprep.subr.bf16.mxu0 0
    %6672 = vmatpush1.bf16.msra.mxu0 0
    %6673 = vmatprep.subr.bf16.mxu0 0
    %6674 = vmatpush1.bf16.msra.mxu0 0
    %6675 = vmatprep.subr.bf16.mxu0 0
    %6676 = vmatpush1.bf16.msra.mxu0 0
    %6677 = vmatprep.subr.bf16.mxu0 0
    %6678 = vmatpush1.bf16.msra.mxu0 0
    %6679 = vmatprep.subr.bf16.mxu0 0
    %6680 = vmatpush1.bf16.msra.mxu0 0
    %6681 = vmatprep.mubr.bf16.mxu0 0
    %6682 = vmatmul.mubr.bf16.gmra.mrb[0].mxu0 %v6647
    %v6683 = vpop.f32.mrb[0].mxu0
    %v6684 = vadd.f32 0.0, %v6683
    %v6685 = vpop.f32.mrb[0].mxu0
    %v6686 = vpop.f32.mrb[0].mxu0
    %v6687 = vadd.f32 0.0, %v6686
    %v6688 = vpop.f32.mrb[0].mxu0
    %6689 = vdwg.mxu0
    %v6691 = vsel %vm632, %v6596, 0
    %6693 = vmatprep.subr.bf16.mxu0 0
    %6694 = vmatpush1.bf16.msra.mxu0 %v6012
    %6695 = vmatprep.subr.bf16.mxu0 0
    %6696 = vmatpush1.bf16.msra.mxu0 0
    %6697 = vmatprep.subr.bf16.mxu0 0
    %6698 = vmatpush1.bf16.msra.mxu0 0
    %6699 = vmatprep.subr.bf16.mxu0 0
    %6700 = vmatpush1.bf16.msra.mxu0 0
    %6701 = vmatprep.subr.bf16.mxu0 0
    %6702 = vmatpush1.bf16.msra.mxu0 0
    %6703 = vmatprep.subr.bf16.mxu0 0
    %6704 = vmatpush1.bf16.msra.mxu0 0
    %6705 = vmatprep.subr.bf16.mxu0 0
    %6706 = vmatpush1.bf16.msra.mxu0 0
    %6707 = vmatprep.subr.bf16.mxu0 0
    %6708 = vmatpush1.bf16.msra.mxu0 0
    %6709 = vmatprep.subr.bf16.mxu0 0
    %6710 = vmatpush1.bf16.msra.mxu0 0
    %6711 = vmatprep.subr.bf16.mxu0 0
    %6712 = vmatpush1.bf16.msra.mxu0 0
    %6713 = vmatprep.subr.bf16.mxu0 0
    %6714 = vmatpush1.bf16.msra.mxu0 0
    %6715 = vmatprep.subr.bf16.mxu0 0
    %6716 = vmatpush1.bf16.msra.mxu0 0
    %6717 = vmatprep.subr.bf16.mxu0 0
    %6718 = vmatpush1.bf16.msra.mxu0 0
    %6719 = vmatprep.subr.bf16.mxu0 0
    %6720 = vmatpush1.bf16.msra.mxu0 0
    %6721 = vmatprep.subr.bf16.mxu0 0
    %6722 = vmatpush1.bf16.msra.mxu0 0
    %6723 = vmatprep.subr.bf16.mxu0 0
    %6724 = vmatpush1.bf16.msra.mxu0 0
    %6725 = vmatprep.mubr.bf16.mxu0 0
    %6726 = vmatmul.mubr.bf16.gmra.mrb[0].mxu0 %v6691
    %v6727 = vpop.f32.mrb[0].mxu0
    %v6728 = vadd.f32 0.0, %v6727
    %v6729 = vpop.f32.mrb[0].mxu0
    %v6730 = vpop.f32.mrb[0].mxu0
    %v6731 = vadd.f32 0.0, %v6730
    %v6732 = vpop.f32.mrb[0].mxu0
    %6733 = vdwg.mxu0
    %v6735 = vsel %vm632, %v6597, 0
    %6737 = vmatprep.subr.bf16.mxu0 0
    %6738 = vmatpush1.bf16.msra.mxu0 %v6013
    %6739 = vmatprep.subr.bf16.mxu0 0
    %6740 = vmatpush1.bf16.msra.mxu0 0
    %6741 = vmatprep.subr.bf16.mxu0 0
    %6742 = vmatpush1.bf16.msra.mxu0 0
    %6743 = vmatprep.subr.bf16.mxu0 0
    %6744 = vmatpush1.bf16.msra.mxu0 0
    %6745 = vmatprep.subr.bf16.mxu0 0
    %6746 = vmatpush1.bf16.msra.mxu0 0
    %6747 = vmatprep.subr.bf16.mxu0 0
    %6748 = vmatpush1.bf16.msra.mxu0 0
    %6749 = vmatprep.subr.bf16.mxu0 0
    %6750 = vmatpush1.bf16.msra.mxu0 0
    %6751 = vmatprep.subr.bf16.mxu0 0
    %6752 = vmatpush1.bf16.msra.mxu0 0
    %6753 = vmatprep.subr.bf16.mxu0 0
    %6754 = vmatpush1.bf16.msra.mxu0 0
    %6755 = vmatprep.subr.bf16.mxu0 0
    %6756 = vmatpush1.bf16.msra.mxu0 0
    %6757 = vmatprep.subr.bf16.mxu0 0
    %6758 = vmatpush1.bf16.msra.mxu0 0
    %6759 = vmatprep.subr.bf16.mxu0 0
    %6760 = vmatpush1.bf16.msra.mxu0 0
    %6761 = vmatprep.subr.bf16.mxu0 0
    %6762 = vmatpush1.bf16.msra.mxu0 0
    %6763 = vmatprep.subr.bf16.mxu0 0
    %6764 = vmatpush1.bf16.msra.mxu0 0
    %6765 = vmatprep.subr.bf16.mxu0 0
    %6766 = vmatpush1.bf16.msra.mxu0 0
    %6767 = vmatprep.subr.bf16.mxu0 0
    %6768 = vmatpush1.bf16.msra.mxu0 0
    %6769 = vmatprep.mubr.bf16.mxu0 0
    %6770 = vmatmul.mubr.bf16.gmra.mrb[0].mxu0 %v6735
    %v6771 = vpop.f32.mrb[0].mxu0
    %v6772 = vadd.f32 0.0, %v6771
    %v6773 = vpop.f32.mrb[0].mxu0
    %v6774 = vpop.f32.mrb[0].mxu0
    %v6775 = vadd.f32 0.0, %v6774
    %v6776 = vpop.f32.mrb[0].mxu0
    %6777 = vdwg.mxu0
    %v6779 = vsel %vm632, %v6598, 0
    %6781 = vmatprep.subr.bf16.mxu0 0
    %6782 = vmatpush1.bf16.msra.mxu0 %v6014
    %6783 = vmatprep.subr.bf16.mxu0 0
    %6784 = vmatpush1.bf16.msra.mxu0 0
    %6785 = vmatprep.subr.bf16.mxu0 0
    %6786 = vmatpush1.bf16.msra.mxu0 0
    %6787 = vmatprep.subr.bf16.mxu0 0
    %6788 = vmatpush1.bf16.msra.mxu0 0
    %6789 = vmatprep.subr.bf16.mxu0 0
    %6790 = vmatpush1.bf16.msra.mxu0 0
    %6791 = vmatprep.subr.bf16.mxu0 0
    %6792 = vmatpush1.bf16.msra.mxu0 0
    %6793 = vmatprep.subr.bf16.mxu0 0
    %6794 = vmatpush1.bf16.msra.mxu0 0
    %6795 = vmatprep.subr.bf16.mxu0 0
    %6796 = vmatpush1.bf16.msra.mxu0 0
    %6797 = vmatprep.subr.bf16.mxu0 0
    %6798 = vmatpush1.bf16.msra.mxu0 0
    %6799 = vmatprep.subr.bf16.mxu0 0
    %6800 = vmatpush1.bf16.msra.mxu0 0
    %6801 = vmatprep.subr.bf16.mxu0 0
    %6802 = vmatpush1.bf16.msra.mxu0 0
    %6803 = vmatprep.subr.bf16.mxu0 0
    %6804 = vmatpush1.bf16.msra.mxu0 0
    %6805 = vmatprep.subr.bf16.mxu0 0
    %6806 = vmatpush1.bf16.msra.mxu0 0
    %6807 = vmatprep.subr.bf16.mxu0 0
    %6808 = vmatpush1.bf16.msra.mxu0 0
    %6809 = vmatprep.subr.bf16.mxu0 0
    %6810 = vmatpush1.bf16.msra.mxu0 0
    %6811 = vmatprep.subr.bf16.mxu0 0
    %6812 = vmatpush1.bf16.msra.mxu0 0
    %6813 = vmatprep.mubr.bf16.mxu0 0
    %6814 = vmatmul.mubr.bf16.gmra.mrb[0].mxu0 %v6779
    %v6815 = vpop.f32.mrb[0].mxu0
    %v6816 = vadd.f32 0.0, %v6815
    %v6817 = vpop.f32.mrb[0].mxu0
    %v6818 = vpop.f32.mrb[0].mxu0
    %v6819 = vadd.f32 0.0, %v6818
    %v6820 = vpop.f32.mrb[0].mxu0
    %6821 = vdwg.mxu0
    %v6823 = vsel %vm632, %v6599, 0
    %6825 = vmatprep.subr.bf16.mxu0 0
    %6826 = vmatpush1.bf16.msra.mxu0 %v6015
    %6827 = vmatprep.subr.bf16.mxu0 0
    %6828 = vmatpush1.bf16.msra.mxu0 0
    %6829 = vmatprep.subr.bf16.mxu0 0
    %6830 = vmatpush1.bf16.msra.mxu0 0
    %6831 = vmatprep.subr.bf16.mxu0 0
    %6832 = vmatpush1.bf16.msra.mxu0 0
    %6833 = vmatprep.subr.bf16.mxu0 0
    %6834 = vmatpush1.bf16.msra.mxu0 0
    %6835 = vmatprep.subr.bf16.mxu0 0
    %6836 = vmatpush1.bf16.msra.mxu0 0
    %6837 = vmatprep.subr.bf16.mxu0 0
    %6838 = vmatpush1.bf16.msra.mxu0 0
    %6839 = vmatprep.subr.bf16.mxu0 0
    %6840 = vmatpush1.bf16.msra.mxu0 0
    %6841 = vmatprep.subr.bf16.mxu0 0
    %6842 = vmatpush1.bf16.msra.mxu0 0
    %6843 = vmatprep.subr.bf16.mxu0 0
    %6844 = vmatpush1.bf16.msra.mxu0 0
    %6845 = vmatprep.subr.bf16.mxu0 0
    %6846 = vmatpush1.bf16.msra.mxu0 0
    %6847 = vmatprep.subr.bf16.mxu0 0
    %6848 = vmatpush1.bf16.msra.mxu0 0
    %6849 = vmatprep.subr.bf16.mxu0 0
    %6850 = vmatpush1.bf16.msra.mxu0 0
    %6851 = vmatprep.subr.bf16.mxu0 0
    %6852 = vmatpush1.bf16.msra.mxu0 0
    %6853 = vmatprep.subr.bf16.mxu0 0
    %6854 = vmatpush1.bf16.msra.mxu0 0
    %6855 = vmatprep.subr.bf16.mxu0 0
    %6856 = vmatpush1.bf16.msra.mxu0 0
    %6857 = vmatprep.mubr.bf16.mxu0 0
    %6858 = vmatmul.mubr.bf16.gmra.mrb[0].mxu0 %v6823
    %v6859 = vpop.f32.mrb[0].mxu0
    %v6860 = vadd.f32 0.0, %v6859
    %v6861 = vpop.f32.mrb[0].mxu0
    %v6862 = vpop.f32.mrb[0].mxu0
    %v6863 = vadd.f32 0.0, %v6862
    %v6864 = vpop.f32.mrb[0].mxu0
    %6865 = vdwg.mxu0
    %v6867 = vsel %vm632, %v6600, 0
    %6869 = vmatprep.subr.bf16.mxu0 0
    %6870 = vmatpush1.bf16.msra.mxu0 %v6016
    %6871 = vmatprep.subr.bf16.mxu0 0
    %6872 = vmatpush1.bf16.msra.mxu0 0
    %6873 = vmatprep.subr.bf16.mxu0 0
    %6874 = vmatpush1.bf16.msra.mxu0 0
    %6875 = vmatprep.subr.bf16.mxu0 0
    %6876 = vmatpush1.bf16.msra.mxu0 0
    %6877 = vmatprep.subr.bf16.mxu0 0
    %6878 = vmatpush1.bf16.msra.mxu0 0
    %6879 = vmatprep.subr.bf16.mxu0 0
    %6880 = vmatpush1.bf16.msra.mxu0 0
    %6881 = vmatprep.subr.bf16.mxu0 0
    %6882 = vmatpush1.bf16.msra.mxu0 0
    %6883 = vmatprep.subr.bf16.mxu0 0
    %6884 = vmatpush1.bf16.msra.mxu0 0
    %6885 = vmatprep.subr.bf16.mxu0 0
    %6886 = vmatpush1.bf16.msra.mxu0 0
    %6887 = vmatprep.subr.bf16.mxu0 0
    %6888 = vmatpush1.bf16.msra.mxu0 0
    %6889 = vmatprep.subr.bf16.mxu0 0
    %6890 = vmatpush1.bf16.msra.mxu0 0
    %6891 = vmatprep.subr.bf16.mxu0 0
    %6892 = vmatpush1.bf16.msra.mxu0 0
    %6893 = vmatprep.subr.bf16.mxu0 0
    %6894 = vmatpush1.bf16.msra.mxu0 0
    %6895 = vmatprep.subr.bf16.mxu0 0
    %6896 = vmatpush1.bf16.msra.mxu0 0
    %6897 = vmatprep.subr.bf16.mxu0 0
    %6898 = vmatpush1.bf16.msra.mxu0 0
    %6899 = vmatprep.subr.bf16.mxu0 0
    %6900 = vmatpush1.bf16.msra.mxu0 0
    %6901 = vmatprep.mubr.bf16.mxu0 0
    %6902 = vmatmul.mubr.bf16.gmra.mrb[0].mxu0 %v6867
    %v6903 = vpop.f32.mrb[0].mxu0
    %v6904 = vadd.f32 0.0, %v6903
    %v6905 = vpop.f32.mrb[0].mxu0
    %v6906 = vpop.f32.mrb[0].mxu0
    %v6907 = vadd.f32 0.0, %v6906
    %v6908 = vpop.f32.mrb[0].mxu0
    %6909 = vdwg.mxu0
    %v6911 = vsel %vm632, %v6601, 0
    %6913 = vmatprep.subr.bf16.mxu0 0
    %6914 = vmatpush1.bf16.msra.mxu0 %v6017
    %6915 = vmatprep.subr.bf16.mxu0 0
    %6916 = vmatpush1.bf16.msra.mxu0 0
    %6917 = vmatprep.subr.bf16.mxu0 0
    %6918 = vmatpush1.bf16.msra.mxu0 0
    %6919 = vmatprep.subr.bf16.mxu0 0
    %6920 = vmatpush1.bf16.msra.mxu0 0
    %6921 = vmatprep.subr.bf16.mxu0 0
    %6922 = vmatpush1.bf16.msra.mxu0 0
    %6923 = vmatprep.subr.bf16.mxu0 0
    %6924 = vmatpush1.bf16.msra.mxu0 0
    %6925 = vmatprep.subr.bf16.mxu0 0
    %6926 = vmatpush1.bf16.msra.mxu0 0
    %6927 = vmatprep.subr.bf16.mxu0 0
    %6928 = vmatpush1.bf16.msra.mxu0 0
    %6929 = vmatprep.subr.bf16.mxu0 0
    %6930 = vmatpush1.bf16.msra.mxu0 0
    %6931 = vmatprep.subr.bf16.mxu0 0
    %6932 = vmatpush1.bf16.msra.mxu0 0
    %6933 = vmatprep.subr.bf16.mxu0 0
    %6934 = vmatpush1.bf16.msra.mxu0 0
    %6935 = vmatprep.subr.bf16.mxu0 0
    %6936 = vmatpush1.bf16.msra.mxu0 0
    %6937 = vmatprep.subr.bf16.mxu0 0
    %6938 = vmatpush1.bf16.msra.mxu0 0
    %6939 = vmatprep.subr.bf16.mxu0 0
    %6940 = vmatpush1.bf16.msra.mxu0 0
    %6941 = vmatprep.subr.bf16.mxu0 0
    %6942 = vmatpush1.bf16.msra.mxu0 0
    %6943 = vmatprep.subr.bf16.mxu0 0
    %6944 = vmatpush1.bf16.msra.mxu0 0
    %6945 = vmatprep.mubr.bf16.mxu0 0
    %6946 = vmatmul.mubr.bf16.gmra.mrb[0].mxu0 %v6911
    %v6947 = vpop.f32.mrb[0].mxu0
    %v6948 = vadd.f32 0.0, %v6947
    %v6949 = vpop.f32.mrb[0].mxu0
    %v6950 = vpop.f32.mrb[0].mxu0
    %v6951 = vadd.f32 0.0, %v6950
    %v6952 = vpop.f32.mrb[0].mxu0
    %6953 = vdwg.mxu0
    %6954 = vrot.lane.b32.xlu0 %v6002, 112
    %v6955 = vpop.permute.xlu0 %6954
    %6956 = vrot.lane.b32.xlu0 %v6002, 48
    %v6957 = vpop.permute.xlu0 %6956
    %v6959 = vsel %vm632, %v6955, 0
    %v6962 = vsel %vm632, %v6957, 0
    %6964 = vmatprep.subr.bf16.mxu0 0
    %6965 = vmatpush1.bf16.xpose.msra.mxu0 %v6962
    %6966 = vmatprep.subr.bf16.mxu0 0
    %6967 = vmatpush1.bf16.xpose.msra.mxu0 0
    %6968 = vmatprep.subr.bf16.mxu0 0
    %6969 = vmatpush1.bf16.xpose.msra.mxu0 0
    %6970 = vmatprep.subr.bf16.mxu0 0
    %6971 = vmatpush1.bf16.xpose.msra.mxu0 0
    %6972 = vmatprep.subr.bf16.mxu0 0
    %6973 = vmatpush1.bf16.xpose.msra.mxu0 0
    %6974 = vmatprep.subr.bf16.mxu0 0
    %6975 = vmatpush1.bf16.xpose.msra.mxu0 0
    %6976 = vmatprep.subr.bf16.mxu0 0
    %6977 = vmatpush1.bf16.xpose.msra.mxu0 0
    %6978 = vmatprep.subr.bf16.mxu0 0
    %6979 = vmatpush1.bf16.xpose.msra.mxu0 0
    %6980 = vmatprep.subr.bf16.mxu0 0
    %6981 = vmatpush1.bf16.xpose.msra.mxu0 0
    %6982 = vmatprep.subr.bf16.mxu0 0
    %6983 = vmatpush1.bf16.xpose.msra.mxu0 0
    %6984 = vmatprep.subr.bf16.mxu0 0
    %6985 = vmatpush1.bf16.xpose.msra.mxu0 0
    %6986 = vmatprep.subr.bf16.mxu0 0
    %6987 = vmatpush1.bf16.xpose.msra.mxu0 0
    %6988 = vmatprep.subr.bf16.mxu0 0
    %6989 = vmatpush1.bf16.xpose.msra.mxu0 0
    %6990 = vmatprep.subr.bf16.mxu0 0
    %6991 = vmatpush1.bf16.xpose.msra.mxu0 0
    %6992 = vmatprep.subr.bf16.mxu0 0
    %6993 = vmatpush1.bf16.xpose.msra.mxu0 0
    %6994 = vmatprep.subr.bf16.mxu0 0
    %6995 = vmatpush1.bf16.xpose.msra.mxu0 0
    %6996 = vmatprep.mubr.bf16.mxu0 0
    %6997 = vmatmul.mubr.bf16.gmra.mrb[0].mxu0 %v6959
    %v6998 = vpop.f32.mrb[0].mxu0
    %v6999 = vadd.f32 0.0, %v6998
    %v7000 = vpop.f32.mrb[0].mxu0
    %v7001 = vpop.f32.mrb[0].mxu0
    %v7002 = vadd.f32 0.0, %v7001
    %v7003 = vpop.f32.mrb[0].mxu0
    %7004 = vdwg.mxu0
    %7005 = vrot.lane.b32.xlu0 %v6003, 112
    %v7006 = vpop.permute.xlu0 %7005
    %7007 = vrot.lane.b32.xlu0 %v6003, 48
    %v7008 = vpop.permute.xlu0 %7007
    %v7010 = vsel %vm632, %v7006, 0
    %v7013 = vsel %vm632, %v7008, 0
    %7015 = vmatprep.subr.bf16.mxu0 0
    %7016 = vmatpush1.bf16.xpose.msra.mxu0 %v7013
    %7017 = vmatprep.subr.bf16.mxu0 0
    %7018 = vmatpush1.bf16.xpose.msra.mxu0 0
    %7019 = vmatprep.subr.bf16.mxu0 0
    %7020 = vmatpush1.bf16.xpose.msra.mxu0 0
    %7021 = vmatprep.subr.bf16.mxu0 0
    %7022 = vmatpush1.bf16.xpose.msra.mxu0 0
    %7023 = vmatprep.subr.bf16.mxu0 0
    %7024 = vmatpush1.bf16.xpose.msra.mxu0 0
    %7025 = vmatprep.subr.bf16.mxu0 0
    %7026 = vmatpush1.bf16.xpose.msra.mxu0 0
    %7027 = vmatprep.subr.bf16.mxu0 0
    %7028 = vmatpush1.bf16.xpose.msra.mxu0 0
    %7029 = vmatprep.subr.bf16.mxu0 0
    %7030 = vmatpush1.bf16.xpose.msra.mxu0 0
    %7031 = vmatprep.subr.bf16.mxu0 0
    %7032 = vmatpush1.bf16.xpose.msra.mxu0 0
    %7033 = vmatprep.subr.bf16.mxu0 0
    %7034 = vmatpush1.bf16.xpose.msra.mxu0 0
    %7035 = vmatprep.subr.bf16.mxu0 0
    %7036 = vmatpush1.bf16.xpose.msra.mxu0 0
    %7037 = vmatprep.subr.bf16.mxu0 0
    %7038 = vmatpush1.bf16.xpose.msra.mxu0 0
    %7039 = vmatprep.subr.bf16.mxu0 0
    %7040 = vmatpush1.bf16.xpose.msra.mxu0 0
    %7041 = vmatprep.subr.bf16.mxu0 0
    %7042 = vmatpush1.bf16.xpose.msra.mxu0 0
    %7043 = vmatprep.subr.bf16.mxu0 0
    %7044 = vmatpush1.bf16.xpose.msra.mxu0 0
    %7045 = vmatprep.subr.bf16.mxu0 0
    %7046 = vmatpush1.bf16.xpose.msra.mxu0 0
    %7047 = vmatprep.mubr.bf16.mxu0 0
    %7048 = vmatmul.mubr.bf16.gmra.mrb[0].mxu0 %v7010
    %v7049 = vpop.f32.mrb[0].mxu0
    %v7050 = vadd.f32 0.0, %v7049
    %v7051 = vpop.f32.mrb[0].mxu0
    %v7052 = vpop.f32.mrb[0].mxu0
    %v7053 = vadd.f32 0.0, %v7052
    %v7054 = vpop.f32.mrb[0].mxu0
    %7055 = vdwg.mxu0
    %7056 = vrot.lane.b32.xlu0 %v6004, 112
    %v7057 = vpop.permute.xlu0 %7056
    %7058 = vrot.lane.b32.xlu0 %v6004, 48
    %v7059 = vpop.permute.xlu0 %7058
    %v7061 = vsel %vm632, %v7057, 0
    %v7064 = vsel %vm632, %v7059, 0
    %7066 = vmatprep.subr.bf16.mxu0 0
    %7067 = vmatpush1.bf16.xpose.msra.mxu0 %v7064
    %7068 = vmatprep.subr.bf16.mxu0 0
    %7069 = vmatpush1.bf16.xpose.msra.mxu0 0
    %7070 = vmatprep.subr.bf16.mxu0 0
    %7071 = vmatpush1.bf16.xpose.msra.mxu0 0
    %7072 = vmatprep.subr.bf16.mxu0 0
    %7073 = vmatpush1.bf16.xpose.msra.mxu0 0
    %7074 = vmatprep.subr.bf16.mxu0 0
    %7075 = vmatpush1.bf16.xpose.msra.mxu0 0
    %7076 = vmatprep.subr.bf16.mxu0 0
    %7077 = vmatpush1.bf16.xpose.msra.mxu0 0
    %7078 = vmatprep.subr.bf16.mxu0 0
    %7079 = vmatpush1.bf16.xpose.msra.mxu0 0
    %7080 = vmatprep.subr.bf16.mxu0 0
    %7081 = vmatpush1.bf16.xpose.msra.mxu0 0
    %7082 = vmatprep.subr.bf16.mxu0 0
    %7083 = vmatpush1.bf16.xpose.msra.mxu0 0
    %7084 = vmatprep.subr.bf16.mxu0 0
    %7085 = vmatpush1.bf16.xpose.msra.mxu0 0
    %7086 = vmatprep.subr.bf16.mxu0 0
    %7087 = vmatpush1.bf16.xpose.msra.mxu0 0
    %7088 = vmatprep.subr.bf16.mxu0 0
    %7089 = vmatpush1.bf16.xpose.msra.mxu0 0
    %7090 = vmatprep.subr.bf16.mxu0 0
    %7091 = vmatpush1.bf16.xpose.msra.mxu0 0
    %7092 = vmatprep.subr.bf16.mxu0 0
    %7093 = vmatpush1.bf16.xpose.msra.mxu0 0
    %7094 = vmatprep.subr.bf16.mxu0 0
    %7095 = vmatpush1.bf16.xpose.msra.mxu0 0
    %7096 = vmatprep.subr.bf16.mxu0 0
    %7097 = vmatpush1.bf16.xpose.msra.mxu0 0
    %7098 = vmatprep.mubr.bf16.mxu0 0
    %7099 = vmatmul.mubr.bf16.gmra.mrb[0].mxu0 %v7061
    %v7100 = vpop.f32.mrb[0].mxu0
    %v7101 = vadd.f32 0.0, %v7100
    %v7102 = vpop.f32.mrb[0].mxu0
    %v7103 = vpop.f32.mrb[0].mxu0
    %v7104 = vadd.f32 0.0, %v7103
    %v7105 = vpop.f32.mrb[0].mxu0
    %7106 = vdwg.mxu0
    %7107 = vrot.lane.b32.xlu0 %v6005, 112
    %v7108 = vpop.permute.xlu0 %7107
    %7109 = vrot.lane.b32.xlu0 %v6005, 48
    %v7110 = vpop.permute.xlu0 %7109
    %v7112 = vsel %vm632, %v7108, 0
    %v7115 = vsel %vm632, %v7110, 0
    %7117 = vmatprep.subr.bf16.mxu0 0
    %7118 = vmatpush1.bf16.xpose.msra.mxu0 %v7115
    %7119 = vmatprep.subr.bf16.mxu0 0
    %7120 = vmatpush1.bf16.xpose.msra.mxu0 0
    %7121 = vmatprep.subr.bf16.mxu0 0
    %7122 = vmatpush1.bf16.xpose.msra.mxu0 0
    %7123 = vmatprep.subr.bf16.mxu0 0
    %7124 = vmatpush1.bf16.xpose.msra.mxu0 0
    %7125 = vmatprep.subr.bf16.mxu0 0
    %7126 = vmatpush1.bf16.xpose.msra.mxu0 0
    %7127 = vmatprep.subr.bf16.mxu0 0
    %7128 = vmatpush1.bf16.xpose.msra.mxu0 0
    %7129 = vmatprep.subr.bf16.mxu0 0
    %7130 = vmatpush1.bf16.xpose.msra.mxu0 0
    %7131 = vmatprep.subr.bf16.mxu0 0
    %7132 = vmatpush1.bf16.xpose.msra.mxu0 0
    %7133 = vmatprep.subr.bf16.mxu0 0
    %7134 = vmatpush1.bf16.xpose.msra.mxu0 0
    %7135 = vmatprep.subr.bf16.mxu0 0
    %7136 = vmatpush1.bf16.xpose.msra.mxu0 0
    %7137 = vmatprep.subr.bf16.mxu0 0
    %7138 = vmatpush1.bf16.xpose.msra.mxu0 0
    %7139 = vmatprep.subr.bf16.mxu0 0
    %7140 = vmatpush1.bf16.xpose.msra.mxu0 0
    %7141 = vmatprep.subr.bf16.mxu0 0
    %7142 = vmatpush1.bf16.xpose.msra.mxu0 0
    %7143 = vmatprep.subr.bf16.mxu0 0
    %7144 = vmatpush1.bf16.xpose.msra.mxu0 0
    %7145 = vmatprep.subr.bf16.mxu0 0
    %7146 = vmatpush1.bf16.xpose.msra.mxu0 0
    %7147 = vmatprep.subr.bf16.mxu0 0
    %7148 = vmatpush1.bf16.xpose.msra.mxu0 0
    %7149 = vmatprep.mubr.bf16.mxu0 0
    %7150 = vmatmul.mubr.bf16.gmra.mrb[0].mxu0 %v7112
    %v7151 = vpop.f32.mrb[0].mxu0
    %v7152 = vadd.f32 0.0, %v7151
    %v7153 = vpop.f32.mrb[0].mxu0
    %v7154 = vpop.f32.mrb[0].mxu0
    %v7155 = vadd.f32 0.0, %v7154
    %v7156 = vpop.f32.mrb[0].mxu0
    %7157 = vdwg.mxu0
    %7158 = vrot.lane.b32.xlu0 %v6006, 112
    %v7159 = vpop.permute.xlu0 %7158
    %7160 = vrot.lane.b32.xlu0 %v6006, 48
    %v7161 = vpop.permute.xlu0 %7160
    %v7163 = vsel %vm632, %v7159, 0
    %v7166 = vsel %vm632, %v7161, 0
    %7168 = vmatprep.subr.bf16.mxu0 0
    %7169 = vmatpush1.bf16.xpose.msra.mxu0 %v7166
    %7170 = vmatprep.subr.bf16.mxu0 0
    %7171 = vmatpush1.bf16.xpose.msra.mxu0 0
    %7172 = vmatprep.subr.bf16.mxu0 0
    %7173 = vmatpush1.bf16.xpose.msra.mxu0 0
    %7174 = vmatprep.subr.bf16.mxu0 0
    %7175 = vmatpush1.bf16.xpose.msra.mxu0 0
    %7176 = vmatprep.subr.bf16.mxu0 0
    %7177 = vmatpush1.bf16.xpose.msra.mxu0 0
    %7178 = vmatprep.subr.bf16.mxu0 0
    %7179 = vmatpush1.bf16.xpose.msra.mxu0 0
    %7180 = vmatprep.subr.bf16.mxu0 0
    %7181 = vmatpush1.bf16.xpose.msra.mxu0 0
    %7182 = vmatprep.subr.bf16.mxu0 0
    %7183 = vmatpush1.bf16.xpose.msra.mxu0 0
    %7184 = vmatprep.subr.bf16.mxu0 0
    %7185 = vmatpush1.bf16.xpose.msra.mxu0 0
    %7186 = vmatprep.subr.bf16.mxu0 0
    %7187 = vmatpush1.bf16.xpose.msra.mxu0 0
    %7188 = vmatprep.subr.bf16.mxu0 0
    %7189 = vmatpush1.bf16.xpose.msra.mxu0 0
    %7190 = vmatprep.subr.bf16.mxu0 0
    %7191 = vmatpush1.bf16.xpose.msra.mxu0 0
    %7192 = vmatprep.subr.bf16.mxu0 0
    %7193 = vmatpush1.bf16.xpose.msra.mxu0 0
    %7194 = vmatprep.subr.bf16.mxu0 0
    %7195 = vmatpush1.bf16.xpose.msra.mxu0 0
    %7196 = vmatprep.subr.bf16.mxu0 0
    %7197 = vmatpush1.bf16.xpose.msra.mxu0 0
    %7198 = vmatprep.subr.bf16.mxu0 0
    %7199 = vmatpush1.bf16.xpose.msra.mxu0 0
    %7200 = vmatprep.mubr.bf16.mxu0 0
    %7201 = vmatmul.mubr.bf16.gmra.mrb[0].mxu0 %v7163
    %v7202 = vpop.f32.mrb[0].mxu0
    %v7203 = vadd.f32 0.0, %v7202
    %v7204 = vpop.f32.mrb[0].mxu0
    %v7205 = vpop.f32.mrb[0].mxu0
    %v7206 = vadd.f32 0.0, %v7205
    %v7207 = vpop.f32.mrb[0].mxu0
    %7208 = vdwg.mxu0
    %7209 = vrot.lane.b32.xlu0 %v6007, 112
    %v7210 = vpop.permute.xlu0 %7209
    %7211 = vrot.lane.b32.xlu0 %v6007, 48
    %v7212 = vpop.permute.xlu0 %7211
    %v7214 = vsel %vm632, %v7210, 0
    %v7217 = vsel %vm632, %v7212, 0
    %7219 = vmatprep.subr.bf16.mxu0 0
    %7220 = vmatpush1.bf16.xpose.msra.mxu0 %v7217
    %7221 = vmatprep.subr.bf16.mxu0 0
    %7222 = vmatpush1.bf16.xpose.msra.mxu0 0
    %7223 = vmatprep.subr.bf16.mxu0 0
    %7224 = vmatpush1.bf16.xpose.msra.mxu0 0
    %7225 = vmatprep.subr.bf16.mxu0 0
    %7226 = vmatpush1.bf16.xpose.msra.mxu0 0
    %7227 = vmatprep.subr.bf16.mxu0 0
    %7228 = vmatpush1.bf16.xpose.msra.mxu0 0
    %7229 = vmatprep.subr.bf16.mxu0 0
    %7230 = vmatpush1.bf16.xpose.msra.mxu0 0
    %7231 = vmatprep.subr.bf16.mxu0 0
    %7232 = vmatpush1.bf16.xpose.msra.mxu0 0
    %7233 = vmatprep.subr.bf16.mxu0 0
    %7234 = vmatpush1.bf16.xpose.msra.mxu0 0
    %7235 = vmatprep.subr.bf16.mxu0 0
    %7236 = vmatpush1.bf16.xpose.msra.mxu0 0
    %7237 = vmatprep.subr.bf16.mxu0 0
    %7238 = vmatpush1.bf16.xpose.msra.mxu0 0
    %7239 = vmatprep.subr.bf16.mxu0 0
    %7240 = vmatpush1.bf16.xpose.msra.mxu0 0
    %7241 = vmatprep.subr.bf16.mxu0 0
    %7242 = vmatpush1.bf16.xpose.msra.mxu0 0
    %7243 = vmatprep.subr.bf16.mxu0 0
    %7244 = vmatpush1.bf16.xpose.msra.mxu0 0
    %7245 = vmatprep.subr.bf16.mxu0 0
    %7246 = vmatpush1.bf16.xpose.msra.mxu0 0
    %7247 = vmatprep.subr.bf16.mxu0 0
    %7248 = vmatpush1.bf16.xpose.msra.mxu0 0
    %7249 = vmatprep.subr.bf16.mxu0 0
    %7250 = vmatpush1.bf16.xpose.msra.mxu0 0
    %7251 = vmatprep.mubr.bf16.mxu0 0
    %7252 = vmatmul.mubr.bf16.gmra.mrb[0].mxu0 %v7214
    %v7253 = vpop.f32.mrb[0].mxu0
    %v7254 = vadd.f32 0.0, %v7253
    %v7255 = vpop.f32.mrb[0].mxu0
    %v7256 = vpop.f32.mrb[0].mxu0
    %v7257 = vadd.f32 0.0, %v7256
    %v7258 = vpop.f32.mrb[0].mxu0
    %7259 = vdwg.mxu0
    %7260 = vrot.lane.b32.xlu0 %v6008, 112
    %v7261 = vpop.permute.xlu0 %7260
    %7262 = vrot.lane.b32.xlu0 %v6008, 48
    %v7263 = vpop.permute.xlu0 %7262
    %v7265 = vsel %vm632, %v7261, 0
    %v7268 = vsel %vm632, %v7263, 0
    %7270 = vmatprep.subr.bf16.mxu0 0
    %7271 = vmatpush1.bf16.xpose.msra.mxu0 %v7268
    %7272 = vmatprep.subr.bf16.mxu0 0
    %7273 = vmatpush1.bf16.xpose.msra.mxu0 0
    %7274 = vmatprep.subr.bf16.mxu0 0
    %7275 = vmatpush1.bf16.xpose.msra.mxu0 0
    %7276 = vmatprep.subr.bf16.mxu0 0
    %7277 = vmatpush1.bf16.xpose.msra.mxu0 0
    %7278 = vmatprep.subr.bf16.mxu0 0
    %7279 = vmatpush1.bf16.xpose.msra.mxu0 0
    %7280 = vmatprep.subr.bf16.mxu0 0
    %7281 = vmatpush1.bf16.xpose.msra.mxu0 0
    %7282 = vmatprep.subr.bf16.mxu0 0
    %7283 = vmatpush1.bf16.xpose.msra.mxu0 0
    %7284 = vmatprep.subr.bf16.mxu0 0
    %7285 = vmatpush1.bf16.xpose.msra.mxu0 0
    %7286 = vmatprep.subr.bf16.mxu0 0
    %7287 = vmatpush1.bf16.xpose.msra.mxu0 0
    %7288 = vmatprep.subr.bf16.mxu0 0
    %7289 = vmatpush1.bf16.xpose.msra.mxu0 0
    %7290 = vmatprep.subr.bf16.mxu0 0
    %7291 = vmatpush1.bf16.xpose.msra.mxu0 0
    %7292 = vmatprep.subr.bf16.mxu0 0
    %7293 = vmatpush1.bf16.xpose.msra.mxu0 0
    %7294 = vmatprep.subr.bf16.mxu0 0
    %7295 = vmatpush1.bf16.xpose.msra.mxu0 0
    %7296 = vmatprep.subr.bf16.mxu0 0
    %7297 = vmatpush1.bf16.xpose.msra.mxu0 0
    %7298 = vmatprep.subr.bf16.mxu0 0
    %7299 = vmatpush1.bf16.xpose.msra.mxu0 0
    %7300 = vmatprep.subr.bf16.mxu0 0
    %7301 = vmatpush1.bf16.xpose.msra.mxu0 0
    %7302 = vmatprep.mubr.bf16.mxu0 0
    %7303 = vmatmul.mubr.bf16.gmra.mrb[0].mxu0 %v7265
    %v7304 = vpop.f32.mrb[0].mxu0
    %v7305 = vadd.f32 0.0, %v7304
    %v7306 = vpop.f32.mrb[0].mxu0
    %v7307 = vpop.f32.mrb[0].mxu0
    %v7308 = vadd.f32 0.0, %v7307
    %v7309 = vpop.f32.mrb[0].mxu0
    %7310 = vdwg.mxu0
    %7311 = vrot.lane.b32.xlu0 %v6009, 112
    %v7312 = vpop.permute.xlu0 %7311
    %7313 = vrot.lane.b32.xlu0 %v6009, 48
    %v7314 = vpop.permute.xlu0 %7313
    %v7316 = vsel %vm632, %v7312, 0
    %v7319 = vsel %vm632, %v7314, 0
    %7321 = vmatprep.subr.bf16.mxu0 0
    %7322 = vmatpush1.bf16.xpose.msra.mxu0 %v7319
    %7323 = vmatprep.subr.bf16.mxu0 0
    %7324 = vmatpush1.bf16.xpose.msra.mxu0 0
    %7325 = vmatprep.subr.bf16.mxu0 0
    %7326 = vmatpush1.bf16.xpose.msra.mxu0 0
    %7327 = vmatprep.subr.bf16.mxu0 0
    %7328 = vmatpush1.bf16.xpose.msra.mxu0 0
    %7329 = vmatprep.subr.bf16.mxu0 0
    %7330 = vmatpush1.bf16.xpose.msra.mxu0 0
    %7331 = vmatprep.subr.bf16.mxu0 0
    %7332 = vmatpush1.bf16.xpose.msra.mxu0 0
    %7333 = vmatprep.subr.bf16.mxu0 0
    %7334 = vmatpush1.bf16.xpose.msra.mxu0 0
    %7335 = vmatprep.subr.bf16.mxu0 0
    %7336 = vmatpush1.bf16.xpose.msra.mxu0 0
    %7337 = vmatprep.subr.bf16.mxu0 0
    %7338 = vmatpush1.bf16.xpose.msra.mxu0 0
    %7339 = vmatprep.subr.bf16.mxu0 0
    %7340 = vmatpush1.bf16.xpose.msra.mxu0 0
    %7341 = vmatprep.subr.bf16.mxu0 0
    %7342 = vmatpush1.bf16.xpose.msra.mxu0 0
    %7343 = vmatprep.subr.bf16.mxu0 0
    %7344 = vmatpush1.bf16.xpose.msra.mxu0 0
    %7345 = vmatprep.subr.bf16.mxu0 0
    %7346 = vmatpush1.bf16.xpose.msra.mxu0 0
    %7347 = vmatprep.subr.bf16.mxu0 0
    %7348 = vmatpush1.bf16.xpose.msra.mxu0 0
    %7349 = vmatprep.subr.bf16.mxu0 0
    %7350 = vmatpush1.bf16.xpose.msra.mxu0 0
    %7351 = vmatprep.subr.bf16.mxu0 0
    %7352 = vmatpush1.bf16.xpose.msra.mxu0 0
    %7353 = vmatprep.mubr.bf16.mxu0 0
    %7354 = vmatmul.mubr.bf16.gmra.mrb[0].mxu0 %v7316
    %v7355 = vpop.f32.mrb[0].mxu0
    %v7356 = vadd.f32 0.0, %v7355
    %v7357 = vpop.f32.mrb[0].mxu0
    %v7358 = vpop.f32.mrb[0].mxu0
    %v7359 = vadd.f32 0.0, %v7358
    %v7360 = vpop.f32.mrb[0].mxu0
    %7361 = vdwg.mxu0
    %v7362 = vsel %vm632, %v6999, -inf
    %7363 = vmax.xlane.f32.xlu0 %v7362
    %v7364 = vpop.xlane.xlu0 %7363
    %v7365 = vsel %vm632, %v7002, -inf
    %7366 = vmax.xlane.f32.xlu0 %v7365
    %v7367 = vpop.xlane.xlu0 %7366
    %v7368 = vsel %vm632, %v7050, -inf
    %7369 = vmax.xlane.f32.xlu0 %v7368
    %v7370 = vpop.xlane.xlu0 %7369
    %v7371 = vsel %vm632, %v7053, -inf
    %7372 = vmax.xlane.f32.xlu0 %v7371
    %v7373 = vpop.xlane.xlu0 %7372
    %v7374 = vsel %vm632, %v7101, -inf
    %7375 = vmax.xlane.f32.xlu0 %v7374
    %v7376 = vpop.xlane.xlu0 %7375
    %v7377 = vsel %vm632, %v7104, -inf
    %7378 = vmax.xlane.f32.xlu0 %v7377
    %v7379 = vpop.xlane.xlu0 %7378
    %v7380 = vsel %vm632, %v7152, -inf
    %7381 = vmax.xlane.f32.xlu0 %v7380
    %v7382 = vpop.xlane.xlu0 %7381
    %v7383 = vsel %vm632, %v7155, -inf
    %7384 = vmax.xlane.f32.xlu0 %v7383
    %v7385 = vpop.xlane.xlu0 %7384
    %v7386 = vsel %vm632, %v7203, -inf
    %7387 = vmax.xlane.f32.xlu0 %v7386
    %v7388 = vpop.xlane.xlu0 %7387
    %v7389 = vsel %vm632, %v7206, -inf
    %7390 = vmax.xlane.f32.xlu0 %v7389
    %v7391 = vpop.xlane.xlu0 %7390
    %v7392 = vsel %vm632, %v7254, -inf
    %7393 = vmax.xlane.f32.xlu0 %v7392
    %v7394 = vpop.xlane.xlu0 %7393
    %v7395 = vsel %vm632, %v7257, -inf
    %7396 = vmax.xlane.f32.xlu0 %v7395
    %v7397 = vpop.xlane.xlu0 %7396
    %v7398 = vsel %vm632, %v7305, -inf
    %7399 = vmax.xlane.f32.xlu0 %v7398
    %v7400 = vpop.xlane.xlu0 %7399
    %v7401 = vsel %vm632, %v7308, -inf
    %7402 = vmax.xlane.f32.xlu0 %v7401
    %v7403 = vpop.xlane.xlu0 %7402
    %v7404 = vsel %vm632, %v7356, -inf
    %7405 = vmax.xlane.f32.xlu0 %v7404
    %v7406 = vpop.xlane.xlu0 %7405
    %v7407 = vsel %vm632, %v7359, -inf
    %7408 = vmax.xlane.f32.xlu0 %v7407
    %v7409 = vpop.xlane.xlu0 %7408
    %v7410 = vsub.f32 %v6999, %v7364
    %v7411 = vsub.f32 %v7002, %v7367
    %v7412 = vsub.f32 %v7050, %v7370
    %v7413 = vsub.f32 %v7053, %v7373
    %v7414 = vsub.f32 %v7101, %v7376
    %v7415 = vsub.f32 %v7104, %v7379
    %v7416 = vsub.f32 %v7152, %v7382
    %v7417 = vsub.f32 %v7155, %v7385
    %v7418 = vsub.f32 %v7203, %v7388
    %v7419 = vsub.f32 %v7206, %v7391
    %v7420 = vsub.f32 %v7254, %v7394
    %v7421 = vsub.f32 %v7257, %v7397
    %v7422 = vsub.f32 %v7305, %v7400
    %v7423 = vsub.f32 %v7308, %v7403
    %v7424 = vsub.f32 %v7356, %v7406
    %v7425 = vsub.f32 %v7359, %v7409
    %v7426 = vmul.f32 %v7410, 1.442695
    %v7427 = vpow.pop %v7426
    %v7428 = vmul.f32 %v7411, 1.442695
    %v7429 = vpow.pop %v7428
    %v7430 = vmul.f32 %v7412, 1.442695
    %v7431 = vpow.pop %v7430
    %v7432 = vmul.f32 %v7413, 1.442695
    %v7433 = vpow.pop %v7432
    %v7434 = vmul.f32 %v7414, 1.442695
    %v7435 = vpow.pop %v7434
    %v7436 = vmul.f32 %v7415, 1.442695
    %v7437 = vpow.pop %v7436
    %v7438 = vmul.f32 %v7416, 1.442695
    %v7439 = vpow.pop %v7438
    %v7440 = vmul.f32 %v7417, 1.442695
    %v7441 = vpow.pop %v7440
    %v7442 = vmul.f32 %v7418, 1.442695
    %v7443 = vpow.pop %v7442
    %v7444 = vmul.f32 %v7419, 1.442695
    %v7445 = vpow.pop %v7444
    %v7446 = vmul.f32 %v7420, 1.442695
    %v7447 = vpow.pop %v7446
    %v7448 = vmul.f32 %v7421, 1.442695
    %v7449 = vpow.pop %v7448
    %v7450 = vmul.f32 %v7422, 1.442695
    %v7451 = vpow.pop %v7450
    %v7452 = vmul.f32 %v7423, 1.442695
    %v7453 = vpow.pop %v7452
    %v7454 = vmul.f32 %v7424, 1.442695
    %v7455 = vpow.pop %v7454
    %v7456 = vmul.f32 %v7425, 1.442695
    %v7457 = vpow.pop %v7456
    %v7458 = vsel %vm632, %v7427, 0.0
    %7459 = vadd.xlane.f32.xlu0 %v7458
    %v7460 = vpop.xlane.xlu0 %7459
    %v7461 = vsel %vm632, %v7429, 0.0
    %7462 = vadd.xlane.f32.xlu0 %v7461
    %v7463 = vpop.xlane.xlu0 %7462
    %v7464 = vsel %vm632, %v7431, 0.0
    %7465 = vadd.xlane.f32.xlu0 %v7464
    %v7466 = vpop.xlane.xlu0 %7465
    %v7467 = vsel %vm632, %v7433, 0.0
    %7468 = vadd.xlane.f32.xlu0 %v7467
    %v7469 = vpop.xlane.xlu0 %7468
    %v7470 = vsel %vm632, %v7435, 0.0
    %7471 = vadd.xlane.f32.xlu0 %v7470
    %v7472 = vpop.xlane.xlu0 %7471
    %v7473 = vsel %vm632, %v7437, 0.0
    %7474 = vadd.xlane.f32.xlu0 %v7473
    %v7475 = vpop.xlane.xlu0 %7474
    %v7476 = vsel %vm632, %v7439, 0.0
    %7477 = vadd.xlane.f32.xlu0 %v7476
    %v7478 = vpop.xlane.xlu0 %7477
    %v7479 = vsel %vm632, %v7441, 0.0
    %7480 = vadd.xlane.f32.xlu0 %v7479
    %v7481 = vpop.xlane.xlu0 %7480
    %v7482 = vsel %vm632, %v7443, 0.0
    %7483 = vadd.xlane.f32.xlu0 %v7482
    %v7484 = vpop.xlane.xlu0 %7483
    %v7485 = vsel %vm632, %v7445, 0.0
    %7486 = vadd.xlane.f32.xlu0 %v7485
    %v7487 = vpop.xlane.xlu0 %7486
    %v7488 = vsel %vm632, %v7447, 0.0
    %7489 = vadd.xlane.f32.xlu0 %v7488
    %v7490 = vpop.xlane.xlu0 %7489
    %v7491 = vsel %vm632, %v7449, 0.0
    %7492 = vadd.xlane.f32.xlu0 %v7491
    %v7493 = vpop.xlane.xlu0 %7492
    %v7494 = vsel %vm632, %v7451, 0.0
    %7495 = vadd.xlane.f32.xlu0 %v7494
    %v7496 = vpop.xlane.xlu0 %7495
    %v7497 = vsel %vm632, %v7453, 0.0
    %7498 = vadd.xlane.f32.xlu0 %v7497
    %v7499 = vpop.xlane.xlu0 %7498
    %v7500 = vsel %vm632, %v7455, 0.0
    %7501 = vadd.xlane.f32.xlu0 %v7500
    %v7502 = vpop.xlane.xlu0 %7501
    %v7503 = vsel %vm632, %v7457, 0.0
    %7504 = vadd.xlane.f32.xlu0 %v7503
    %v7505 = vpop.xlane.xlu0 %7504
    %v7506 = vrcp.pop %v7460
    %v7507 = vmul.f32 %v7427, %v7506
    %v7508 = vrcp.pop %v7463
    %v7509 = vmul.f32 %v7429, %v7508
    %v7510 = vrcp.pop %v7466
    %v7511 = vmul.f32 %v7431, %v7510
    %v7512 = vrcp.pop %v7469
    %v7513 = vmul.f32 %v7433, %v7512
    %v7514 = vrcp.pop %v7472
    %v7515 = vmul.f32 %v7435, %v7514
    %v7516 = vrcp.pop %v7475
    %v7517 = vmul.f32 %v7437, %v7516
    %v7518 = vrcp.pop %v7478
    %v7519 = vmul.f32 %v7439, %v7518
    %v7520 = vrcp.pop %v7481
    %v7521 = vmul.f32 %v7441, %v7520
    %v7522 = vrcp.pop %v7484
    %v7523 = vmul.f32 %v7443, %v7522
    %v7524 = vrcp.pop %v7487
    %v7525 = vmul.f32 %v7445, %v7524
    %v7526 = vrcp.pop %v7490
    %v7527 = vmul.f32 %v7447, %v7526
    %v7528 = vrcp.pop %v7493
    %v7529 = vmul.f32 %v7449, %v7528
    %v7530 = vrcp.pop %v7496
    %v7531 = vmul.f32 %v7451, %v7530
    %v7532 = vrcp.pop %v7499
    %v7533 = vmul.f32 %v7453, %v7532
    %v7534 = vrcp.pop %v7502
    %v7535 = vmul.f32 %v7455, %v7534
    %v7536 = vrcp.pop %v7505
    %v7537 = vmul.f32 %v7457, %v7536
    %v7538 = vpack.c.bf16 %v7509, %v7507
    %v7539 = vpack.c.bf16 %v7513, %v7511
    %v7540 = vpack.c.bf16 %v7517, %v7515
    %v7541 = vpack.c.bf16 %v7521, %v7519
    %v7542 = vpack.c.bf16 %v7525, %v7523
    %v7543 = vpack.c.bf16 %v7529, %v7527
    %v7544 = vpack.c.bf16 %v7533, %v7531
    %v7545 = vpack.c.bf16 %v7537, %v7535
    %7547 = vrot.lane.b32.xlu0 %v6010, 112
    %v7548 = vpop.permute.xlu0 %7547
    %v7551 = vsel %vm632, %v7538, 0
    %7553 = vmatprep.subr.bf16.mxu0 0
    %7554 = vmatpush1.bf16.msra.mxu0 %v7548
    %7555 = vmatprep.subr.bf16.mxu0 0
    %7556 = vmatpush1.bf16.msra.mxu0 0
    %7557 = vmatprep.subr.bf16.mxu0 0
    %7558 = vmatpush1.bf16.msra.mxu0 0
    %7559 = vmatprep.subr.bf16.mxu0 0
    %7560 = vmatpush1.bf16.msra.mxu0 0
    %7561 = vmatprep.subr.bf16.mxu0 0
    %7562 = vmatpush1.bf16.msra.mxu0 0
    %7563 = vmatprep.subr.bf16.mxu0 0
    %7564 = vmatpush1.bf16.msra.mxu0 0
    %7565 = vmatprep.subr.bf16.mxu0 0
    %7566 = vmatpush1.bf16.msra.mxu0 0
    %7567 = vmatprep.subr.bf16.mxu0 0
    %7568 = vmatpush1.bf16.msra.mxu0 0
    %7569 = vmatprep.subr.bf16.mxu0 0
    %7570 = vmatpush1.bf16.msra.mxu0 0
    %7571 = vmatprep.subr.bf16.mxu0 0
    %7572 = vmatpush1.bf16.msra.mxu0 0
    %7573 = vmatprep.subr.bf16.mxu0 0
    %7574 = vmatpush1.bf16.msra.mxu0 0
    %7575 = vmatprep.subr.bf16.mxu0 0
    %7576 = vmatpush1.bf16.msra.mxu0 0
    %7577 = vmatprep.subr.bf16.mxu0 0
    %7578 = vmatpush1.bf16.msra.mxu0 0
    %7579 = vmatprep.subr.bf16.mxu0 0
    %7580 = vmatpush1.bf16.msra.mxu0 0
    %7581 = vmatprep.subr.bf16.mxu0 0
    %7582 = vmatpush1.bf16.msra.mxu0 0
    %7583 = vmatprep.subr.bf16.mxu0 0
    %7584 = vmatpush1.bf16.msra.mxu0 0
    %7585 = vmatprep.mubr.bf16.mxu0 0
    %7586 = vmatmul.mubr.bf16.gmra.mrb[0].mxu0 %v7551
    %v7587 = vpop.f32.mrb[0].mxu0
    %v7588 = vadd.f32 0.0, %v7587
    %v7589 = vpop.f32.mrb[0].mxu0
    %v7590 = vpop.f32.mrb[0].mxu0
    %v7591 = vadd.f32 0.0, %v7590
    %v7592 = vpop.f32.mrb[0].mxu0
    %7593 = vdwg.mxu0
    %7595 = vrot.lane.b32.xlu0 %v6011, 112
    %v7596 = vpop.permute.xlu0 %7595
    %v7599 = vsel %vm632, %v7539, 0
    %7601 = vmatprep.subr.bf16.mxu0 0
    %7602 = vmatpush1.bf16.msra.mxu0 %v7596
    %7603 = vmatprep.subr.bf16.mxu0 0
    %7604 = vmatpush1.bf16.msra.mxu0 0
    %7605 = vmatprep.subr.bf16.mxu0 0
    %7606 = vmatpush1.bf16.msra.mxu0 0
    %7607 = vmatprep.subr.bf16.mxu0 0
    %7608 = vmatpush1.bf16.msra.mxu0 0
    %7609 = vmatprep.subr.bf16.mxu0 0
    %7610 = vmatpush1.bf16.msra.mxu0 0
    %7611 = vmatprep.subr.bf16.mxu0 0
    %7612 = vmatpush1.bf16.msra.mxu0 0
    %7613 = vmatprep.subr.bf16.mxu0 0
    %7614 = vmatpush1.bf16.msra.mxu0 0
    %7615 = vmatprep.subr.bf16.mxu0 0
    %7616 = vmatpush1.bf16.msra.mxu0 0
    %7617 = vmatprep.subr.bf16.mxu0 0
    %7618 = vmatpush1.bf16.msra.mxu0 0
    %7619 = vmatprep.subr.bf16.mxu0 0
    %7620 = vmatpush1.bf16.msra.mxu0 0
    %7621 = vmatprep.subr.bf16.mxu0 0
    %7622 = vmatpush1.bf16.msra.mxu0 0
    %7623 = vmatprep.subr.bf16.mxu0 0
    %7624 = vmatpush1.bf16.msra.mxu0 0
    %7625 = vmatprep.subr.bf16.mxu0 0
    %7626 = vmatpush1.bf16.msra.mxu0 0
    %7627 = vmatprep.subr.bf16.mxu0 0
    %7628 = vmatpush1.bf16.msra.mxu0 0
    %7629 = vmatprep.subr.bf16.mxu0 0
    %7630 = vmatpush1.bf16.msra.mxu0 0
    %7631 = vmatprep.subr.bf16.mxu0 0
    %7632 = vmatpush1.bf16.msra.mxu0 0
    %7633 = vmatprep.mubr.bf16.mxu0 0
    %7634 = vmatmul.mubr.bf16.gmra.mrb[0].mxu0 %v7599
    %v7635 = vpop.f32.mrb[0].mxu0
    %v7636 = vadd.f32 0.0, %v7635
    %v7637 = vpop.f32.mrb[0].mxu0
    %v7638 = vpop.f32.mrb[0].mxu0
    %v7639 = vadd.f32 0.0, %v7638
    %v7640 = vpop.f32.mrb[0].mxu0
    %7641 = vdwg.mxu0
    %7643 = vrot.lane.b32.xlu0 %v6012, 112
    %v7644 = vpop.permute.xlu0 %7643
    %v7647 = vsel %vm632, %v7540, 0
    %7649 = vmatprep.subr.bf16.mxu0 0
    %7650 = vmatpush1.bf16.msra.mxu0 %v7644
    %7651 = vmatprep.subr.bf16.mxu0 0
    %7652 = vmatpush1.bf16.msra.mxu0 0
    %7653 = vmatprep.subr.bf16.mxu0 0
    %7654 = vmatpush1.bf16.msra.mxu0 0
    %7655 = vmatprep.subr.bf16.mxu0 0
    %7656 = vmatpush1.bf16.msra.mxu0 0
    %7657 = vmatprep.subr.bf16.mxu0 0
    %7658 = vmatpush1.bf16.msra.mxu0 0
    %7659 = vmatprep.subr.bf16.mxu0 0
    %7660 = vmatpush1.bf16.msra.mxu0 0
    %7661 = vmatprep.subr.bf16.mxu0 0
    %7662 = vmatpush1.bf16.msra.mxu0 0
    %7663 = vmatprep.subr.bf16.mxu0 0
    %7664 = vmatpush1.bf16.msra.mxu0 0
    %7665 = vmatprep.subr.bf16.mxu0 0
    %7666 = vmatpush1.bf16.msra.mxu0 0
    %7667 = vmatprep.subr.bf16.mxu0 0
    %7668 = vmatpush1.bf16.msra.mxu0 0
    %7669 = vmatprep.subr.bf16.mxu0 0
    %7670 = vmatpush1.bf16.msra.mxu0 0
    %7671 = vmatprep.subr.bf16.mxu0 0
    %7672 = vmatpush1.bf16.msra.mxu0 0
    %7673 = vmatprep.subr.bf16.mxu0 0
    %7674 = vmatpush1.bf16.msra.mxu0 0
    %7675 = vmatprep.subr.bf16.mxu0 0
    %7676 = vmatpush1.bf16.msra.mxu0 0
    %7677 = vmatprep.subr.bf16.mxu0 0
    %7678 = vmatpush1.bf16.msra.mxu0 0
    %7679 = vmatprep.subr.bf16.mxu0 0
    %7680 = vmatpush1.bf16.msra.mxu0 0
    %7681 = vmatprep.mubr.bf16.mxu0 0
    %7682 = vmatmul.mubr.bf16.gmra.mrb[0].mxu0 %v7647
    %v7683 = vpop.f32.mrb[0].mxu0
    %v7684 = vadd.f32 0.0, %v7683
    %v7685 = vpop.f32.mrb[0].mxu0
    %v7686 = vpop.f32.mrb[0].mxu0
    %v7687 = vadd.f32 0.0, %v7686
    %v7688 = vpop.f32.mrb[0].mxu0
    %7689 = vdwg.mxu0
    %7691 = vrot.lane.b32.xlu0 %v6013, 112
    %v7692 = vpop.permute.xlu0 %7691
    %v7695 = vsel %vm632, %v7541, 0
    %7697 = vmatprep.subr.bf16.mxu0 0
    %7698 = vmatpush1.bf16.msra.mxu0 %v7692
    %7699 = vmatprep.subr.bf16.mxu0 0
    %7700 = vmatpush1.bf16.msra.mxu0 0
    %7701 = vmatprep.subr.bf16.mxu0 0
    %7702 = vmatpush1.bf16.msra.mxu0 0
    %7703 = vmatprep.subr.bf16.mxu0 0
    %7704 = vmatpush1.bf16.msra.mxu0 0
    %7705 = vmatprep.subr.bf16.mxu0 0
    %7706 = vmatpush1.bf16.msra.mxu0 0
    %7707 = vmatprep.subr.bf16.mxu0 0
    %7708 = vmatpush1.bf16.msra.mxu0 0
    %7709 = vmatprep.subr.bf16.mxu0 0
    %7710 = vmatpush1.bf16.msra.mxu0 0
    %7711 = vmatprep.subr.bf16.mxu0 0
    %7712 = vmatpush1.bf16.msra.mxu0 0
    %7713 = vmatprep.subr.bf16.mxu0 0
    %7714 = vmatpush1.bf16.msra.mxu0 0
    %7715 = vmatprep.subr.bf16.mxu0 0
    %7716 = vmatpush1.bf16.msra.mxu0 0
    %7717 = vmatprep.subr.bf16.mxu0 0
    %7718 = vmatpush1.bf16.msra.mxu0 0
    %7719 = vmatprep.subr.bf16.mxu0 0
    %7720 = vmatpush1.bf16.msra.mxu0 0
    %7721 = vmatprep.subr.bf16.mxu0 0
    %7722 = vmatpush1.bf16.msra.mxu0 0
    %7723 = vmatprep.subr.bf16.mxu0 0
    %7724 = vmatpush1.bf16.msra.mxu0 0
    %7725 = vmatprep.subr.bf16.mxu0 0
    %7726 = vmatpush1.bf16.msra.mxu0 0
    %7727 = vmatprep.subr.bf16.mxu0 0
    %7728 = vmatpush1.bf16.msra.mxu0 0
    %7729 = vmatprep.mubr.bf16.mxu0 0
    %7730 = vmatmul.mubr.bf16.gmra.mrb[0].mxu0 %v7695
    %v7731 = vpop.f32.mrb[0].mxu0
    %v7732 = vadd.f32 0.0, %v7731
    %v7733 = vpop.f32.mrb[0].mxu0
    %v7734 = vpop.f32.mrb[0].mxu0
    %v7735 = vadd.f32 0.0, %v7734
    %v7736 = vpop.f32.mrb[0].mxu0
    %7737 = vdwg.mxu0
    %7739 = vrot.lane.b32.xlu0 %v6014, 112
    %v7740 = vpop.permute.xlu0 %7739
    %v7743 = vsel %vm632, %v7542, 0
    %7745 = vmatprep.subr.bf16.mxu0 0
    %7746 = vmatpush1.bf16.msra.mxu0 %v7740
    %7747 = vmatprep.subr.bf16.mxu0 0
    %7748 = vmatpush1.bf16.msra.mxu0 0
    %7749 = vmatprep.subr.bf16.mxu0 0
    %7750 = vmatpush1.bf16.msra.mxu0 0
    %7751 = vmatprep.subr.bf16.mxu0 0
    %7752 = vmatpush1.bf16.msra.mxu0 0
    %7753 = vmatprep.subr.bf16.mxu0 0
    %7754 = vmatpush1.bf16.msra.mxu0 0
    %7755 = vmatprep.subr.bf16.mxu0 0
    %7756 = vmatpush1.bf16.msra.mxu0 0
    %7757 = vmatprep.subr.bf16.mxu0 0
    %7758 = vmatpush1.bf16.msra.mxu0 0
    %7759 = vmatprep.subr.bf16.mxu0 0
    %7760 = vmatpush1.bf16.msra.mxu0 0
    %7761 = vmatprep.subr.bf16.mxu0 0
    %7762 = vmatpush1.bf16.msra.mxu0 0
    %7763 = vmatprep.subr.bf16.mxu0 0
    %7764 = vmatpush1.bf16.msra.mxu0 0
    %7765 = vmatprep.subr.bf16.mxu0 0
    %7766 = vmatpush1.bf16.msra.mxu0 0
    %7767 = vmatprep.subr.bf16.mxu0 0
    %7768 = vmatpush1.bf16.msra.mxu0 0
    %7769 = vmatprep.subr.bf16.mxu0 0
    %7770 = vmatpush1.bf16.msra.mxu0 0
    %7771 = vmatprep.subr.bf16.mxu0 0
    %7772 = vmatpush1.bf16.msra.mxu0 0
    %7773 = vmatprep.subr.bf16.mxu0 0
    %7774 = vmatpush1.bf16.msra.mxu0 0
    %7775 = vmatprep.subr.bf16.mxu0 0
    %7776 = vmatpush1.bf16.msra.mxu0 0
    %7777 = vmatprep.mubr.bf16.mxu0 0
    %7778 = vmatmul.mubr.bf16.gmra.mrb[0].mxu0 %v7743
    %v7779 = vpop.f32.mrb[0].mxu0
    %v7780 = vadd.f32 0.0, %v7779
    %v7781 = vpop.f32.mrb[0].mxu0
    %v7782 = vpop.f32.mrb[0].mxu0
    %v7783 = vadd.f32 0.0, %v7782
    %v7784 = vpop.f32.mrb[0].mxu0
    %7785 = vdwg.mxu0
    %7787 = vrot.lane.b32.xlu0 %v6015, 112
    %v7788 = vpop.permute.xlu0 %7787
    %v7791 = vsel %vm632, %v7543, 0
    %7793 = vmatprep.subr.bf16.mxu0 0
    %7794 = vmatpush1.bf16.msra.mxu0 %v7788
    %7795 = vmatprep.subr.bf16.mxu0 0
    %7796 = vmatpush1.bf16.msra.mxu0 0
    %7797 = vmatprep.subr.bf16.mxu0 0
    %7798 = vmatpush1.bf16.msra.mxu0 0
    %7799 = vmatprep.subr.bf16.mxu0 0
    %7800 = vmatpush1.bf16.msra.mxu0 0
    %7801 = vmatprep.subr.bf16.mxu0 0
    %7802 = vmatpush1.bf16.msra.mxu0 0
    %7803 = vmatprep.subr.bf16.mxu0 0
    %7804 = vmatpush1.bf16.msra.mxu0 0
    %7805 = vmatprep.subr.bf16.mxu0 0
    %7806 = vmatpush1.bf16.msra.mxu0 0
    %7807 = vmatprep.subr.bf16.mxu0 0
    %7808 = vmatpush1.bf16.msra.mxu0 0
    %7809 = vmatprep.subr.bf16.mxu0 0
    %7810 = vmatpush1.bf16.msra.mxu0 0
    %7811 = vmatprep.subr.bf16.mxu0 0
    %7812 = vmatpush1.bf16.msra.mxu0 0
    %7813 = vmatprep.subr.bf16.mxu0 0
    %7814 = vmatpush1.bf16.msra.mxu0 0
    %7815 = vmatprep.subr.bf16.mxu0 0
    %7816 = vmatpush1.bf16.msra.mxu0 0
    %7817 = vmatprep.subr.bf16.mxu0 0
    %7818 = vmatpush1.bf16.msra.mxu0 0
    %7819 = vmatprep.subr.bf16.mxu0 0
    %7820 = vmatpush1.bf16.msra.mxu0 0
    %7821 = vmatprep.subr.bf16.mxu0 0
    %7822 = vmatpush1.bf16.msra.mxu0 0
    %7823 = vmatprep.subr.bf16.mxu0 0
    %7824 = vmatpush1.bf16.msra.mxu0 0
    %7825 = vmatprep.mubr.bf16.mxu0 0
    %7826 = vmatmul.mubr.bf16.gmra.mrb[0].mxu0 %v7791
    %v7827 = vpop.f32.mrb[0].mxu0
    %v7828 = vadd.f32 0.0, %v7827
    %v7829 = vpop.f32.mrb[0].mxu0
    %v7830 = vpop.f32.mrb[0].mxu0
    %v7831 = vadd.f32 0.0, %v7830
    %v7832 = vpop.f32.mrb[0].mxu0
    %7833 = vdwg.mxu0
    %7835 = vrot.lane.b32.xlu0 %v6016, 112
    %v7836 = vpop.permute.xlu0 %7835
    %v7839 = vsel %vm632, %v7544, 0
    %7841 = vmatprep.subr.bf16.mxu0 0
    %7842 = vmatpush1.bf16.msra.mxu0 %v7836
    %7843 = vmatprep.subr.bf16.mxu0 0
    %7844 = vmatpush1.bf16.msra.mxu0 0
    %7845 = vmatprep.subr.bf16.mxu0 0
    %7846 = vmatpush1.bf16.msra.mxu0 0
    %7847 = vmatprep.subr.bf16.mxu0 0
    %7848 = vmatpush1.bf16.msra.mxu0 0
    %7849 = vmatprep.subr.bf16.mxu0 0
    %7850 = vmatpush1.bf16.msra.mxu0 0
    %7851 = vmatprep.subr.bf16.mxu0 0
    %7852 = vmatpush1.bf16.msra.mxu0 0
    %7853 = vmatprep.subr.bf16.mxu0 0
    %7854 = vmatpush1.bf16.msra.mxu0 0
    %7855 = vmatprep.subr.bf16.mxu0 0
    %7856 = vmatpush1.bf16.msra.mxu0 0
    %7857 = vmatprep.subr.bf16.mxu0 0
    %7858 = vmatpush1.bf16.msra.mxu0 0
    %7859 = vmatprep.subr.bf16.mxu0 0
    %7860 = vmatpush1.bf16.msra.mxu0 0
    %7861 = vmatprep.subr.bf16.mxu0 0
    %7862 = vmatpush1.bf16.msra.mxu0 0
    %7863 = vmatprep.subr.bf16.mxu0 0
    %7864 = vmatpush1.bf16.msra.mxu0 0
    %7865 = vmatprep.subr.bf16.mxu0 0
    %7866 = vmatpush1.bf16.msra.mxu0 0
    %7867 = vmatprep.subr.bf16.mxu0 0
    %7868 = vmatpush1.bf16.msra.mxu0 0
    %7869 = vmatprep.subr.bf16.mxu0 0
    %7870 = vmatpush1.bf16.msra.mxu0 0
    %7871 = vmatprep.subr.bf16.mxu0 0
    %7872 = vmatpush1.bf16.msra.mxu0 0
    %7873 = vmatprep.mubr.bf16.mxu0 0
    %7874 = vmatmul.mubr.bf16.gmra.mrb[0].mxu0 %v7839
    %v7875 = vpop.f32.mrb[0].mxu0
    %v7876 = vadd.f32 0.0, %v7875
    %v7877 = vpop.f32.mrb[0].mxu0
    %v7878 = vpop.f32.mrb[0].mxu0
    %v7879 = vadd.f32 0.0, %v7878
    %v7880 = vpop.f32.mrb[0].mxu0
    %7881 = vdwg.mxu0
    %7883 = vrot.lane.b32.xlu0 %v6017, 112
    %v7884 = vpop.permute.xlu0 %7883
    %v7887 = vsel %vm632, %v7545, 0
    %7889 = vmatprep.subr.bf16.mxu0 0
    %7890 = vmatpush1.bf16.msra.mxu0 %v7884
    %7891 = vmatprep.subr.bf16.mxu0 0
    %7892 = vmatpush1.bf16.msra.mxu0 0
    %7893 = vmatprep.subr.bf16.mxu0 0
    %7894 = vmatpush1.bf16.msra.mxu0 0
    %7895 = vmatprep.subr.bf16.mxu0 0
    %7896 = vmatpush1.bf16.msra.mxu0 0
    %7897 = vmatprep.subr.bf16.mxu0 0
    %7898 = vmatpush1.bf16.msra.mxu0 0
    %7899 = vmatprep.subr.bf16.mxu0 0
    %7900 = vmatpush1.bf16.msra.mxu0 0
    %7901 = vmatprep.subr.bf16.mxu0 0
    %7902 = vmatpush1.bf16.msra.mxu0 0
    %7903 = vmatprep.subr.bf16.mxu0 0
    %7904 = vmatpush1.bf16.msra.mxu0 0
    %7905 = vmatprep.subr.bf16.mxu0 0
    %7906 = vmatpush1.bf16.msra.mxu0 0
    %7907 = vmatprep.subr.bf16.mxu0 0
    %7908 = vmatpush1.bf16.msra.mxu0 0
    %7909 = vmatprep.subr.bf16.mxu0 0
    %7910 = vmatpush1.bf16.msra.mxu0 0
    %7911 = vmatprep.subr.bf16.mxu0 0
    %7912 = vmatpush1.bf16.msra.mxu0 0
    %7913 = vmatprep.subr.bf16.mxu0 0
    %7914 = vmatpush1.bf16.msra.mxu0 0
    %7915 = vmatprep.subr.bf16.mxu0 0
    %7916 = vmatpush1.bf16.msra.mxu0 0
    %7917 = vmatprep.subr.bf16.mxu0 0
    %7918 = vmatpush1.bf16.msra.mxu0 0
    %7919 = vmatprep.subr.bf16.mxu0 0
    %7920 = vmatpush1.bf16.msra.mxu0 0
    %7921 = vmatprep.mubr.bf16.mxu0 0
    %7922 = vmatmul.mubr.bf16.gmra.mrb[0].mxu0 %v7887
    %v7923 = vpop.f32.mrb[0].mxu0
    %v7924 = vadd.f32 0.0, %v7923
    %v7925 = vpop.f32.mrb[0].mxu0
    %v7926 = vpop.f32.mrb[0].mxu0
    %v7927 = vadd.f32 0.0, %v7926
    %v7928 = vpop.f32.mrb[0].mxu0
    %7929 = vdwg.mxu0
    %7930 = vrot.lane.b32.xlu0 %v6002, 96
    %v7931 = vpop.permute.xlu0 %7930
    %7932 = vrot.lane.b32.xlu0 %v6002, 32
    %v7933 = vpop.permute.xlu0 %7932
    %v7935 = vsel %vm632, %v7931, 0
    %v7938 = vsel %vm632, %v7933, 0
    %7940 = vmatprep.subr.bf16.mxu0 0
    %7941 = vmatpush1.bf16.xpose.msra.mxu0 %v7938
    %7942 = vmatprep.subr.bf16.mxu0 0
    %7943 = vmatpush1.bf16.xpose.msra.mxu0 0
    %7944 = vmatprep.subr.bf16.mxu0 0
    %7945 = vmatpush1.bf16.xpose.msra.mxu0 0
    %7946 = vmatprep.subr.bf16.mxu0 0
    %7947 = vmatpush1.bf16.xpose.msra.mxu0 0
    %7948 = vmatprep.subr.bf16.mxu0 0
    %7949 = vmatpush1.bf16.xpose.msra.mxu0 0
    %7950 = vmatprep.subr.bf16.mxu0 0
    %7951 = vmatpush1.bf16.xpose.msra.mxu0 0
    %7952 = vmatprep.subr.bf16.mxu0 0
    %7953 = vmatpush1.bf16.xpose.msra.mxu0 0
    %7954 = vmatprep.subr.bf16.mxu0 0
    %7955 = vmatpush1.bf16.xpose.msra.mxu0 0
    %7956 = vmatprep.subr.bf16.mxu0 0
    %7957 = vmatpush1.bf16.xpose.msra.mxu0 0
    %7958 = vmatprep.subr.bf16.mxu0 0
    %7959 = vmatpush1.bf16.xpose.msra.mxu0 0
    %7960 = vmatprep.subr.bf16.mxu0 0
    %7961 = vmatpush1.bf16.xpose.msra.mxu0 0
    %7962 = vmatprep.subr.bf16.mxu0 0
    %7963 = vmatpush1.bf16.xpose.msra.mxu0 0
    %7964 = vmatprep.subr.bf16.mxu0 0
    %7965 = vmatpush1.bf16.xpose.msra.mxu0 0
    %7966 = vmatprep.subr.bf16.mxu0 0
    %7967 = vmatpush1.bf16.xpose.msra.mxu0 0
    %7968 = vmatprep.subr.bf16.mxu0 0
    %7969 = vmatpush1.bf16.xpose.msra.mxu0 0
    %7970 = vmatprep.subr.bf16.mxu0 0
    %7971 = vmatpush1.bf16.xpose.msra.mxu0 0
    %7972 = vmatprep.mubr.bf16.mxu0 0
    %7973 = vmatmul.mubr.bf16.gmra.mrb[0].mxu0 %v7935
    %v7974 = vpop.f32.mrb[0].mxu0
    %v7975 = vadd.f32 0.0, %v7974
    %v7976 = vpop.f32.mrb[0].mxu0
    %v7977 = vpop.f32.mrb[0].mxu0
    %v7978 = vadd.f32 0.0, %v7977
    %v7979 = vpop.f32.mrb[0].mxu0
    %7980 = vdwg.mxu0
    %7981 = vrot.lane.b32.xlu0 %v6003, 96
    %v7982 = vpop.permute.xlu0 %7981
    %7983 = vrot.lane.b32.xlu0 %v6003, 32
    %v7984 = vpop.permute.xlu0 %7983
    %v7986 = vsel %vm632, %v7982, 0
    %v7989 = vsel %vm632, %v7984, 0
    %7991 = vmatprep.subr.bf16.mxu0 0
    %7992 = vmatpush1.bf16.xpose.msra.mxu0 %v7989
    %7993 = vmatprep.subr.bf16.mxu0 0
    %7994 = vmatpush1.bf16.xpose.msra.mxu0 0
    %7995 = vmatprep.subr.bf16.mxu0 0
    %7996 = vmatpush1.bf16.xpose.msra.mxu0 0
    %7997 = vmatprep.subr.bf16.mxu0 0
    %7998 = vmatpush1.bf16.xpose.msra.mxu0 0
    %7999 = vmatprep.subr.bf16.mxu0 0
    %8000 = vmatpush1.bf16.xpose.msra.mxu0 0
    %8001 = vmatprep.subr.bf16.mxu0 0
    %8002 = vmatpush1.bf16.xpose.msra.mxu0 0
    %8003 = vmatprep.subr.bf16.mxu0 0
    %8004 = vmatpush1.bf16.xpose.msra.mxu0 0
    %8005 = vmatprep.subr.bf16.mxu0 0
    %8006 = vmatpush1.bf16.xpose.msra.mxu0 0
    %8007 = vmatprep.subr.bf16.mxu0 0
    %8008 = vmatpush1.bf16.xpose.msra.mxu0 0
    %8009 = vmatprep.subr.bf16.mxu0 0
    %8010 = vmatpush1.bf16.xpose.msra.mxu0 0
    %8011 = vmatprep.subr.bf16.mxu0 0
    %8012 = vmatpush1.bf16.xpose.msra.mxu0 0
    %8013 = vmatprep.subr.bf16.mxu0 0
    %8014 = vmatpush1.bf16.xpose.msra.mxu0 0
    %8015 = vmatprep.subr.bf16.mxu0 0
    %8016 = vmatpush1.bf16.xpose.msra.mxu0 0
    %8017 = vmatprep.subr.bf16.mxu0 0
    %8018 = vmatpush1.bf16.xpose.msra.mxu0 0
    %8019 = vmatprep.subr.bf16.mxu0 0
    %8020 = vmatpush1.bf16.xpose.msra.mxu0 0
    %8021 = vmatprep.subr.bf16.mxu0 0
    %8022 = vmatpush1.bf16.xpose.msra.mxu0 0
    %8023 = vmatprep.mubr.bf16.mxu0 0
    %8024 = vmatmul.mubr.bf16.gmra.mrb[0].mxu0 %v7986
    %v8025 = vpop.f32.mrb[0].mxu0
    %v8026 = vadd.f32 0.0, %v8025
    %v8027 = vpop.f32.mrb[0].mxu0
    %v8028 = vpop.f32.mrb[0].mxu0
    %v8029 = vadd.f32 0.0, %v8028
    %v8030 = vpop.f32.mrb[0].mxu0
    %8031 = vdwg.mxu0
    %8032 = vrot.lane.b32.xlu0 %v6004, 96
    %v8033 = vpop.permute.xlu0 %8032
    %8034 = vrot.lane.b32.xlu0 %v6004, 32
    %v8035 = vpop.permute.xlu0 %8034
    %v8037 = vsel %vm632, %v8033, 0
    %v8040 = vsel %vm632, %v8035, 0
    %8042 = vmatprep.subr.bf16.mxu0 0
    %8043 = vmatpush1.bf16.xpose.msra.mxu0 %v8040
    %8044 = vmatprep.subr.bf16.mxu0 0
    %8045 = vmatpush1.bf16.xpose.msra.mxu0 0
    %8046 = vmatprep.subr.bf16.mxu0 0
    %8047 = vmatpush1.bf16.xpose.msra.mxu0 0
    %8048 = vmatprep.subr.bf16.mxu0 0
    %8049 = vmatpush1.bf16.xpose.msra.mxu0 0
    %8050 = vmatprep.subr.bf16.mxu0 0
    %8051 = vmatpush1.bf16.xpose.msra.mxu0 0
    %8052 = vmatprep.subr.bf16.mxu0 0
    %8053 = vmatpush1.bf16.xpose.msra.mxu0 0
    %8054 = vmatprep.subr.bf16.mxu0 0
    %8055 = vmatpush1.bf16.xpose.msra.mxu0 0
    %8056 = vmatprep.subr.bf16.mxu0 0
    %8057 = vmatpush1.bf16.xpose.msra.mxu0 0
    %8058 = vmatprep.subr.bf16.mxu0 0
    %8059 = vmatpush1.bf16.xpose.msra.mxu0 0
    %8060 = vmatprep.subr.bf16.mxu0 0
    %8061 = vmatpush1.bf16.xpose.msra.mxu0 0
    %8062 = vmatprep.subr.bf16.mxu0 0
    %8063 = vmatpush1.bf16.xpose.msra.mxu0 0
    %8064 = vmatprep.subr.bf16.mxu0 0
    %8065 = vmatpush1.bf16.xpose.msra.mxu0 0
    %8066 = vmatprep.subr.bf16.mxu0 0
    %8067 = vmatpush1.bf16.xpose.msra.mxu0 0
    %8068 = vmatprep.subr.bf16.mxu0 0
    %8069 = vmatpush1.bf16.xpose.msra.mxu0 0
    %8070 = vmatprep.subr.bf16.mxu0 0
    %8071 = vmatpush1.bf16.xpose.msra.mxu0 0
    %8072 = vmatprep.subr.bf16.mxu0 0
    %8073 = vmatpush1.bf16.xpose.msra.mxu0 0
    %8074 = vmatprep.mubr.bf16.mxu0 0
    %8075 = vmatmul.mubr.bf16.gmra.mrb[0].mxu0 %v8037
    %v8076 = vpop.f32.mrb[0].mxu0
    %v8077 = vadd.f32 0.0, %v8076
    %v8078 = vpop.f32.mrb[0].mxu0
    %v8079 = vpop.f32.mrb[0].mxu0
    %v8080 = vadd.f32 0.0, %v8079
    %v8081 = vpop.f32.mrb[0].mxu0
    %8082 = vdwg.mxu0
    %8083 = vrot.lane.b32.xlu0 %v6005, 96
    %v8084 = vpop.permute.xlu0 %8083
    %8085 = vrot.lane.b32.xlu0 %v6005, 32
    %v8086 = vpop.permute.xlu0 %8085
    %v8088 = vsel %vm632, %v8084, 0
    %v8091 = vsel %vm632, %v8086, 0
    %8093 = vmatprep.subr.bf16.mxu0 0
    %8094 = vmatpush1.bf16.xpose.msra.mxu0 %v8091
    %8095 = vmatprep.subr.bf16.mxu0 0
    %8096 = vmatpush1.bf16.xpose.msra.mxu0 0
    %8097 = vmatprep.subr.bf16.mxu0 0
    %8098 = vmatpush1.bf16.xpose.msra.mxu0 0
    %8099 = vmatprep.subr.bf16.mxu0 0
    %8100 = vmatpush1.bf16.xpose.msra.mxu0 0
    %8101 = vmatprep.subr.bf16.mxu0 0
    %8102 = vmatpush1.bf16.xpose.msra.mxu0 0
    %8103 = vmatprep.subr.bf16.mxu0 0
    %8104 = vmatpush1.bf16.xpose.msra.mxu0 0
    %8105 = vmatprep.subr.bf16.mxu0 0
    %8106 = vmatpush1.bf16.xpose.msra.mxu0 0
    %8107 = vmatprep.subr.bf16.mxu0 0
    %8108 = vmatpush1.bf16.xpose.msra.mxu0 0
    %8109 = vmatprep.subr.bf16.mxu0 0
    %8110 = vmatpush1.bf16.xpose.msra.mxu0 0
    %8111 = vmatprep.subr.bf16.mxu0 0
    %8112 = vmatpush1.bf16.xpose.msra.mxu0 0
    %8113 = vmatprep.subr.bf16.mxu0 0
    %8114 = vmatpush1.bf16.xpose.msra.mxu0 0
    %8115 = vmatprep.subr.bf16.mxu0 0
    %8116 = vmatpush1.bf16.xpose.msra.mxu0 0
    %8117 = vmatprep.subr.bf16.mxu0 0
    %8118 = vmatpush1.bf16.xpose.msra.mxu0 0
    %8119 = vmatprep.subr.bf16.mxu0 0
    %8120 = vmatpush1.bf16.xpose.msra.mxu0 0
    %8121 = vmatprep.subr.bf16.mxu0 0
    %8122 = vmatpush1.bf16.xpose.msra.mxu0 0
    %8123 = vmatprep.subr.bf16.mxu0 0
    %8124 = vmatpush1.bf16.xpose.msra.mxu0 0
    %8125 = vmatprep.mubr.bf16.mxu0 0
    %8126 = vmatmul.mubr.bf16.gmra.mrb[0].mxu0 %v8088
    %v8127 = vpop.f32.mrb[0].mxu0
    %v8128 = vadd.f32 0.0, %v8127
    %v8129 = vpop.f32.mrb[0].mxu0
    %v8130 = vpop.f32.mrb[0].mxu0
    %v8131 = vadd.f32 0.0, %v8130
    %v8132 = vpop.f32.mrb[0].mxu0
    %8133 = vdwg.mxu0
    %8134 = vrot.lane.b32.xlu0 %v6006, 96
    %v8135 = vpop.permute.xlu0 %8134
    %8136 = vrot.lane.b32.xlu0 %v6006, 32
    %v8137 = vpop.permute.xlu0 %8136
    %v8139 = vsel %vm632, %v8135, 0
    %v8142 = vsel %vm632, %v8137, 0
    %8144 = vmatprep.subr.bf16.mxu0 0
    %8145 = vmatpush1.bf16.xpose.msra.mxu0 %v8142
    %8146 = vmatprep.subr.bf16.mxu0 0
    %8147 = vmatpush1.bf16.xpose.msra.mxu0 0
    %8148 = vmatprep.subr.bf16.mxu0 0
    %8149 = vmatpush1.bf16.xpose.msra.mxu0 0
    %8150 = vmatprep.subr.bf16.mxu0 0
    %8151 = vmatpush1.bf16.xpose.msra.mxu0 0
    %8152 = vmatprep.subr.bf16.mxu0 0
    %8153 = vmatpush1.bf16.xpose.msra.mxu0 0
    %8154 = vmatprep.subr.bf16.mxu0 0
    %8155 = vmatpush1.bf16.xpose.msra.mxu0 0
    %8156 = vmatprep.subr.bf16.mxu0 0
    %8157 = vmatpush1.bf16.xpose.msra.mxu0 0
    %8158 = vmatprep.subr.bf16.mxu0 0
    %8159 = vmatpush1.bf16.xpose.msra.mxu0 0
    %8160 = vmatprep.subr.bf16.mxu0 0
    %8161 = vmatpush1.bf16.xpose.msra.mxu0 0
    %8162 = vmatprep.subr.bf16.mxu0 0
    %8163 = vmatpush1.bf16.xpose.msra.mxu0 0
    %8164 = vmatprep.subr.bf16.mxu0 0
    %8165 = vmatpush1.bf16.xpose.msra.mxu0 0
    %8166 = vmatprep.subr.bf16.mxu0 0
    %8167 = vmatpush1.bf16.xpose.msra.mxu0 0
    %8168 = vmatprep.subr.bf16.mxu0 0
    %8169 = vmatpush1.bf16.xpose.msra.mxu0 0
    %8170 = vmatprep.subr.bf16.mxu0 0
    %8171 = vmatpush1.bf16.xpose.msra.mxu0 0
    %8172 = vmatprep.subr.bf16.mxu0 0
    %8173 = vmatpush1.bf16.xpose.msra.mxu0 0
    %8174 = vmatprep.subr.bf16.mxu0 0
    %8175 = vmatpush1.bf16.xpose.msra.mxu0 0
    %8176 = vmatprep.mubr.bf16.mxu0 0
    %8177 = vmatmul.mubr.bf16.gmra.mrb[0].mxu0 %v8139
    %v8178 = vpop.f32.mrb[0].mxu0
    %v8179 = vadd.f32 0.0, %v8178
    %v8180 = vpop.f32.mrb[0].mxu0
    %v8181 = vpop.f32.mrb[0].mxu0
    %v8182 = vadd.f32 0.0, %v8181
    %v8183 = vpop.f32.mrb[0].mxu0
    %8184 = vdwg.mxu0
    %8185 = vrot.lane.b32.xlu0 %v6007, 96
    %v8186 = vpop.permute.xlu0 %8185
    %8187 = vrot.lane.b32.xlu0 %v6007, 32
    %v8188 = vpop.permute.xlu0 %8187
    %v8190 = vsel %vm632, %v8186, 0
    %v8193 = vsel %vm632, %v8188, 0
    %8195 = vmatprep.subr.bf16.mxu0 0
    %8196 = vmatpush1.bf16.xpose.msra.mxu0 %v8193
    %8197 = vmatprep.subr.bf16.mxu0 0
    %8198 = vmatpush1.bf16.xpose.msra.mxu0 0
    %8199 = vmatprep.subr.bf16.mxu0 0
    %8200 = vmatpush1.bf16.xpose.msra.mxu0 0
    %8201 = vmatprep.subr.bf16.mxu0 0
    %8202 = vmatpush1.bf16.xpose.msra.mxu0 0
    %8203 = vmatprep.subr.bf16.mxu0 0
    %8204 = vmatpush1.bf16.xpose.msra.mxu0 0
    %8205 = vmatprep.subr.bf16.mxu0 0
    %8206 = vmatpush1.bf16.xpose.msra.mxu0 0
    %8207 = vmatprep.subr.bf16.mxu0 0
    %8208 = vmatpush1.bf16.xpose.msra.mxu0 0
    %8209 = vmatprep.subr.bf16.mxu0 0
    %8210 = vmatpush1.bf16.xpose.msra.mxu0 0
    %8211 = vmatprep.subr.bf16.mxu0 0
    %8212 = vmatpush1.bf16.xpose.msra.mxu0 0
    %8213 = vmatprep.subr.bf16.mxu0 0
    %8214 = vmatpush1.bf16.xpose.msra.mxu0 0
    %8215 = vmatprep.subr.bf16.mxu0 0
    %8216 = vmatpush1.bf16.xpose.msra.mxu0 0
    %8217 = vmatprep.subr.bf16.mxu0 0
    %8218 = vmatpush1.bf16.xpose.msra.mxu0 0
    %8219 = vmatprep.subr.bf16.mxu0 0
    %8220 = vmatpush1.bf16.xpose.msra.mxu0 0
    %8221 = vmatprep.subr.bf16.mxu0 0
    %8222 = vmatpush1.bf16.xpose.msra.mxu0 0
    %8223 = vmatprep.subr.bf16.mxu0 0
    %8224 = vmatpush1.bf16.xpose.msra.mxu0 0
    %8225 = vmatprep.subr.bf16.mxu0 0
    %8226 = vmatpush1.bf16.xpose.msra.mxu0 0
    %8227 = vmatprep.mubr.bf16.mxu0 0
    %8228 = vmatmul.mubr.bf16.gmra.mrb[0].mxu0 %v8190
    %v8229 = vpop.f32.mrb[0].mxu0
    %v8230 = vadd.f32 0.0, %v8229
    %v8231 = vpop.f32.mrb[0].mxu0
    %v8232 = vpop.f32.mrb[0].mxu0
    %v8233 = vadd.f32 0.0, %v8232
    %v8234 = vpop.f32.mrb[0].mxu0
    %8235 = vdwg.mxu0
    %8236 = vrot.lane.b32.xlu0 %v6008, 96
    %v8237 = vpop.permute.xlu0 %8236
    %8238 = vrot.lane.b32.xlu0 %v6008, 32
    %v8239 = vpop.permute.xlu0 %8238
    %v8241 = vsel %vm632, %v8237, 0
    %v8244 = vsel %vm632, %v8239, 0
    %8246 = vmatprep.subr.bf16.mxu0 0
    %8247 = vmatpush1.bf16.xpose.msra.mxu0 %v8244
    %8248 = vmatprep.subr.bf16.mxu0 0
    %8249 = vmatpush1.bf16.xpose.msra.mxu0 0
    %8250 = vmatprep.subr.bf16.mxu0 0
    %8251 = vmatpush1.bf16.xpose.msra.mxu0 0
    %8252 = vmatprep.subr.bf16.mxu0 0
    %8253 = vmatpush1.bf16.xpose.msra.mxu0 0
    %8254 = vmatprep.subr.bf16.mxu0 0
    %8255 = vmatpush1.bf16.xpose.msra.mxu0 0
    %8256 = vmatprep.subr.bf16.mxu0 0
    %8257 = vmatpush1.bf16.xpose.msra.mxu0 0
    %8258 = vmatprep.subr.bf16.mxu0 0
    %8259 = vmatpush1.bf16.xpose.msra.mxu0 0
    %8260 = vmatprep.subr.bf16.mxu0 0
    %8261 = vmatpush1.bf16.xpose.msra.mxu0 0
    %8262 = vmatprep.subr.bf16.mxu0 0
    %8263 = vmatpush1.bf16.xpose.msra.mxu0 0
    %8264 = vmatprep.subr.bf16.mxu0 0
    %8265 = vmatpush1.bf16.xpose.msra.mxu0 0
    %8266 = vmatprep.subr.bf16.mxu0 0
    %8267 = vmatpush1.bf16.xpose.msra.mxu0 0
    %8268 = vmatprep.subr.bf16.mxu0 0
    %8269 = vmatpush1.bf16.xpose.msra.mxu0 0
    %8270 = vmatprep.subr.bf16.mxu0 0
    %8271 = vmatpush1.bf16.xpose.msra.mxu0 0
    %8272 = vmatprep.subr.bf16.mxu0 0
    %8273 = vmatpush1.bf16.xpose.msra.mxu0 0
    %8274 = vmatprep.subr.bf16.mxu0 0
    %8275 = vmatpush1.bf16.xpose.msra.mxu0 0
    %8276 = vmatprep.subr.bf16.mxu0 0
    %8277 = vmatpush1.bf16.xpose.msra.mxu0 0
    %8278 = vmatprep.mubr.bf16.mxu0 0
    %8279 = vmatmul.mubr.bf16.gmra.mrb[0].mxu0 %v8241
    %v8280 = vpop.f32.mrb[0].mxu0
    %v8281 = vadd.f32 0.0, %v8280
    %v8282 = vpop.f32.mrb[0].mxu0
    %v8283 = vpop.f32.mrb[0].mxu0
    %v8284 = vadd.f32 0.0, %v8283
    %v8285 = vpop.f32.mrb[0].mxu0
    %8286 = vdwg.mxu0
    %8287 = vrot.lane.b32.xlu0 %v6009, 96
    %v8288 = vpop.permute.xlu0 %8287
    %8289 = vrot.lane.b32.xlu0 %v6009, 32
    %v8290 = vpop.permute.xlu0 %8289
    %v8292 = vsel %vm632, %v8288, 0
    %v8295 = vsel %vm632, %v8290, 0
    %8297 = vmatprep.subr.bf16.mxu0 0
    %8298 = vmatpush1.bf16.xpose.msra.mxu0 %v8295
    %8299 = vmatprep.subr.bf16.mxu0 0
    %8300 = vmatpush1.bf16.xpose.msra.mxu0 0
    %8301 = vmatprep.subr.bf16.mxu0 0
    %8302 = vmatpush1.bf16.xpose.msra.mxu0 0
    %8303 = vmatprep.subr.bf16.mxu0 0
    %8304 = vmatpush1.bf16.xpose.msra.mxu0 0
    %8305 = vmatprep.subr.bf16.mxu0 0
    %8306 = vmatpush1.bf16.xpose.msra.mxu0 0
    %8307 = vmatprep.subr.bf16.mxu0 0
    %8308 = vmatpush1.bf16.xpose.msra.mxu0 0
    %8309 = vmatprep.subr.bf16.mxu0 0
    %8310 = vmatpush1.bf16.xpose.msra.mxu0 0
    %8311 = vmatprep.subr.bf16.mxu0 0
    %8312 = vmatpush1.bf16.xpose.msra.mxu0 0
    %8313 = vmatprep.subr.bf16.mxu0 0
    %8314 = vmatpush1.bf16.xpose.msra.mxu0 0
    %8315 = vmatprep.subr.bf16.mxu0 0
    %8316 = vmatpush1.bf16.xpose.msra.mxu0 0
    %8317 = vmatprep.subr.bf16.mxu0 0
    %8318 = vmatpush1.bf16.xpose.msra.mxu0 0
    %8319 = vmatprep.subr.bf16.mxu0 0
    %8320 = vmatpush1.bf16.xpose.msra.mxu0 0
    %8321 = vmatprep.subr.bf16.mxu0 0
    %8322 = vmatpush1.bf16.xpose.msra.mxu0 0
    %8323 = vmatprep.subr.bf16.mxu0 0
    %8324 = vmatpush1.bf16.xpose.msra.mxu0 0
    %8325 = vmatprep.subr.bf16.mxu0 0
    %8326 = vmatpush1.bf16.xpose.msra.mxu0 0
    %8327 = vmatprep.subr.bf16.mxu0 0
    %8328 = vmatpush1.bf16.xpose.msra.mxu0 0
    %8329 = vmatprep.mubr.bf16.mxu0 0
    %8330 = vmatmul.mubr.bf16.gmra.mrb[0].mxu0 %v8292
    %v8331 = vpop.f32.mrb[0].mxu0
    %v8332 = vadd.f32 0.0, %v8331
    %v8333 = vpop.f32.mrb[0].mxu0
    %v8334 = vpop.f32.mrb[0].mxu0
    %v8335 = vadd.f32 0.0, %v8334
    %v8336 = vpop.f32.mrb[0].mxu0
    %8337 = vdwg.mxu0
    %v8338 = vsel %vm632, %v7975, -inf
    %8339 = vmax.xlane.f32.xlu0 %v8338
    %v8340 = vpop.xlane.xlu0 %8339
    %v8341 = vsel %vm632, %v7978, -inf
    %8342 = vmax.xlane.f32.xlu0 %v8341
    %v8343 = vpop.xlane.xlu0 %8342
    %v8344 = vsel %vm632, %v8026, -inf
    %8345 = vmax.xlane.f32.xlu0 %v8344
    %v8346 = vpop.xlane.xlu0 %8345
    %v8347 = vsel %vm632, %v8029, -inf
    %8348 = vmax.xlane.f32.xlu0 %v8347
    %v8349 = vpop.xlane.xlu0 %8348
    %v8350 = vsel %vm632, %v8077, -inf
    %8351 = vmax.xlane.f32.xlu0 %v8350
    %v8352 = vpop.xlane.xlu0 %8351
    %v8353 = vsel %vm632, %v8080, -inf
    %8354 = vmax.xlane.f32.xlu0 %v8353
    %v8355 = vpop.xlane.xlu0 %8354
    %v8356 = vsel %vm632, %v8128, -inf
    %8357 = vmax.xlane.f32.xlu0 %v8356
    %v8358 = vpop.xlane.xlu0 %8357
    %v8359 = vsel %vm632, %v8131, -inf
    %8360 = vmax.xlane.f32.xlu0 %v8359
    %v8361 = vpop.xlane.xlu0 %8360
    %v8362 = vsel %vm632, %v8179, -inf
    %8363 = vmax.xlane.f32.xlu0 %v8362
    %v8364 = vpop.xlane.xlu0 %8363
    %v8365 = vsel %vm632, %v8182, -inf
    %8366 = vmax.xlane.f32.xlu0 %v8365
    %v8367 = vpop.xlane.xlu0 %8366
    %v8368 = vsel %vm632, %v8230, -inf
    %8369 = vmax.xlane.f32.xlu0 %v8368
    %v8370 = vpop.xlane.xlu0 %8369
    %v8371 = vsel %vm632, %v8233, -inf
    %8372 = vmax.xlane.f32.xlu0 %v8371
    %v8373 = vpop.xlane.xlu0 %8372
    %v8374 = vsel %vm632, %v8281, -inf
    %8375 = vmax.xlane.f32.xlu0 %v8374
    %v8376 = vpop.xlane.xlu0 %8375
    %v8377 = vsel %vm632, %v8284, -inf
    %8378 = vmax.xlane.f32.xlu0 %v8377
    %v8379 = vpop.xlane.xlu0 %8378
    %v8380 = vsel %vm632, %v8332, -inf
    %8381 = vmax.xlane.f32.xlu0 %v8380
    %v8382 = vpop.xlane.xlu0 %8381
    %v8383 = vsel %vm632, %v8335, -inf
    %8384 = vmax.xlane.f32.xlu0 %v8383
    %v8385 = vpop.xlane.xlu0 %8384
    %v8386 = vsub.f32 %v7975, %v8340
    %v8387 = vsub.f32 %v7978, %v8343
    %v8388 = vsub.f32 %v8026, %v8346
    %v8389 = vsub.f32 %v8029, %v8349
    %v8390 = vsub.f32 %v8077, %v8352
    %v8391 = vsub.f32 %v8080, %v8355
    %v8392 = vsub.f32 %v8128, %v8358
    %v8393 = vsub.f32 %v8131, %v8361
    %v8394 = vsub.f32 %v8179, %v8364
    %v8395 = vsub.f32 %v8182, %v8367
    %v8396 = vsub.f32 %v8230, %v8370
    %v8397 = vsub.f32 %v8233, %v8373
    %v8398 = vsub.f32 %v8281, %v8376
    %v8399 = vsub.f32 %v8284, %v8379
    %v8400 = vsub.f32 %v8332, %v8382
    %v8401 = vsub.f32 %v8335, %v8385
    %v8402 = vmul.f32 %v8386, 1.442695
    %v8403 = vpow.pop %v8402
    %v8404 = vmul.f32 %v8387, 1.442695
    %v8405 = vpow.pop %v8404
    %v8406 = vmul.f32 %v8388, 1.442695
    %v8407 = vpow.pop %v8406
    %v8408 = vmul.f32 %v8389, 1.442695
    %v8409 = vpow.pop %v8408
    %v8410 = vmul.f32 %v8390, 1.442695
    %v8411 = vpow.pop %v8410
    %v8412 = vmul.f32 %v8391, 1.442695
    %v8413 = vpow.pop %v8412
    %v8414 = vmul.f32 %v8392, 1.442695
    %v8415 = vpow.pop %v8414
    %v8416 = vmul.f32 %v8393, 1.442695
    %v8417 = vpow.pop %v8416
    %v8418 = vmul.f32 %v8394, 1.442695
    %v8419 = vpow.pop %v8418
    %v8420 = vmul.f32 %v8395, 1.442695
    %v8421 = vpow.pop %v8420
    %v8422 = vmul.f32 %v8396, 1.442695
    %v8423 = vpow.pop %v8422
    %v8424 = vmul.f32 %v8397, 1.442695
    %v8425 = vpow.pop %v8424
    %v8426 = vmul.f32 %v8398, 1.442695
    %v8427 = vpow.pop %v8426
    %v8428 = vmul.f32 %v8399, 1.442695
    %v8429 = vpow.pop %v8428
    %v8430 = vmul.f32 %v8400, 1.442695
    %v8431 = vpow.pop %v8430
    %v8432 = vmul.f32 %v8401, 1.442695
    %v8433 = vpow.pop %v8432
    %v8434 = vsel %vm632, %v8403, 0.0
    %8435 = vadd.xlane.f32.xlu0 %v8434
    %v8436 = vpop.xlane.xlu0 %8435
    %v8437 = vsel %vm632, %v8405, 0.0
    %8438 = vadd.xlane.f32.xlu0 %v8437
    %v8439 = vpop.xlane.xlu0 %8438
    %v8440 = vsel %vm632, %v8407, 0.0
    %8441 = vadd.xlane.f32.xlu0 %v8440
    %v8442 = vpop.xlane.xlu0 %8441
    %v8443 = vsel %vm632, %v8409, 0.0
    %8444 = vadd.xlane.f32.xlu0 %v8443
    %v8445 = vpop.xlane.xlu0 %8444
    %v8446 = vsel %vm632, %v8411, 0.0
    %8447 = vadd.xlane.f32.xlu0 %v8446
    %v8448 = vpop.xlane.xlu0 %8447
    %v8449 = vsel %vm632, %v8413, 0.0
    %8450 = vadd.xlane.f32.xlu0 %v8449
    %v8451 = vpop.xlane.xlu0 %8450
    %v8452 = vsel %vm632, %v8415, 0.0
    %8453 = vadd.xlane.f32.xlu0 %v8452
    %v8454 = vpop.xlane.xlu0 %8453
    %v8455 = vsel %vm632, %v8417, 0.0
    %8456 = vadd.xlane.f32.xlu0 %v8455
    %v8457 = vpop.xlane.xlu0 %8456
    %v8458 = vsel %vm632, %v8419, 0.0
    %8459 = vadd.xlane.f32.xlu0 %v8458
    %v8460 = vpop.xlane.xlu0 %8459
    %v8461 = vsel %vm632, %v8421, 0.0
    %8462 = vadd.xlane.f32.xlu0 %v8461
    %v8463 = vpop.xlane.xlu0 %8462
    %v8464 = vsel %vm632, %v8423, 0.0
    %8465 = vadd.xlane.f32.xlu0 %v8464
    %v8466 = vpop.xlane.xlu0 %8465
    %v8467 = vsel %vm632, %v8425, 0.0
    %8468 = vadd.xlane.f32.xlu0 %v8467
    %v8469 = vpop.xlane.xlu0 %8468
    %v8470 = vsel %vm632, %v8427, 0.0
    %8471 = vadd.xlane.f32.xlu0 %v8470
    %v8472 = vpop.xlane.xlu0 %8471
    %v8473 = vsel %vm632, %v8429, 0.0
    %8474 = vadd.xlane.f32.xlu0 %v8473
    %v8475 = vpop.xlane.xlu0 %8474
    %v8476 = vsel %vm632, %v8431, 0.0
    %8477 = vadd.xlane.f32.xlu0 %v8476
    %v8478 = vpop.xlane.xlu0 %8477
    %v8479 = vsel %vm632, %v8433, 0.0
    %8480 = vadd.xlane.f32.xlu0 %v8479
    %v8481 = vpop.xlane.xlu0 %8480
    %v8482 = vrcp.pop %v8436
    %v8483 = vmul.f32 %v8403, %v8482
    %v8484 = vrcp.pop %v8439
    %v8485 = vmul.f32 %v8405, %v8484
    %v8486 = vrcp.pop %v8442
    %v8487 = vmul.f32 %v8407, %v8486
    %v8488 = vrcp.pop %v8445
    %v8489 = vmul.f32 %v8409, %v8488
    %v8490 = vrcp.pop %v8448
    %v8491 = vmul.f32 %v8411, %v8490
    %v8492 = vrcp.pop %v8451
    %v8493 = vmul.f32 %v8413, %v8492
    %v8494 = vrcp.pop %v8454
    %v8495 = vmul.f32 %v8415, %v8494
    %v8496 = vrcp.pop %v8457
    %v8497 = vmul.f32 %v8417, %v8496
    %v8498 = vrcp.pop %v8460
    %v8499 = vmul.f32 %v8419, %v8498
    %v8500 = vrcp.pop %v8463
    %v8501 = vmul.f32 %v8421, %v8500
    %v8502 = vrcp.pop %v8466
    %v8503 = vmul.f32 %v8423, %v8502
    %v8504 = vrcp.pop %v8469
    %v8505 = vmul.f32 %v8425, %v8504
    %v8506 = vrcp.pop %v8472
    %v8507 = vmul.f32 %v8427, %v8506
    %v8508 = vrcp.pop %v8475
    %v8509 = vmul.f32 %v8429, %v8508
    %v8510 = vrcp.pop %v8478
    %v8511 = vmul.f32 %v8431, %v8510
    %v8512 = vrcp.pop %v8481
    %v8513 = vmul.f32 %v8433, %v8512
    %v8514 = vpack.c.bf16 %v8485, %v8483
    %v8515 = vpack.c.bf16 %v8489, %v8487
    %v8516 = vpack.c.bf16 %v8493, %v8491
    %v8517 = vpack.c.bf16 %v8497, %v8495
    %v8518 = vpack.c.bf16 %v8501, %v8499
    %v8519 = vpack.c.bf16 %v8505, %v8503
    %v8520 = vpack.c.bf16 %v8509, %v8507
    %v8521 = vpack.c.bf16 %v8513, %v8511
    %8522 = vrot.lane.b32.xlu0 %v6010, 96
    %v8523 = vpop.permute.xlu0 %8522
    %v8526 = vsel %vm632, %v8514, 0
    %8528 = vmatprep.subr.bf16.mxu0 0
    %8529 = vmatpush1.bf16.msra.mxu0 %v8523
    %8530 = vmatprep.subr.bf16.mxu0 0
    %8531 = vmatpush1.bf16.msra.mxu0 0
    %8532 = vmatprep.subr.bf16.mxu0 0
    %8533 = vmatpush1.bf16.msra.mxu0 0
    %8534 = vmatprep.subr.bf16.mxu0 0
    %8535 = vmatpush1.bf16.msra.mxu0 0
    %8536 = vmatprep.subr.bf16.mxu0 0
    %8537 = vmatpush1.bf16.msra.mxu0 0
    %8538 = vmatprep.subr.bf16.mxu0 0
    %8539 = vmatpush1.bf16.msra.mxu0 0
    %8540 = vmatprep.subr.bf16.mxu0 0
    %8541 = vmatpush1.bf16.msra.mxu0 0
    %8542 = vmatprep.subr.bf16.mxu0 0
    %8543 = vmatpush1.bf16.msra.mxu0 0
    %8544 = vmatprep.subr.bf16.mxu0 0
    %8545 = vmatpush1.bf16.msra.mxu0 0
    %8546 = vmatprep.subr.bf16.mxu0 0
    %8547 = vmatpush1.bf16.msra.mxu0 0
    %8548 = vmatprep.subr.bf16.mxu0 0
    %8549 = vmatpush1.bf16.msra.mxu0 0
    %8550 = vmatprep.subr.bf16.mxu0 0
    %8551 = vmatpush1.bf16.msra.mxu0 0
    %8552 = vmatprep.subr.bf16.mxu0 0
    %8553 = vmatpush1.bf16.msra.mxu0 0
    %8554 = vmatprep.subr.bf16.mxu0 0
    %8555 = vmatpush1.bf16.msra.mxu0 0
    %8556 = vmatprep.subr.bf16.mxu0 0
    %8557 = vmatpush1.bf16.msra.mxu0 0
    %8558 = vmatprep.subr.bf16.mxu0 0
    %8559 = vmatpush1.bf16.msra.mxu0 0
    %8560 = vmatprep.mubr.bf16.mxu0 0
    %8561 = vmatmul.mubr.bf16.gmra.mrb[0].mxu0 %v8526
    %v8562 = vpop.f32.mrb[0].mxu0
    %v8563 = vadd.f32 0.0, %v8562
    %v8564 = vpop.f32.mrb[0].mxu0
    %v8565 = vpop.f32.mrb[0].mxu0
    %v8566 = vadd.f32 0.0, %v8565
    %v8567 = vpop.f32.mrb[0].mxu0
    %8568 = vdwg.mxu0
    %8569 = vrot.lane.b32.xlu0 %v6011, 96
    %v8570 = vpop.permute.xlu0 %8569
    %v8573 = vsel %vm632, %v8515, 0
    %8575 = vmatprep.subr.bf16.mxu0 0
    %8576 = vmatpush1.bf16.msra.mxu0 %v8570
    %8577 = vmatprep.subr.bf16.mxu0 0
    %8578 = vmatpush1.bf16.msra.mxu0 0
    %8579 = vmatprep.subr.bf16.mxu0 0
    %8580 = vmatpush1.bf16.msra.mxu0 0
    %8581 = vmatprep.subr.bf16.mxu0 0
    %8582 = vmatpush1.bf16.msra.mxu0 0
    %8583 = vmatprep.subr.bf16.mxu0 0
    %8584 = vmatpush1.bf16.msra.mxu0 0
    %8585 = vmatprep.subr.bf16.mxu0 0
    %8586 = vmatpush1.bf16.msra.mxu0 0
    %8587 = vmatprep.subr.bf16.mxu0 0
    %8588 = vmatpush1.bf16.msra.mxu0 0
    %8589 = vmatprep.subr.bf16.mxu0 0
    %8590 = vmatpush1.bf16.msra.mxu0 0
    %8591 = vmatprep.subr.bf16.mxu0 0
    %8592 = vmatpush1.bf16.msra.mxu0 0
    %8593 = vmatprep.subr.bf16.mxu0 0
    %8594 = vmatpush1.bf16.msra.mxu0 0
    %8595 = vmatprep.subr.bf16.mxu0 0
    %8596 = vmatpush1.bf16.msra.mxu0 0
    %8597 = vmatprep.subr.bf16.mxu0 0
    %8598 = vmatpush1.bf16.msra.mxu0 0
    %8599 = vmatprep.subr.bf16.mxu0 0
    %8600 = vmatpush1.bf16.msra.mxu0 0
    %8601 = vmatprep.subr.bf16.mxu0 0
    %8602 = vmatpush1.bf16.msra.mxu0 0
    %8603 = vmatprep.subr.bf16.mxu0 0
    %8604 = vmatpush1.bf16.msra.mxu0 0
    %8605 = vmatprep.subr.bf16.mxu0 0
    %8606 = vmatpush1.bf16.msra.mxu0 0
    %8607 = vmatprep.mubr.bf16.mxu0 0
    %8608 = vmatmul.mubr.bf16.gmra.mrb[0].mxu0 %v8573
    %v8609 = vpop.f32.mrb[0].mxu0
    %v8610 = vadd.f32 0.0, %v8609
    %v8611 = vpop.f32.mrb[0].mxu0
    %v8612 = vpop.f32.mrb[0].mxu0
    %v8613 = vadd.f32 0.0, %v8612
    %v8614 = vpop.f32.mrb[0].mxu0
    %8615 = vdwg.mxu0
    %8616 = vrot.lane.b32.xlu0 %v6012, 96
    %v8617 = vpop.permute.xlu0 %8616
    %v8620 = vsel %vm632, %v8516, 0
    %8622 = vmatprep.subr.bf16.mxu0 0
    %8623 = vmatpush1.bf16.msra.mxu0 %v8617
    %8624 = vmatprep.subr.bf16.mxu0 0
    %8625 = vmatpush1.bf16.msra.mxu0 0
    %8626 = vmatprep.subr.bf16.mxu0 0
    %8627 = vmatpush1.bf16.msra.mxu0 0
    %8628 = vmatprep.subr.bf16.mxu0 0
    %8629 = vmatpush1.bf16.msra.mxu0 0
    %8630 = vmatprep.subr.bf16.mxu0 0
    %8631 = vmatpush1.bf16.msra.mxu0 0
    %8632 = vmatprep.subr.bf16.mxu0 0
    %8633 = vmatpush1.bf16.msra.mxu0 0
    %8634 = vmatprep.subr.bf16.mxu0 0
    %8635 = vmatpush1.bf16.msra.mxu0 0
    %8636 = vmatprep.subr.bf16.mxu0 0
    %8637 = vmatpush1.bf16.msra.mxu0 0
    %8638 = vmatprep.subr.bf16.mxu0 0
    %8639 = vmatpush1.bf16.msra.mxu0 0
    %8640 = vmatprep.subr.bf16.mxu0 0
    %8641 = vmatpush1.bf16.msra.mxu0 0
    %8642 = vmatprep.subr.bf16.mxu0 0
    %8643 = vmatpush1.bf16.msra.mxu0 0
    %8644 = vmatprep.subr.bf16.mxu0 0
    %8645 = vmatpush1.bf16.msra.mxu0 0
    %8646 = vmatprep.subr.bf16.mxu0 0
    %8647 = vmatpush1.bf16.msra.mxu0 0
    %8648 = vmatprep.subr.bf16.mxu0 0
    %8649 = vmatpush1.bf16.msra.mxu0 0
    %8650 = vmatprep.subr.bf16.mxu0 0
    %8651 = vmatpush1.bf16.msra.mxu0 0
    %8652 = vmatprep.subr.bf16.mxu0 0
    %8653 = vmatpush1.bf16.msra.mxu0 0
    %8654 = vmatprep.mubr.bf16.mxu0 0
    %8655 = vmatmul.mubr.bf16.gmra.mrb[0].mxu0 %v8620
    %v8656 = vpop.f32.mrb[0].mxu0
    %v8657 = vadd.f32 0.0, %v8656
    %v8658 = vpop.f32.mrb[0].mxu0
    %v8659 = vpop.f32.mrb[0].mxu0
    %v8660 = vadd.f32 0.0, %v8659
    %v8661 = vpop.f32.mrb[0].mxu0
    %8662 = vdwg.mxu0
    %8663 = vrot.lane.b32.xlu0 %v6013, 96
    %v8664 = vpop.permute.xlu0 %8663
    %v8667 = vsel %vm632, %v8517, 0
    %8669 = vmatprep.subr.bf16.mxu0 0
    %8670 = vmatpush1.bf16.msra.mxu0 %v8664
    %8671 = vmatprep.subr.bf16.mxu0 0
    %8672 = vmatpush1.bf16.msra.mxu0 0
    %8673 = vmatprep.subr.bf16.mxu0 0
    %8674 = vmatpush1.bf16.msra.mxu0 0
    %8675 = vmatprep.subr.bf16.mxu0 0
    %8676 = vmatpush1.bf16.msra.mxu0 0
    %8677 = vmatprep.subr.bf16.mxu0 0
    %8678 = vmatpush1.bf16.msra.mxu0 0
    %8679 = vmatprep.subr.bf16.mxu0 0
    %8680 = vmatpush1.bf16.msra.mxu0 0
    %8681 = vmatprep.subr.bf16.mxu0 0
    %8682 = vmatpush1.bf16.msra.mxu0 0
    %8683 = vmatprep.subr.bf16.mxu0 0
    %8684 = vmatpush1.bf16.msra.mxu0 0
    %8685 = vmatprep.subr.bf16.mxu0 0
    %8686 = vmatpush1.bf16.msra.mxu0 0
    %8687 = vmatprep.subr.bf16.mxu0 0
    %8688 = vmatpush1.bf16.msra.mxu0 0
    %8689 = vmatprep.subr.bf16.mxu0 0
    %8690 = vmatpush1.bf16.msra.mxu0 0
    %8691 = vmatprep.subr.bf16.mxu0 0
    %8692 = vmatpush1.bf16.msra.mxu0 0
    %8693 = vmatprep.subr.bf16.mxu0 0
    %8694 = vmatpush1.bf16.msra.mxu0 0
    %8695 = vmatprep.subr.bf16.mxu0 0
    %8696 = vmatpush1.bf16.msra.mxu0 0
    %8697 = vmatprep.subr.bf16.mxu0 0
    %8698 = vmatpush1.bf16.msra.mxu0 0
    %8699 = vmatprep.subr.bf16.mxu0 0
    %8700 = vmatpush1.bf16.msra.mxu0 0
    %8701 = vmatprep.mubr.bf16.mxu0 0
    %8702 = vmatmul.mubr.bf16.gmra.mrb[0].mxu0 %v8667
    %v8703 = vpop.f32.mrb[0].mxu0
    %v8704 = vadd.f32 0.0, %v8703
    %v8705 = vpop.f32.mrb[0].mxu0
    %v8706 = vpop.f32.mrb[0].mxu0
    %v8707 = vadd.f32 0.0, %v8706
    %v8708 = vpop.f32.mrb[0].mxu0
    %8709 = vdwg.mxu0
    %8710 = vrot.lane.b32.xlu0 %v6014, 96
    %v8711 = vpop.permute.xlu0 %8710
    %v8714 = vsel %vm632, %v8518, 0
    %8716 = vmatprep.subr.bf16.mxu0 0
    %8717 = vmatpush1.bf16.msra.mxu0 %v8711
    %8718 = vmatprep.subr.bf16.mxu0 0
    %8719 = vmatpush1.bf16.msra.mxu0 0
    %8720 = vmatprep.subr.bf16.mxu0 0
    %8721 = vmatpush1.bf16.msra.mxu0 0
    %8722 = vmatprep.subr.bf16.mxu0 0
    %8723 = vmatpush1.bf16.msra.mxu0 0
    %8724 = vmatprep.subr.bf16.mxu0 0
    %8725 = vmatpush1.bf16.msra.mxu0 0
    %8726 = vmatprep.subr.bf16.mxu0 0
    %8727 = vmatpush1.bf16.msra.mxu0 0
    %8728 = vmatprep.subr.bf16.mxu0 0
    %8729 = vmatpush1.bf16.msra.mxu0 0
    %8730 = vmatprep.subr.bf16.mxu0 0
    %8731 = vmatpush1.bf16.msra.mxu0 0
    %8732 = vmatprep.subr.bf16.mxu0 0
    %8733 = vmatpush1.bf16.msra.mxu0 0
    %8734 = vmatprep.subr.bf16.mxu0 0
    %8735 = vmatpush1.bf16.msra.mxu0 0
    %8736 = vmatprep.subr.bf16.mxu0 0
    %8737 = vmatpush1.bf16.msra.mxu0 0
    %8738 = vmatprep.subr.bf16.mxu0 0
    %8739 = vmatpush1.bf16.msra.mxu0 0
    %8740 = vmatprep.subr.bf16.mxu0 0
    %8741 = vmatpush1.bf16.msra.mxu0 0
    %8742 = vmatprep.subr.bf16.mxu0 0
    %8743 = vmatpush1.bf16.msra.mxu0 0
    %8744 = vmatprep.subr.bf16.mxu0 0
    %8745 = vmatpush1.bf16.msra.mxu0 0
    %8746 = vmatprep.subr.bf16.mxu0 0
    %8747 = vmatpush1.bf16.msra.mxu0 0
    %8748 = vmatprep.mubr.bf16.mxu0 0
    %8749 = vmatmul.mubr.bf16.gmra.mrb[0].mxu0 %v8714
    %v8750 = vpop.f32.mrb[0].mxu0
    %v8751 = vadd.f32 0.0, %v8750
    %v8752 = vpop.f32.mrb[0].mxu0
    %v8753 = vpop.f32.mrb[0].mxu0
    %v8754 = vadd.f32 0.0, %v8753
    %v8755 = vpop.f32.mrb[0].mxu0
    %8756 = vdwg.mxu0
    %8757 = vrot.lane.b32.xlu0 %v6015, 96
    %v8758 = vpop.permute.xlu0 %8757
    %v8761 = vsel %vm632, %v8519, 0
    %8763 = vmatprep.subr.bf16.mxu0 0
    %8764 = vmatpush1.bf16.msra.mxu0 %v8758
    %8765 = vmatprep.subr.bf16.mxu0 0
    %8766 = vmatpush1.bf16.msra.mxu0 0
    %8767 = vmatprep.subr.bf16.mxu0 0
    %8768 = vmatpush1.bf16.msra.mxu0 0
    %8769 = vmatprep.subr.bf16.mxu0 0
    %8770 = vmatpush1.bf16.msra.mxu0 0
    %8771 = vmatprep.subr.bf16.mxu0 0
    %8772 = vmatpush1.bf16.msra.mxu0 0
    %8773 = vmatprep.subr.bf16.mxu0 0
    %8774 = vmatpush1.bf16.msra.mxu0 0
    %8775 = vmatprep.subr.bf16.mxu0 0
    %8776 = vmatpush1.bf16.msra.mxu0 0
    %8777 = vmatprep.subr.bf16.mxu0 0
    %8778 = vmatpush1.bf16.msra.mxu0 0
    %8779 = vmatprep.subr.bf16.mxu0 0
    %8780 = vmatpush1.bf16.msra.mxu0 0
    %8781 = vmatprep.subr.bf16.mxu0 0
    %8782 = vmatpush1.bf16.msra.mxu0 0
    %8783 = vmatprep.subr.bf16.mxu0 0
    %8784 = vmatpush1.bf16.msra.mxu0 0
    %8785 = vmatprep.subr.bf16.mxu0 0
    %8786 = vmatpush1.bf16.msra.mxu0 0
    %8787 = vmatprep.subr.bf16.mxu0 0
    %8788 = vmatpush1.bf16.msra.mxu0 0
    %8789 = vmatprep.subr.bf16.mxu0 0
    %8790 = vmatpush1.bf16.msra.mxu0 0
    %8791 = vmatprep.subr.bf16.mxu0 0
    %8792 = vmatpush1.bf16.msra.mxu0 0
    %8793 = vmatprep.subr.bf16.mxu0 0
    %8794 = vmatpush1.bf16.msra.mxu0 0
    %8795 = vmatprep.mubr.bf16.mxu0 0
    %8796 = vmatmul.mubr.bf16.gmra.mrb[0].mxu0 %v8761
    %v8797 = vpop.f32.mrb[0].mxu0
    %v8798 = vadd.f32 0.0, %v8797
    %v8799 = vpop.f32.mrb[0].mxu0
    %v8800 = vpop.f32.mrb[0].mxu0
    %v8801 = vadd.f32 0.0, %v8800
    %v8802 = vpop.f32.mrb[0].mxu0
    %8803 = vdwg.mxu0
    %8804 = vrot.lane.b32.xlu0 %v6016, 96
    %v8805 = vpop.permute.xlu0 %8804
    %v8808 = vsel %vm632, %v8520, 0
    %8810 = vmatprep.subr.bf16.mxu0 0
    %8811 = vmatpush1.bf16.msra.mxu0 %v8805
    %8812 = vmatprep.subr.bf16.mxu0 0
    %8813 = vmatpush1.bf16.msra.mxu0 0
    %8814 = vmatprep.subr.bf16.mxu0 0
    %8815 = vmatpush1.bf16.msra.mxu0 0
    %8816 = vmatprep.subr.bf16.mxu0 0
    %8817 = vmatpush1.bf16.msra.mxu0 0
    %8818 = vmatprep.subr.bf16.mxu0 0
    %8819 = vmatpush1.bf16.msra.mxu0 0
    %8820 = vmatprep.subr.bf16.mxu0 0
    %8821 = vmatpush1.bf16.msra.mxu0 0
    %8822 = vmatprep.subr.bf16.mxu0 0
    %8823 = vmatpush1.bf16.msra.mxu0 0
    %8824 = vmatprep.subr.bf16.mxu0 0
    %8825 = vmatpush1.bf16.msra.mxu0 0
    %8826 = vmatprep.subr.bf16.mxu0 0
    %8827 = vmatpush1.bf16.msra.mxu0 0
    %8828 = vmatprep.subr.bf16.mxu0 0
    %8829 = vmatpush1.bf16.msra.mxu0 0
    %8830 = vmatprep.subr.bf16.mxu0 0
    %8831 = vmatpush1.bf16.msra.mxu0 0
    %8832 = vmatprep.subr.bf16.mxu0 0
    %8833 = vmatpush1.bf16.msra.mxu0 0
    %8834 = vmatprep.subr.bf16.mxu0 0
    %8835 = vmatpush1.bf16.msra.mxu0 0
    %8836 = vmatprep.subr.bf16.mxu0 0
    %8837 = vmatpush1.bf16.msra.mxu0 0
    %8838 = vmatprep.subr.bf16.mxu0 0
    %8839 = vmatpush1.bf16.msra.mxu0 0
    %8840 = vmatprep.subr.bf16.mxu0 0
    %8841 = vmatpush1.bf16.msra.mxu0 0
    %8842 = vmatprep.mubr.bf16.mxu0 0
    %8843 = vmatmul.mubr.bf16.gmra.mrb[0].mxu0 %v8808
    %v8844 = vpop.f32.mrb[0].mxu0
    %v8845 = vadd.f32 0.0, %v8844
    %v8846 = vpop.f32.mrb[0].mxu0
    %v8847 = vpop.f32.mrb[0].mxu0
    %v8848 = vadd.f32 0.0, %v8847
    %v8849 = vpop.f32.mrb[0].mxu0
    %8850 = vdwg.mxu0
    %8851 = vrot.lane.b32.xlu0 %v6017, 96
    %v8852 = vpop.permute.xlu0 %8851
    %v8855 = vsel %vm632, %v8521, 0
    %8857 = vmatprep.subr.bf16.mxu0 0
    %8858 = vmatpush1.bf16.msra.mxu0 %v8852
    %8859 = vmatprep.subr.bf16.mxu0 0
    %8860 = vmatpush1.bf16.msra.mxu0 0
    %8861 = vmatprep.subr.bf16.mxu0 0
    %8862 = vmatpush1.bf16.msra.mxu0 0
    %8863 = vmatprep.subr.bf16.mxu0 0
    %8864 = vmatpush1.bf16.msra.mxu0 0
    %8865 = vmatprep.subr.bf16.mxu0 0
    %8866 = vmatpush1.bf16.msra.mxu0 0
    %8867 = vmatprep.subr.bf16.mxu0 0
    %8868 = vmatpush1.bf16.msra.mxu0 0
    %8869 = vmatprep.subr.bf16.mxu0 0
    %8870 = vmatpush1.bf16.msra.mxu0 0
    %8871 = vmatprep.subr.bf16.mxu0 0
    %8872 = vmatpush1.bf16.msra.mxu0 0
    %8873 = vmatprep.subr.bf16.mxu0 0
    %8874 = vmatpush1.bf16.msra.mxu0 0
    %8875 = vmatprep.subr.bf16.mxu0 0
    %8876 = vmatpush1.bf16.msra.mxu0 0
    %8877 = vmatprep.subr.bf16.mxu0 0
    %8878 = vmatpush1.bf16.msra.mxu0 0
    %8879 = vmatprep.subr.bf16.mxu0 0
    %8880 = vmatpush1.bf16.msra.mxu0 0
    %8881 = vmatprep.subr.bf16.mxu0 0
    %8882 = vmatpush1.bf16.msra.mxu0 0
    %8883 = vmatprep.subr.bf16.mxu0 0
    %8884 = vmatpush1.bf16.msra.mxu0 0
    %8885 = vmatprep.subr.bf16.mxu0 0
    %8886 = vmatpush1.bf16.msra.mxu0 0
    %8887 = vmatprep.subr.bf16.mxu0 0
    %8888 = vmatpush1.bf16.msra.mxu0 0
    %8889 = vmatprep.mubr.bf16.mxu0 0
    %8890 = vmatmul.mubr.bf16.gmra.mrb[0].mxu0 %v8855
    %v8891 = vpop.f32.mrb[0].mxu0
    %v8892 = vadd.f32 0.0, %v8891
    %v8893 = vpop.f32.mrb[0].mxu0
    %v8894 = vpop.f32.mrb[0].mxu0
    %v8895 = vadd.f32 0.0, %v8894
    %v8896 = vpop.f32.mrb[0].mxu0
    %8897 = vdwg.mxu0
    %8898 = vrot.lane.b32.xlu0 %v6002, 80
    %v8899 = vpop.permute.xlu0 %8898
    %8900 = vrot.lane.b32.xlu0 %v6002, 16
    %v8901 = vpop.permute.xlu0 %8900
    %v8903 = vsel %vm632, %v8899, 0
    %v8906 = vsel %vm632, %v8901, 0
    %8908 = vmatprep.subr.bf16.mxu0 0
    %8909 = vmatpush1.bf16.xpose.msra.mxu0 %v8906
    %8910 = vmatprep.subr.bf16.mxu0 0
    %8911 = vmatpush1.bf16.xpose.msra.mxu0 0
    %8912 = vmatprep.subr.bf16.mxu0 0
    %8913 = vmatpush1.bf16.xpose.msra.mxu0 0
    %8914 = vmatprep.subr.bf16.mxu0 0
    %8915 = vmatpush1.bf16.xpose.msra.mxu0 0
    %8916 = vmatprep.subr.bf16.mxu0 0
    %8917 = vmatpush1.bf16.xpose.msra.mxu0 0
    %8918 = vmatprep.subr.bf16.mxu0 0
    %8919 = vmatpush1.bf16.xpose.msra.mxu0 0
    %8920 = vmatprep.subr.bf16.mxu0 0
    %8921 = vmatpush1.bf16.xpose.msra.mxu0 0
    %8922 = vmatprep.subr.bf16.mxu0 0
    %8923 = vmatpush1.bf16.xpose.msra.mxu0 0
    %8924 = vmatprep.subr.bf16.mxu0 0
    %8925 = vmatpush1.bf16.xpose.msra.mxu0 0
    %8926 = vmatprep.subr.bf16.mxu0 0
    %8927 = vmatpush1.bf16.xpose.msra.mxu0 0
    %8928 = vmatprep.subr.bf16.mxu0 0
    %8929 = vmatpush1.bf16.xpose.msra.mxu0 0
    %8930 = vmatprep.subr.bf16.mxu0 0
    %8931 = vmatpush1.bf16.xpose.msra.mxu0 0
    %8932 = vmatprep.subr.bf16.mxu0 0
    %8933 = vmatpush1.bf16.xpose.msra.mxu0 0
    %8934 = vmatprep.subr.bf16.mxu0 0
    %8935 = vmatpush1.bf16.xpose.msra.mxu0 0
    %8936 = vmatprep.subr.bf16.mxu0 0
    %8937 = vmatpush1.bf16.xpose.msra.mxu0 0
    %8938 = vmatprep.subr.bf16.mxu0 0
    %8939 = vmatpush1.bf16.xpose.msra.mxu0 0
    %8940 = vmatprep.mubr.bf16.mxu0 0
    %8941 = vmatmul.mubr.bf16.gmra.mrb[0].mxu0 %v8903
    %v8942 = vpop.f32.mrb[0].mxu0
    %v8943 = vadd.f32 0.0, %v8942
    %v8944 = vpop.f32.mrb[0].mxu0
    %v8945 = vpop.f32.mrb[0].mxu0
    %v8946 = vadd.f32 0.0, %v8945
    %v8947 = vpop.f32.mrb[0].mxu0
    %8948 = vdwg.mxu0
    %8949 = vrot.lane.b32.xlu0 %v6003, 80
    %v8950 = vpop.permute.xlu0 %8949
    %8951 = vrot.lane.b32.xlu0 %v6003, 16
    %v8952 = vpop.permute.xlu0 %8951
    %v8954 = vsel %vm632, %v8950, 0
    %v8957 = vsel %vm632, %v8952, 0
    %8959 = vmatprep.subr.bf16.mxu0 0
    %8960 = vmatpush1.bf16.xpose.msra.mxu0 %v8957
    %8961 = vmatprep.subr.bf16.mxu0 0
    %8962 = vmatpush1.bf16.xpose.msra.mxu0 0
    %8963 = vmatprep.subr.bf16.mxu0 0
    %8964 = vmatpush1.bf16.xpose.msra.mxu0 0
    %8965 = vmatprep.subr.bf16.mxu0 0
    %8966 = vmatpush1.bf16.xpose.msra.mxu0 0
    %8967 = vmatprep.subr.bf16.mxu0 0
    %8968 = vmatpush1.bf16.xpose.msra.mxu0 0
    %8969 = vmatprep.subr.bf16.mxu0 0
    %8970 = vmatpush1.bf16.xpose.msra.mxu0 0
    %8971 = vmatprep.subr.bf16.mxu0 0
    %8972 = vmatpush1.bf16.xpose.msra.mxu0 0
    %8973 = vmatprep.subr.bf16.mxu0 0
    %8974 = vmatpush1.bf16.xpose.msra.mxu0 0
    %8975 = vmatprep.subr.bf16.mxu0 0
    %8976 = vmatpush1.bf16.xpose.msra.mxu0 0
    %8977 = vmatprep.subr.bf16.mxu0 0
    %8978 = vmatpush1.bf16.xpose.msra.mxu0 0
    %8979 = vmatprep.subr.bf16.mxu0 0
    %8980 = vmatpush1.bf16.xpose.msra.mxu0 0
    %8981 = vmatprep.subr.bf16.mxu0 0
    %8982 = vmatpush1.bf16.xpose.msra.mxu0 0
    %8983 = vmatprep.subr.bf16.mxu0 0
    %8984 = vmatpush1.bf16.xpose.msra.mxu0 0
    %8985 = vmatprep.subr.bf16.mxu0 0
    %8986 = vmatpush1.bf16.xpose.msra.mxu0 0
    %8987 = vmatprep.subr.bf16.mxu0 0
    %8988 = vmatpush1.bf16.xpose.msra.mxu0 0
    %8989 = vmatprep.subr.bf16.mxu0 0
    %8990 = vmatpush1.bf16.xpose.msra.mxu0 0
    %8991 = vmatprep.mubr.bf16.mxu0 0
    %8992 = vmatmul.mubr.bf16.gmra.mrb[0].mxu0 %v8954
    %v8993 = vpop.f32.mrb[0].mxu0
    %v8994 = vadd.f32 0.0, %v8993
    %v8995 = vpop.f32.mrb[0].mxu0
    %v8996 = vpop.f32.mrb[0].mxu0
    %v8997 = vadd.f32 0.0, %v8996
    %v8998 = vpop.f32.mrb[0].mxu0
    %8999 = vdwg.mxu0
    %9000 = vrot.lane.b32.xlu0 %v6004, 80
    %v9001 = vpop.permute.xlu0 %9000
    %9002 = vrot.lane.b32.xlu0 %v6004, 16
    %v9003 = vpop.permute.xlu0 %9002
    %v9005 = vsel %vm632, %v9001, 0
    %v9008 = vsel %vm632, %v9003, 0
    %9010 = vmatprep.subr.bf16.mxu0 0
    %9011 = vmatpush1.bf16.xpose.msra.mxu0 %v9008
    %9012 = vmatprep.subr.bf16.mxu0 0
    %9013 = vmatpush1.bf16.xpose.msra.mxu0 0
    %9014 = vmatprep.subr.bf16.mxu0 0
    %9015 = vmatpush1.bf16.xpose.msra.mxu0 0
    %9016 = vmatprep.subr.bf16.mxu0 0
    %9017 = vmatpush1.bf16.xpose.msra.mxu0 0
    %9018 = vmatprep.subr.bf16.mxu0 0
    %9019 = vmatpush1.bf16.xpose.msra.mxu0 0
    %9020 = vmatprep.subr.bf16.mxu0 0
    %9021 = vmatpush1.bf16.xpose.msra.mxu0 0
    %9022 = vmatprep.subr.bf16.mxu0 0
    %9023 = vmatpush1.bf16.xpose.msra.mxu0 0
    %9024 = vmatprep.subr.bf16.mxu0 0
    %9025 = vmatpush1.bf16.xpose.msra.mxu0 0
    %9026 = vmatprep.subr.bf16.mxu0 0
    %9027 = vmatpush1.bf16.xpose.msra.mxu0 0
    %9028 = vmatprep.subr.bf16.mxu0 0
    %9029 = vmatpush1.bf16.xpose.msra.mxu0 0
    %9030 = vmatprep.subr.bf16.mxu0 0
    %9031 = vmatpush1.bf16.xpose.msra.mxu0 0
    %9032 = vmatprep.subr.bf16.mxu0 0
    %9033 = vmatpush1.bf16.xpose.msra.mxu0 0
    %9034 = vmatprep.subr.bf16.mxu0 0
    %9035 = vmatpush1.bf16.xpose.msra.mxu0 0
    %9036 = vmatprep.subr.bf16.mxu0 0
    %9037 = vmatpush1.bf16.xpose.msra.mxu0 0
    %9038 = vmatprep.subr.bf16.mxu0 0
    %9039 = vmatpush1.bf16.xpose.msra.mxu0 0
    %9040 = vmatprep.subr.bf16.mxu0 0
    %9041 = vmatpush1.bf16.xpose.msra.mxu0 0
    %9042 = vmatprep.mubr.bf16.mxu0 0
    %9043 = vmatmul.mubr.bf16.gmra.mrb[0].mxu0 %v9005
    %v9044 = vpop.f32.mrb[0].mxu0
    %v9045 = vadd.f32 0.0, %v9044
    %v9046 = vpop.f32.mrb[0].mxu0
    %v9047 = vpop.f32.mrb[0].mxu0
    %v9048 = vadd.f32 0.0, %v9047
    %v9049 = vpop.f32.mrb[0].mxu0
    %9050 = vdwg.mxu0
    %9051 = vrot.lane.b32.xlu0 %v6005, 80
    %v9052 = vpop.permute.xlu0 %9051
    %9053 = vrot.lane.b32.xlu0 %v6005, 16
    %v9054 = vpop.permute.xlu0 %9053
    %v9056 = vsel %vm632, %v9052, 0
    %v9059 = vsel %vm632, %v9054, 0
    %9061 = vmatprep.subr.bf16.mxu0 0
    %9062 = vmatpush1.bf16.xpose.msra.mxu0 %v9059
    %9063 = vmatprep.subr.bf16.mxu0 0
    %9064 = vmatpush1.bf16.xpose.msra.mxu0 0
    %9065 = vmatprep.subr.bf16.mxu0 0
    %9066 = vmatpush1.bf16.xpose.msra.mxu0 0
    %9067 = vmatprep.subr.bf16.mxu0 0
    %9068 = vmatpush1.bf16.xpose.msra.mxu0 0
    %9069 = vmatprep.subr.bf16.mxu0 0
    %9070 = vmatpush1.bf16.xpose.msra.mxu0 0
    %9071 = vmatprep.subr.bf16.mxu0 0
    %9072 = vmatpush1.bf16.xpose.msra.mxu0 0
    %9073 = vmatprep.subr.bf16.mxu0 0
    %9074 = vmatpush1.bf16.xpose.msra.mxu0 0
    %9075 = vmatprep.subr.bf16.mxu0 0
    %9076 = vmatpush1.bf16.xpose.msra.mxu0 0
    %9077 = vmatprep.subr.bf16.mxu0 0
    %9078 = vmatpush1.bf16.xpose.msra.mxu0 0
    %9079 = vmatprep.subr.bf16.mxu0 0
    %9080 = vmatpush1.bf16.xpose.msra.mxu0 0
    %9081 = vmatprep.subr.bf16.mxu0 0
    %9082 = vmatpush1.bf16.xpose.msra.mxu0 0
    %9083 = vmatprep.subr.bf16.mxu0 0
    %9084 = vmatpush1.bf16.xpose.msra.mxu0 0
    %9085 = vmatprep.subr.bf16.mxu0 0
    %9086 = vmatpush1.bf16.xpose.msra.mxu0 0
    %9087 = vmatprep.subr.bf16.mxu0 0
    %9088 = vmatpush1.bf16.xpose.msra.mxu0 0
    %9089 = vmatprep.subr.bf16.mxu0 0
    %9090 = vmatpush1.bf16.xpose.msra.mxu0 0
    %9091 = vmatprep.subr.bf16.mxu0 0
    %9092 = vmatpush1.bf16.xpose.msra.mxu0 0
    %9093 = vmatprep.mubr.bf16.mxu0 0
    %9094 = vmatmul.mubr.bf16.gmra.mrb[0].mxu0 %v9056
    %v9095 = vpop.f32.mrb[0].mxu0
    %v9096 = vadd.f32 0.0, %v9095
    %v9097 = vpop.f32.mrb[0].mxu0
    %v9098 = vpop.f32.mrb[0].mxu0
    %v9099 = vadd.f32 0.0, %v9098
    %v9100 = vpop.f32.mrb[0].mxu0
    %9101 = vdwg.mxu0
    %9102 = vrot.lane.b32.xlu0 %v6006, 80
    %v9103 = vpop.permute.xlu0 %9102
    %9104 = vrot.lane.b32.xlu0 %v6006, 16
    %v9105 = vpop.permute.xlu0 %9104
    %v9107 = vsel %vm632, %v9103, 0
    %v9110 = vsel %vm632, %v9105, 0
    %9112 = vmatprep.subr.bf16.mxu0 0
    %9113 = vmatpush1.bf16.xpose.msra.mxu0 %v9110
    %9114 = vmatprep.subr.bf16.mxu0 0
    %9115 = vmatpush1.bf16.xpose.msra.mxu0 0
    %9116 = vmatprep.subr.bf16.mxu0 0
    %9117 = vmatpush1.bf16.xpose.msra.mxu0 0
    %9118 = vmatprep.subr.bf16.mxu0 0
    %9119 = vmatpush1.bf16.xpose.msra.mxu0 0
    %9120 = vmatprep.subr.bf16.mxu0 0
    %9121 = vmatpush1.bf16.xpose.msra.mxu0 0
    %9122 = vmatprep.subr.bf16.mxu0 0
    %9123 = vmatpush1.bf16.xpose.msra.mxu0 0
    %9124 = vmatprep.subr.bf16.mxu0 0
    %9125 = vmatpush1.bf16.xpose.msra.mxu0 0
    %9126 = vmatprep.subr.bf16.mxu0 0
    %9127 = vmatpush1.bf16.xpose.msra.mxu0 0
    %9128 = vmatprep.subr.bf16.mxu0 0
    %9129 = vmatpush1.bf16.xpose.msra.mxu0 0
    %9130 = vmatprep.subr.bf16.mxu0 0
    %9131 = vmatpush1.bf16.xpose.msra.mxu0 0
    %9132 = vmatprep.subr.bf16.mxu0 0
    %9133 = vmatpush1.bf16.xpose.msra.mxu0 0
    %9134 = vmatprep.subr.bf16.mxu0 0
    %9135 = vmatpush1.bf16.xpose.msra.mxu0 0
    %9136 = vmatprep.subr.bf16.mxu0 0
    %9137 = vmatpush1.bf16.xpose.msra.mxu0 0
    %9138 = vmatprep.subr.bf16.mxu0 0
    %9139 = vmatpush1.bf16.xpose.msra.mxu0 0
    %9140 = vmatprep.subr.bf16.mxu0 0
    %9141 = vmatpush1.bf16.xpose.msra.mxu0 0
    %9142 = vmatprep.subr.bf16.mxu0 0
    %9143 = vmatpush1.bf16.xpose.msra.mxu0 0
    %9144 = vmatprep.mubr.bf16.mxu0 0
    %9145 = vmatmul.mubr.bf16.gmra.mrb[0].mxu0 %v9107
    %v9146 = vpop.f32.mrb[0].mxu0
    %v9147 = vadd.f32 0.0, %v9146
    %v9148 = vpop.f32.mrb[0].mxu0
    %v9149 = vpop.f32.mrb[0].mxu0
    %v9150 = vadd.f32 0.0, %v9149
    %v9151 = vpop.f32.mrb[0].mxu0
    %9152 = vdwg.mxu0
    %9153 = vrot.lane.b32.xlu0 %v6007, 80
    %v9154 = vpop.permute.xlu0 %9153
    %9155 = vrot.lane.b32.xlu0 %v6007, 16
    %v9156 = vpop.permute.xlu0 %9155
    %v9158 = vsel %vm632, %v9154, 0
    %v9161 = vsel %vm632, %v9156, 0
    %9163 = vmatprep.subr.bf16.mxu0 0
    %9164 = vmatpush1.bf16.xpose.msra.mxu0 %v9161
    %9165 = vmatprep.subr.bf16.mxu0 0
    %9166 = vmatpush1.bf16.xpose.msra.mxu0 0
    %9167 = vmatprep.subr.bf16.mxu0 0
    %9168 = vmatpush1.bf16.xpose.msra.mxu0 0
    %9169 = vmatprep.subr.bf16.mxu0 0
    %9170 = vmatpush1.bf16.xpose.msra.mxu0 0
    %9171 = vmatprep.subr.bf16.mxu0 0
    %9172 = vmatpush1.bf16.xpose.msra.mxu0 0
    %9173 = vmatprep.subr.bf16.mxu0 0
    %9174 = vmatpush1.bf16.xpose.msra.mxu0 0
    %9175 = vmatprep.subr.bf16.mxu0 0
    %9176 = vmatpush1.bf16.xpose.msra.mxu0 0
    %9177 = vmatprep.subr.bf16.mxu0 0
    %9178 = vmatpush1.bf16.xpose.msra.mxu0 0
    %9179 = vmatprep.subr.bf16.mxu0 0
    %9180 = vmatpush1.bf16.xpose.msra.mxu0 0
    %9181 = vmatprep.subr.bf16.mxu0 0
    %9182 = vmatpush1.bf16.xpose.msra.mxu0 0
    %9183 = vmatprep.subr.bf16.mxu0 0
    %9184 = vmatpush1.bf16.xpose.msra.mxu0 0
    %9185 = vmatprep.subr.bf16.mxu0 0
    %9186 = vmatpush1.bf16.xpose.msra.mxu0 0
    %9187 = vmatprep.subr.bf16.mxu0 0
    %9188 = vmatpush1.bf16.xpose.msra.mxu0 0
    %9189 = vmatprep.subr.bf16.mxu0 0
    %9190 = vmatpush1.bf16.xpose.msra.mxu0 0
    %9191 = vmatprep.subr.bf16.mxu0 0
    %9192 = vmatpush1.bf16.xpose.msra.mxu0 0
    %9193 = vmatprep.subr.bf16.mxu0 0
    %9194 = vmatpush1.bf16.xpose.msra.mxu0 0
    %9195 = vmatprep.mubr.bf16.mxu0 0
    %9196 = vmatmul.mubr.bf16.gmra.mrb[0].mxu0 %v9158
    %v9197 = vpop.f32.mrb[0].mxu0
    %v9198 = vadd.f32 0.0, %v9197
    %v9199 = vpop.f32.mrb[0].mxu0
    %v9200 = vpop.f32.mrb[0].mxu0
    %v9201 = vadd.f32 0.0, %v9200
    %v9202 = vpop.f32.mrb[0].mxu0
    %9203 = vdwg.mxu0
    %9204 = vrot.lane.b32.xlu0 %v6008, 80
    %v9205 = vpop.permute.xlu0 %9204
    %9206 = vrot.lane.b32.xlu0 %v6008, 16
    %v9207 = vpop.permute.xlu0 %9206
    %v9209 = vsel %vm632, %v9205, 0
    %v9212 = vsel %vm632, %v9207, 0
    %9214 = vmatprep.subr.bf16.mxu0 0
    %9215 = vmatpush1.bf16.xpose.msra.mxu0 %v9212
    %9216 = vmatprep.subr.bf16.mxu0 0
    %9217 = vmatpush1.bf16.xpose.msra.mxu0 0
    %9218 = vmatprep.subr.bf16.mxu0 0
    %9219 = vmatpush1.bf16.xpose.msra.mxu0 0
    %9220 = vmatprep.subr.bf16.mxu0 0
    %9221 = vmatpush1.bf16.xpose.msra.mxu0 0
    %9222 = vmatprep.subr.bf16.mxu0 0
    %9223 = vmatpush1.bf16.xpose.msra.mxu0 0
    %9224 = vmatprep.subr.bf16.mxu0 0
    %9225 = vmatpush1.bf16.xpose.msra.mxu0 0
    %9226 = vmatprep.subr.bf16.mxu0 0
    %9227 = vmatpush1.bf16.xpose.msra.mxu0 0
    %9228 = vmatprep.subr.bf16.mxu0 0
    %9229 = vmatpush1.bf16.xpose.msra.mxu0 0
    %9230 = vmatprep.subr.bf16.mxu0 0
    %9231 = vmatpush1.bf16.xpose.msra.mxu0 0
    %9232 = vmatprep.subr.bf16.mxu0 0
    %9233 = vmatpush1.bf16.xpose.msra.mxu0 0
    %9234 = vmatprep.subr.bf16.mxu0 0
    %9235 = vmatpush1.bf16.xpose.msra.mxu0 0
    %9236 = vmatprep.subr.bf16.mxu0 0
    %9237 = vmatpush1.bf16.xpose.msra.mxu0 0
    %9238 = vmatprep.subr.bf16.mxu0 0
    %9239 = vmatpush1.bf16.xpose.msra.mxu0 0
    %9240 = vmatprep.subr.bf16.mxu0 0
    %9241 = vmatpush1.bf16.xpose.msra.mxu0 0
    %9242 = vmatprep.subr.bf16.mxu0 0
    %9243 = vmatpush1.bf16.xpose.msra.mxu0 0
    %9244 = vmatprep.subr.bf16.mxu0 0
    %9245 = vmatpush1.bf16.xpose.msra.mxu0 0
    %9246 = vmatprep.mubr.bf16.mxu0 0
    %9247 = vmatmul.mubr.bf16.gmra.mrb[0].mxu0 %v9209
    %v9248 = vpop.f32.mrb[0].mxu0
    %v9249 = vadd.f32 0.0, %v9248
    %v9250 = vpop.f32.mrb[0].mxu0
    %v9251 = vpop.f32.mrb[0].mxu0
    %v9252 = vadd.f32 0.0, %v9251
    %v9253 = vpop.f32.mrb[0].mxu0
    %9254 = vdwg.mxu0
    %9255 = vrot.lane.b32.xlu0 %v6009, 80
    %v9256 = vpop.permute.xlu0 %9255
    %9257 = vrot.lane.b32.xlu0 %v6009, 16
    %v9258 = vpop.permute.xlu0 %9257
    %v9260 = vsel %vm632, %v9256, 0
    %v9263 = vsel %vm632, %v9258, 0
    %9265 = vmatprep.subr.bf16.mxu0 0
    %9266 = vmatpush1.bf16.xpose.msra.mxu0 %v9263
    %9267 = vmatprep.subr.bf16.mxu0 0
    %9268 = vmatpush1.bf16.xpose.msra.mxu0 0
    %9269 = vmatprep.subr.bf16.mxu0 0
    %9270 = vmatpush1.bf16.xpose.msra.mxu0 0
    %9271 = vmatprep.subr.bf16.mxu0 0
    %9272 = vmatpush1.bf16.xpose.msra.mxu0 0
    %9273 = vmatprep.subr.bf16.mxu0 0
    %9274 = vmatpush1.bf16.xpose.msra.mxu0 0
    %9275 = vmatprep.subr.bf16.mxu0 0
    %9276 = vmatpush1.bf16.xpose.msra.mxu0 0
    %9277 = vmatprep.subr.bf16.mxu0 0
    %9278 = vmatpush1.bf16.xpose.msra.mxu0 0
    %9279 = vmatprep.subr.bf16.mxu0 0
    %9280 = vmatpush1.bf16.xpose.msra.mxu0 0
    %9281 = vmatprep.subr.bf16.mxu0 0
    %9282 = vmatpush1.bf16.xpose.msra.mxu0 0
    %9283 = vmatprep.subr.bf16.mxu0 0
    %9284 = vmatpush1.bf16.xpose.msra.mxu0 0
    %9285 = vmatprep.subr.bf16.mxu0 0
    %9286 = vmatpush1.bf16.xpose.msra.mxu0 0
    %9287 = vmatprep.subr.bf16.mxu0 0
    %9288 = vmatpush1.bf16.xpose.msra.mxu0 0
    %9289 = vmatprep.subr.bf16.mxu0 0
    %9290 = vmatpush1.bf16.xpose.msra.mxu0 0
    %9291 = vmatprep.subr.bf16.mxu0 0
    %9292 = vmatpush1.bf16.xpose.msra.mxu0 0
    %9293 = vmatprep.subr.bf16.mxu0 0
    %9294 = vmatpush1.bf16.xpose.msra.mxu0 0
    %9295 = vmatprep.subr.bf16.mxu0 0
    %9296 = vmatpush1.bf16.xpose.msra.mxu0 0
    %9297 = vmatprep.mubr.bf16.mxu0 0
    %9298 = vmatmul.mubr.bf16.gmra.mrb[0].mxu0 %v9260
    %v9299 = vpop.f32.mrb[0].mxu0
    %v9300 = vadd.f32 0.0, %v9299
    %v9301 = vpop.f32.mrb[0].mxu0
    %v9302 = vpop.f32.mrb[0].mxu0
    %v9303 = vadd.f32 0.0, %v9302
    %v9304 = vpop.f32.mrb[0].mxu0
    %9305 = vdwg.mxu0
    %v9306 = vsel %vm632, %v8943, -inf
    %9307 = vmax.xlane.f32.xlu0 %v9306
    %v9308 = vpop.xlane.xlu0 %9307
    %v9309 = vsel %vm632, %v8946, -inf
    %9310 = vmax.xlane.f32.xlu0 %v9309
    %v9311 = vpop.xlane.xlu0 %9310
    %v9312 = vsel %vm632, %v8994, -inf
    %9313 = vmax.xlane.f32.xlu0 %v9312
    %v9314 = vpop.xlane.xlu0 %9313
    %v9315 = vsel %vm632, %v8997, -inf
    %9316 = vmax.xlane.f32.xlu0 %v9315
    %v9317 = vpop.xlane.xlu0 %9316
    %v9318 = vsel %vm632, %v9045, -inf
    %9319 = vmax.xlane.f32.xlu0 %v9318
    %v9320 = vpop.xlane.xlu0 %9319
    %v9321 = vsel %vm632, %v9048, -inf
    %9322 = vmax.xlane.f32.xlu0 %v9321
    %v9323 = vpop.xlane.xlu0 %9322
    %v9324 = vsel %vm632, %v9096, -inf
    %9325 = vmax.xlane.f32.xlu0 %v9324
    %v9326 = vpop.xlane.xlu0 %9325
    %v9327 = vsel %vm632, %v9099, -inf
    %9328 = vmax.xlane.f32.xlu0 %v9327
    %v9329 = vpop.xlane.xlu0 %9328
    %v9330 = vsel %vm632, %v9147, -inf
    %9331 = vmax.xlane.f32.xlu0 %v9330
    %v9332 = vpop.xlane.xlu0 %9331
    %v9333 = vsel %vm632, %v9150, -inf
    %9334 = vmax.xlane.f32.xlu0 %v9333
    %v9335 = vpop.xlane.xlu0 %9334
    %v9336 = vsel %vm632, %v9198, -inf
    %9337 = vmax.xlane.f32.xlu0 %v9336
    %v9338 = vpop.xlane.xlu0 %9337
    %v9339 = vsel %vm632, %v9201, -inf
    %9340 = vmax.xlane.f32.xlu0 %v9339
    %v9341 = vpop.xlane.xlu0 %9340
    %v9342 = vsel %vm632, %v9249, -inf
    %9343 = vmax.xlane.f32.xlu0 %v9342
    %v9344 = vpop.xlane.xlu0 %9343
    %v9345 = vsel %vm632, %v9252, -inf
    %9346 = vmax.xlane.f32.xlu0 %v9345
    %v9347 = vpop.xlane.xlu0 %9346
    %v9348 = vsel %vm632, %v9300, -inf
    %9349 = vmax.xlane.f32.xlu0 %v9348
    %v9350 = vpop.xlane.xlu0 %9349
    %v9351 = vsel %vm632, %v9303, -inf
    %9352 = vmax.xlane.f32.xlu0 %v9351
    %v9353 = vpop.xlane.xlu0 %9352
    %v9354 = vsub.f32 %v8943, %v9308
    %v9355 = vsub.f32 %v8946, %v9311
    %v9356 = vsub.f32 %v8994, %v9314
    %v9357 = vsub.f32 %v8997, %v9317
    %v9358 = vsub.f32 %v9045, %v9320
    %v9359 = vsub.f32 %v9048, %v9323
    %v9360 = vsub.f32 %v9096, %v9326
    %v9361 = vsub.f32 %v9099, %v9329
    %v9362 = vsub.f32 %v9147, %v9332
    %v9363 = vsub.f32 %v9150, %v9335
    %v9364 = vsub.f32 %v9198, %v9338
    %v9365 = vsub.f32 %v9201, %v9341
    %v9366 = vsub.f32 %v9249, %v9344
    %v9367 = vsub.f32 %v9252, %v9347
    %v9368 = vsub.f32 %v9300, %v9350
    %v9369 = vsub.f32 %v9303, %v9353
    %v9370 = vmul.f32 %v9354, 1.442695
    %v9371 = vpow.pop %v9370
    %v9372 = vmul.f32 %v9355, 1.442695
    %v9373 = vpow.pop %v9372
    %v9374 = vmul.f32 %v9356, 1.442695
    %v9375 = vpow.pop %v9374
    %v9376 = vmul.f32 %v9357, 1.442695
    %v9377 = vpow.pop %v9376
    %v9378 = vmul.f32 %v9358, 1.442695
    %v9379 = vpow.pop %v9378
    %v9380 = vmul.f32 %v9359, 1.442695
    %v9381 = vpow.pop %v9380
    %v9382 = vmul.f32 %v9360, 1.442695
    %v9383 = vpow.pop %v9382
    %v9384 = vmul.f32 %v9361, 1.442695
    %v9385 = vpow.pop %v9384
    %v9386 = vmul.f32 %v9362, 1.442695
    %v9387 = vpow.pop %v9386
    %v9388 = vmul.f32 %v9363, 1.442695
    %v9389 = vpow.pop %v9388
    %v9390 = vmul.f32 %v9364, 1.442695
    %v9391 = vpow.pop %v9390
    %v9392 = vmul.f32 %v9365, 1.442695
    %v9393 = vpow.pop %v9392
    %v9394 = vmul.f32 %v9366, 1.442695
    %v9395 = vpow.pop %v9394
    %v9396 = vmul.f32 %v9367, 1.442695
    %v9397 = vpow.pop %v9396
    %v9398 = vmul.f32 %v9368, 1.442695
    %v9399 = vpow.pop %v9398
    %v9400 = vmul.f32 %v9369, 1.442695
    %v9401 = vpow.pop %v9400
    %v9402 = vsel %vm632, %v9371, 0.0
    %9403 = vadd.xlane.f32.xlu0 %v9402
    %v9404 = vpop.xlane.xlu0 %9403
    %v9405 = vsel %vm632, %v9373, 0.0
    %9406 = vadd.xlane.f32.xlu0 %v9405
    %v9407 = vpop.xlane.xlu0 %9406
    %v9408 = vsel %vm632, %v9375, 0.0
    %9409 = vadd.xlane.f32.xlu0 %v9408
    %v9410 = vpop.xlane.xlu0 %9409
    %v9411 = vsel %vm632, %v9377, 0.0
    %9412 = vadd.xlane.f32.xlu0 %v9411
    %v9413 = vpop.xlane.xlu0 %9412
    %v9414 = vsel %vm632, %v9379, 0.0
    %9415 = vadd.xlane.f32.xlu0 %v9414
    %v9416 = vpop.xlane.xlu0 %9415
    %v9417 = vsel %vm632, %v9381, 0.0
    %9418 = vadd.xlane.f32.xlu0 %v9417
    %v9419 = vpop.xlane.xlu0 %9418
    %v9420 = vsel %vm632, %v9383, 0.0
    %9421 = vadd.xlane.f32.xlu0 %v9420
    %v9422 = vpop.xlane.xlu0 %9421
    %v9423 = vsel %vm632, %v9385, 0.0
    %9424 = vadd.xlane.f32.xlu0 %v9423
    %v9425 = vpop.xlane.xlu0 %9424
    %v9426 = vsel %vm632, %v9387, 0.0
    %9427 = vadd.xlane.f32.xlu0 %v9426
    %v9428 = vpop.xlane.xlu0 %9427
    %v9429 = vsel %vm632, %v9389, 0.0
    %9430 = vadd.xlane.f32.xlu0 %v9429
    %v9431 = vpop.xlane.xlu0 %9430
    %v9432 = vsel %vm632, %v9391, 0.0
    %9433 = vadd.xlane.f32.xlu0 %v9432
    %v9434 = vpop.xlane.xlu0 %9433
    %v9435 = vsel %vm632, %v9393, 0.0
    %9436 = vadd.xlane.f32.xlu0 %v9435
    %v9437 = vpop.xlane.xlu0 %9436
    %v9438 = vsel %vm632, %v9395, 0.0
    %9439 = vadd.xlane.f32.xlu0 %v9438
    %v9440 = vpop.xlane.xlu0 %9439
    %v9441 = vsel %vm632, %v9397, 0.0
    %9442 = vadd.xlane.f32.xlu0 %v9441
    %v9443 = vpop.xlane.xlu0 %9442
    %v9444 = vsel %vm632, %v9399, 0.0
    %9445 = vadd.xlane.f32.xlu0 %v9444
    %v9446 = vpop.xlane.xlu0 %9445
    %v9447 = vsel %vm632, %v9401, 0.0
    %9448 = vadd.xlane.f32.xlu0 %v9447
    %v9449 = vpop.xlane.xlu0 %9448
    %v9450 = vrcp.pop %v9404
    %v9451 = vmul.f32 %v9371, %v9450
    %v9452 = vrcp.pop %v9407
    %v9453 = vmul.f32 %v9373, %v9452
    %v9454 = vrcp.pop %v9410
    %v9455 = vmul.f32 %v9375, %v9454
    %v9456 = vrcp.pop %v9413
    %v9457 = vmul.f32 %v9377, %v9456
    %v9458 = vrcp.pop %v9416
    %v9459 = vmul.f32 %v9379, %v9458
    %v9460 = vrcp.pop %v9419
    %v9461 = vmul.f32 %v9381, %v9460
    %v9462 = vrcp.pop %v9422
    %v9463 = vmul.f32 %v9383, %v9462
    %v9464 = vrcp.pop %v9425
    %v9465 = vmul.f32 %v9385, %v9464
    %v9466 = vrcp.pop %v9428
    %v9467 = vmul.f32 %v9387, %v9466
    %v9468 = vrcp.pop %v9431
    %v9469 = vmul.f32 %v9389, %v9468
    %v9470 = vrcp.pop %v9434
    %v9471 = vmul.f32 %v9391, %v9470
    %v9472 = vrcp.pop %v9437
    %v9473 = vmul.f32 %v9393, %v9472
    %v9474 = vrcp.pop %v9440
    %v9475 = vmul.f32 %v9395, %v9474
    %v9476 = vrcp.pop %v9443
    %v9477 = vmul.f32 %v9397, %v9476
    %v9478 = vrcp.pop %v9446
    %v9479 = vmul.f32 %v9399, %v9478
    %v9480 = vrcp.pop %v9449
    %v9481 = vmul.f32 %v9401, %v9480
    %v9482 = vpack.c.bf16 %v9453, %v9451
    %v9483 = vpack.c.bf16 %v9457, %v9455
    %v9484 = vpack.c.bf16 %v9461, %v9459
    %v9485 = vpack.c.bf16 %v9465, %v9463
    %v9486 = vpack.c.bf16 %v9469, %v9467
    %v9487 = vpack.c.bf16 %v9473, %v9471
    %v9488 = vpack.c.bf16 %v9477, %v9475
    %v9489 = vpack.c.bf16 %v9481, %v9479
    %9490 = vrot.lane.b32.xlu0 %v6010, 80
    %v9491 = vpop.permute.xlu0 %9490
    %v9494 = vsel %vm632, %v9482, 0
    %9496 = vmatprep.subr.bf16.mxu0 0
    %9497 = vmatpush1.bf16.msra.mxu0 %v9491
    %9498 = vmatprep.subr.bf16.mxu0 0
    %9499 = vmatpush1.bf16.msra.mxu0 0
    %9500 = vmatprep.subr.bf16.mxu0 0
    %9501 = vmatpush1.bf16.msra.mxu0 0
    %9502 = vmatprep.subr.bf16.mxu0 0
    %9503 = vmatpush1.bf16.msra.mxu0 0
    %9504 = vmatprep.subr.bf16.mxu0 0
    %9505 = vmatpush1.bf16.msra.mxu0 0
    %9506 = vmatprep.subr.bf16.mxu0 0
    %9507 = vmatpush1.bf16.msra.mxu0 0
    %9508 = vmatprep.subr.bf16.mxu0 0
    %9509 = vmatpush1.bf16.msra.mxu0 0
    %9510 = vmatprep.subr.bf16.mxu0 0
    %9511 = vmatpush1.bf16.msra.mxu0 0
    %9512 = vmatprep.subr.bf16.mxu0 0
    %9513 = vmatpush1.bf16.msra.mxu0 0
    %9514 = vmatprep.subr.bf16.mxu0 0
    %9515 = vmatpush1.bf16.msra.mxu0 0
    %9516 = vmatprep.subr.bf16.mxu0 0
    %9517 = vmatpush1.bf16.msra.mxu0 0
    %9518 = vmatprep.subr.bf16.mxu0 0
    %9519 = vmatpush1.bf16.msra.mxu0 0
    %9520 = vmatprep.subr.bf16.mxu0 0
    %9521 = vmatpush1.bf16.msra.mxu0 0
    %9522 = vmatprep.subr.bf16.mxu0 0
    %9523 = vmatpush1.bf16.msra.mxu0 0
    %9524 = vmatprep.subr.bf16.mxu0 0
    %9525 = vmatpush1.bf16.msra.mxu0 0
    %9526 = vmatprep.subr.bf16.mxu0 0
    %9527 = vmatpush1.bf16.msra.mxu0 0
    %9528 = vmatprep.mubr.bf16.mxu0 0
    %9529 = vmatmul.mubr.bf16.gmra.mrb[0].mxu0 %v9494
    %v9530 = vpop.f32.mrb[0].mxu0
    %v9531 = vadd.f32 0.0, %v9530
    %v9532 = vpop.f32.mrb[0].mxu0
    %v9533 = vpop.f32.mrb[0].mxu0
    %v9534 = vadd.f32 0.0, %v9533
    %v9535 = vpop.f32.mrb[0].mxu0
    %9536 = vdwg.mxu0
    %9537 = vrot.lane.b32.xlu0 %v6011, 80
    %v9538 = vpop.permute.xlu0 %9537
    %v9541 = vsel %vm632, %v9483, 0
    %9543 = vmatprep.subr.bf16.mxu0 0
    %9544 = vmatpush1.bf16.msra.mxu0 %v9538
    %9545 = vmatprep.subr.bf16.mxu0 0
    %9546 = vmatpush1.bf16.msra.mxu0 0
    %9547 = vmatprep.subr.bf16.mxu0 0
    %9548 = vmatpush1.bf16.msra.mxu0 0
    %9549 = vmatprep.subr.bf16.mxu0 0
    %9550 = vmatpush1.bf16.msra.mxu0 0
    %9551 = vmatprep.subr.bf16.mxu0 0
    %9552 = vmatpush1.bf16.msra.mxu0 0
    %9553 = vmatprep.subr.bf16.mxu0 0
    %9554 = vmatpush1.bf16.msra.mxu0 0
    %9555 = vmatprep.subr.bf16.mxu0 0
    %9556 = vmatpush1.bf16.msra.mxu0 0
    %9557 = vmatprep.subr.bf16.mxu0 0
    %9558 = vmatpush1.bf16.msra.mxu0 0
    %9559 = vmatprep.subr.bf16.mxu0 0
    %9560 = vmatpush1.bf16.msra.mxu0 0
    %9561 = vmatprep.subr.bf16.mxu0 0
    %9562 = vmatpush1.bf16.msra.mxu0 0
    %9563 = vmatprep.subr.bf16.mxu0 0
    %9564 = vmatpush1.bf16.msra.mxu0 0
    %9565 = vmatprep.subr.bf16.mxu0 0
    %9566 = vmatpush1.bf16.msra.mxu0 0
    %9567 = vmatprep.subr.bf16.mxu0 0
    %9568 = vmatpush1.bf16.msra.mxu0 0
    %9569 = vmatprep.subr.bf16.mxu0 0
    %9570 = vmatpush1.bf16.msra.mxu0 0
    %9571 = vmatprep.subr.bf16.mxu0 0
    %9572 = vmatpush1.bf16.msra.mxu0 0
    %9573 = vmatprep.subr.bf16.mxu0 0
    %9574 = vmatpush1.bf16.msra.mxu0 0
    %9575 = vmatprep.mubr.bf16.mxu0 0
    %9576 = vmatmul.mubr.bf16.gmra.mrb[0].mxu0 %v9541
    %v9577 = vpop.f32.mrb[0].mxu0
    %v9578 = vadd.f32 0.0, %v9577
    %v9579 = vpop.f32.mrb[0].mxu0
    %v9580 = vpop.f32.mrb[0].mxu0
    %v9581 = vadd.f32 0.0, %v9580
    %v9582 = vpop.f32.mrb[0].mxu0
    %9583 = vdwg.mxu0
    %9584 = vrot.lane.b32.xlu0 %v6012, 80
    %v9585 = vpop.permute.xlu0 %9584
    %v9588 = vsel %vm632, %v9484, 0
    %9590 = vmatprep.subr.bf16.mxu0 0
    %9591 = vmatpush1.bf16.msra.mxu0 %v9585
    %9592 = vmatprep.subr.bf16.mxu0 0
    %9593 = vmatpush1.bf16.msra.mxu0 0
    %9594 = vmatprep.subr.bf16.mxu0 0
    %9595 = vmatpush1.bf16.msra.mxu0 0
    %9596 = vmatprep.subr.bf16.mxu0 0
    %9597 = vmatpush1.bf16.msra.mxu0 0
    %9598 = vmatprep.subr.bf16.mxu0 0
    %9599 = vmatpush1.bf16.msra.mxu0 0
    %9600 = vmatprep.subr.bf16.mxu0 0
    %9601 = vmatpush1.bf16.msra.mxu0 0
    %9602 = vmatprep.subr.bf16.mxu0 0
    %9603 = vmatpush1.bf16.msra.mxu0 0
    %9604 = vmatprep.subr.bf16.mxu0 0
    %9605 = vmatpush1.bf16.msra.mxu0 0
    %9606 = vmatprep.subr.bf16.mxu0 0
    %9607 = vmatpush1.bf16.msra.mxu0 0
    %9608 = vmatprep.subr.bf16.mxu0 0
    %9609 = vmatpush1.bf16.msra.mxu0 0
    %9610 = vmatprep.subr.bf16.mxu0 0
    %9611 = vmatpush1.bf16.msra.mxu0 0
    %9612 = vmatprep.subr.bf16.mxu0 0
    %9613 = vmatpush1.bf16.msra.mxu0 0
    %9614 = vmatprep.subr.bf16.mxu0 0
    %9615 = vmatpush1.bf16.msra.mxu0 0
    %9616 = vmatprep.subr.bf16.mxu0 0
    %9617 = vmatpush1.bf16.msra.mxu0 0
    %9618 = vmatprep.subr.bf16.mxu0 0
    %9619 = vmatpush1.bf16.msra.mxu0 0
    %9620 = vmatprep.subr.bf16.mxu0 0
    %9621 = vmatpush1.bf16.msra.mxu0 0
    %9622 = vmatprep.mubr.bf16.mxu0 0
    %9623 = vmatmul.mubr.bf16.gmra.mrb[0].mxu0 %v9588
    %v9624 = vpop.f32.mrb[0].mxu0
    %v9625 = vadd.f32 0.0, %v9624
    %v9626 = vpop.f32.mrb[0].mxu0
    %v9627 = vpop.f32.mrb[0].mxu0
    %v9628 = vadd.f32 0.0, %v9627
    %v9629 = vpop.f32.mrb[0].mxu0
    %9630 = vdwg.mxu0
    %9631 = vrot.lane.b32.xlu0 %v6013, 80
    %v9632 = vpop.permute.xlu0 %9631
    %v9635 = vsel %vm632, %v9485, 0
    %9637 = vmatprep.subr.bf16.mxu0 0
    %9638 = vmatpush1.bf16.msra.mxu0 %v9632
    %9639 = vmatprep.subr.bf16.mxu0 0
    %9640 = vmatpush1.bf16.msra.mxu0 0
    %9641 = vmatprep.subr.bf16.mxu0 0
    %9642 = vmatpush1.bf16.msra.mxu0 0
    %9643 = vmatprep.subr.bf16.mxu0 0
    %9644 = vmatpush1.bf16.msra.mxu0 0
    %9645 = vmatprep.subr.bf16.mxu0 0
    %9646 = vmatpush1.bf16.msra.mxu0 0
    %9647 = vmatprep.subr.bf16.mxu0 0
    %9648 = vmatpush1.bf16.msra.mxu0 0
    %9649 = vmatprep.subr.bf16.mxu0 0
    %9650 = vmatpush1.bf16.msra.mxu0 0
    %9651 = vmatprep.subr.bf16.mxu0 0
    %9652 = vmatpush1.bf16.msra.mxu0 0
    %9653 = vmatprep.subr.bf16.mxu0 0
    %9654 = vmatpush1.bf16.msra.mxu0 0
    %9655 = vmatprep.subr.bf16.mxu0 0
    %9656 = vmatpush1.bf16.msra.mxu0 0
    %9657 = vmatprep.subr.bf16.mxu0 0
    %9658 = vmatpush1.bf16.msra.mxu0 0
    %9659 = vmatprep.subr.bf16.mxu0 0
    %9660 = vmatpush1.bf16.msra.mxu0 0
    %9661 = vmatprep.subr.bf16.mxu0 0
    %9662 = vmatpush1.bf16.msra.mxu0 0
    %9663 = vmatprep.subr.bf16.mxu0 0
    %9664 = vmatpush1.bf16.msra.mxu0 0
    %9665 = vmatprep.subr.bf16.mxu0 0
    %9666 = vmatpush1.bf16.msra.mxu0 0
    %9667 = vmatprep.subr.bf16.mxu0 0
    %9668 = vmatpush1.bf16.msra.mxu0 0
    %9669 = vmatprep.mubr.bf16.mxu0 0
    %9670 = vmatmul.mubr.bf16.gmra.mrb[0].mxu0 %v9635
    %v9671 = vpop.f32.mrb[0].mxu0
    %v9672 = vadd.f32 0.0, %v9671
    %v9673 = vpop.f32.mrb[0].mxu0
    %v9674 = vpop.f32.mrb[0].mxu0
    %v9675 = vadd.f32 0.0, %v9674
    %v9676 = vpop.f32.mrb[0].mxu0
    %9677 = vdwg.mxu0
    %9678 = vrot.lane.b32.xlu0 %v6014, 80
    %v9679 = vpop.permute.xlu0 %9678
    %v9682 = vsel %vm632, %v9486, 0
    %9684 = vmatprep.subr.bf16.mxu0 0
    %9685 = vmatpush1.bf16.msra.mxu0 %v9679
    %9686 = vmatprep.subr.bf16.mxu0 0
    %9687 = vmatpush1.bf16.msra.mxu0 0
    %9688 = vmatprep.subr.bf16.mxu0 0
    %9689 = vmatpush1.bf16.msra.mxu0 0
    %9690 = vmatprep.subr.bf16.mxu0 0
    %9691 = vmatpush1.bf16.msra.mxu0 0
    %9692 = vmatprep.subr.bf16.mxu0 0
    %9693 = vmatpush1.bf16.msra.mxu0 0
    %9694 = vmatprep.subr.bf16.mxu0 0
    %9695 = vmatpush1.bf16.msra.mxu0 0
    %9696 = vmatprep.subr.bf16.mxu0 0
    %9697 = vmatpush1.bf16.msra.mxu0 0
    %9698 = vmatprep.subr.bf16.mxu0 0
    %9699 = vmatpush1.bf16.msra.mxu0 0
    %9700 = vmatprep.subr.bf16.mxu0 0
    %9701 = vmatpush1.bf16.msra.mxu0 0
    %9702 = vmatprep.subr.bf16.mxu0 0
    %9703 = vmatpush1.bf16.msra.mxu0 0
    %9704 = vmatprep.subr.bf16.mxu0 0
    %9705 = vmatpush1.bf16.msra.mxu0 0
    %9706 = vmatprep.subr.bf16.mxu0 0
    %9707 = vmatpush1.bf16.msra.mxu0 0
    %9708 = vmatprep.subr.bf16.mxu0 0
    %9709 = vmatpush1.bf16.msra.mxu0 0
    %9710 = vmatprep.subr.bf16.mxu0 0
    %9711 = vmatpush1.bf16.msra.mxu0 0
    %9712 = vmatprep.subr.bf16.mxu0 0
    %9713 = vmatpush1.bf16.msra.mxu0 0
    %9714 = vmatprep.subr.bf16.mxu0 0
    %9715 = vmatpush1.bf16.msra.mxu0 0
    %9716 = vmatprep.mubr.bf16.mxu0 0
    %9717 = vmatmul.mubr.bf16.gmra.mrb[0].mxu0 %v9682
    %v9718 = vpop.f32.mrb[0].mxu0
    %v9719 = vadd.f32 0.0, %v9718
    %v9720 = vpop.f32.mrb[0].mxu0
    %v9721 = vpop.f32.mrb[0].mxu0
    %v9722 = vadd.f32 0.0, %v9721
    %v9723 = vpop.f32.mrb[0].mxu0
    %9724 = vdwg.mxu0
    %9725 = vrot.lane.b32.xlu0 %v6015, 80
    %v9726 = vpop.permute.xlu0 %9725
    %v9729 = vsel %vm632, %v9487, 0
    %9731 = vmatprep.subr.bf16.mxu0 0
    %9732 = vmatpush1.bf16.msra.mxu0 %v9726
    %9733 = vmatprep.subr.bf16.mxu0 0
    %9734 = vmatpush1.bf16.msra.mxu0 0
    %9735 = vmatprep.subr.bf16.mxu0 0
    %9736 = vmatpush1.bf16.msra.mxu0 0
    %9737 = vmatprep.subr.bf16.mxu0 0
    %9738 = vmatpush1.bf16.msra.mxu0 0
    %9739 = vmatprep.subr.bf16.mxu0 0
    %9740 = vmatpush1.bf16.msra.mxu0 0
    %9741 = vmatprep.subr.bf16.mxu0 0
    %9742 = vmatpush1.bf16.msra.mxu0 0
    %9743 = vmatprep.subr.bf16.mxu0 0
    %9744 = vmatpush1.bf16.msra.mxu0 0
    %9745 = vmatprep.subr.bf16.mxu0 0
    %9746 = vmatpush1.bf16.msra.mxu0 0
    %9747 = vmatprep.subr.bf16.mxu0 0
    %9748 = vmatpush1.bf16.msra.mxu0 0
    %9749 = vmatprep.subr.bf16.mxu0 0
    %9750 = vmatpush1.bf16.msra.mxu0 0
    %9751 = vmatprep.subr.bf16.mxu0 0
    %9752 = vmatpush1.bf16.msra.mxu0 0
    %9753 = vmatprep.subr.bf16.mxu0 0
    %9754 = vmatpush1.bf16.msra.mxu0 0
    %9755 = vmatprep.subr.bf16.mxu0 0
    %9756 = vmatpush1.bf16.msra.mxu0 0
    %9757 = vmatprep.subr.bf16.mxu0 0
    %9758 = vmatpush1.bf16.msra.mxu0 0
    %9759 = vmatprep.subr.bf16.mxu0 0
    %9760 = vmatpush1.bf16.msra.mxu0 0
    %9761 = vmatprep.subr.bf16.mxu0 0
    %9762 = vmatpush1.bf16.msra.mxu0 0
    %9763 = vmatprep.mubr.bf16.mxu0 0
    %9764 = vmatmul.mubr.bf16.gmra.mrb[0].mxu0 %v9729
    %v9765 = vpop.f32.mrb[0].mxu0
    %v9766 = vadd.f32 0.0, %v9765
    %v9767 = vpop.f32.mrb[0].mxu0
    %v9768 = vpop.f32.mrb[0].mxu0
    %v9769 = vadd.f32 0.0, %v9768
    %v9770 = vpop.f32.mrb[0].mxu0
    %9771 = vdwg.mxu0
    %9772 = vrot.lane.b32.xlu0 %v6016, 80
    %v9773 = vpop.permute.xlu0 %9772
    %v9776 = vsel %vm632, %v9488, 0
    %9778 = vmatprep.subr.bf16.mxu0 0
    %9779 = vmatpush1.bf16.msra.mxu0 %v9773
    %9780 = vmatprep.subr.bf16.mxu0 0
    %9781 = vmatpush1.bf16.msra.mxu0 0
    %9782 = vmatprep.subr.bf16.mxu0 0
    %9783 = vmatpush1.bf16.msra.mxu0 0
    %9784 = vmatprep.subr.bf16.mxu0 0
    %9785 = vmatpush1.bf16.msra.mxu0 0
    %9786 = vmatprep.subr.bf16.mxu0 0
    %9787 = vmatpush1.bf16.msra.mxu0 0
    %9788 = vmatprep.subr.bf16.mxu0 0
    %9789 = vmatpush1.bf16.msra.mxu0 0
    %9790 = vmatprep.subr.bf16.mxu0 0
    %9791 = vmatpush1.bf16.msra.mxu0 0
    %9792 = vmatprep.subr.bf16.mxu0 0
    %9793 = vmatpush1.bf16.msra.mxu0 0
    %9794 = vmatprep.subr.bf16.mxu0 0
    %9795 = vmatpush1.bf16.msra.mxu0 0
    %9796 = vmatprep.subr.bf16.mxu0 0
    %9797 = vmatpush1.bf16.msra.mxu0 0
    %9798 = vmatprep.subr.bf16.mxu0 0
    %9799 = vmatpush1.bf16.msra.mxu0 0
    %9800 = vmatprep.subr.bf16.mxu0 0
    %9801 = vmatpush1.bf16.msra.mxu0 0
    %9802 = vmatprep.subr.bf16.mxu0 0
    %9803 = vmatpush1.bf16.msra.mxu0 0
    %9804 = vmatprep.subr.bf16.mxu0 0
    %9805 = vmatpush1.bf16.msra.mxu0 0
    %9806 = vmatprep.subr.bf16.mxu0 0
    %9807 = vmatpush1.bf16.msra.mxu0 0
    %9808 = vmatprep.subr.bf16.mxu0 0
    %9809 = vmatpush1.bf16.msra.mxu0 0
    %9810 = vmatprep.mubr.bf16.mxu0 0
    %9811 = vmatmul.mubr.bf16.gmra.mrb[0].mxu0 %v9776
    %v9812 = vpop.f32.mrb[0].mxu0
    %v9813 = vadd.f32 0.0, %v9812
    %v9814 = vpop.f32.mrb[0].mxu0
    %v9815 = vpop.f32.mrb[0].mxu0
    %v9816 = vadd.f32 0.0, %v9815
    %v9817 = vpop.f32.mrb[0].mxu0
    %9818 = vdwg.mxu0
    %9819 = vrot.lane.b32.xlu0 %v6017, 80
    %v9820 = vpop.permute.xlu0 %9819
    %v9823 = vsel %vm632, %v9489, 0
    %9825 = vmatprep.subr.bf16.mxu0 0
    %9826 = vmatpush1.bf16.msra.mxu0 %v9820
    %9827 = vmatprep.subr.bf16.mxu0 0
    %9828 = vmatpush1.bf16.msra.mxu0 0
    %9829 = vmatprep.subr.bf16.mxu0 0
    %9830 = vmatpush1.bf16.msra.mxu0 0
    %9831 = vmatprep.subr.bf16.mxu0 0
    %9832 = vmatpush1.bf16.msra.mxu0 0
    %9833 = vmatprep.subr.bf16.mxu0 0
    %9834 = vmatpush1.bf16.msra.mxu0 0
    %9835 = vmatprep.subr.bf16.mxu0 0
    %9836 = vmatpush1.bf16.msra.mxu0 0
    %9837 = vmatprep.subr.bf16.mxu0 0
    %9838 = vmatpush1.bf16.msra.mxu0 0
    %9839 = vmatprep.subr.bf16.mxu0 0
    %9840 = vmatpush1.bf16.msra.mxu0 0
    %9841 = vmatprep.subr.bf16.mxu0 0
    %9842 = vmatpush1.bf16.msra.mxu0 0
    %9843 = vmatprep.subr.bf16.mxu0 0
    %9844 = vmatpush1.bf16.msra.mxu0 0
    %9845 = vmatprep.subr.bf16.mxu0 0
    %9846 = vmatpush1.bf16.msra.mxu0 0
    %9847 = vmatprep.subr.bf16.mxu0 0
    %9848 = vmatpush1.bf16.msra.mxu0 0
    %9849 = vmatprep.subr.bf16.mxu0 0
    %9850 = vmatpush1.bf16.msra.mxu0 0
    %9851 = vmatprep.subr.bf16.mxu0 0
    %9852 = vmatpush1.bf16.msra.mxu0 0
    %9853 = vmatprep.subr.bf16.mxu0 0
    %9854 = vmatpush1.bf16.msra.mxu0 0
    %9855 = vmatprep.subr.bf16.mxu0 0
    %9856 = vmatpush1.bf16.msra.mxu0 0
    %9857 = vmatprep.mubr.bf16.mxu0 0
    %9858 = vmatmul.mubr.bf16.gmra.mrb[0].mxu0 %v9823
    %v9859 = vpop.f32.mrb[0].mxu0
    %v9860 = vadd.f32 0.0, %v9859
    %v9861 = vpop.f32.mrb[0].mxu0
    %v9862 = vpop.f32.mrb[0].mxu0
    %v9863 = vadd.f32 0.0, %v9862
    %v9864 = vpop.f32.mrb[0].mxu0
    %9865 = vdwg.mxu0
    %9882 = vrot.lane.b32.xlu0 %v7588, 16
    %v9883 = vpop.permute.xlu0 %9882
    %9884 = vrot.lane.b32.xlu0 %v7591, 16
    %v9885 = vpop.permute.xlu0 %9884
    %9886 = vrot.lane.b32.xlu0 %v7636, 16
    %v9887 = vpop.permute.xlu0 %9886
    %9888 = vrot.lane.b32.xlu0 %v7639, 16
    %v9889 = vpop.permute.xlu0 %9888
    %9890 = vrot.lane.b32.xlu0 %v7684, 16
    %v9891 = vpop.permute.xlu0 %9890
    %9892 = vrot.lane.b32.xlu0 %v7687, 16
    %v9893 = vpop.permute.xlu0 %9892
    %9894 = vrot.lane.b32.xlu0 %v7732, 16
    %v9895 = vpop.permute.xlu0 %9894
    %9896 = vrot.lane.b32.xlu0 %v7735, 16
    %v9897 = vpop.permute.xlu0 %9896
    %9898 = vrot.lane.b32.xlu0 %v7780, 16
    %v9899 = vpop.permute.xlu0 %9898
    %9900 = vrot.lane.b32.xlu0 %v7783, 16
    %v9901 = vpop.permute.xlu0 %9900
    %9902 = vrot.lane.b32.xlu0 %v7828, 16
    %v9903 = vpop.permute.xlu0 %9902
    %9904 = vrot.lane.b32.xlu0 %v7831, 16
    %v9905 = vpop.permute.xlu0 %9904
    %9906 = vrot.lane.b32.xlu0 %v7876, 16
    %v9907 = vpop.permute.xlu0 %9906
    %9908 = vrot.lane.b32.xlu0 %v7879, 16
    %v9909 = vpop.permute.xlu0 %9908
    %9910 = vrot.lane.b32.xlu0 %v7924, 16
    %v9911 = vpop.permute.xlu0 %9910
    %9912 = vrot.lane.b32.xlu0 %v7927, 16
    %v9913 = vpop.permute.xlu0 %9912
    %9946 = vrot.lane.b32.xlu0 %v8563, 32
    %v9947 = vpop.permute.xlu0 %9946
    %9948 = vrot.lane.b32.xlu0 %v8566, 32
    %v9949 = vpop.permute.xlu0 %9948
    %9950 = vrot.lane.b32.xlu0 %v8610, 32
    %v9951 = vpop.permute.xlu0 %9950
    %9952 = vrot.lane.b32.xlu0 %v8613, 32
    %v9953 = vpop.permute.xlu0 %9952
    %9954 = vrot.lane.b32.xlu0 %v8657, 32
    %v9955 = vpop.permute.xlu0 %9954
    %9956 = vrot.lane.b32.xlu0 %v8660, 32
    %v9957 = vpop.permute.xlu0 %9956
    %9958 = vrot.lane.b32.xlu0 %v8704, 32
    %v9959 = vpop.permute.xlu0 %9958
    %9960 = vrot.lane.b32.xlu0 %v8707, 32
    %v9961 = vpop.permute.xlu0 %9960
    %9962 = vrot.lane.b32.xlu0 %v8751, 32
    %v9963 = vpop.permute.xlu0 %9962
    %9964 = vrot.lane.b32.xlu0 %v8754, 32
    %v9965 = vpop.permute.xlu0 %9964
    %9966 = vrot.lane.b32.xlu0 %v8798, 32
    %v9967 = vpop.permute.xlu0 %9966
    %9968 = vrot.lane.b32.xlu0 %v8801, 32
    %v9969 = vpop.permute.xlu0 %9968
    %9970 = vrot.lane.b32.xlu0 %v8845, 32
    %v9971 = vpop.permute.xlu0 %9970
    %9972 = vrot.lane.b32.xlu0 %v8848, 32
    %v9973 = vpop.permute.xlu0 %9972
    %9974 = vrot.lane.b32.xlu0 %v8892, 32
    %v9975 = vpop.permute.xlu0 %9974
    %9976 = vrot.lane.b32.xlu0 %v8895, 32
    %v9977 = vpop.permute.xlu0 %9976
    %10010 = vrot.lane.b32.xlu0 %v9531, 48
    %v10011 = vpop.permute.xlu0 %10010
    %10012 = vrot.lane.b32.xlu0 %v9534, 48
    %v10013 = vpop.permute.xlu0 %10012
    %10014 = vrot.lane.b32.xlu0 %v9578, 48
    %v10015 = vpop.permute.xlu0 %10014
    %10016 = vrot.lane.b32.xlu0 %v9581, 48
    %v10017 = vpop.permute.xlu0 %10016
    %10018 = vrot.lane.b32.xlu0 %v9625, 48
    %v10019 = vpop.permute.xlu0 %10018
    %10020 = vrot.lane.b32.xlu0 %v9628, 48
    %v10021 = vpop.permute.xlu0 %10020
    %10022 = vrot.lane.b32.xlu0 %v9672, 48
    %v10023 = vpop.permute.xlu0 %10022
    %10024 = vrot.lane.b32.xlu0 %v9675, 48
    %v10025 = vpop.permute.xlu0 %10024
    %10026 = vrot.lane.b32.xlu0 %v9719, 48
    %v10027 = vpop.permute.xlu0 %10026
    %10028 = vrot.lane.b32.xlu0 %v9722, 48
    %v10029 = vpop.permute.xlu0 %10028
    %10030 = vrot.lane.b32.xlu0 %v9766, 48
    %v10031 = vpop.permute.xlu0 %10030
    %10032 = vrot.lane.b32.xlu0 %v9769, 48
    %v10033 = vpop.permute.xlu0 %10032
    %10034 = vrot.lane.b32.xlu0 %v9813, 48
    %v10035 = vpop.permute.xlu0 %10034
    %10036 = vrot.lane.b32.xlu0 %v9816, 48
    %v10037 = vpop.permute.xlu0 %10036
    %10038 = vrot.lane.b32.xlu0 %v9860, 48
    %v10039 = vpop.permute.xlu0 %10038
    %10040 = vrot.lane.b32.xlu0 %v9863, 48
    %v10041 = vpop.permute.xlu0 %10040
    %v10058 = vsel %vm632, %v6640, %v9883
    %v10059 = vsel %vm632, %v6643, %v9885
    %v10060 = vsel %vm632, %v6684, %v9887
    %v10061 = vsel %vm632, %v6687, %v9889
    %v10062 = vsel %vm632, %v6728, %v9891
    %v10063 = vsel %vm632, %v6731, %v9893
    %v10064 = vsel %vm632, %v6772, %v9895
    %v10065 = vsel %vm632, %v6775, %v9897
    %v10066 = vsel %vm632, %v6816, %v9899
    %v10067 = vsel %vm632, %v6819, %v9901
    %v10068 = vsel %vm632, %v6860, %v9903
    %v10069 = vsel %vm632, %v6863, %v9905
    %v10070 = vsel %vm632, %v6904, %v9907
    %v10071 = vsel %vm632, %v6907, %v9909
    %v10072 = vsel %vm632, %v6948, %v9911
    %v10073 = vsel %vm632, %v6951, %v9913
    %v10074 = vsel %vm4686, %v10058, %v9947
    %v10075 = vsel %vm4686, %v10059, %v9949
    %v10076 = vsel %vm4686, %v10060, %v9951
    %v10077 = vsel %vm4686, %v10061, %v9953
    %v10078 = vsel %vm4686, %v10062, %v9955
    %v10079 = vsel %vm4686, %v10063, %v9957
    %v10080 = vsel %vm4686, %v10064, %v9959
    %v10081 = vsel %vm4686, %v10065, %v9961
    %v10082 = vsel %vm4686, %v10066, %v9963
    %v10083 = vsel %vm4686, %v10067, %v9965
    %v10084 = vsel %vm4686, %v10068, %v9967
    %v10085 = vsel %vm4686, %v10069, %v9969
    %v10086 = vsel %vm4686, %v10070, %v9971
    %v10087 = vsel %vm4686, %v10071, %v9973
    %v10088 = vsel %vm4686, %v10072, %v9975
    %v10089 = vsel %vm4686, %v10073, %v9977
    %v10090 = vsel %vm4703, %v10074, %v10011
    %v10091 = vsel %vm4703, %v10075, %v10013
    %v10092 = vsel %vm4703, %v10076, %v10015
    %v10093 = vsel %vm4703, %v10077, %v10017
    %v10094 = vsel %vm4703, %v10078, %v10019
    %v10095 = vsel %vm4703, %v10079, %v10021
    %v10096 = vsel %vm4703, %v10080, %v10023
    %v10097 = vsel %vm4703, %v10081, %v10025
    %v10098 = vsel %vm4703, %v10082, %v10027
    %v10099 = vsel %vm4703, %v10083, %v10029
    %v10100 = vsel %vm4703, %v10084, %v10031
    %v10101 = vsel %vm4703, %v10085, %v10033
    %v10102 = vsel %vm4703, %v10086, %v10035
    %v10103 = vsel %vm4703, %v10087, %v10037
    %v10104 = vsel %vm4703, %v10088, %v10039
    %v10105 = vsel %vm4703, %v10089, %v10041
    %v10106 = vpack.c.bf16 %v10091, %v10090
    %v10107 = vpack.c.bf16 %v10093, %v10092
    %v10108 = vpack.c.bf16 %v10095, %v10094
    %v10109 = vpack.c.bf16 %v10097, %v10096
    %v10110 = vpack.c.bf16 %v10099, %v10098
    %v10111 = vpack.c.bf16 %v10101, %v10100
    %v10112 = vpack.c.bf16 %v10103, %v10102
    %v10113 = vpack.c.bf16 %v10105, %v10104
    %v10114 = vlaneseq
    %v10115 = vshrl.u32 %v10114, 7
    %v10116 = vsub.s32 0, %v10115
    %v10117 = vrot.slane %v5778, %v10116
    %v10126 = vunpack.c.l.b16 %v5751
    %v10127 = vunpack.c.l.b16 %v5752
    %v10128 = vunpack.c.l.b16 %v5753
    %v10129 = vunpack.c.l.b16 %v5754
    %v10130 = vunpack.c.l.b16 %v5755
    %v10131 = vunpack.c.l.b16 %v5756
    %v10132 = vunpack.c.l.b16 %v5757
    %v10133 = vunpack.c.l.b16 %v5758
    %v10134 = vpack.c.b16 %v10127, %v10126
    %v10135 = vpack.c.b16 %v10129, %v10128
    %v10136 = vpack.c.b16 %v10131, %v10130
    %v10137 = vpack.c.b16 %v10133, %v10132
    %v10143 = vsel %vm177, %v10106, 0
    %v10146 = vsel %vm177, %v10107, 0
    %v10149 = vsel %vm177, %v10108, 0
    %v10152 = vsel %vm177, %v10109, 0
    %v10155 = vsel %vm177, %v10110, 0
    %v10158 = vsel %vm177, %v10111, 0
    %v10161 = vsel %vm177, %v10112, 0
    %v10164 = vsel %vm177, %v10113, 0
    %10166 = vmatprep.subr.bf16.mxu0 0
    %10167 = vmatpush1.bf16.msra.mxu0 %v10134
    %10168 = vmatprep.subr.bf16.mxu0 0
    %10169 = vmatpush1.bf16.msra.mxu0 %v10135
    %10170 = vmatprep.subr.bf16.mxu0 0
    %10171 = vmatpush1.bf16.msra.mxu0 %v10136
    %10172 = vmatprep.subr.bf16.mxu0 0
    %10173 = vmatpush1.bf16.msra.mxu0 %v10137
    %10174 = vmatprep.subr.bf16.mxu0 0
    %10175 = vmatpush1.bf16.msra.mxu0 0
    %10176 = vmatprep.subr.bf16.mxu0 0
    %10177 = vmatpush1.bf16.msra.mxu0 0
    %10178 = vmatprep.subr.bf16.mxu0 0
    %10179 = vmatpush1.bf16.msra.mxu0 0
    %10180 = vmatprep.subr.bf16.mxu0 0
    %10181 = vmatpush1.bf16.msra.mxu0 0
    %10182 = vmatprep.subr.bf16.mxu0 0
    %10183 = vmatpush1.bf16.msra.mxu0 0
    %10184 = vmatprep.subr.bf16.mxu0 0
    %10185 = vmatpush1.bf16.msra.mxu0 0
    %10186 = vmatprep.subr.bf16.mxu0 0
    %10187 = vmatpush1.bf16.msra.mxu0 0
    %10188 = vmatprep.subr.bf16.mxu0 0
    %10189 = vmatpush1.bf16.msra.mxu0 0
    %10190 = vmatprep.subr.bf16.mxu0 0
    %10191 = vmatpush1.bf16.msra.mxu0 0
    %10192 = vmatprep.subr.bf16.mxu0 0
    %10193 = vmatpush1.bf16.msra.mxu0 0
    %10194 = vmatprep.subr.bf16.mxu0 0
    %10195 = vmatpush1.bf16.msra.mxu0 0
    %10196 = vmatprep.subr.bf16.mxu0 0
    %10197 = vmatpush1.bf16.msra.mxu0 0
    %10198 = vmatprep.mubr.bf16.mxu0 0
    %10199 = vmatmul.mubr.bf16.gmra.mrb[0].mxu0 %v10143
    %v10200 = vpop.f32.mrb[0].mxu0
    %v10201 = vadd.f32 %v10117, %v10200
    %v10202 = vpop.f32.mrb[0].mxu0
    %v10203 = vpop.f32.mrb[0].mxu0
    %v10204 = vadd.f32 %v10117, %v10203
    %v10205 = vpop.f32.mrb[0].mxu0
    %10206 = vmatprep.mubr.bf16.mxu0 0
    %10207 = vmatmul.mubr.bf16.gmra.mrb[0].mxu0 %v10146
    %v10208 = vpop.f32.mrb[0].mxu0
    %v10209 = vadd.f32 %v10117, %v10208
    %v10210 = vpop.f32.mrb[0].mxu0
    %v10211 = vpop.f32.mrb[0].mxu0
    %v10212 = vadd.f32 %v10117, %v10211
    %v10213 = vpop.f32.mrb[0].mxu0
    %10214 = vmatprep.mubr.bf16.mxu0 0
    %10215 = vmatmul.mubr.bf16.gmra.mrb[0].mxu0 %v10149
    %v10216 = vpop.f32.mrb[0].mxu0
    %v10217 = vadd.f32 %v10117, %v10216
    %v10218 = vpop.f32.mrb[0].mxu0
    %v10219 = vpop.f32.mrb[0].mxu0
    %v10220 = vadd.f32 %v10117, %v10219
    %v10221 = vpop.f32.mrb[0].mxu0
    %10222 = vmatprep.mubr.bf16.mxu0 0
    %10223 = vmatmul.mubr.bf16.gmra.mrb[0].mxu0 %v10152
    %v10224 = vpop.f32.mrb[0].mxu0
    %v10225 = vadd.f32 %v10117, %v10224
    %v10226 = vpop.f32.mrb[0].mxu0
    %v10227 = vpop.f32.mrb[0].mxu0
    %v10228 = vadd.f32 %v10117, %v10227
    %v10229 = vpop.f32.mrb[0].mxu0
    %10230 = vmatprep.mubr.bf16.mxu0 0
    %10231 = vmatmul.mubr.bf16.gmra.mrb[0].mxu0 %v10155
    %v10232 = vpop.f32.mrb[0].mxu0
    %v10233 = vadd.f32 %v10117, %v10232
    %v10234 = vpop.f32.mrb[0].mxu0
    %v10235 = vpop.f32.mrb[0].mxu0
    %v10236 = vadd.f32 %v10117, %v10235
    %v10237 = vpop.f32.mrb[0].mxu0
    %10238 = vmatprep.mubr.bf16.mxu0 0
    %10239 = vmatmul.mubr.bf16.gmra.mrb[0].mxu0 %v10158
    %v10240 = vpop.f32.mrb[0].mxu0
    %v10241 = vadd.f32 %v10117, %v10240
    %v10242 = vpop.f32.mrb[0].mxu0
    %v10243 = vpop.f32.mrb[0].mxu0
    %v10244 = vadd.f32 %v10117, %v10243
    %v10245 = vpop.f32.mrb[0].mxu0
    %10246 = vmatprep.mubr.bf16.mxu0 0
    %10247 = vmatmul.mubr.bf16.gmra.mrb[0].mxu0 %v10161
    %v10248 = vpop.f32.mrb[0].mxu0
    %v10249 = vadd.f32 %v10117, %v10248
    %v10250 = vpop.f32.mrb[0].mxu0
    %v10251 = vpop.f32.mrb[0].mxu0
    %v10252 = vadd.f32 %v10117, %v10251
    %v10253 = vpop.f32.mrb[0].mxu0
    %10254 = vmatprep.mubr.bf16.mxu0 0
    %10255 = vmatmul.mubr.bf16.gmra.mrb[0].mxu0 %v10164
    %v10256 = vpop.f32.mrb[0].mxu0
    %v10257 = vadd.f32 %v10117, %v10256
    %v10258 = vpop.f32.mrb[0].mxu0
    %v10259 = vpop.f32.mrb[0].mxu0
    %v10260 = vadd.f32 %v10117, %v10259
    %v10261 = vpop.f32.mrb[0].mxu0
    %10262 = vdwg.mxu0
    %v10263 = vadd.f32 %v5720, %v10201
    %v10264 = vadd.f32 %v5721, %v10204
    %v10265 = vadd.f32 %v5722, %v10209
    %v10266 = vadd.f32 %v5723, %v10212
    %v10267 = vadd.f32 %v5724, %v10217
    %v10268 = vadd.f32 %v5725, %v10220
    %v10269 = vadd.f32 %v5726, %v10225
    %v10270 = vadd.f32 %v5727, %v10228
    %v10271 = vadd.f32 %v5728, %v10233
    %v10272 = vadd.f32 %v5729, %v10236
    %v10273 = vadd.f32 %v5730, %v10241
    %v10274 = vadd.f32 %v5731, %v10244
    %v10275 = vadd.f32 %v5732, %v10249
    %v10276 = vadd.f32 %v5733, %v10252
    %v10277 = vadd.f32 %v5734, %v10257
    %v10278 = vadd.f32 %v5735, %v10260
    %v10279 = vsel %vm177, %v10263, 0.0
    %10280 = vadd.xlane.f32.xlu0 %v10279
    %v10281 = vpop.xlane.xlu0 %10280
    %v10282 = vsel %vm177, %v10264, 0.0
    %10283 = vadd.xlane.f32.xlu0 %v10282
    %v10284 = vpop.xlane.xlu0 %10283
    %v10285 = vsel %vm177, %v10265, 0.0
    %10286 = vadd.xlane.f32.xlu0 %v10285
    %v10287 = vpop.xlane.xlu0 %10286
    %v10288 = vsel %vm177, %v10266, 0.0
    %10289 = vadd.xlane.f32.xlu0 %v10288
    %v10290 = vpop.xlane.xlu0 %10289
    %v10291 = vsel %vm177, %v10267, 0.0
    %10292 = vadd.xlane.f32.xlu0 %v10291
    %v10293 = vpop.xlane.xlu0 %10292
    %v10294 = vsel %vm177, %v10268, 0.0
    %10295 = vadd.xlane.f32.xlu0 %v10294
    %v10296 = vpop.xlane.xlu0 %10295
    %v10297 = vsel %vm177, %v10269, 0.0
    %10298 = vadd.xlane.f32.xlu0 %v10297
    %v10299 = vpop.xlane.xlu0 %10298
    %v10300 = vsel %vm177, %v10270, 0.0
    %10301 = vadd.xlane.f32.xlu0 %v10300
    %v10302 = vpop.xlane.xlu0 %10301
    %v10303 = vsel %vm177, %v10271, 0.0
    %10304 = vadd.xlane.f32.xlu0 %v10303
    %v10305 = vpop.xlane.xlu0 %10304
    %v10306 = vsel %vm177, %v10272, 0.0
    %10307 = vadd.xlane.f32.xlu0 %v10306
    %v10308 = vpop.xlane.xlu0 %10307
    %v10309 = vsel %vm177, %v10273, 0.0
    %10310 = vadd.xlane.f32.xlu0 %v10309
    %v10311 = vpop.xlane.xlu0 %10310
    %v10312 = vsel %vm177, %v10274, 0.0
    %10313 = vadd.xlane.f32.xlu0 %v10312
    %v10314 = vpop.xlane.xlu0 %10313
    %v10315 = vsel %vm177, %v10275, 0.0
    %10316 = vadd.xlane.f32.xlu0 %v10315
    %v10317 = vpop.xlane.xlu0 %10316
    %v10318 = vsel %vm177, %v10276, 0.0
    %10319 = vadd.xlane.f32.xlu0 %v10318
    %v10320 = vpop.xlane.xlu0 %10319
    %v10321 = vsel %vm177, %v10277, 0.0
    %10322 = vadd.xlane.f32.xlu0 %v10321
    %v10323 = vpop.xlane.xlu0 %10322
    %v10324 = vsel %vm177, %v10278, 0.0
    %10325 = vadd.xlane.f32.xlu0 %v10324
    %v10326 = vpop.xlane.xlu0 %10325
    %v10327 = vmul.f32 %v10281, %v4941
    %v10328 = vmul.f32 %v10284, %v4941
    %v10329 = vmul.f32 %v10287, %v4941
    %v10330 = vmul.f32 %v10290, %v4941
    %v10331 = vmul.f32 %v10293, %v4941
    %v10332 = vmul.f32 %v10296, %v4941
    %v10333 = vmul.f32 %v10299, %v4941
    %v10334 = vmul.f32 %v10302, %v4941
    %v10335 = vmul.f32 %v10305, %v4941
    %v10336 = vmul.f32 %v10308, %v4941
    %v10337 = vmul.f32 %v10311, %v4941
    %v10338 = vmul.f32 %v10314, %v4941
    %v10339 = vmul.f32 %v10317, %v4941
    %v10340 = vmul.f32 %v10320, %v4941
    %v10341 = vmul.f32 %v10323, %v4941
    %v10342 = vmul.f32 %v10326, %v4941
    %v10343 = vsub.f32 %v10263, %v10327
    %v10344 = vsub.f32 %v10264, %v10328
    %v10345 = vsub.f32 %v10265, %v10329
    %v10346 = vsub.f32 %v10266, %v10330
    %v10347 = vsub.f32 %v10267, %v10331
    %v10348 = vsub.f32 %v10268, %v10332
    %v10349 = vsub.f32 %v10269, %v10333
    %v10350 = vsub.f32 %v10270, %v10334
    %v10351 = vsub.f32 %v10271, %v10335
    %v10352 = vsub.f32 %v10272, %v10336
    %v10353 = vsub.f32 %v10273, %v10337
    %v10354 = vsub.f32 %v10274, %v10338
    %v10355 = vsub.f32 %v10275, %v10339
    %v10356 = vsub.f32 %v10276, %v10340
    %v10357 = vsub.f32 %v10277, %v10341
    %v10358 = vsub.f32 %v10278, %v10342
    %v10359 = vmul.f32 %v10343, %v10343
    %v10360 = vmul.f32 %v10344, %v10344
    %v10361 = vmul.f32 %v10345, %v10345
    %v10362 = vmul.f32 %v10346, %v10346
    %v10363 = vmul.f32 %v10347, %v10347
    %v10364 = vmul.f32 %v10348, %v10348
    %v10365 = vmul.f32 %v10349, %v10349
    %v10366 = vmul.f32 %v10350, %v10350
    %v10367 = vmul.f32 %v10351, %v10351
    %v10368 = vmul.f32 %v10352, %v10352
    %v10369 = vmul.f32 %v10353, %v10353
    %v10370 = vmul.f32 %v10354, %v10354
    %v10371 = vmul.f32 %v10355, %v10355
    %v10372 = vmul.f32 %v10356, %v10356
    %v10373 = vmul.f32 %v10357, %v10357
    %v10374 = vmul.f32 %v10358, %v10358
    %v10375 = vsel %vm177, %v10359, 0.0
    %10376 = vadd.xlane.f32.xlu0 %v10375
    %v10377 = vpop.xlane.xlu0 %10376
    %v10378 = vsel %vm177, %v10360, 0.0
    %10379 = vadd.xlane.f32.xlu0 %v10378
    %v10380 = vpop.xlane.xlu0 %10379
    %v10381 = vsel %vm177, %v10361, 0.0
    %10382 = vadd.xlane.f32.xlu0 %v10381
    %v10383 = vpop.xlane.xlu0 %10382
    %v10384 = vsel %vm177, %v10362, 0.0
    %10385 = vadd.xlane.f32.xlu0 %v10384
    %v10386 = vpop.xlane.xlu0 %10385
    %v10387 = vsel %vm177, %v10363, 0.0
    %10388 = vadd.xlane.f32.xlu0 %v10387
    %v10389 = vpop.xlane.xlu0 %10388
    %v10390 = vsel %vm177, %v10364, 0.0
    %10391 = vadd.xlane.f32.xlu0 %v10390
    %v10392 = vpop.xlane.xlu0 %10391
    %v10393 = vsel %vm177, %v10365, 0.0
    %10394 = vadd.xlane.f32.xlu0 %v10393
    %v10395 = vpop.xlane.xlu0 %10394
    %v10396 = vsel %vm177, %v10366, 0.0
    %10397 = vadd.xlane.f32.xlu0 %v10396
    %v10398 = vpop.xlane.xlu0 %10397
    %v10399 = vsel %vm177, %v10367, 0.0
    %10400 = vadd.xlane.f32.xlu0 %v10399
    %v10401 = vpop.xlane.xlu0 %10400
    %v10402 = vsel %vm177, %v10368, 0.0
    %10403 = vadd.xlane.f32.xlu0 %v10402
    %v10404 = vpop.xlane.xlu0 %10403
    %v10405 = vsel %vm177, %v10369, 0.0
    %10406 = vadd.xlane.f32.xlu0 %v10405
    %v10407 = vpop.xlane.xlu0 %10406
    %v10408 = vsel %vm177, %v10370, 0.0
    %10409 = vadd.xlane.f32.xlu0 %v10408
    %v10410 = vpop.xlane.xlu0 %10409
    %v10411 = vsel %vm177, %v10371, 0.0
    %10412 = vadd.xlane.f32.xlu0 %v10411
    %v10413 = vpop.xlane.xlu0 %10412
    %v10414 = vsel %vm177, %v10372, 0.0
    %10415 = vadd.xlane.f32.xlu0 %v10414
    %v10416 = vpop.xlane.xlu0 %10415
    %v10417 = vsel %vm177, %v10373, 0.0
    %10418 = vadd.xlane.f32.xlu0 %v10417
    %v10419 = vpop.xlane.xlu0 %10418
    %v10420 = vsel %vm177, %v10374, 0.0
    %10421 = vadd.xlane.f32.xlu0 %v10420
    %v10422 = vpop.xlane.xlu0 %10421
    %v10423 = vmul.f32 %v10377, %v4941
    %v10424 = vmul.f32 %v10380, %v4941
    %v10425 = vmul.f32 %v10383, %v4941
    %v10426 = vmul.f32 %v10386, %v4941
    %v10427 = vmul.f32 %v10389, %v4941
    %v10428 = vmul.f32 %v10392, %v4941
    %v10429 = vmul.f32 %v10395, %v4941
    %v10430 = vmul.f32 %v10398, %v4941
    %v10431 = vmul.f32 %v10401, %v4941
    %v10432 = vmul.f32 %v10404, %v4941
    %v10433 = vmul.f32 %v10407, %v4941
    %v10434 = vmul.f32 %v10410, %v4941
    %v10435 = vmul.f32 %v10413, %v4941
    %v10436 = vmul.f32 %v10416, %v4941
    %v10437 = vmul.f32 %v10419, %v4941
    %v10438 = vmul.f32 %v10422, %v4941
    %v10439 = vadd.f32 %v10423, 1e-05
    %v10440 = vadd.f32 %v10424, 1e-05
    %v10441 = vadd.f32 %v10425, 1e-05
    %v10442 = vadd.f32 %v10426, 1e-05
    %v10443 = vadd.f32 %v10427, 1e-05
    %v10444 = vadd.f32 %v10428, 1e-05
    %v10445 = vadd.f32 %v10429, 1e-05
    %v10446 = vadd.f32 %v10430, 1e-05
    %v10447 = vadd.f32 %v10431, 1e-05
    %v10448 = vadd.f32 %v10432, 1e-05
    %v10449 = vadd.f32 %v10433, 1e-05
    %v10450 = vadd.f32 %v10434, 1e-05
    %v10451 = vadd.f32 %v10435, 1e-05
    %v10452 = vadd.f32 %v10436, 1e-05
    %v10453 = vadd.f32 %v10437, 1e-05
    %v10454 = vadd.f32 %v10438, 1e-05
    %v10455 = vrsqrt.pop %v10439
    %v10456 = vrsqrt.pop %v10440
    %v10457 = vrsqrt.pop %v10441
    %v10458 = vrsqrt.pop %v10442
    %v10459 = vrsqrt.pop %v10443
    %v10460 = vrsqrt.pop %v10444
    %v10461 = vrsqrt.pop %v10445
    %v10462 = vrsqrt.pop %v10446
    %v10463 = vrsqrt.pop %v10447
    %v10464 = vrsqrt.pop %v10448
    %v10465 = vrsqrt.pop %v10449
    %v10466 = vrsqrt.pop %v10450
    %v10467 = vrsqrt.pop %v10451
    %v10468 = vrsqrt.pop %v10452
    %v10469 = vrsqrt.pop %v10453
    %v10470 = vrsqrt.pop %v10454
    %v10471 = vmul.f32 %v10343, %v10455
    %v10472 = vmul.f32 %v10344, %v10456
    %v10473 = vmul.f32 %v10345, %v10457
    %v10474 = vmul.f32 %v10346, %v10458
    %v10475 = vmul.f32 %v10347, %v10459
    %v10476 = vmul.f32 %v10348, %v10460
    %v10477 = vmul.f32 %v10349, %v10461
    %v10478 = vmul.f32 %v10350, %v10462
    %v10479 = vmul.f32 %v10351, %v10463
    %v10480 = vmul.f32 %v10352, %v10464
    %v10481 = vmul.f32 %v10353, %v10465
    %v10482 = vmul.f32 %v10354, %v10466
    %v10483 = vmul.f32 %v10355, %v10467
    %v10484 = vmul.f32 %v10356, %v10468
    %v10485 = vmul.f32 %v10357, %v10469
    %v10486 = vmul.f32 %v10358, %v10470
    %v10487 = vlaneseq
    %v10488 = vshrl.u32 %v10487, 7
    %v10489 = vsub.s32 0, %v10488
    %v10490 = vrot.slane %v5781, %v10489
    %v10491 = vmul.f32 %v10471, %v10490
    %v10492 = vmul.f32 %v10472, %v10490
    %v10493 = vmul.f32 %v10473, %v10490
    %v10494 = vmul.f32 %v10474, %v10490
    %v10495 = vmul.f32 %v10475, %v10490
    %v10496 = vmul.f32 %v10476, %v10490
    %v10497 = vmul.f32 %v10477, %v10490
    %v10498 = vmul.f32 %v10478, %v10490
    %v10499 = vmul.f32 %v10479, %v10490
    %v10500 = vmul.f32 %v10480, %v10490
    %v10501 = vmul.f32 %v10481, %v10490
    %v10502 = vmul.f32 %v10482, %v10490
    %v10503 = vmul.f32 %v10483, %v10490
    %v10504 = vmul.f32 %v10484, %v10490
    %v10505 = vmul.f32 %v10485, %v10490
    %v10506 = vmul.f32 %v10486, %v10490
    %v10507 = vlaneseq
    %v10508 = vshrl.u32 %v10507, 7
    %v10509 = vsub.s32 0, %v10508
    %v10510 = vrot.slane %v5782, %v10509
    %v10511 = vadd.f32 %v10491, %v10510
    %v10512 = vadd.f32 %v10492, %v10510
    %v10513 = vadd.f32 %v10493, %v10510
    %v10514 = vadd.f32 %v10494, %v10510
    %v10515 = vadd.f32 %v10495, %v10510
    %v10516 = vadd.f32 %v10496, %v10510
    %v10517 = vadd.f32 %v10497, %v10510
    %v10518 = vadd.f32 %v10498, %v10510
    %v10519 = vadd.f32 %v10499, %v10510
    %v10520 = vadd.f32 %v10500, %v10510
    %v10521 = vadd.f32 %v10501, %v10510
    %v10522 = vadd.f32 %v10502, %v10510
    %v10523 = vadd.f32 %v10503, %v10510
    %v10524 = vadd.f32 %v10504, %v10510
    %v10525 = vadd.f32 %v10505, %v10510
    %v10526 = vadd.f32 %v10506, %v10510
    %v10527 = vpack.c.bf16 %v10512, %v10511
    %v10528 = vpack.c.bf16 %v10514, %v10513
    %v10529 = vpack.c.bf16 %v10516, %v10515
    %v10530 = vpack.c.bf16 %v10518, %v10517
    %v10531 = vpack.c.bf16 %v10520, %v10519
    %v10532 = vpack.c.bf16 %v10522, %v10521
    %v10533 = vpack.c.bf16 %v10524, %v10523
    %v10534 = vpack.c.bf16 %v10526, %v10525
    %v10535 = vlaneseq
    %v10536 = vshrl.u32 %v10535, 7
    %v10537 = vsub.s32 0, %v10536
    %v10538 = vrot.slane %v5779, %v10537
    %v10547 = vunpack.c.l.b16 %v5760
    %v10548 = vunpack.c.l.b16 %v5761
    %v10549 = vunpack.c.l.b16 %v5762
    %v10550 = vunpack.c.l.b16 %v5763
    %v10551 = vunpack.c.l.b16 %v5764
    %v10552 = vunpack.c.l.b16 %v5765
    %v10553 = vunpack.c.l.b16 %v5766
    %v10554 = vunpack.c.l.b16 %v5767
    %v10555 = vpack.c.b16 %v10548, %v10547
    %v10556 = vpack.c.b16 %v10550, %v10549
    %v10557 = vpack.c.b16 %v10552, %v10551
    %v10558 = vpack.c.b16 %v10554, %v10553
    %v10564 = vsel %vm177, %v10527, 0
    %v10567 = vsel %vm177, %v10528, 0
    %v10570 = vsel %vm177, %v10529, 0
    %v10573 = vsel %vm177, %v10530, 0
    %v10576 = vsel %vm177, %v10531, 0
    %v10579 = vsel %vm177, %v10532, 0
    %v10582 = vsel %vm177, %v10533, 0
    %v10585 = vsel %vm177, %v10534, 0
    %10587 = vmatprep.subr.bf16.mxu0 0
    %10588 = vmatpush1.bf16.msra.mxu0 %v10555
    %10589 = vmatprep.subr.bf16.mxu0 0
    %10590 = vmatpush1.bf16.msra.mxu0 %v10556
    %10591 = vmatprep.subr.bf16.mxu0 0
    %10592 = vmatpush1.bf16.msra.mxu0 %v10557
    %10593 = vmatprep.subr.bf16.mxu0 0
    %10594 = vmatpush1.bf16.msra.mxu0 %v10558
    %10595 = vmatprep.subr.bf16.mxu0 0
    %10596 = vmatpush1.bf16.msra.mxu0 0
    %10597 = vmatprep.subr.bf16.mxu0 0
    %10598 = vmatpush1.bf16.msra.mxu0 0
    %10599 = vmatprep.subr.bf16.mxu0 0
    %10600 = vmatpush1.bf16.msra.mxu0 0
    %10601 = vmatprep.subr.bf16.mxu0 0
    %10602 = vmatpush1.bf16.msra.mxu0 0
    %10603 = vmatprep.subr.bf16.mxu0 0
    %10604 = vmatpush1.bf16.msra.mxu0 0
    %10605 = vmatprep.subr.bf16.mxu0 0
    %10606 = vmatpush1.bf16.msra.mxu0 0
    %10607 = vmatprep.subr.bf16.mxu0 0
    %10608 = vmatpush1.bf16.msra.mxu0 0
    %10609 = vmatprep.subr.bf16.mxu0 0
    %10610 = vmatpush1.bf16.msra.mxu0 0
    %10611 = vmatprep.subr.bf16.mxu0 0
    %10612 = vmatpush1.bf16.msra.mxu0 0
    %10613 = vmatprep.subr.bf16.mxu0 0
    %10614 = vmatpush1.bf16.msra.mxu0 0
    %10615 = vmatprep.subr.bf16.mxu0 0
    %10616 = vmatpush1.bf16.msra.mxu0 0
    %10617 = vmatprep.subr.bf16.mxu0 0
    %10618 = vmatpush1.bf16.msra.mxu0 0
    %10619 = vmatprep.mubr.bf16.mxu0 0
    %10620 = vmatmul.mubr.bf16.gmra.mrb[0].mxu0 %v10564
    %v10621 = vpop.f32.mrb[0].mxu0
    %v10622 = vadd.f32 %v10538, %v10621
    %v10623 = vpop.f32.mrb[0].mxu0
    %v10624 = vpop.f32.mrb[0].mxu0
    %v10625 = vadd.f32 %v10538, %v10624
    %v10626 = vpop.f32.mrb[0].mxu0
    %10627 = vmatprep.mubr.bf16.mxu0 0
    %10628 = vmatmul.mubr.bf16.gmra.mrb[0].mxu0 %v10567
    %v10629 = vpop.f32.mrb[0].mxu0
    %v10630 = vadd.f32 %v10538, %v10629
    %v10631 = vpop.f32.mrb[0].mxu0
    %v10632 = vpop.f32.mrb[0].mxu0
    %v10633 = vadd.f32 %v10538, %v10632
    %v10634 = vpop.f32.mrb[0].mxu0
    %10635 = vmatprep.mubr.bf16.mxu0 0
    %10636 = vmatmul.mubr.bf16.gmra.mrb[0].mxu0 %v10570
    %v10637 = vpop.f32.mrb[0].mxu0
    %v10638 = vadd.f32 %v10538, %v10637
    %v10639 = vpop.f32.mrb[0].mxu0
    %v10640 = vpop.f32.mrb[0].mxu0
    %v10641 = vadd.f32 %v10538, %v10640
    %v10642 = vpop.f32.mrb[0].mxu0
    %10643 = vmatprep.mubr.bf16.mxu0 0
    %10644 = vmatmul.mubr.bf16.gmra.mrb[0].mxu0 %v10573
    %v10645 = vpop.f32.mrb[0].mxu0
    %v10646 = vadd.f32 %v10538, %v10645
    %v10647 = vpop.f32.mrb[0].mxu0
    %v10648 = vpop.f32.mrb[0].mxu0
    %v10649 = vadd.f32 %v10538, %v10648
    %v10650 = vpop.f32.mrb[0].mxu0
    %10651 = vmatprep.mubr.bf16.mxu0 0
    %10652 = vmatmul.mubr.bf16.gmra.mrb[0].mxu0 %v10576
    %v10653 = vpop.f32.mrb[0].mxu0
    %v10654 = vadd.f32 %v10538, %v10653
    %v10655 = vpop.f32.mrb[0].mxu0
    %v10656 = vpop.f32.mrb[0].mxu0
    %v10657 = vadd.f32 %v10538, %v10656
    %v10658 = vpop.f32.mrb[0].mxu0
    %10659 = vmatprep.mubr.bf16.mxu0 0
    %10660 = vmatmul.mubr.bf16.gmra.mrb[0].mxu0 %v10579
    %v10661 = vpop.f32.mrb[0].mxu0
    %v10662 = vadd.f32 %v10538, %v10661
    %v10663 = vpop.f32.mrb[0].mxu0
    %v10664 = vpop.f32.mrb[0].mxu0
    %v10665 = vadd.f32 %v10538, %v10664
    %v10666 = vpop.f32.mrb[0].mxu0
    %10667 = vmatprep.mubr.bf16.mxu0 0
    %10668 = vmatmul.mubr.bf16.gmra.mrb[0].mxu0 %v10582
    %v10669 = vpop.f32.mrb[0].mxu0
    %v10670 = vadd.f32 %v10538, %v10669
    %v10671 = vpop.f32.mrb[0].mxu0
    %v10672 = vpop.f32.mrb[0].mxu0
    %v10673 = vadd.f32 %v10538, %v10672
    %v10674 = vpop.f32.mrb[0].mxu0
    %10675 = vmatprep.mubr.bf16.mxu0 0
    %10676 = vmatmul.mubr.bf16.gmra.mrb[0].mxu0 %v10585
    %v10677 = vpop.f32.mrb[0].mxu0
    %v10678 = vadd.f32 %v10538, %v10677
    %v10679 = vpop.f32.mrb[0].mxu0
    %v10680 = vpop.f32.mrb[0].mxu0
    %v10681 = vadd.f32 %v10538, %v10680
    %v10682 = vpop.f32.mrb[0].mxu0
    %10683 = vdwg.mxu0
    %v10684 = vmax.f32 %v10622, 0.0
    %v10685 = vmax.f32 %v10625, 0.0
    %v10686 = vmax.f32 %v10630, 0.0
    %v10687 = vmax.f32 %v10633, 0.0
    %v10688 = vmax.f32 %v10638, 0.0
    %v10689 = vmax.f32 %v10641, 0.0
    %v10690 = vmax.f32 %v10646, 0.0
    %v10691 = vmax.f32 %v10649, 0.0
    %v10692 = vmax.f32 %v10654, 0.0
    %v10693 = vmax.f32 %v10657, 0.0
    %v10694 = vmax.f32 %v10662, 0.0
    %v10695 = vmax.f32 %v10665, 0.0
    %v10696 = vmax.f32 %v10670, 0.0
    %v10697 = vmax.f32 %v10673, 0.0
    %v10698 = vmax.f32 %v10678, 0.0
    %v10699 = vmax.f32 %v10681, 0.0
    %v10700 = vpack.c.bf16 %v10685, %v10684
    %v10701 = vpack.c.bf16 %v10687, %v10686
    %v10702 = vpack.c.bf16 %v10689, %v10688
    %v10703 = vpack.c.bf16 %v10691, %v10690
    %v10704 = vpack.c.bf16 %v10693, %v10692
    %v10705 = vpack.c.bf16 %v10695, %v10694
    %v10706 = vpack.c.bf16 %v10697, %v10696
    %v10707 = vpack.c.bf16 %v10699, %v10698
    %v10708 = vlaneseq
    %v10709 = vshrl.u32 %v10708, 7
    %v10710 = vsub.s32 0, %v10709
    %v10711 = vrot.slane %v5780, %v10710
    %v10720 = vunpack.c.l.b16 %v5769
    %v10721 = vunpack.c.l.b16 %v5770
    %v10722 = vunpack.c.l.b16 %v5771
    %v10723 = vunpack.c.l.b16 %v5772
    %v10724 = vunpack.c.l.b16 %v5773
    %v10725 = vunpack.c.l.b16 %v5774
    %v10726 = vunpack.c.l.b16 %v5775
    %v10727 = vunpack.c.l.b16 %v5776
    %v10728 = vpack.c.b16 %v10721, %v10720
    %v10729 = vpack.c.b16 %v10723, %v10722
    %v10730 = vpack.c.b16 %v10725, %v10724
    %v10731 = vpack.c.b16 %v10727, %v10726
    %v10737 = vsel %vm177, %v10700, 0
    %v10740 = vsel %vm177, %v10701, 0
    %v10743 = vsel %vm177, %v10702, 0
    %v10746 = vsel %vm177, %v10703, 0
    %v10749 = vsel %vm177, %v10704, 0
    %v10752 = vsel %vm177, %v10705, 0
    %v10755 = vsel %vm177, %v10706, 0
    %v10758 = vsel %vm177, %v10707, 0
    %10760 = vmatprep.subr.bf16.mxu0 0
    %10761 = vmatpush1.bf16.msra.mxu0 %v10728
    %10762 = vmatprep.subr.bf16.mxu0 0
    %10763 = vmatpush1.bf16.msra.mxu0 %v10729
    %10764 = vmatprep.subr.bf16.mxu0 0
    %10765 = vmatpush1.bf16.msra.mxu0 %v10730
    %10766 = vmatprep.subr.bf16.mxu0 0
    %10767 = vmatpush1.bf16.msra.mxu0 %v10731
    %10768 = vmatprep.subr.bf16.mxu0 0
    %10769 = vmatpush1.bf16.msra.mxu0 0
    %10770 = vmatprep.subr.bf16.mxu0 0
    %10771 = vmatpush1.bf16.msra.mxu0 0
    %10772 = vmatprep.subr.bf16.mxu0 0
    %10773 = vmatpush1.bf16.msra.mxu0 0
    %10774 = vmatprep.subr.bf16.mxu0 0
    %10775 = vmatpush1.bf16.msra.mxu0 0
    %10776 = vmatprep.subr.bf16.mxu0 0
    %10777 = vmatpush1.bf16.msra.mxu0 0
    %10778 = vmatprep.subr.bf16.mxu0 0
    %10779 = vmatpush1.bf16.msra.mxu0 0
    %10780 = vmatprep.subr.bf16.mxu0 0
    %10781 = vmatpush1.bf16.msra.mxu0 0
    %10782 = vmatprep.subr.bf16.mxu0 0
    %10783 = vmatpush1.bf16.msra.mxu0 0
    %10784 = vmatprep.subr.bf16.mxu0 0
    %10785 = vmatpush1.bf16.msra.mxu0 0
    %10786 = vmatprep.subr.bf16.mxu0 0
    %10787 = vmatpush1.bf16.msra.mxu0 0
    %10788 = vmatprep.subr.bf16.mxu0 0
    %10789 = vmatpush1.bf16.msra.mxu0 0
    %10790 = vmatprep.subr.bf16.mxu0 0
    %10791 = vmatpush1.bf16.msra.mxu0 0
    %10792 = vmatprep.mubr.bf16.mxu0 0
    %10793 = vmatmul.mubr.bf16.gmra.mrb[0].mxu0 %v10737
    %v10794 = vpop.f32.mrb[0].mxu0
    %v10795 = vadd.f32 %v10711, %v10794
    %v10796 = vpop.f32.mrb[0].mxu0
    %v10797 = vpop.f32.mrb[0].mxu0
    %v10798 = vadd.f32 %v10711, %v10797
    %v10799 = vpop.f32.mrb[0].mxu0
    %10800 = vmatprep.mubr.bf16.mxu0 0
    %10801 = vmatmul.mubr.bf16.gmra.mrb[0].mxu0 %v10740
    %v10802 = vpop.f32.mrb[0].mxu0
    %v10803 = vadd.f32 %v10711, %v10802
    %v10804 = vpop.f32.mrb[0].mxu0
    %v10805 = vpop.f32.mrb[0].mxu0
    %v10806 = vadd.f32 %v10711, %v10805
    %v10807 = vpop.f32.mrb[0].mxu0
    %10808 = vmatprep.mubr.bf16.mxu0 0
    %10809 = vmatmul.mubr.bf16.gmra.mrb[0].mxu0 %v10743
    %v10810 = vpop.f32.mrb[0].mxu0
    %v10811 = vadd.f32 %v10711, %v10810
    %v10812 = vpop.f32.mrb[0].mxu0
    %v10813 = vpop.f32.mrb[0].mxu0
    %v10814 = vadd.f32 %v10711, %v10813
    %v10815 = vpop.f32.mrb[0].mxu0
    %10816 = vmatprep.mubr.bf16.mxu0 0
    %10817 = vmatmul.mubr.bf16.gmra.mrb[0].mxu0 %v10746
    %v10818 = vpop.f32.mrb[0].mxu0
    %v10819 = vadd.f32 %v10711, %v10818
    %v10820 = vpop.f32.mrb[0].mxu0
    %v10821 = vpop.f32.mrb[0].mxu0
    %v10822 = vadd.f32 %v10711, %v10821
    %v10823 = vpop.f32.mrb[0].mxu0
    %10824 = vmatprep.mubr.bf16.mxu0 0
    %10825 = vmatmul.mubr.bf16.gmra.mrb[0].mxu0 %v10749
    %v10826 = vpop.f32.mrb[0].mxu0
    %v10827 = vadd.f32 %v10711, %v10826
    %v10828 = vpop.f32.mrb[0].mxu0
    %v10829 = vpop.f32.mrb[0].mxu0
    %v10830 = vadd.f32 %v10711, %v10829
    %v10831 = vpop.f32.mrb[0].mxu0
    %10832 = vmatprep.mubr.bf16.mxu0 0
    %10833 = vmatmul.mubr.bf16.gmra.mrb[0].mxu0 %v10752
    %v10834 = vpop.f32.mrb[0].mxu0
    %v10835 = vadd.f32 %v10711, %v10834
    %v10836 = vpop.f32.mrb[0].mxu0
    %v10837 = vpop.f32.mrb[0].mxu0
    %v10838 = vadd.f32 %v10711, %v10837
    %v10839 = vpop.f32.mrb[0].mxu0
    %10840 = vmatprep.mubr.bf16.mxu0 0
    %10841 = vmatmul.mubr.bf16.gmra.mrb[0].mxu0 %v10755
    %v10842 = vpop.f32.mrb[0].mxu0
    %v10843 = vadd.f32 %v10711, %v10842
    %v10844 = vpop.f32.mrb[0].mxu0
    %v10845 = vpop.f32.mrb[0].mxu0
    %v10846 = vadd.f32 %v10711, %v10845
    %v10847 = vpop.f32.mrb[0].mxu0
    %10848 = vmatprep.mubr.bf16.mxu0 0
    %10849 = vmatmul.mubr.bf16.gmra.mrb[0].mxu0 %v10758
    %v10850 = vpop.f32.mrb[0].mxu0
    %v10851 = vadd.f32 %v10711, %v10850
    %v10852 = vpop.f32.mrb[0].mxu0
    %v10853 = vpop.f32.mrb[0].mxu0
    %v10854 = vadd.f32 %v10711, %v10853
    %v10855 = vpop.f32.mrb[0].mxu0
    %10856 = vdwg.mxu0
    %v10857 = vadd.f32 %v10511, %v10795
    %v10858 = vadd.f32 %v10512, %v10798
    %v10859 = vadd.f32 %v10513, %v10803
    %v10860 = vadd.f32 %v10514, %v10806
    %v10861 = vadd.f32 %v10515, %v10811
    %v10862 = vadd.f32 %v10516, %v10814
    %v10863 = vadd.f32 %v10517, %v10819
    %v10864 = vadd.f32 %v10518, %v10822
    %v10865 = vadd.f32 %v10519, %v10827
    %v10866 = vadd.f32 %v10520, %v10830
    %v10867 = vadd.f32 %v10521, %v10835
    %v10868 = vadd.f32 %v10522, %v10838
    %v10869 = vadd.f32 %v10523, %v10843
    %v10870 = vadd.f32 %v10524, %v10846
    %v10871 = vadd.f32 %v10525, %v10851
    %v10872 = vadd.f32 %v10526, %v10854
    %v10873 = vsel %vm177, %v10857, 0.0
    %10874 = vadd.xlane.f32.xlu0 %v10873
    %v10875 = vpop.xlane.xlu0 %10874
    %v10876 = vsel %vm177, %v10858, 0.0
    %10877 = vadd.xlane.f32.xlu0 %v10876
    %v10878 = vpop.xlane.xlu0 %10877
    %v10879 = vsel %vm177, %v10859, 0.0
    %10880 = vadd.xlane.f32.xlu0 %v10879
    %v10881 = vpop.xlane.xlu0 %10880
    %v10882 = vsel %vm177, %v10860, 0.0
    %10883 = vadd.xlane.f32.xlu0 %v10882
    %v10884 = vpop.xlane.xlu0 %10883
    %v10885 = vsel %vm177, %v10861, 0.0
    %10886 = vadd.xlane.f32.xlu0 %v10885
    %v10887 = vpop.xlane.xlu0 %10886
    %v10888 = vsel %vm177, %v10862, 0.0
    %10889 = vadd.xlane.f32.xlu0 %v10888
    %v10890 = vpop.xlane.xlu0 %10889
    %v10891 = vsel %vm177, %v10863, 0.0
    %10892 = vadd.xlane.f32.xlu0 %v10891
    %v10893 = vpop.xlane.xlu0 %10892
    %v10894 = vsel %vm177, %v10864, 0.0
    %10895 = vadd.xlane.f32.xlu0 %v10894
    %v10896 = vpop.xlane.xlu0 %10895
    %v10897 = vsel %vm177, %v10865, 0.0
    %10898 = vadd.xlane.f32.xlu0 %v10897
    %v10899 = vpop.xlane.xlu0 %10898
    %v10900 = vsel %vm177, %v10866, 0.0
    %10901 = vadd.xlane.f32.xlu0 %v10900
    %v10902 = vpop.xlane.xlu0 %10901
    %v10903 = vsel %vm177, %v10867, 0.0
    %10904 = vadd.xlane.f32.xlu0 %v10903
    %v10905 = vpop.xlane.xlu0 %10904
    %v10906 = vsel %vm177, %v10868, 0.0
    %10907 = vadd.xlane.f32.xlu0 %v10906
    %v10908 = vpop.xlane.xlu0 %10907
    %v10909 = vsel %vm177, %v10869, 0.0
    %10910 = vadd.xlane.f32.xlu0 %v10909
    %v10911 = vpop.xlane.xlu0 %10910
    %v10912 = vsel %vm177, %v10870, 0.0
    %10913 = vadd.xlane.f32.xlu0 %v10912
    %v10914 = vpop.xlane.xlu0 %10913
    %v10915 = vsel %vm177, %v10871, 0.0
    %10916 = vadd.xlane.f32.xlu0 %v10915
    %v10917 = vpop.xlane.xlu0 %10916
    %v10918 = vsel %vm177, %v10872, 0.0
    %10919 = vadd.xlane.f32.xlu0 %v10918
    %v10920 = vpop.xlane.xlu0 %10919
    %v10921 = vmul.f32 %v10875, %v4941
    %v10922 = vmul.f32 %v10878, %v4941
    %v10923 = vmul.f32 %v10881, %v4941
    %v10924 = vmul.f32 %v10884, %v4941
    %v10925 = vmul.f32 %v10887, %v4941
    %v10926 = vmul.f32 %v10890, %v4941
    %v10927 = vmul.f32 %v10893, %v4941
    %v10928 = vmul.f32 %v10896, %v4941
    %v10929 = vmul.f32 %v10899, %v4941
    %v10930 = vmul.f32 %v10902, %v4941
    %v10931 = vmul.f32 %v10905, %v4941
    %v10932 = vmul.f32 %v10908, %v4941
    %v10933 = vmul.f32 %v10911, %v4941
    %v10934 = vmul.f32 %v10914, %v4941
    %v10935 = vmul.f32 %v10917, %v4941
    %v10936 = vmul.f32 %v10920, %v4941
    %v10937 = vsub.f32 %v10857, %v10921
    %v10938 = vsub.f32 %v10858, %v10922
    %v10939 = vsub.f32 %v10859, %v10923
    %v10940 = vsub.f32 %v10860, %v10924
    %v10941 = vsub.f32 %v10861, %v10925
    %v10942 = vsub.f32 %v10862, %v10926
    %v10943 = vsub.f32 %v10863, %v10927
    %v10944 = vsub.f32 %v10864, %v10928
    %v10945 = vsub.f32 %v10865, %v10929
    %v10946 = vsub.f32 %v10866, %v10930
    %v10947 = vsub.f32 %v10867, %v10931
    %v10948 = vsub.f32 %v10868, %v10932
    %v10949 = vsub.f32 %v10869, %v10933
    %v10950 = vsub.f32 %v10870, %v10934
    %v10951 = vsub.f32 %v10871, %v10935
    %v10952 = vsub.f32 %v10872, %v10936
    %v10953 = vmul.f32 %v10937, %v10937
    %v10954 = vmul.f32 %v10938, %v10938
    %v10955 = vmul.f32 %v10939, %v10939
    %v10956 = vmul.f32 %v10940, %v10940
    %v10957 = vmul.f32 %v10941, %v10941
    %v10958 = vmul.f32 %v10942, %v10942
    %v10959 = vmul.f32 %v10943, %v10943
    %v10960 = vmul.f32 %v10944, %v10944
    %v10961 = vmul.f32 %v10945, %v10945
    %v10962 = vmul.f32 %v10946, %v10946
    %v10963 = vmul.f32 %v10947, %v10947
    %v10964 = vmul.f32 %v10948, %v10948
    %v10965 = vmul.f32 %v10949, %v10949
    %v10966 = vmul.f32 %v10950, %v10950
    %v10967 = vmul.f32 %v10951, %v10951
    %v10968 = vmul.f32 %v10952, %v10952
    %v10969 = vsel %vm177, %v10953, 0.0
    %10970 = vadd.xlane.f32.xlu0 %v10969
    %v10971 = vpop.xlane.xlu0 %10970
    %v10972 = vsel %vm177, %v10954, 0.0
    %10973 = vadd.xlane.f32.xlu0 %v10972
    %v10974 = vpop.xlane.xlu0 %10973
    %v10975 = vsel %vm177, %v10955, 0.0
    %10976 = vadd.xlane.f32.xlu0 %v10975
    %v10977 = vpop.xlane.xlu0 %10976
    %v10978 = vsel %vm177, %v10956, 0.0
    %10979 = vadd.xlane.f32.xlu0 %v10978
    %v10980 = vpop.xlane.xlu0 %10979
    %v10981 = vsel %vm177, %v10957, 0.0
    %10982 = vadd.xlane.f32.xlu0 %v10981
    %v10983 = vpop.xlane.xlu0 %10982
    %v10984 = vsel %vm177, %v10958, 0.0
    %10985 = vadd.xlane.f32.xlu0 %v10984
    %v10986 = vpop.xlane.xlu0 %10985
    %v10987 = vsel %vm177, %v10959, 0.0
    %10988 = vadd.xlane.f32.xlu0 %v10987
    %v10989 = vpop.xlane.xlu0 %10988
    %v10990 = vsel %vm177, %v10960, 0.0
    %10991 = vadd.xlane.f32.xlu0 %v10990
    %v10992 = vpop.xlane.xlu0 %10991
    %v10993 = vsel %vm177, %v10961, 0.0
    %10994 = vadd.xlane.f32.xlu0 %v10993
    %v10995 = vpop.xlane.xlu0 %10994
    %v10996 = vsel %vm177, %v10962, 0.0
    %10997 = vadd.xlane.f32.xlu0 %v10996
    %v10998 = vpop.xlane.xlu0 %10997
    %v10999 = vsel %vm177, %v10963, 0.0
    %11000 = vadd.xlane.f32.xlu0 %v10999
    %v11001 = vpop.xlane.xlu0 %11000
    %v11002 = vsel %vm177, %v10964, 0.0
    %11003 = vadd.xlane.f32.xlu0 %v11002
    %v11004 = vpop.xlane.xlu0 %11003
    %v11005 = vsel %vm177, %v10965, 0.0
    %11006 = vadd.xlane.f32.xlu0 %v11005
    %v11007 = vpop.xlane.xlu0 %11006
    %v11008 = vsel %vm177, %v10966, 0.0
    %11009 = vadd.xlane.f32.xlu0 %v11008
    %v11010 = vpop.xlane.xlu0 %11009
    %v11011 = vsel %vm177, %v10967, 0.0
    %11012 = vadd.xlane.f32.xlu0 %v11011
    %v11013 = vpop.xlane.xlu0 %11012
    %v11014 = vsel %vm177, %v10968, 0.0
    %11015 = vadd.xlane.f32.xlu0 %v11014
    %v11016 = vpop.xlane.xlu0 %11015
    %v11017 = vmul.f32 %v10971, %v4941
    %v11018 = vmul.f32 %v10974, %v4941
    %v11019 = vmul.f32 %v10977, %v4941
    %v11020 = vmul.f32 %v10980, %v4941
    %v11021 = vmul.f32 %v10983, %v4941
    %v11022 = vmul.f32 %v10986, %v4941
    %v11023 = vmul.f32 %v10989, %v4941
    %v11024 = vmul.f32 %v10992, %v4941
    %v11025 = vmul.f32 %v10995, %v4941
    %v11026 = vmul.f32 %v10998, %v4941
    %v11027 = vmul.f32 %v11001, %v4941
    %v11028 = vmul.f32 %v11004, %v4941
    %v11029 = vmul.f32 %v11007, %v4941
    %v11030 = vmul.f32 %v11010, %v4941
    %v11031 = vmul.f32 %v11013, %v4941
    %v11032 = vmul.f32 %v11016, %v4941
    %v11033 = vadd.f32 %v11017, 1e-05
    %v11034 = vadd.f32 %v11018, 1e-05
    %v11035 = vadd.f32 %v11019, 1e-05
    %v11036 = vadd.f32 %v11020, 1e-05
    %v11037 = vadd.f32 %v11021, 1e-05
    %v11038 = vadd.f32 %v11022, 1e-05
    %v11039 = vadd.f32 %v11023, 1e-05
    %v11040 = vadd.f32 %v11024, 1e-05
    %v11041 = vadd.f32 %v11025, 1e-05
    %v11042 = vadd.f32 %v11026, 1e-05
    %v11043 = vadd.f32 %v11027, 1e-05
    %v11044 = vadd.f32 %v11028, 1e-05
    %v11045 = vadd.f32 %v11029, 1e-05
    %v11046 = vadd.f32 %v11030, 1e-05
    %v11047 = vadd.f32 %v11031, 1e-05
    %v11048 = vadd.f32 %v11032, 1e-05
    %v11049 = vrsqrt.pop %v11033
    %v11050 = vrsqrt.pop %v11034
    %v11051 = vrsqrt.pop %v11035
    %v11052 = vrsqrt.pop %v11036
    %v11053 = vrsqrt.pop %v11037
    %v11054 = vrsqrt.pop %v11038
    %v11055 = vrsqrt.pop %v11039
    %v11056 = vrsqrt.pop %v11040
    %v11057 = vrsqrt.pop %v11041
    %v11058 = vrsqrt.pop %v11042
    %v11059 = vrsqrt.pop %v11043
    %v11060 = vrsqrt.pop %v11044
    %v11061 = vrsqrt.pop %v11045
    %v11062 = vrsqrt.pop %v11046
    %v11063 = vrsqrt.pop %v11047
    %v11064 = vrsqrt.pop %v11048
    %v11065 = vmul.f32 %v10937, %v11049
    %v11066 = vmul.f32 %v10938, %v11050
    %v11067 = vmul.f32 %v10939, %v11051
    %v11068 = vmul.f32 %v10940, %v11052
    %v11069 = vmul.f32 %v10941, %v11053
    %v11070 = vmul.f32 %v10942, %v11054
    %v11071 = vmul.f32 %v10943, %v11055
    %v11072 = vmul.f32 %v10944, %v11056
    %v11073 = vmul.f32 %v10945, %v11057
    %v11074 = vmul.f32 %v10946, %v11058
    %v11075 = vmul.f32 %v10947, %v11059
    %v11076 = vmul.f32 %v10948, %v11060
    %v11077 = vmul.f32 %v10949, %v11061
    %v11078 = vmul.f32 %v10950, %v11062
    %v11079 = vmul.f32 %v10951, %v11063
    %v11080 = vmul.f32 %v10952, %v11064
    %v11081 = vlaneseq
    %v11082 = vshrl.u32 %v11081, 7
    %v11083 = vsub.s32 0, %v11082
    %v11084 = vrot.slane %v5783, %v11083
    %v11085 = vmul.f32 %v11065, %v11084
    %v11086 = vmul.f32 %v11066, %v11084
    %v11087 = vmul.f32 %v11067, %v11084
    %v11088 = vmul.f32 %v11068, %v11084
    %v11089 = vmul.f32 %v11069, %v11084
    %v11090 = vmul.f32 %v11070, %v11084
    %v11091 = vmul.f32 %v11071, %v11084
    %v11092 = vmul.f32 %v11072, %v11084
    %v11093 = vmul.f32 %v11073, %v11084
    %v11094 = vmul.f32 %v11074, %v11084
    %v11095 = vmul.f32 %v11075, %v11084
    %v11096 = vmul.f32 %v11076, %v11084
    %v11097 = vmul.f32 %v11077, %v11084
    %v11098 = vmul.f32 %v11078, %v11084
    %v11099 = vmul.f32 %v11079, %v11084
    %v11100 = vmul.f32 %v11080, %v11084
    %v11101 = vlaneseq
    %v11102 = vshrl.u32 %v11101, 7
    %v11103 = vsub.s32 0, %v11102
    %v11104 = vrot.slane %v5784, %v11103
    %v11105 = vadd.f32 %v11085, %v11104
    %v11106 = vadd.f32 %v11086, %v11104
    %v11107 = vadd.f32 %v11087, %v11104
    %v11108 = vadd.f32 %v11088, %v11104
    %v11109 = vadd.f32 %v11089, %v11104
    %v11110 = vadd.f32 %v11090, %v11104
    %v11111 = vadd.f32 %v11091, %v11104
    %v11112 = vadd.f32 %v11092, %v11104
    %v11113 = vadd.f32 %v11093, %v11104
    %v11114 = vadd.f32 %v11094, %v11104
    %v11115 = vadd.f32 %v11095, %v11104
    %v11116 = vadd.f32 %v11096, %v11104
    %v11117 = vadd.f32 %v11097, %v11104
    %v11118 = vadd.f32 %v11098, %v11104
    %v11119 = vadd.f32 %v11099, %v11104
    %v11120 = vadd.f32 %v11100, %v11104
    %v11129 = vrot.slane %v11107, 7
    %vm11130 = vcmask 1041409
    %v11131 = vsel %vm11130, %v11129, %v11105
    %v11132 = vrot.slane %v11109, 6
    %vm11133 = vcmask 1042434
    %v11134 = vsel %vm11133, %v11132, %v11131
    %v11135 = vrot.slane %v11111, 5
    %vm11136 = vcmask 1043459
    %v11137 = vsel %vm11136, %v11135, %v11134
    %v11138 = vrot.slane %v11113, 4
    %vm11139 = vcmask 1044484
    %v11140 = vsel %vm11139, %v11138, %v11137
    %v11141 = vrot.slane %v11115, 3
    %vm11142 = vcmask 1045509
    %v11143 = vsel %vm11142, %v11141, %v11140
    %v11144 = vrot.slane %v11117, 2
    %vm11145 = vcmask 1046534
    %v11146 = vsel %vm11145, %v11144, %v11143
    %v11147 = vrot.slane %v11119, 1
    %vm11148 = vcmask 1047559
    %v11149 = vsel %vm11148, %v11147, %v11146
    %11151 = vst.msk [vmem:[#allocation10] sm:$0xff] %vm177, %v11149
    %v11152 = vsel %vm11133, %v11129, %v11105
    %v11153 = vsel %vm11136, %v11132, %v11152
    %v11154 = vsel %vm11139, %v11135, %v11153
    %v11155 = vsel %vm11142, %v11138, %v11154
    %v11156 = vsel %vm11145, %v11141, %v11155
    %v11157 = vsel %vm11148, %v11144, %v11156
    %s11160 = scalar_lea.vmem [#allocation10], 8
    %vm11161 = vcmask 523265
    %11162 = vst.msk [vmem:[%s11160 - $0x1] sm:$0xfe] %vm11161, %v11157
    %vm11163 = vcmask 516096
    %11164 = vst.msk [vmem:[%s11160 + $0x7] sm:$0x1] %vm11163, %v11147
    %v11165 = vsel %vm11136, %v11129, %v11105
    %v11166 = vsel %vm11139, %v11132, %v11165
    %v11167 = vsel %vm11142, %v11135, %v11166
    %v11168 = vsel %vm11145, %v11138, %v11167
    %v11169 = vsel %vm11148, %v11141, %v11168
    %v11170 = vsel %vm11130, %v11147, %v11144
    %s11173 = scalar_lea.vmem [#allocation10], 16
    %vm11174 = vcmask 523266
    %11175 = vst.msk [vmem:[%s11173 - $0x2] sm:$0xfc] %vm11174, %v11169
    %vm11176 = vcmask 517120
    %11177 = vst.msk [vmem:[%s11173 + $0x6] sm:$0x3] %vm11176, %v11170
    %v11178 = vsel %vm11139, %v11129, %v11105
    %v11179 = vsel %vm11142, %v11132, %v11178
    %v11180 = vsel %vm11145, %v11135, %v11179
    %v11181 = vsel %vm11148, %v11138, %v11180
    %v11182 = vsel %vm11130, %v11144, %v11141
    %v11183 = vsel %vm11133, %v11147, %v11182
    %s11186 = scalar_lea.vmem [#allocation10], 24
    %vm11187 = vcmask 523267
    %11188 = vst.msk [vmem:[%s11186 - $0x3] sm:$0xf8] %vm11187, %v11181
    %vm11189 = vcmask 518144
    %11190 = vst.msk [vmem:[%s11186 + $0x5] sm:$0x7] %vm11189, %v11183
    %v11191 = vsel %vm11142, %v11129, %v11105
    %v11192 = vsel %vm11145, %v11132, %v11191
    %v11193 = vsel %vm11148, %v11135, %v11192
    %v11194 = vsel %vm11130, %v11141, %v11138
    %v11195 = vsel %vm11133, %v11144, %v11194
    %v11196 = vsel %vm11136, %v11147, %v11195
    %s11199 = scalar_lea.vmem [#allocation10], 32
    %vm11200 = vcmask 523268
    %11201 = vst.msk [vmem:[%s11199 - $0x4] sm:$0xf0] %vm11200, %v11193
    %vm11202 = vcmask 519168
    %11203 = vst.msk [vmem:[%s11199 + $0x4] sm:$0xf] %vm11202, %v11196
    %v11204 = vsel %vm11145, %v11129, %v11105
    %v11205 = vsel %vm11148, %v11132, %v11204
    %v11206 = vsel %vm11130, %v11138, %v11135
    %v11207 = vsel %vm11133, %v11141, %v11206
    %v11208 = vsel %vm11136, %v11144, %v11207
    %v11209 = vsel %vm11139, %v11147, %v11208
    %s11212 = scalar_lea.vmem [#allocation10], 40
    %vm11213 = vcmask 523269
    %11214 = vst.msk [vmem:[%s11212 - $0x5] sm:$0xe0] %vm11213, %v11205
    %vm11215 = vcmask 520192
    %11216 = vst.msk [vmem:[%s11212 + $0x3] sm:$0x1f] %vm11215, %v11209
    %v11217 = vsel %vm11148, %v11129, %v11105
    %v11218 = vsel %vm11130, %v11135, %v11132
    %v11219 = vsel %vm11133, %v11138, %v11218
    %v11220 = vsel %vm11136, %v11141, %v11219
    %v11221 = vsel %vm11139, %v11144, %v11220
    %v11222 = vsel %vm11142, %v11147, %v11221
    %s11225 = scalar_lea.vmem [#allocation10], 48
    %vm11226 = vcmask 523270
    %11227 = vst.msk [vmem:[%s11225 - $0x6] sm:$0xc0] %vm11226, %v11217
    %vm11228 = vcmask 521216
    %11229 = vst.msk [vmem:[%s11225 + $0x2] sm:$0x3f] %vm11228, %v11222
    %v11230 = vsel %vm11130, %v11132, %v11129
    %v11231 = vsel %vm11133, %v11135, %v11230
    %v11232 = vsel %vm11136, %v11138, %v11231
    %v11233 = vsel %vm11139, %v11141, %v11232
    %v11234 = vsel %vm11142, %v11144, %v11233
    %v11235 = vsel %vm11145, %v11147, %v11234
    %s11238 = scalar_lea.vmem [#allocation10], 56
    %vm11239 = vcmask 523271
    %11240 = vst.msk [vmem:[%s11238 - $0x7] sm:$0x80] %vm11239, %v11105
    %vm11241 = vcmask 522240
    %11242 = vst.msk [vmem:[%s11238 + $0x1] sm:$0x7f] %vm11241, %v11235
    %v11251 = vrot.slane %v11108, 7
    %v11252 = vsel %vm11130, %v11251, %v11106
    %v11253 = vrot.slane %v11110, 6
    %v11254 = vsel %vm11133, %v11253, %v11252
    %v11255 = vrot.slane %v11112, 5
    %v11256 = vsel %vm11136, %v11255, %v11254
    %v11257 = vrot.slane %v11114, 4
    %v11258 = vsel %vm11139, %v11257, %v11256
    %v11259 = vrot.slane %v11116, 3
    %v11260 = vsel %vm11142, %v11259, %v11258
    %v11261 = vrot.slane %v11118, 2
    %v11262 = vsel %vm11145, %v11261, %v11260
    %v11263 = vrot.slane %v11120, 1
    %v11264 = vsel %vm11148, %v11263, %v11262
    %s11266 = scalar_lea.vmem [#allocation10], 64
    %11267 = vst.msk [vmem:[%s11266] sm:$0xff] %vm177, %v11264
    %v11268 = vsel %vm11133, %v11251, %v11106
    %v11269 = vsel %vm11136, %v11253, %v11268
    %v11270 = vsel %vm11139, %v11255, %v11269
    %v11271 = vsel %vm11142, %v11257, %v11270
    %v11272 = vsel %vm11145, %v11259, %v11271
    %v11273 = vsel %vm11148, %v11261, %v11272
    %s11276 = scalar_lea.vmem [#allocation10], 72
    %11277 = vst.msk [vmem:[%s11276 - $0x1] sm:$0xfe] %vm11161, %v11273
    %11278 = vst.msk [vmem:[%s11276 + $0x7] sm:$0x1] %vm11163, %v11263
    %v11279 = vsel %vm11136, %v11251, %v11106
    %v11280 = vsel %vm11139, %v11253, %v11279
    %v11281 = vsel %vm11142, %v11255, %v11280
    %v11282 = vsel %vm11145, %v11257, %v11281
    %v11283 = vsel %vm11148, %v11259, %v11282
    %v11284 = vsel %vm11130, %v11263, %v11261
    %s11287 = scalar_lea.vmem [#allocation10], 80
    %11288 = vst.msk [vmem:[%s11287 - $0x2] sm:$0xfc] %vm11174, %v11283
    %11289 = vst.msk [vmem:[%s11287 + $0x6] sm:$0x3] %vm11176, %v11284
    %v11290 = vsel %vm11139, %v11251, %v11106
    %v11291 = vsel %vm11142, %v11253, %v11290
    %v11292 = vsel %vm11145, %v11255, %v11291
    %v11293 = vsel %vm11148, %v11257, %v11292
    %v11294 = vsel %vm11130, %v11261, %v11259
    %v11295 = vsel %vm11133, %v11263, %v11294
    %s11298 = scalar_lea.vmem [#allocation10], 88
    %11299 = vst.msk [vmem:[%s11298 - $0x3] sm:$0xf8] %vm11187, %v11293
    %11300 = vst.msk [vmem:[%s11298 + $0x5] sm:$0x7] %vm11189, %v11295
    %v11301 = vsel %vm11142, %v11251, %v11106
    %v11302 = vsel %vm11145, %v11253, %v11301
    %v11303 = vsel %vm11148, %v11255, %v11302
    %v11304 = vsel %vm11130, %v11259, %v11257
    %v11305 = vsel %vm11133, %v11261, %v11304
    %v11306 = vsel %vm11136, %v11263, %v11305
    %s11309 = scalar_lea.vmem [#allocation10], 96
    %11310 = vst.msk [vmem:[%s11309 - $0x4] sm:$0xf0] %vm11200, %v11303
    %11311 = vst.msk [vmem:[%s11309 + $0x4] sm:$0xf] %vm11202, %v11306
    %v11312 = vsel %vm11145, %v11251, %v11106
    %v11313 = vsel %vm11148, %v11253, %v11312
    %v11314 = vsel %vm11130, %v11257, %v11255
    %v11315 = vsel %vm11133, %v11259, %v11314
    %v11316 = vsel %vm11136, %v11261, %v11315
    %v11317 = vsel %vm11139, %v11263, %v11316
    %s11320 = scalar_lea.vmem [#allocation10], 104
    %11321 = vst.msk [vmem:[%s11320 - $0x5] sm:$0xe0] %vm11213, %v11313
    %11322 = vst.msk [vmem:[%s11320 + $0x3] sm:$0x1f] %vm11215, %v11317
    %v11323 = vsel %vm11148, %v11251, %v11106
    %v11324 = vsel %vm11130, %v11255, %v11253
    %v11325 = vsel %vm11133, %v11257, %v11324
    %v11326 = vsel %vm11136, %v11259, %v11325
    %v11327 = vsel %vm11139, %v11261, %v11326
    %v11328 = vsel %vm11142, %v11263, %v11327
    %s11331 = scalar_lea.vmem [#allocation10], 112
    %11332 = vst.msk [vmem:[%s11331 - $0x6] sm:$0xc0] %vm11226, %v11323
    %11333 = vst.msk [vmem:[%s11331 + $0x2] sm:$0x3f] %vm11228, %v11328
    %v11334 = vsel %vm11130, %v11253, %v11251
    %v11335 = vsel %vm11133, %v11255, %v11334
    %v11336 = vsel %vm11136, %v11257, %v11335
    %v11337 = vsel %vm11139, %v11259, %v11336
    %v11338 = vsel %vm11142, %v11261, %v11337
    %v11339 = vsel %vm11145, %v11263, %v11338
    %s11342 = scalar_lea.vmem [#allocation10], 120
    %11343 = vst.msk [vmem:[%s11342 - $0x7] sm:$0x80] %vm11239, %v11106
    %11344 = vst.msk [vmem:[%s11342 + $0x1] sm:$0x7f] %vm11241, %v11339
    // Predicated region
    $region46: #{tpu_custom_call.1} parent=1 // pred_check
      _
    $region47: #{tpu_custom_call.1} parent=1 // pred_check_branch
      %11346 = sbr.rel (0) target = $region49
    $region48: #{tpu_custom_call.1} parent=1 // pred_region
      %s11348 = ssub.s32 2048, 2048
      %11349 = vsyncadd [#allocation4], %s11348
      %s11350 = sshll.u32 [#allocation10], 4
      %s11351 = int_to_ptr.vmem [resolvable:$true] %s11350
      %11356 = dma.vmem_to_hbm [thread:$0]  %s11351, 2048, %s7, [#allocation4], 128, 128, 8
    $region49: #{tpu_custom_call.1} parent=1 // pred_fallthru
      _
    // Predicated region
    $region50: #{tpu_custom_call.1} parent=1 // pred_check
      _
    $region51: #{tpu_custom_call.1} parent=1 // pred_check_branch
      %11358 = sbr.rel (0) target = $region53
    $region52: #{tpu_custom_call.1} parent=1 // pred_region
      %11359 = dma.done [#allocation4], 2048
    $region53: #{tpu_custom_call.1} parent=1 // pred_fallthru
      _
    %11360 = vsyncpa [#allocation3], 1
    %11361 = vsyncpa [#allocation6], 1
    %11362 = vsyncpa [#allocation9], 1
    %11363 = vsyncpa [#allocation4], 1

</llo_original>
